<compile_context>
chip_gen: v7x
topology: tpu7x:2x2x1
jax: 0.10.0
libtpu: 0.0.40
codegen_flags: <defaults>
</compile_context>

<pallas_src>
import jax
import jax.numpy as jnp
from jax.experimental import pallas as pl
from jax.experimental.pallas import tpu as pltpu

# ----------------------------- config (small) --------------------------------
NUM_LAYERS = 2
NUM_HEADS = 4
D_MODEL = 128
D_FF = 256
BATCH = 2
SEQ = 16
D_HEAD = D_MODEL // NUM_HEADS
BS = BATCH * SEQ                  # rows for projection / FFN matmuls  (32)
BHS = NUM_HEADS * BATCH * SEQ     # rows for head-major attention matmuls (128)
LN_EPS = 1e-5
NEG_INF = -1e9


# ------------------------------ Pallas kernel --------------------------------
def _layer_norm(y, g, b):
    mu = jnp.mean(y, axis=-1, keepdims=True)
    var = jnp.mean((y - mu) ** 2, axis=-1, keepdims=True)
    return (y - mu) * jax.lax.rsqrt(var + LN_EPS) * g + b


def _to_heads(a):
    # (B*S, D) -> (H*B*S, Dh): one reshape + minor-dim-preserving transpose.
    # Row order is (h, b, s); the attention bias is built with the same order.
    return (a.reshape(BS, NUM_HEADS, D_HEAD)
             .transpose(1, 0, 2)
             .reshape(BHS, D_HEAD))


def _from_heads(a):
    # (H*B*S, Dh) -> (B*S, D) with columns ordered (h, dh), matching the
    # reference's concat-over-heads layout.
    return (a.reshape(NUM_HEADS, BS, D_HEAD)
             .transpose(1, 0, 2)
             .reshape(BS, D_MODEL))


def encoder_kernel(
    x_ref, bias_ref,
    wqkv_ref, bqkv_ref, wo_ref, bo_ref,
    w1_ref, b1_ref, w2_ref, b2_ref,
    g1_ref, be1_ref, g2_ref, be2_ref,
    o_ref,
):
    x = x_ref[...]          # (B*S, D) f32
    bias = bias_ref[...]    # (BHS, BHS) f32: 0 inside each (h,b) block when the
                            # key is valid, -1e9 elsewhere. Layer-invariant.

    for l in range(NUM_LAYERS):   # static unroll over fused layers
        # ---- fused, pre-scaled QKV projection: one (32,128)x(128,384) matmul ----
        qkv = jnp.dot(x, wqkv_ref[l], preferred_element_type=jnp.float32) + bqkv_ref[l]
        q = qkv[:, 0 * D_MODEL:1 * D_MODEL]
        k = qkv[:, 1 * D_MODEL:2 * D_MODEL]
        v = qkv[:, 2 * D_MODEL:3 * D_MODEL]

        qh = _to_heads(q)   # (128, 32)
        kh = _to_heads(k)
        vh = _to_heads(v)

        # ---- lane-dense attention: (128,128) scores, softmax over 128 lanes ----
        # 1/sqrt(D_HEAD) is already folded into the Q columns of wqkv/bqkv.
        scores = jnp.einsum("qd,kd->qk", qh, kh,
                            preferred_element_type=jnp.float32) + bias
        m = jnp.max(scores, axis=-1, keepdims=True)
        e = jnp.exp(scores - m)
        p = e / jnp.sum(e, axis=-1, keepdims=True)                 # exact softmax
        ctx = jnp.dot(p, vh, preferred_element_type=jnp.float32)   # (128, 32)
        ctx = _from_heads(ctx)                                     # (32, 128)

        attn = jnp.dot(ctx, wo_ref[l], preferred_element_type=jnp.float32) + bo_ref[l]
        # TODO(synk): attention-weight / FFN dropout omitted (eval-mode identity).

        # ---- residual + LayerNorm 1 ----
        x1 = _layer_norm(attn + x, g1_ref[l], be1_ref[l])

        # ---- feed-forward (Linear -> ReLU -> Linear) ----
        h = jnp.dot(x1, w1_ref[l], preferred_element_type=jnp.float32) + b1_ref[l]
        h = jnp.maximum(h, 0.0)
        h = jnp.dot(h, w2_ref[l], preferred_element_type=jnp.float32) + b2_ref[l]

        # ---- residual + LayerNorm 2 ----
        x = _layer_norm(h + x1, g2_ref[l], be2_ref[l])

    o_ref[...] = x


# ------------------------------ host-side wrapper -----------------------------
def _full_spec(shape):
    nd = len(shape)
    return pl.BlockSpec(shape, lambda i, _nd=nd: (0,) * _nd)


def _attention_bias(mask):
    """mask: (B, 1, S) int (1 keep / 0 pad) -> (BHS, BHS) additive bias (0 / -1e9)
    in the head-major row order idx = h*B*S + b*S + s used by _to_heads."""
    idx = jnp.arange(BHS)
    grp = idx // SEQ                        # (h*B + b) group id per row/col
    same = grp[:, None] == grp[None, :]     # block-diagonal over (h, b) groups
    b_of = (idx // SEQ) % BATCH
    s_of = idx % SEQ
    keyvalid = mask[b_of, 0, s_of] > 0      # key-padding per column
    return jnp.where(same & keyvalid[None, :], 0.0, NEG_INF).astype(jnp.float32)


def encoder_forward(x, mask, stacked):
    """x: (B, S, D) f32; mask: (B, 1, S) int32 (1 keep / 0 mask); stacked params."""
    B, S, D = x.shape
    x2d = x.reshape(B * S, D)               # fold batch into the sublane/M axis
    bias = _attention_bias(mask)            # (BHS, BHS), layer-invariant

    weight_args = (
        stacked["wqkv"], stacked["bqkv"], stacked["wo"], stacked["bo"],
        stacked["w1"], stacked["b1"], stacked["w2"], stacked["b2"],
        stacked["g1"], stacked["be1"], stacked["g2"], stacked["be2"],
    )
    in_specs = [_full_spec(x2d.shape), _full_spec(bias.shape)] + \
               [_full_spec(w.shape) for w in weight_args]

    out2d = pl.pallas_call(
        encoder_kernel,
        out_shape=jax.ShapeDtypeStruct((B * S, D), jnp.float32),
        grid_spec=pltpu.PrefetchScalarGridSpec(
            num_scalar_prefetch=0,
            grid=(1,),                       # single step: everything VMEM-resident
            in_specs=in_specs,
            out_specs=_full_spec((B * S, D)),
        ),
        compiler_params=pltpu.CompilerParams(
            dimension_semantics=("arbitrary",)),
    )(x2d, bias, *weight_args)
    return out2d.reshape(B, S, D)


encoder_forward = jax.jit(encoder_forward)


# --------------------------- deterministic params ----------------------------
def init_layer_params(key):
    ks = jax.random.split(key, 6)
    w = lambda k, shape: (0.02 * jax.random.normal(k, shape)).astype(jnp.float32)
    return {
        "wq": w(ks[0], (D_MODEL, D_MODEL)), "bq": jnp.zeros((1, D_MODEL), jnp.float32),
        "wk": w(ks[1], (D_MODEL, D_MODEL)), "bk": jnp.zeros((1, D_MODEL), jnp.float32),
        "wv": w(ks[2], (D_MODEL, D_MODEL)), "bv": jnp.zeros((1, D_MODEL), jnp.float32),
        "wo": w(ks[3], (D_MODEL, D_MODEL)), "bo": jnp.zeros((1, D_MODEL), jnp.float32),
        "w1": w(ks[4], (D_MODEL, D_FF)),    "b1": jnp.zeros((1, D_FF), jnp.float32),
        "w2": w(ks[5], (D_FF, D_MODEL)),    "b2": jnp.zeros((1, D_MODEL), jnp.float32),
        "g1": jnp.ones((1, D_MODEL), jnp.float32), "be1": jnp.zeros((1, D_MODEL), jnp.float32),
        "g2": jnp.ones((1, D_MODEL), jnp.float32), "be2": jnp.zeros((1, D_MODEL), jnp.float32),
    }


def stack_params(all_params):
    """Stack per-layer params on a leading layer axis; fuse wq|wk|wv -> w_qkv and
    fold the 1/sqrt(D_HEAD) attention scale into the Q columns (init-time, free)."""
    scale = 1.0 / (D_HEAD ** 0.5)

    def stack(f):
        return jnp.stack([f(p) for p in all_params], axis=0)

    return {
        "wqkv": stack(lambda p: jnp.concatenate(
            [p["wq"] * scale, p["wk"], p["wv"]], axis=1)),
        "bqkv": stack(lambda p: jnp.concatenate(
            [p["bq"] * scale, p["bk"], p["bv"]], axis=1)),
        "wo": stack(lambda p: p["wo"]), "bo": stack(lambda p: p["bo"]),
        "w1": stack(lambda p: p["w1"]), "b1": stack(lambda p: p["b1"]),
        "w2": stack(lambda p: p["w2"]), "b2": stack(lambda p: p["b2"]),
        "g1": stack(lambda p: p["g1"]), "be1": stack(lambda p: p["be1"]),
        "g2": stack(lambda p: p["g2"]), "be2": stack(lambda p: p["be2"]),
    }


# ----------------------------- pure-JAX reference ----------------------------
def ref_layer(x, mask, p):
    def ln(y, g, b):
        mu = jnp.mean(y, axis=-1, keepdims=True)
        var = jnp.mean((y - mu) ** 2, axis=-1, keepdims=True)
        return (y - mu) * jax.lax.rsqrt(var + LN_EPS) * g + b

    B, S, D = x.shape
    q = x @ p["wq"] + p["bq"]
    k = x @ p["wk"] + p["bk"]
    v = x @ p["wv"] + p["bv"]
    q = q.reshape(B, S, NUM_HEADS, D_HEAD).transpose(0, 2, 1, 3)
    k = k.reshape(B, S, NUM_HEADS, D_HEAD).transpose(0, 2, 1, 3)
    v = v.reshape(B, S, NUM_HEADS, D_HEAD).transpose(0, 2, 1, 3)
    s = jnp.einsum("bhqd,bhkd->bhqk", q, k) / (D_HEAD ** 0.5)
    s = jnp.where(mask[:, None, :, :] > 0, s, NEG_INF)
    a = jax.nn.softmax(s, axis=-1)
    o = jnp.einsum("bhqk,bhkd->bhqd", a, v)
    o = o.transpose(0, 2, 1, 3).reshape(B, S, D)
    o = o @ p["wo"] + p["bo"]
    x1 = ln(o + x, p["g1"], p["be1"])
    h = jnp.maximum(x1 @ p["w1"] + p["b1"], 0.0)
    h = h @ p["w2"] + p["b2"]
    return ln(h + x1, p["g2"], p["be2"])


def ref_encoder(x, mask, all_params):
    for p in all_params:
        x = ref_layer(x, mask, p)
    return x


# ---------------------------------- main --------------------------------------
if __name__ == "__main__":
    key = jax.random.PRNGKey(0)
    kx, *kls = jax.random.split(key, 1 + NUM_LAYERS)

    x = jax.random.normal(kx, (BATCH, SEQ, D_MODEL), dtype=jnp.float32)
    # key-padding mask (1 keep / 0 mask): batch 0 all-keep, batch 1 pads the tail.
    mask = jnp.ones((BATCH, 1, SEQ), dtype=jnp.int32)
    mask = mask.at[1, 0, SEQ - 4:].set(0)

    all_params = [init_layer_params(k) for k in kls]
    stacked = stack_params(all_params)

    out = jax.block_until_ready(encoder_forward(x, mask, stacked))
    ref = jax.block_until_ready(ref_encoder(x, mask, all_params))

    assert out.shape == (BATCH, SEQ, D_MODEL)
    max_err = float(jnp.max(jnp.abs(out - ref)))
    # Exact softmax -> residual drift is only f32-matmul rounding differences.
    assert jnp.allclose(out, ref, atol=1e-2, rtol=1e-2), max_err

    print("KERNEL_OK")
</pallas_src>

<mosaic_0001>
module attributes {stable_mosaic.version = 11 : i64} {
  func.func @encoder_kernel(%arg0: i32, %arg1: memref<32x128xf32, #tpu.memory_space<vmem>>, %arg2: memref<128x128xf32, #tpu.memory_space<vmem>>, %arg3: memref<2x128x384xf32, #tpu.memory_space<vmem>>, %arg4: memref<2x1x384xf32, #tpu.memory_space<vmem>>, %arg5: memref<2x128x128xf32, #tpu.memory_space<vmem>>, %arg6: memref<2x1x128xf32, #tpu.memory_space<vmem>>, %arg7: memref<2x128x256xf32, #tpu.memory_space<vmem>>, %arg8: memref<2x1x256xf32, #tpu.memory_space<vmem>>, %arg9: memref<2x256x128xf32, #tpu.memory_space<vmem>>, %arg10: memref<2x1x128xf32, #tpu.memory_space<vmem>>, %arg11: memref<2x1x128xf32, #tpu.memory_space<vmem>>, %arg12: memref<2x1x128xf32, #tpu.memory_space<vmem>>, %arg13: memref<2x1x128xf32, #tpu.memory_space<vmem>>, %arg14: memref<2x1x128xf32, #tpu.memory_space<vmem>>, %arg15: memref<32x128xf32, #tpu.memory_space<vmem>>) attributes {dimension_semantics = [#tpu.dimension_semantics<arbitrary>], iteration_bounds = array<i64: 1>, scalar_prefetch = 0 : i64, scratch_operands = 0 : i64, tpu.core_type = #tpu.core_type<tc>, window_params = [{pipeline_mode = #tpu.pipeline_mode<synchronous>, transform_indices = @transform_0, window_bounds = array<i64: 32, 128>}, {pipeline_mode = #tpu.pipeline_mode<synchronous>, transform_indices = @transform_1, window_bounds = array<i64: 128, 128>}, {pipeline_mode = #tpu.pipeline_mode<synchronous>, transform_indices = @transform_2, window_bounds = array<i64: 2, 128, 384>}, {pipeline_mode = #tpu.pipeline_mode<synchronous>, transform_indices = @transform_3, window_bounds = array<i64: 2, 1, 384>}, {pipeline_mode = #tpu.pipeline_mode<synchronous>, transform_indices = @transform_4, window_bounds = array<i64: 2, 128, 128>}, {pipeline_mode = #tpu.pipeline_mode<synchronous>, transform_indices = @transform_5, window_bounds = array<i64: 2, 1, 128>}, {pipeline_mode = #tpu.pipeline_mode<synchronous>, transform_indices = @transform_6, window_bounds = array<i64: 2, 128, 256>}, {pipeline_mode = #tpu.pipeline_mode<synchronous>, transform_indices = @transform_7, window_bounds = array<i64: 2, 1, 256>}, {pipeline_mode = #tpu.pipeline_mode<synchronous>, transform_indices = @transform_8, window_bounds = array<i64: 2, 256, 128>}, {pipeline_mode = #tpu.pipeline_mode<synchronous>, transform_indices = @transform_9, window_bounds = array<i64: 2, 1, 128>}, {pipeline_mode = #tpu.pipeline_mode<synchronous>, transform_indices = @transform_10, window_bounds = array<i64: 2, 1, 128>}, {pipeline_mode = #tpu.pipeline_mode<synchronous>, transform_indices = @transform_11, window_bounds = array<i64: 2, 1, 128>}, {pipeline_mode = #tpu.pipeline_mode<synchronous>, transform_indices = @transform_12, window_bounds = array<i64: 2, 1, 128>}, {pipeline_mode = #tpu.pipeline_mode<synchronous>, transform_indices = @transform_13, window_bounds = array<i64: 2, 1, 128>}, {pipeline_mode = #tpu.pipeline_mode<synchronous>, transform_indices = @transform_14, window_bounds = array<i64: 32, 128>}]} {
    %c0 = arith.constant 0 : index
    %c0_0 = arith.constant 0 : index
    %0 = vector.load %arg1[%c0, %c0_0] : memref<32x128xf32, #tpu.memory_space<vmem>>, vector<32x128xf32>
    %c0_1 = arith.constant 0 : index
    %c0_2 = arith.constant 0 : index
    %1 = vector.load %arg2[%c0_1, %c0_2] : memref<128x128xf32, #tpu.memory_space<vmem>>, vector<128x128xf32>
    %c0_3 = arith.constant 0 : index
    %c0_4 = arith.constant 0 : index
    %c0_5 = arith.constant 0 : index
    %2 = vector.load %arg3[%c0_3, %c0_4, %c0_5] : memref<2x128x384xf32, #tpu.memory_space<vmem>>, vector<1x128x384xf32>
    %3 = vector.shape_cast %2 : vector<1x128x384xf32> to vector<128x384xf32>
    %cst = arith.constant dense<0.000000e+00> : vector<32x384xf32>
    %4 = tpu.matmul %0, %3, %cst {dimension_numbers = #tpu.dot_dimension_numbers<[1], [0], [0], [1], [0, 0, 1, 1], [], []>} : vector<32x128xf32>, vector<128x384xf32>, vector<32x384xf32> -> vector<32x384xf32>
    %c0_6 = arith.constant 0 : index
    %c0_7 = arith.constant 0 : index
    %c0_8 = arith.constant 0 : index
    %5 = vector.load %arg4[%c0_6, %c0_7, %c0_8] : memref<2x1x384xf32, #tpu.memory_space<vmem>>, vector<1x1x384xf32>
    %6 = vector.shape_cast %5 : vector<1x1x384xf32> to vector<1x384xf32>
    %7 = vector.broadcast %6 : vector<1x384xf32> to vector<32x384xf32>
    %8 = arith.addf %4, %7 : vector<32x384xf32>
    %9 = vector.extract_strided_slice %8 {offsets = [0, 0], sizes = [32, 128], strides = [1, 1]} : vector<32x384xf32> to vector<32x128xf32>
    %10 = vector.extract_strided_slice %8 {offsets = [0, 128], sizes = [32, 128], strides = [1, 1]} : vector<32x384xf32> to vector<32x128xf32>
    %11 = vector.extract_strided_slice %8 {offsets = [0, 256], sizes = [32, 128], strides = [1, 1]} : vector<32x384xf32> to vector<32x128xf32>
    %12 = vector.shape_cast %9 : vector<32x128xf32> to vector<32x4x32xf32>
    %13 = tpu.transpose %12, [1, 0, 2] : vector<32x4x32xf32> -> vector<4x32x32xf32>
    %14 = vector.shape_cast %13 : vector<4x32x32xf32> to vector<128x32xf32>
    %15 = vector.shape_cast %10 : vector<32x128xf32> to vector<32x4x32xf32>
    %16 = tpu.transpose %15, [1, 0, 2] : vector<32x4x32xf32> -> vector<4x32x32xf32>
    %17 = vector.shape_cast %16 : vector<4x32x32xf32> to vector<128x32xf32>
    %18 = vector.shape_cast %11 : vector<32x128xf32> to vector<32x4x32xf32>
    %19 = tpu.transpose %18, [1, 0, 2] : vector<32x4x32xf32> -> vector<4x32x32xf32>
    %20 = vector.shape_cast %19 : vector<4x32x32xf32> to vector<128x32xf32>
    "tpu.trace_start"() <{level = 10 : i32, message = "qd,kd->qk"}> : () -> ()
    %cst_9 = arith.constant dense<0.000000e+00> : vector<128x128xf32>
    %21 = tpu.matmul %14, %17, %cst_9 {dimension_numbers = #tpu.dot_dimension_numbers<[1], [1], [0], [0], [0, 0, 1, 0], [], []>} : vector<128x32xf32>, vector<128x32xf32>, vector<128x128xf32> -> vector<128x128xf32>
    "tpu.trace_stop"() : () -> ()
    %22 = arith.addf %21, %1 : vector<128x128xf32>
    %cst_10 = arith.constant dense<0xFF800000> : vector<128xf32>
    %23 = vector.multi_reduction <maximumf>, %22, %cst_10 [1] : vector<128x128xf32> to vector<128xf32>
    %24 = vector.shape_cast %23 : vector<128xf32> to vector<128x1xf32>
    %25 = vector.broadcast %24 : vector<128x1xf32> to vector<128x128xf32>
    %26 = arith.subf %22, %25 : vector<128x128xf32>
    %27 = math.exp %26 : vector<128x128xf32>
    %cst_11 = arith.constant dense<0.000000e+00> : vector<128xf32>
    %28 = vector.multi_reduction <add>, %27, %cst_11 [1] : vector<128x128xf32> to vector<128xf32>
    %29 = vector.shape_cast %28 : vector<128xf32> to vector<128x1xf32>
    %30 = vector.broadcast %29 : vector<128x1xf32> to vector<128x128xf32>
    %31 = arith.divf %27, %30 : vector<128x128xf32>
    %cst_12 = arith.constant dense<0.000000e+00> : vector<128x32xf32>
    %32 = tpu.matmul %31, %20, %cst_12 {dimension_numbers = #tpu.dot_dimension_numbers<[1], [0], [0], [1], [0, 0, 1, 1], [], []>} : vector<128x128xf32>, vector<128x32xf32>, vector<128x32xf32> -> vector<128x32xf32>
    %33 = vector.shape_cast %32 : vector<128x32xf32> to vector<4x32x32xf32>
    %34 = tpu.transpose %33, [1, 0, 2] : vector<4x32x32xf32> -> vector<32x4x32xf32>
    %35 = vector.shape_cast %34 : vector<32x4x32xf32> to vector<32x128xf32>
    %c0_13 = arith.constant 0 : index
    %c0_14 = arith.constant 0 : index
    %c0_15 = arith.constant 0 : index
    %36 = vector.load %arg5[%c0_13, %c0_14, %c0_15] : memref<2x128x128xf32, #tpu.memory_space<vmem>>, vector<1x128x128xf32>
    %37 = vector.shape_cast %36 : vector<1x128x128xf32> to vector<128x128xf32>
    %cst_16 = arith.constant dense<0.000000e+00> : vector<32x128xf32>
    %38 = tpu.matmul %35, %37, %cst_16 {dimension_numbers = #tpu.dot_dimension_numbers<[1], [0], [0], [1], [0, 0, 1, 1], [], []>} : vector<32x128xf32>, vector<128x128xf32>, vector<32x128xf32> -> vector<32x128xf32>
    %c0_17 = arith.constant 0 : index
    %c0_18 = arith.constant 0 : index
    %c0_19 = arith.constant 0 : index
    %39 = vector.load %arg6[%c0_17, %c0_18, %c0_19] : memref<2x1x128xf32, #tpu.memory_space<vmem>>, vector<1x1x128xf32>
    %40 = vector.shape_cast %39 : vector<1x1x128xf32> to vector<1x128xf32>
    %41 = vector.broadcast %40 : vector<1x128xf32> to vector<32x128xf32>
    %42 = arith.addf %38, %41 : vector<32x128xf32>
    %43 = arith.addf %42, %0 : vector<32x128xf32>
    %c0_20 = arith.constant 0 : index
    %c0_21 = arith.constant 0 : index
    %c0_22 = arith.constant 0 : index
    %44 = vector.load %arg11[%c0_20, %c0_21, %c0_22] : memref<2x1x128xf32, #tpu.memory_space<vmem>>, vector<1x1x128xf32>
    %45 = vector.shape_cast %44 : vector<1x1x128xf32> to vector<1x128xf32>
    %c0_23 = arith.constant 0 : index
    %c0_24 = arith.constant 0 : index
    %c0_25 = arith.constant 0 : index
    %46 = vector.load %arg12[%c0_23, %c0_24, %c0_25] : memref<2x1x128xf32, #tpu.memory_space<vmem>>, vector<1x1x128xf32>
    %47 = vector.shape_cast %46 : vector<1x1x128xf32> to vector<1x128xf32>
    %cst_26 = arith.constant dense<0.000000e+00> : vector<32xf32>
    %48 = vector.multi_reduction <add>, %43, %cst_26 [1] : vector<32x128xf32> to vector<32xf32>
    %49 = vector.shape_cast %48 : vector<32xf32> to vector<32x1xf32>
    %cst_27 = arith.constant 1.280000e+02 : f32
    %50 = vector.broadcast %cst_27 : f32 to vector<32x1xf32>
    %51 = arith.divf %49, %50 : vector<32x1xf32>
    %52 = vector.broadcast %51 : vector<32x1xf32> to vector<32x128xf32>
    %53 = arith.subf %43, %52 : vector<32x128xf32>
    %54 = arith.mulf %53, %53 : vector<32x128xf32>
    %cst_28 = arith.constant dense<0.000000e+00> : vector<32xf32>
    %55 = vector.multi_reduction <add>, %54, %cst_28 [1] : vector<32x128xf32> to vector<32xf32>
    %56 = vector.shape_cast %55 : vector<32xf32> to vector<32x1xf32>
    %cst_29 = arith.constant 1.280000e+02 : f32
    %57 = vector.broadcast %cst_29 : f32 to vector<32x1xf32>
    %58 = arith.divf %56, %57 : vector<32x1xf32>
    %59 = vector.broadcast %51 : vector<32x1xf32> to vector<32x128xf32>
    %60 = arith.subf %43, %59 : vector<32x128xf32>
    %cst_30 = arith.constant 9.99999974E-6 : f32
    %61 = vector.broadcast %cst_30 : f32 to vector<32x1xf32>
    %62 = arith.addf %58, %61 : vector<32x1xf32>
    %63 = math.rsqrt %62 : vector<32x1xf32>
    %64 = vector.broadcast %63 : vector<32x1xf32> to vector<32x128xf32>
    %65 = arith.mulf %60, %64 : vector<32x128xf32>
    %66 = vector.broadcast %45 : vector<1x128xf32> to vector<32x128xf32>
    %67 = arith.mulf %65, %66 : vector<32x128xf32>
    %68 = vector.broadcast %47 : vector<1x128xf32> to vector<32x128xf32>
    %69 = arith.addf %67, %68 : vector<32x128xf32>
    %c0_31 = arith.constant 0 : index
    %c0_32 = arith.constant 0 : index
    %c0_33 = arith.constant 0 : index
    %70 = vector.load %arg7[%c0_31, %c0_32, %c0_33] : memref<2x128x256xf32, #tpu.memory_space<vmem>>, vector<1x128x256xf32>
    %71 = vector.shape_cast %70 : vector<1x128x256xf32> to vector<128x256xf32>
    %cst_34 = arith.constant dense<0.000000e+00> : vector<32x256xf32>
    %72 = tpu.matmul %69, %71, %cst_34 {dimension_numbers = #tpu.dot_dimension_numbers<[1], [0], [0], [1], [0, 0, 1, 1], [], []>} : vector<32x128xf32>, vector<128x256xf32>, vector<32x256xf32> -> vector<32x256xf32>
    %c0_35 = arith.constant 0 : index
    %c0_36 = arith.constant 0 : index
    %c0_37 = arith.constant 0 : index
    %73 = vector.load %arg8[%c0_35, %c0_36, %c0_37] : memref<2x1x256xf32, #tpu.memory_space<vmem>>, vector<1x1x256xf32>
    %74 = vector.shape_cast %73 : vector<1x1x256xf32> to vector<1x256xf32>
    %75 = vector.broadcast %74 : vector<1x256xf32> to vector<32x256xf32>
    %76 = arith.addf %72, %75 : vector<32x256xf32>
    %cst_38 = arith.constant 0.000000e+00 : f32
    %77 = vector.broadcast %cst_38 : f32 to vector<32x256xf32>
    %78 = arith.maximumf %76, %77 : vector<32x256xf32>
    %c0_39 = arith.constant 0 : index
    %c0_40 = arith.constant 0 : index
    %c0_41 = arith.constant 0 : index
    %79 = vector.load %arg9[%c0_39, %c0_40, %c0_41] : memref<2x256x128xf32, #tpu.memory_space<vmem>>, vector<1x256x128xf32>
    %80 = vector.shape_cast %79 : vector<1x256x128xf32> to vector<256x128xf32>
    %cst_42 = arith.constant dense<0.000000e+00> : vector<32x128xf32>
    %81 = tpu.matmul %78, %80, %cst_42 {dimension_numbers = #tpu.dot_dimension_numbers<[1], [0], [0], [1], [0, 0, 1, 1], [], []>} : vector<32x256xf32>, vector<256x128xf32>, vector<32x128xf32> -> vector<32x128xf32>
    %c0_43 = arith.constant 0 : index
    %c0_44 = arith.constant 0 : index
    %c0_45 = arith.constant 0 : index
    %82 = vector.load %arg10[%c0_43, %c0_44, %c0_45] : memref<2x1x128xf32, #tpu.memory_space<vmem>>, vector<1x1x128xf32>
    %83 = vector.shape_cast %82 : vector<1x1x128xf32> to vector<1x128xf32>
    %84 = vector.broadcast %83 : vector<1x128xf32> to vector<32x128xf32>
    %85 = arith.addf %81, %84 : vector<32x128xf32>
    %86 = arith.addf %85, %69 : vector<32x128xf32>
    %c0_46 = arith.constant 0 : index
    %c0_47 = arith.constant 0 : index
    %c0_48 = arith.constant 0 : index
    %87 = vector.load %arg13[%c0_46, %c0_47, %c0_48] : memref<2x1x128xf32, #tpu.memory_space<vmem>>, vector<1x1x128xf32>
    %88 = vector.shape_cast %87 : vector<1x1x128xf32> to vector<1x128xf32>
    %c0_49 = arith.constant 0 : index
    %c0_50 = arith.constant 0 : index
    %c0_51 = arith.constant 0 : index
    %89 = vector.load %arg14[%c0_49, %c0_50, %c0_51] : memref<2x1x128xf32, #tpu.memory_space<vmem>>, vector<1x1x128xf32>
    %90 = vector.shape_cast %89 : vector<1x1x128xf32> to vector<1x128xf32>
    %cst_52 = arith.constant dense<0.000000e+00> : vector<32xf32>
    %91 = vector.multi_reduction <add>, %86, %cst_52 [1] : vector<32x128xf32> to vector<32xf32>
    %92 = vector.shape_cast %91 : vector<32xf32> to vector<32x1xf32>
    %cst_53 = arith.constant 1.280000e+02 : f32
    %93 = vector.broadcast %cst_53 : f32 to vector<32x1xf32>
    %94 = arith.divf %92, %93 : vector<32x1xf32>
    %95 = vector.broadcast %94 : vector<32x1xf32> to vector<32x128xf32>
    %96 = arith.subf %86, %95 : vector<32x128xf32>
    %97 = arith.mulf %96, %96 : vector<32x128xf32>
    %cst_54 = arith.constant dense<0.000000e+00> : vector<32xf32>
    %98 = vector.multi_reduction <add>, %97, %cst_54 [1] : vector<32x128xf32> to vector<32xf32>
    %99 = vector.shape_cast %98 : vector<32xf32> to vector<32x1xf32>
    %cst_55 = arith.constant 1.280000e+02 : f32
    %100 = vector.broadcast %cst_55 : f32 to vector<32x1xf32>
    %101 = arith.divf %99, %100 : vector<32x1xf32>
    %102 = vector.broadcast %94 : vector<32x1xf32> to vector<32x128xf32>
    %103 = arith.subf %86, %102 : vector<32x128xf32>
    %cst_56 = arith.constant 9.99999974E-6 : f32
    %104 = vector.broadcast %cst_56 : f32 to vector<32x1xf32>
    %105 = arith.addf %101, %104 : vector<32x1xf32>
    %106 = math.rsqrt %105 : vector<32x1xf32>
    %107 = vector.broadcast %106 : vector<32x1xf32> to vector<32x128xf32>
    %108 = arith.mulf %103, %107 : vector<32x128xf32>
    %109 = vector.broadcast %88 : vector<1x128xf32> to vector<32x128xf32>
    %110 = arith.mulf %108, %109 : vector<32x128xf32>
    %111 = vector.broadcast %90 : vector<1x128xf32> to vector<32x128xf32>
    %112 = arith.addf %110, %111 : vector<32x128xf32>
    %c1 = arith.constant 1 : index
    %c0_57 = arith.constant 0 : index
    %c0_58 = arith.constant 0 : index
    %113 = vector.load %arg3[%c1, %c0_57, %c0_58] : memref<2x128x384xf32, #tpu.memory_space<vmem>>, vector<1x128x384xf32>
    %114 = vector.shape_cast %113 : vector<1x128x384xf32> to vector<128x384xf32>
    %cst_59 = arith.constant dense<0.000000e+00> : vector<32x384xf32>
    %115 = tpu.matmul %112, %114, %cst_59 {dimension_numbers = #tpu.dot_dimension_numbers<[1], [0], [0], [1], [0, 0, 1, 1], [], []>} : vector<32x128xf32>, vector<128x384xf32>, vector<32x384xf32> -> vector<32x384xf32>
    %c1_60 = arith.constant 1 : index
    %c0_61 = arith.constant 0 : index
    %c0_62 = arith.constant 0 : index
    %116 = vector.load %arg4[%c1_60, %c0_61, %c0_62] : memref<2x1x384xf32, #tpu.memory_space<vmem>>, vector<1x1x384xf32>
    %117 = vector.shape_cast %116 : vector<1x1x384xf32> to vector<1x384xf32>
    %118 = vector.broadcast %117 : vector<1x384xf32> to vector<32x384xf32>
    %119 = arith.addf %115, %118 : vector<32x384xf32>
    %120 = vector.extract_strided_slice %119 {offsets = [0, 0], sizes = [32, 128], strides = [1, 1]} : vector<32x384xf32> to vector<32x128xf32>
    %121 = vector.extract_strided_slice %119 {offsets = [0, 128], sizes = [32, 128], strides = [1, 1]} : vector<32x384xf32> to vector<32x128xf32>
    %122 = vector.extract_strided_slice %119 {offsets = [0, 256], sizes = [32, 128], strides = [1, 1]} : vector<32x384xf32> to vector<32x128xf32>
    %123 = vector.shape_cast %120 : vector<32x128xf32> to vector<32x4x32xf32>
    %124 = tpu.transpose %123, [1, 0, 2] : vector<32x4x32xf32> -> vector<4x32x32xf32>
    %125 = vector.shape_cast %124 : vector<4x32x32xf32> to vector<128x32xf32>
    %126 = vector.shape_cast %121 : vector<32x128xf32> to vector<32x4x32xf32>
    %127 = tpu.transpose %126, [1, 0, 2] : vector<32x4x32xf32> -> vector<4x32x32xf32>
    %128 = vector.shape_cast %127 : vector<4x32x32xf32> to vector<128x32xf32>
    %129 = vector.shape_cast %122 : vector<32x128xf32> to vector<32x4x32xf32>
    %130 = tpu.transpose %129, [1, 0, 2] : vector<32x4x32xf32> -> vector<4x32x32xf32>
    %131 = vector.shape_cast %130 : vector<4x32x32xf32> to vector<128x32xf32>
    "tpu.trace_start"() <{level = 10 : i32, message = "qd,kd->qk"}> : () -> ()
    %cst_63 = arith.constant dense<0.000000e+00> : vector<128x128xf32>
    %132 = tpu.matmul %125, %128, %cst_63 {dimension_numbers = #tpu.dot_dimension_numbers<[1], [1], [0], [0], [0, 0, 1, 0], [], []>} : vector<128x32xf32>, vector<128x32xf32>, vector<128x128xf32> -> vector<128x128xf32>
    "tpu.trace_stop"() : () -> ()
    %133 = arith.addf %132, %1 : vector<128x128xf32>
    %cst_64 = arith.constant dense<0xFF800000> : vector<128xf32>
    %134 = vector.multi_reduction <maximumf>, %133, %cst_64 [1] : vector<128x128xf32> to vector<128xf32>
    %135 = vector.shape_cast %134 : vector<128xf32> to vector<128x1xf32>
    %136 = vector.broadcast %135 : vector<128x1xf32> to vector<128x128xf32>
    %137 = arith.subf %133, %136 : vector<128x128xf32>
    %138 = math.exp %137 : vector<128x128xf32>
    %cst_65 = arith.constant dense<0.000000e+00> : vector<128xf32>
    %139 = vector.multi_reduction <add>, %138, %cst_65 [1] : vector<128x128xf32> to vector<128xf32>
    %140 = vector.shape_cast %139 : vector<128xf32> to vector<128x1xf32>
    %141 = vector.broadcast %140 : vector<128x1xf32> to vector<128x128xf32>
    %142 = arith.divf %138, %141 : vector<128x128xf32>
    %cst_66 = arith.constant dense<0.000000e+00> : vector<128x32xf32>
    %143 = tpu.matmul %142, %131, %cst_66 {dimension_numbers = #tpu.dot_dimension_numbers<[1], [0], [0], [1], [0, 0, 1, 1], [], []>} : vector<128x128xf32>, vector<128x32xf32>, vector<128x32xf32> -> vector<128x32xf32>
    %144 = vector.shape_cast %143 : vector<128x32xf32> to vector<4x32x32xf32>
    %145 = tpu.transpose %144, [1, 0, 2] : vector<4x32x32xf32> -> vector<32x4x32xf32>
    %146 = vector.shape_cast %145 : vector<32x4x32xf32> to vector<32x128xf32>
    %c1_67 = arith.constant 1 : index
    %c0_68 = arith.constant 0 : index
    %c0_69 = arith.constant 0 : index
    %147 = vector.load %arg5[%c1_67, %c0_68, %c0_69] : memref<2x128x128xf32, #tpu.memory_space<vmem>>, vector<1x128x128xf32>
    %148 = vector.shape_cast %147 : vector<1x128x128xf32> to vector<128x128xf32>
    %cst_70 = arith.constant dense<0.000000e+00> : vector<32x128xf32>
    %149 = tpu.matmul %146, %148, %cst_70 {dimension_numbers = #tpu.dot_dimension_numbers<[1], [0], [0], [1], [0, 0, 1, 1], [], []>} : vector<32x128xf32>, vector<128x128xf32>, vector<32x128xf32> -> vector<32x128xf32>
    %c1_71 = arith.constant 1 : index
    %c0_72 = arith.constant 0 : index
    %c0_73 = arith.constant 0 : index
    %150 = vector.load %arg6[%c1_71, %c0_72, %c0_73] : memref<2x1x128xf32, #tpu.memory_space<vmem>>, vector<1x1x128xf32>
    %151 = vector.shape_cast %150 : vector<1x1x128xf32> to vector<1x128xf32>
    %152 = vector.broadcast %151 : vector<1x128xf32> to vector<32x128xf32>
    %153 = arith.addf %149, %152 : vector<32x128xf32>
    %154 = arith.addf %153, %112 : vector<32x128xf32>
    %c1_74 = arith.constant 1 : index
    %c0_75 = arith.constant 0 : index
    %c0_76 = arith.constant 0 : index
    %155 = vector.load %arg11[%c1_74, %c0_75, %c0_76] : memref<2x1x128xf32, #tpu.memory_space<vmem>>, vector<1x1x128xf32>
    %156 = vector.shape_cast %155 : vector<1x1x128xf32> to vector<1x128xf32>
    %c1_77 = arith.constant 1 : index
    %c0_78 = arith.constant 0 : index
    %c0_79 = arith.constant 0 : index
    %157 = vector.load %arg12[%c1_77, %c0_78, %c0_79] : memref<2x1x128xf32, #tpu.memory_space<vmem>>, vector<1x1x128xf32>
    %158 = vector.shape_cast %157 : vector<1x1x128xf32> to vector<1x128xf32>
    %cst_80 = arith.constant dense<0.000000e+00> : vector<32xf32>
    %159 = vector.multi_reduction <add>, %154, %cst_80 [1] : vector<32x128xf32> to vector<32xf32>
    %160 = vector.shape_cast %159 : vector<32xf32> to vector<32x1xf32>
    %cst_81 = arith.constant 1.280000e+02 : f32
    %161 = vector.broadcast %cst_81 : f32 to vector<32x1xf32>
    %162 = arith.divf %160, %161 : vector<32x1xf32>
    %163 = vector.broadcast %162 : vector<32x1xf32> to vector<32x128xf32>
    %164 = arith.subf %154, %163 : vector<32x128xf32>
    %165 = arith.mulf %164, %164 : vector<32x128xf32>
    %cst_82 = arith.constant dense<0.000000e+00> : vector<32xf32>
    %166 = vector.multi_reduction <add>, %165, %cst_82 [1] : vector<32x128xf32> to vector<32xf32>
    %167 = vector.shape_cast %166 : vector<32xf32> to vector<32x1xf32>
    %cst_83 = arith.constant 1.280000e+02 : f32
    %168 = vector.broadcast %cst_83 : f32 to vector<32x1xf32>
    %169 = arith.divf %167, %168 : vector<32x1xf32>
    %170 = vector.broadcast %162 : vector<32x1xf32> to vector<32x128xf32>
    %171 = arith.subf %154, %170 : vector<32x128xf32>
    %cst_84 = arith.constant 9.99999974E-6 : f32
    %172 = vector.broadcast %cst_84 : f32 to vector<32x1xf32>
    %173 = arith.addf %169, %172 : vector<32x1xf32>
    %174 = math.rsqrt %173 : vector<32x1xf32>
    %175 = vector.broadcast %174 : vector<32x1xf32> to vector<32x128xf32>
    %176 = arith.mulf %171, %175 : vector<32x128xf32>
    %177 = vector.broadcast %156 : vector<1x128xf32> to vector<32x128xf32>
    %178 = arith.mulf %176, %177 : vector<32x128xf32>
    %179 = vector.broadcast %158 : vector<1x128xf32> to vector<32x128xf32>
    %180 = arith.addf %178, %179 : vector<32x128xf32>
    %c1_85 = arith.constant 1 : index
    %c0_86 = arith.constant 0 : index
    %c0_87 = arith.constant 0 : index
    %181 = vector.load %arg7[%c1_85, %c0_86, %c0_87] : memref<2x128x256xf32, #tpu.memory_space<vmem>>, vector<1x128x256xf32>
    %182 = vector.shape_cast %181 : vector<1x128x256xf32> to vector<128x256xf32>
    %cst_88 = arith.constant dense<0.000000e+00> : vector<32x256xf32>
    %183 = tpu.matmul %180, %182, %cst_88 {dimension_numbers = #tpu.dot_dimension_numbers<[1], [0], [0], [1], [0, 0, 1, 1], [], []>} : vector<32x128xf32>, vector<128x256xf32>, vector<32x256xf32> -> vector<32x256xf32>
    %c1_89 = arith.constant 1 : index
    %c0_90 = arith.constant 0 : index
    %c0_91 = arith.constant 0 : index
    %184 = vector.load %arg8[%c1_89, %c0_90, %c0_91] : memref<2x1x256xf32, #tpu.memory_space<vmem>>, vector<1x1x256xf32>
    %185 = vector.shape_cast %184 : vector<1x1x256xf32> to vector<1x256xf32>
    %186 = vector.broadcast %185 : vector<1x256xf32> to vector<32x256xf32>
    %187 = arith.addf %183, %186 : vector<32x256xf32>
    %cst_92 = arith.constant 0.000000e+00 : f32
    %188 = vector.broadcast %cst_92 : f32 to vector<32x256xf32>
    %189 = arith.maximumf %187, %188 : vector<32x256xf32>
    %c1_93 = arith.constant 1 : index
    %c0_94 = arith.constant 0 : index
    %c0_95 = arith.constant 0 : index
    %190 = vector.load %arg9[%c1_93, %c0_94, %c0_95] : memref<2x256x128xf32, #tpu.memory_space<vmem>>, vector<1x256x128xf32>
    %191 = vector.shape_cast %190 : vector<1x256x128xf32> to vector<256x128xf32>
    %cst_96 = arith.constant dense<0.000000e+00> : vector<32x128xf32>
    %192 = tpu.matmul %189, %191, %cst_96 {dimension_numbers = #tpu.dot_dimension_numbers<[1], [0], [0], [1], [0, 0, 1, 1], [], []>} : vector<32x256xf32>, vector<256x128xf32>, vector<32x128xf32> -> vector<32x128xf32>
    %c1_97 = arith.constant 1 : index
    %c0_98 = arith.constant 0 : index
    %c0_99 = arith.constant 0 : index
    %193 = vector.load %arg10[%c1_97, %c0_98, %c0_99] : memref<2x1x128xf32, #tpu.memory_space<vmem>>, vector<1x1x128xf32>
    %194 = vector.shape_cast %193 : vector<1x1x128xf32> to vector<1x128xf32>
    %195 = vector.broadcast %194 : vector<1x128xf32> to vector<32x128xf32>
    %196 = arith.addf %192, %195 : vector<32x128xf32>
    %197 = arith.addf %196, %180 : vector<32x128xf32>
    %c1_100 = arith.constant 1 : index
    %c0_101 = arith.constant 0 : index
    %c0_102 = arith.constant 0 : index
    %198 = vector.load %arg13[%c1_100, %c0_101, %c0_102] : memref<2x1x128xf32, #tpu.memory_space<vmem>>, vector<1x1x128xf32>
    %199 = vector.shape_cast %198 : vector<1x1x128xf32> to vector<1x128xf32>
    %c1_103 = arith.constant 1 : index
    %c0_104 = arith.constant 0 : index
    %c0_105 = arith.constant 0 : index
    %200 = vector.load %arg14[%c1_103, %c0_104, %c0_105] : memref<2x1x128xf32, #tpu.memory_space<vmem>>, vector<1x1x128xf32>
    %201 = vector.shape_cast %200 : vector<1x1x128xf32> to vector<1x128xf32>
    %cst_106 = arith.constant dense<0.000000e+00> : vector<32xf32>
    %202 = vector.multi_reduction <add>, %197, %cst_106 [1] : vector<32x128xf32> to vector<32xf32>
    %203 = vector.shape_cast %202 : vector<32xf32> to vector<32x1xf32>
    %cst_107 = arith.constant 1.280000e+02 : f32
    %204 = vector.broadcast %cst_107 : f32 to vector<32x1xf32>
    %205 = arith.divf %203, %204 : vector<32x1xf32>
    %206 = vector.broadcast %205 : vector<32x1xf32> to vector<32x128xf32>
    %207 = arith.subf %197, %206 : vector<32x128xf32>
    %208 = arith.mulf %207, %207 : vector<32x128xf32>
    %cst_108 = arith.constant dense<0.000000e+00> : vector<32xf32>
    %209 = vector.multi_reduction <add>, %208, %cst_108 [1] : vector<32x128xf32> to vector<32xf32>
    %210 = vector.shape_cast %209 : vector<32xf32> to vector<32x1xf32>
    %cst_109 = arith.constant 1.280000e+02 : f32
    %211 = vector.broadcast %cst_109 : f32 to vector<32x1xf32>
    %212 = arith.divf %210, %211 : vector<32x1xf32>
    %213 = vector.broadcast %205 : vector<32x1xf32> to vector<32x128xf32>
    %214 = arith.subf %197, %213 : vector<32x128xf32>
    %cst_110 = arith.constant 9.99999974E-6 : f32
    %215 = vector.broadcast %cst_110 : f32 to vector<32x1xf32>
    %216 = arith.addf %212, %215 : vector<32x1xf32>
    %217 = math.rsqrt %216 : vector<32x1xf32>
    %218 = vector.broadcast %217 : vector<32x1xf32> to vector<32x128xf32>
    %219 = arith.mulf %214, %218 : vector<32x128xf32>
    %220 = vector.broadcast %199 : vector<1x128xf32> to vector<32x128xf32>
    %221 = arith.mulf %219, %220 : vector<32x128xf32>
    %222 = vector.broadcast %201 : vector<1x128xf32> to vector<32x128xf32>
    %223 = arith.addf %221, %222 : vector<32x128xf32>
    %c0_111 = arith.constant 0 : index
    %c0_112 = arith.constant 0 : index
    %224 = vector.load %arg15[%c0_111, %c0_112] : memref<32x128xf32, #tpu.memory_space<vmem>>, vector<32x128xf32>
    tpu.vector_store %arg15[%c0_111, %c0_112], %223 {strides = array<i32>} : memref<32x128xf32, #tpu.memory_space<vmem>>, vector<32x128xf32>,
    return
  }
  func.func @transform_0(%arg0: i32) -> (i32, i32) {
    %c0_i32 = arith.constant 0 : i32
    %c0_i32_0 = arith.constant 0 : i32
    %c0_i32_1 = arith.constant 0 : i32
    return %c0_i32, %c0_i32_0 : i32, i32
  }
  func.func @transform_1(%arg0: i32) -> (i32, i32) {
    %c0_i32 = arith.constant 0 : i32
    %c0_i32_0 = arith.constant 0 : i32
    %c0_i32_1 = arith.constant 0 : i32
    return %c0_i32, %c0_i32_0 : i32, i32
  }
  func.func @transform_2(%arg0: i32) -> (i32, i32, i32) {
    %c0_i32 = arith.constant 0 : i32
    %c0_i32_0 = arith.constant 0 : i32
    %c0_i32_1 = arith.constant 0 : i32
    %c0_i32_2 = arith.constant 0 : i32
    return %c0_i32, %c0_i32_0, %c0_i32_1 : i32, i32, i32
  }
  func.func @transform_3(%arg0: i32) -> (i32, i32, i32) {
    %c0_i32 = arith.constant 0 : i32
    %c0_i32_0 = arith.constant 0 : i32
    %c0_i32_1 = arith.constant 0 : i32
    %c0_i32_2 = arith.constant 0 : i32
    return %c0_i32, %c0_i32_0, %c0_i32_1 : i32, i32, i32
  }
  func.func @transform_4(%arg0: i32) -> (i32, i32, i32) {
    %c0_i32 = arith.constant 0 : i32
    %c0_i32_0 = arith.constant 0 : i32
    %c0_i32_1 = arith.constant 0 : i32
    %c0_i32_2 = arith.constant 0 : i32
    return %c0_i32, %c0_i32_0, %c0_i32_1 : i32, i32, i32
  }
  func.func @transform_5(%arg0: i32) -> (i32, i32, i32) {
    %c0_i32 = arith.constant 0 : i32
    %c0_i32_0 = arith.constant 0 : i32
    %c0_i32_1 = arith.constant 0 : i32
    %c0_i32_2 = arith.constant 0 : i32
    return %c0_i32, %c0_i32_0, %c0_i32_1 : i32, i32, i32
  }
  func.func @transform_6(%arg0: i32) -> (i32, i32, i32) {
    %c0_i32 = arith.constant 0 : i32
    %c0_i32_0 = arith.constant 0 : i32
    %c0_i32_1 = arith.constant 0 : i32
    %c0_i32_2 = arith.constant 0 : i32
    return %c0_i32, %c0_i32_0, %c0_i32_1 : i32, i32, i32
  }
  func.func @transform_7(%arg0: i32) -> (i32, i32, i32) {
    %c0_i32 = arith.constant 0 : i32
    %c0_i32_0 = arith.constant 0 : i32
    %c0_i32_1 = arith.constant 0 : i32
    %c0_i32_2 = arith.constant 0 : i32
    return %c0_i32, %c0_i32_0, %c0_i32_1 : i32, i32, i32
  }
  func.func @transform_8(%arg0: i32) -> (i32, i32, i32) {
    %c0_i32 = arith.constant 0 : i32
    %c0_i32_0 = arith.constant 0 : i32
    %c0_i32_1 = arith.constant 0 : i32
    %c0_i32_2 = arith.constant 0 : i32
    return %c0_i32, %c0_i32_0, %c0_i32_1 : i32, i32, i32
  }
  func.func @transform_9(%arg0: i32) -> (i32, i32, i32) {
    %c0_i32 = arith.constant 0 : i32
    %c0_i32_0 = arith.constant 0 : i32
    %c0_i32_1 = arith.constant 0 : i32
    %c0_i32_2 = arith.constant 0 : i32
    return %c0_i32, %c0_i32_0, %c0_i32_1 : i32, i32, i32
  }
  func.func @transform_10(%arg0: i32) -> (i32, i32, i32) {
    %c0_i32 = arith.constant 0 : i32
    %c0_i32_0 = arith.constant 0 : i32
    %c0_i32_1 = arith.constant 0 : i32
    %c0_i32_2 = arith.constant 0 : i32
    return %c0_i32, %c0_i32_0, %c0_i32_1 : i32, i32, i32
  }
  func.func @transform_11(%arg0: i32) -> (i32, i32, i32) {
    %c0_i32 = arith.constant 0 : i32
    %c0_i32_0 = arith.constant 0 : i32
    %c0_i32_1 = arith.constant 0 : i32
    %c0_i32_2 = arith.constant 0 : i32
    return %c0_i32, %c0_i32_0, %c0_i32_1 : i32, i32, i32
  }
  func.func @transform_12(%arg0: i32) -> (i32, i32, i32) {
    %c0_i32 = arith.constant 0 : i32
    %c0_i32_0 = arith.constant 0 : i32
    %c0_i32_1 = arith.constant 0 : i32
    %c0_i32_2 = arith.constant 0 : i32
    return %c0_i32, %c0_i32_0, %c0_i32_1 : i32, i32, i32
  }
  func.func @transform_13(%arg0: i32) -> (i32, i32, i32) {
    %c0_i32 = arith.constant 0 : i32
    %c0_i32_0 = arith.constant 0 : i32
    %c0_i32_1 = arith.constant 0 : i32
    %c0_i32_2 = arith.constant 0 : i32
    return %c0_i32, %c0_i32_0, %c0_i32_1 : i32, i32, i32
  }
  func.func @transform_14(%arg0: i32) -> (i32, i32) {
    %c0_i32 = arith.constant 0 : i32
    %c0_i32_0 = arith.constant 0 : i32
    %c0_i32_1 = arith.constant 0 : i32
    return %c0_i32, %c0_i32_0 : i32, i32
  }
}

</mosaic_0001>

<llo_original>
// kernel: encoder_forward.1
$region0: #{encoder_forward.1}
  #allocation0 [shape = 'u32[]', space=smem, size = 0x4, offset = 0x4, fixed_abs, tag = 'smem constant byte address 0x4 - core index']
  #allocation1 [shape = 'u32[144,128]{1,0:T(1,128)}', space=vmem, size = 0x12000, scoped, tag = 'internal scratch']
  %s0 = inlined_call_operand.vmem [shape: f32[32,128], index: 0, kind: input, shape index: {}]
  %s1 = inlined_call_operand.vmem [shape: f32[128,128], index: 1, kind: input, shape index: {}]
  %s2 = inlined_call_operand.vmem [shape: f32[2,128,384], index: 2, kind: input, shape index: {}]
  %s3 = inlined_call_operand.vmem [shape: f32[2,1,384], index: 3, kind: input, shape index: {}]
  %s4 = inlined_call_operand.hbm [shape: f32[2,128,128], index: 4, kind: input, shape index: {}]
  %s5 = inlined_call_operand.vmem [shape: f32[2,1,128], index: 5, kind: input, shape index: {}]
  %s6 = inlined_call_operand.vmem [shape: f32[2,128,256], index: 6, kind: input, shape index: {}]
  %s7 = inlined_call_operand.vmem [shape: f32[2,1,256], index: 7, kind: input, shape index: {}]
  %s8 = inlined_call_operand.hbm [shape: f32[2,256,128], index: 8, kind: input, shape index: {}]
  %s9 = inlined_call_operand.vmem [shape: f32[2,1,128], index: 9, kind: input, shape index: {}]
  %s10 = inlined_call_operand.vmem [shape: f32[2,1,128], index: 10, kind: input, shape index: {}]
  %s11 = inlined_call_operand.vmem [shape: f32[2,1,128], index: 11, kind: input, shape index: {}]
  %s12 = inlined_call_operand.vmem [shape: f32[2,1,128], index: 12, kind: input, shape index: {}]
  %s13 = inlined_call_operand.vmem [shape: f32[2,1,128], index: 13, kind: input, shape index: {}]
  %s14 = inlined_call_operand.hbm [shape: f32[32,128], index: 14, kind: output, shape index: {}]
  %s15 = sld [smem:[#allocation0]]
  $region74: #{encoder_forward.1} parent=0
    _
  %s17 = ssub.s32 1, %s15
  %s18 = scalar_select 0, %s17, %s15
  $region1: #{encoder_forward.1} parent=0
    #allocation2 [shape = 'u8[131072]{0}', space=vmem, size = 0x20000, scoped, tag = 'input window, operand 4, single buffered']
    #allocation3 [shape = 's32[1]{0}', space=sflag, size = 0x4, scoped, tag = 'scoped memory for encoder_forward.1']
    #allocation4 [shape = 's32[1]{0}', space=sflag, size = 0x4, scoped, tag = 'scoped memory for encoder_forward.1']
    #allocation5 [shape = 'u8[262144]{0}', space=vmem, size = 0x40000, scoped, tag = 'input window, operand 8, single buffered']
    #allocation6 [shape = 's32[1]{0}', space=sflag, size = 0x4, scoped, tag = 'scoped memory for encoder_forward.1']
    #allocation7 [shape = 'u8[16384]{0}', space=vmem, size = 0x4000, scoped, tag = 'output window, operand 0, single buffered']
    %19 = vsyncpa [#allocation3], 0
    %20 = vsyncpa [#allocation6], 0
    %21 = vsyncpa [#allocation4], 0
    // Predicated region
    $region2: #{encoder_forward.1} parent=1 // pred_check
      _
    $region3: #{encoder_forward.1} parent=1 // pred_check_branch
      %23 = sbr.rel (0) target = $region5
    $region4: #{encoder_forward.1} parent=1 // pred_region
      _
    $region5: #{encoder_forward.1} parent=1 // pred_fallthru
      _
    // Predicated region
    $region6: #{encoder_forward.1} parent=1 // pred_check
      _
    $region7: #{encoder_forward.1} parent=1 // pred_check_branch
      %25 = sbr.rel (0) target = $region9
    $region8: #{encoder_forward.1} parent=1 // pred_region
      _
    $region9: #{encoder_forward.1} parent=1 // pred_fallthru
      _
    // Predicated region
    $region10: #{encoder_forward.1} parent=1 // pred_check
      _
    $region11: #{encoder_forward.1} parent=1 // pred_check_branch
      %27 = sbr.rel (0) target = $region13
    $region12: #{encoder_forward.1} parent=1 // pred_region
      _
    $region13: #{encoder_forward.1} parent=1 // pred_fallthru
      _
    // Predicated region
    $region14: #{encoder_forward.1} parent=1 // pred_check
      _
    $region15: #{encoder_forward.1} parent=1 // pred_check_branch
      %29 = sbr.rel (0) target = $region17
    $region16: #{encoder_forward.1} parent=1 // pred_region
      _
    $region17: #{encoder_forward.1} parent=1 // pred_fallthru
      _
    // Predicated region
    $region18: #{encoder_forward.1} parent=1 // pred_check
      _
    $region19: #{encoder_forward.1} parent=1 // pred_check_branch
      %31 = sbr.rel (0) target = $region21
    $region20: #{encoder_forward.1} parent=1 // pred_region
      %s33 = ssub.s32 4096, 4096
      %34 = vsyncadd [#allocation3], %s33
      %s35 = sshll.u32 [#allocation2], 4
      %s36 = int_to_ptr.vmem [resolvable:$true] %s35
      %41 = dma.hbm_to_vmem [thread:$0]  %s4, 4096, %s36, [#allocation3], 128, 128, 8
    $region21: #{encoder_forward.1} parent=1 // pred_fallthru
      _
    // Predicated region
    $region22: #{encoder_forward.1} parent=1 // pred_check
      _
    $region23: #{encoder_forward.1} parent=1 // pred_check_branch
      %43 = sbr.rel (0) target = $region25
    $region24: #{encoder_forward.1} parent=1 // pred_region
      _
    $region25: #{encoder_forward.1} parent=1 // pred_fallthru
      _
    // Predicated region
    $region26: #{encoder_forward.1} parent=1 // pred_check
      _
    $region27: #{encoder_forward.1} parent=1 // pred_check_branch
      %45 = sbr.rel (0) target = $region29
    $region28: #{encoder_forward.1} parent=1 // pred_region
      _
    $region29: #{encoder_forward.1} parent=1 // pred_fallthru
      _
    // Predicated region
    $region30: #{encoder_forward.1} parent=1 // pred_check
      _
    $region31: #{encoder_forward.1} parent=1 // pred_check_branch
      %47 = sbr.rel (0) target = $region33
    $region32: #{encoder_forward.1} parent=1 // pred_region
      _
    $region33: #{encoder_forward.1} parent=1 // pred_fallthru
      _
    // Predicated region
    $region34: #{encoder_forward.1} parent=1 // pred_check
      _
    $region35: #{encoder_forward.1} parent=1 // pred_check_branch
      %49 = sbr.rel (0) target = $region37
    $region36: #{encoder_forward.1} parent=1 // pred_region
      %s51 = ssub.s32 8192, 8192
      %52 = vsyncadd [#allocation6], %s51
      %s53 = sshll.u32 [#allocation5], 4
      %s54 = int_to_ptr.vmem [resolvable:$true] %s53
      %59 = dma.hbm_to_vmem [thread:$0]  %s8, 8192, %s54, [#allocation6], 128, 128, 8
    $region37: #{encoder_forward.1} parent=1 // pred_fallthru
      _
    // Predicated region
    $region38: #{encoder_forward.1} parent=1 // pred_check
      _
    $region39: #{encoder_forward.1} parent=1 // pred_check_branch
      %61 = sbr.rel (0) target = $region41
    $region40: #{encoder_forward.1} parent=1 // pred_region
      _
    $region41: #{encoder_forward.1} parent=1 // pred_fallthru
      _
    // Predicated region
    $region42: #{encoder_forward.1} parent=1 // pred_check
      _
    $region43: #{encoder_forward.1} parent=1 // pred_check_branch
      %63 = sbr.rel (0) target = $region45
    $region44: #{encoder_forward.1} parent=1 // pred_region
      _
    $region45: #{encoder_forward.1} parent=1 // pred_fallthru
      _
    // Predicated region
    $region46: #{encoder_forward.1} parent=1 // pred_check
      _
    $region47: #{encoder_forward.1} parent=1 // pred_check_branch
      %65 = sbr.rel (0) target = $region49
    $region48: #{encoder_forward.1} parent=1 // pred_region
      _
    $region49: #{encoder_forward.1} parent=1 // pred_fallthru
      _
    // Predicated region
    $region50: #{encoder_forward.1} parent=1 // pred_check
      _
    $region51: #{encoder_forward.1} parent=1 // pred_check_branch
      %67 = sbr.rel (0) target = $region53
    $region52: #{encoder_forward.1} parent=1 // pred_region
      _
    $region53: #{encoder_forward.1} parent=1 // pred_fallthru
      _
    // Predicated region
    $region54: #{encoder_forward.1} parent=1 // pred_check
      _
    $region55: #{encoder_forward.1} parent=1 // pred_check_branch
      %69 = sbr.rel (0) target = $region57
    $region56: #{encoder_forward.1} parent=1 // pred_region
      _
    $region57: #{encoder_forward.1} parent=1 // pred_fallthru
      _
    // Predicated region
    $region58: #{encoder_forward.1} parent=1 // pred_check
      _
    $region59: #{encoder_forward.1} parent=1 // pred_check_branch
      %71 = sbr.rel (0) target = $region61
    $region60: #{encoder_forward.1} parent=1 // pred_region
      %72 = dma.done [#allocation3], 4096
    $region61: #{encoder_forward.1} parent=1 // pred_fallthru
      _
    // Predicated region
    $region62: #{encoder_forward.1} parent=1 // pred_check
      _
    $region63: #{encoder_forward.1} parent=1 // pred_check_branch
      %74 = sbr.rel (0) target = $region65
    $region64: #{encoder_forward.1} parent=1 // pred_region
      %75 = dma.done [#allocation6], 8192
    $region65: #{encoder_forward.1} parent=1 // pred_fallthru
      _
    %v76 = vld [vmem:[%s0] sm:$0xff]
    %v77 = vld [vmem:[%s0 + $0x8] sm:$0xff]
    %v78 = vld [vmem:[%s0 + $0x10] sm:$0xff]
    %v79 = vld [vmem:[%s0 + $0x18] sm:$0xff]
    %v80 = vld [vmem:[%s1] sm:$0xff]
    %v81 = vld [vmem:[%s1 + $0x8] sm:$0xff]
    %v82 = vld [vmem:[%s1 + $0x10] sm:$0xff]
    %v83 = vld [vmem:[%s1 + $0x18] sm:$0xff]
    %v84 = vld [vmem:[%s1 + $0x20] sm:$0xff]
    %v85 = vld [vmem:[%s1 + $0x28] sm:$0xff]
    %v86 = vld [vmem:[%s1 + $0x30] sm:$0xff]
    %v87 = vld [vmem:[%s1 + $0x38] sm:$0xff]
    %v88 = vld [vmem:[%s1 + $0x40] sm:$0xff]
    %v89 = vld [vmem:[%s1 + $0x48] sm:$0xff]
    %v90 = vld [vmem:[%s1 + $0x50] sm:$0xff]
    %v91 = vld [vmem:[%s1 + $0x58] sm:$0xff]
    %v92 = vld [vmem:[%s1 + $0x60] sm:$0xff]
    %v93 = vld [vmem:[%s1 + $0x68] sm:$0xff]
    %v94 = vld [vmem:[%s1 + $0x70] sm:$0xff]
    %v95 = vld [vmem:[%s1 + $0x78] sm:$0xff]
    %v96 = vld [vmem:[%s2] sm:$0xff]
    %v97 = vld [vmem:[%s2 + $0x8] sm:$0xff]
    %v98 = vld [vmem:[%s2 + $0x10] sm:$0xff]
    %v99 = vld [vmem:[%s2 + $0x18] sm:$0xff]
    %v100 = vld [vmem:[%s2 + $0x20] sm:$0xff]
    %v101 = vld [vmem:[%s2 + $0x28] sm:$0xff]
    %v102 = vld [vmem:[%s2 + $0x30] sm:$0xff]
    %v103 = vld [vmem:[%s2 + $0x38] sm:$0xff]
    %v104 = vld [vmem:[%s2 + $0x40] sm:$0xff]
    %v105 = vld [vmem:[%s2 + $0x48] sm:$0xff]
    %v106 = vld [vmem:[%s2 + $0x50] sm:$0xff]
    %v107 = vld [vmem:[%s2 + $0x58] sm:$0xff]
    %v108 = vld [vmem:[%s2 + $0x60] sm:$0xff]
    %v109 = vld [vmem:[%s2 + $0x68] sm:$0xff]
    %v110 = vld [vmem:[%s2 + $0x70] sm:$0xff]
    %v111 = vld [vmem:[%s2 + $0x78] sm:$0xff]
    %v112 = vld [vmem:[%s2 + $0x80] sm:$0xff]
    %v113 = vld [vmem:[%s2 + $0x88] sm:$0xff]
    %v114 = vld [vmem:[%s2 + $0x90] sm:$0xff]
    %v115 = vld [vmem:[%s2 + $0x98] sm:$0xff]
    %v116 = vld [vmem:[%s2 + $0xa0] sm:$0xff]
    %v117 = vld [vmem:[%s2 + $0xa8] sm:$0xff]
    %v118 = vld [vmem:[%s2 + $0xb0] sm:$0xff]
    %v119 = vld [vmem:[%s2 + $0xb8] sm:$0xff]
    %v120 = vld [vmem:[%s2 + $0xc0] sm:$0xff]
    %v121 = vld [vmem:[%s2 + $0xc8] sm:$0xff]
    %v122 = vld [vmem:[%s2 + $0xd0] sm:$0xff]
    %v123 = vld [vmem:[%s2 + $0xd8] sm:$0xff]
    %v124 = vld [vmem:[%s2 + $0xe0] sm:$0xff]
    %v125 = vld [vmem:[%s2 + $0xe8] sm:$0xff]
    %v126 = vld [vmem:[%s2 + $0xf0] sm:$0xff]
    %v127 = vld [vmem:[%s2 + $0xf8] sm:$0xff]
    %v128 = vld [vmem:[%s2 + $0x100] sm:$0xff]
    %v129 = vld [vmem:[%s2 + $0x108] sm:$0xff]
    %v130 = vld [vmem:[%s2 + $0x110] sm:$0xff]
    %v131 = vld [vmem:[%s2 + $0x118] sm:$0xff]
    %v132 = vld [vmem:[%s2 + $0x120] sm:$0xff]
    %v133 = vld [vmem:[%s2 + $0x128] sm:$0xff]
    %v134 = vld [vmem:[%s2 + $0x130] sm:$0xff]
    %v135 = vld [vmem:[%s2 + $0x138] sm:$0xff]
    %v136 = vld [vmem:[%s2 + $0x140] sm:$0xff]
    %v137 = vld [vmem:[%s2 + $0x148] sm:$0xff]
    %v138 = vld [vmem:[%s2 + $0x150] sm:$0xff]
    %v139 = vld [vmem:[%s2 + $0x158] sm:$0xff]
    %v140 = vld [vmem:[%s2 + $0x160] sm:$0xff]
    %v141 = vld [vmem:[%s2 + $0x168] sm:$0xff]
    %v142 = vld [vmem:[%s2 + $0x170] sm:$0xff]
    %v143 = vld [vmem:[%s2 + $0x178] sm:$0xff]
    %v144 = vld [vmem:[%s3] sm:$0x7]
    %v146 = vlaneseq
    %v147 = vshrl.u32 %v146, 7
    %v148 = vsub.s32 0, %v147
    %v149 = vrot.slane %v144, %v148
    %v150 = vlaneseq
    %v151 = vshrl.u32 %v150, 7
    %v152 = vsub.s32 1, %v151
    %v153 = vrot.slane %v144, %v152
    %v154 = vlaneseq
    %v155 = vshrl.u32 %v154, 7
    %v156 = vsub.s32 2, %v155
    %v157 = vrot.slane %v144, %v156
    %161 = vmatprep.subr.mxu0 %v97
    %162 = vmatpush1.msra.mxu0 %v96
    %163 = vmatprep.subr.mxu0 %v100
    %164 = vmatpush1.msra.mxu0 %v99
    %165 = vmatprep.subr.mxu0 %v103
    %166 = vmatpush1.msra.mxu0 %v102
    %167 = vmatprep.subr.mxu0 %v106
    %168 = vmatpush1.msra.mxu0 %v105
    %169 = vmatprep.subr.mxu0 %v109
    %170 = vmatpush1.msra.mxu0 %v108
    %171 = vmatprep.subr.mxu0 %v112
    %172 = vmatpush1.msra.mxu0 %v111
    %173 = vmatprep.subr.mxu0 %v115
    %174 = vmatpush1.msra.mxu0 %v114
    %175 = vmatprep.subr.mxu0 %v118
    %176 = vmatpush1.msra.mxu0 %v117
    %177 = vmatprep.subr.mxu0 %v121
    %178 = vmatpush1.msra.mxu0 %v120
    %179 = vmatprep.subr.mxu0 %v124
    %180 = vmatpush1.msra.mxu0 %v123
    %181 = vmatprep.subr.mxu0 %v127
    %182 = vmatpush1.msra.mxu0 %v126
    %183 = vmatprep.subr.mxu0 %v130
    %184 = vmatpush1.msra.mxu0 %v129
    %185 = vmatprep.subr.mxu0 %v133
    %186 = vmatpush1.msra.mxu0 %v132
    %187 = vmatprep.subr.mxu0 %v136
    %188 = vmatpush1.msra.mxu0 %v135
    %189 = vmatprep.subr.mxu0 %v139
    %190 = vmatpush1.msra.mxu0 %v138
    %191 = vmatprep.subr.mxu0 %v142
    %192 = vmatpush1.msra.mxu0 %v141
    %193 = vmatprep.subr.mxu0 0.0
    %194 = vmatpush1.msra.mxu0 0.0
    %195 = vmatprep.subr.mxu0 0.0
    %196 = vmatpush1.msra.mxu0 0.0
    %197 = vmatprep.subr.mxu0 0.0
    %198 = vmatpush1.msra.mxu0 0.0
    %199 = vmatprep.subr.mxu0 0.0
    %200 = vmatpush1.msra.mxu0 0.0
    %201 = vmatprep.subr.mxu0 0.0
    %202 = vmatpush1.msra.mxu0 0.0
    %203 = vmatprep.subr.mxu0 0.0
    %204 = vmatpush1.msra.mxu0 0.0
    %205 = vmatprep.subr.mxu0 0.0
    %206 = vmatpush1.msra.mxu0 0.0
    %207 = vmatprep.subr.mxu0 0.0
    %208 = vmatpush1.msra.mxu0 0.0
    %209 = vmatprep.subr.mxu0 0.0
    %210 = vmatpush1.msra.mxu0 0.0
    %211 = vmatprep.subr.mxu0 0.0
    %212 = vmatpush1.msra.mxu0 0.0
    %213 = vmatprep.subr.mxu0 0.0
    %214 = vmatpush1.msra.mxu0 0.0
    %215 = vmatprep.subr.mxu0 0.0
    %216 = vmatpush1.msra.mxu0 0.0
    %217 = vmatprep.subr.mxu0 0.0
    %218 = vmatpush1.msra.mxu0 0.0
    %219 = vmatprep.subr.mxu0 0.0
    %220 = vmatpush1.msra.mxu0 0.0
    %221 = vmatprep.subr.mxu0 0.0
    %222 = vmatpush1.msra.mxu0 0.0
    %223 = vmatprep.subr.mxu0 0.0
    %224 = vmatpush1.msra.mxu0 0.0
    %225 = vmatprep.mubr.f32.mxu0 0.0
    %226 = vmatmul.mubr.f32.gmra.mrb[0].mxu0 %v76
    %v227 = vpop.f32.mrb[0].mxu0
    %v228 = vadd.f32 %v149, %v227
    %v229 = vpop.f32.mrb[0].mxu0
    %v230 = vadd.f32 %v153, %v229
    %231 = vmatprep.mubr.f32.mxu0 0.0
    %232 = vmatmul.mubr.f32.gmra.mrb[0].mxu0 %v77
    %v233 = vpop.f32.mrb[0].mxu0
    %v234 = vadd.f32 %v149, %v233
    %v235 = vpop.f32.mrb[0].mxu0
    %v236 = vadd.f32 %v153, %v235
    %237 = vmatprep.mubr.f32.mxu0 0.0
    %238 = vmatmul.mubr.f32.gmra.mrb[0].mxu0 %v78
    %v239 = vpop.f32.mrb[0].mxu0
    %v240 = vadd.f32 %v149, %v239
    %v241 = vpop.f32.mrb[0].mxu0
    %v242 = vadd.f32 %v153, %v241
    %243 = vmatprep.mubr.f32.mxu0 0.0
    %244 = vmatmul.mubr.f32.gmra.mrb[0].mxu0 %v79
    %v245 = vpop.f32.mrb[0].mxu0
    %v246 = vadd.f32 %v149, %v245
    %v247 = vpop.f32.mrb[0].mxu0
    %v248 = vadd.f32 %v153, %v247
    %249 = vdwg.mxu0
    %250 = vmatprep.subr.mxu0 0.0
    %251 = vmatpush1.msra.mxu0 %v98
    %252 = vmatprep.subr.mxu0 0.0
    %253 = vmatpush1.msra.mxu0 %v101
    %254 = vmatprep.subr.mxu0 0.0
    %255 = vmatpush1.msra.mxu0 %v104
    %256 = vmatprep.subr.mxu0 0.0
    %257 = vmatpush1.msra.mxu0 %v107
    %258 = vmatprep.subr.mxu0 0.0
    %259 = vmatpush1.msra.mxu0 %v110
    %260 = vmatprep.subr.mxu0 0.0
    %261 = vmatpush1.msra.mxu0 %v113
    %262 = vmatprep.subr.mxu0 0.0
    %263 = vmatpush1.msra.mxu0 %v116
    %264 = vmatprep.subr.mxu0 0.0
    %265 = vmatpush1.msra.mxu0 %v119
    %266 = vmatprep.subr.mxu0 0.0
    %267 = vmatpush1.msra.mxu0 %v122
    %268 = vmatprep.subr.mxu0 0.0
    %269 = vmatpush1.msra.mxu0 %v125
    %270 = vmatprep.subr.mxu0 0.0
    %271 = vmatpush1.msra.mxu0 %v128
    %272 = vmatprep.subr.mxu0 0.0
    %273 = vmatpush1.msra.mxu0 %v131
    %274 = vmatprep.subr.mxu0 0.0
    %275 = vmatpush1.msra.mxu0 %v134
    %276 = vmatprep.subr.mxu0 0.0
    %277 = vmatpush1.msra.mxu0 %v137
    %278 = vmatprep.subr.mxu0 0.0
    %279 = vmatpush1.msra.mxu0 %v140
    %280 = vmatprep.subr.mxu0 0.0
    %281 = vmatpush1.msra.mxu0 %v143
    %282 = vmatprep.subr.mxu0 0.0
    %283 = vmatpush1.msra.mxu0 0.0
    %284 = vmatprep.subr.mxu0 0.0
    %285 = vmatpush1.msra.mxu0 0.0
    %286 = vmatprep.subr.mxu0 0.0
    %287 = vmatpush1.msra.mxu0 0.0
    %288 = vmatprep.subr.mxu0 0.0
    %289 = vmatpush1.msra.mxu0 0.0
    %290 = vmatprep.subr.mxu0 0.0
    %291 = vmatpush1.msra.mxu0 0.0
    %292 = vmatprep.subr.mxu0 0.0
    %293 = vmatpush1.msra.mxu0 0.0
    %294 = vmatprep.subr.mxu0 0.0
    %295 = vmatpush1.msra.mxu0 0.0
    %296 = vmatprep.subr.mxu0 0.0
    %297 = vmatpush1.msra.mxu0 0.0
    %298 = vmatprep.subr.mxu0 0.0
    %299 = vmatpush1.msra.mxu0 0.0
    %300 = vmatprep.subr.mxu0 0.0
    %301 = vmatpush1.msra.mxu0 0.0
    %302 = vmatprep.subr.mxu0 0.0
    %303 = vmatpush1.msra.mxu0 0.0
    %304 = vmatprep.subr.mxu0 0.0
    %305 = vmatpush1.msra.mxu0 0.0
    %306 = vmatprep.subr.mxu0 0.0
    %307 = vmatpush1.msra.mxu0 0.0
    %308 = vmatprep.subr.mxu0 0.0
    %309 = vmatpush1.msra.mxu0 0.0
    %310 = vmatprep.subr.mxu0 0.0
    %311 = vmatpush1.msra.mxu0 0.0
    %312 = vmatprep.subr.mxu0 0.0
    %313 = vmatpush1.msra.mxu0 0.0
    %314 = vmatprep.mubr.f32.mxu0 0.0
    %315 = vmatmul.mubr.f32.gmra.mrb[0].mxu0 %v76
    %v316 = vpop.f32.mrb[0].mxu0
    %v317 = vadd.f32 %v157, %v316
    %v318 = vpop.f32.mrb[0].mxu0
    %319 = vmatprep.mubr.f32.mxu0 0.0
    %320 = vmatmul.mubr.f32.gmra.mrb[0].mxu0 %v77
    %v321 = vpop.f32.mrb[0].mxu0
    %v322 = vadd.f32 %v157, %v321
    %v323 = vpop.f32.mrb[0].mxu0
    %324 = vmatprep.mubr.f32.mxu0 0.0
    %325 = vmatmul.mubr.f32.gmra.mrb[0].mxu0 %v78
    %v326 = vpop.f32.mrb[0].mxu0
    %v327 = vadd.f32 %v157, %v326
    %v328 = vpop.f32.mrb[0].mxu0
    %329 = vmatprep.mubr.f32.mxu0 0.0
    %330 = vmatmul.mubr.f32.gmra.mrb[0].mxu0 %v79
    %v331 = vpop.f32.mrb[0].mxu0
    %v332 = vadd.f32 %v157, %v331
    %v333 = vpop.f32.mrb[0].mxu0
    %334 = vdwg.mxu0
    %339 = vrot.lane.b32.xlu0 %v228, 96
    %v340 = vpop.permute.xlu0 %339
    %341 = vrot.lane.b32.xlu0 %v234, 96
    %v342 = vpop.permute.xlu0 %341
    %343 = vrot.lane.b32.xlu0 %v240, 96
    %v344 = vpop.permute.xlu0 %343
    %345 = vrot.lane.b32.xlu0 %v246, 96
    %v346 = vpop.permute.xlu0 %345
    %351 = vrot.lane.b32.xlu0 %v228, 64
    %v352 = vpop.permute.xlu0 %351
    %353 = vrot.lane.b32.xlu0 %v234, 64
    %v354 = vpop.permute.xlu0 %353
    %355 = vrot.lane.b32.xlu0 %v240, 64
    %v356 = vpop.permute.xlu0 %355
    %357 = vrot.lane.b32.xlu0 %v246, 64
    %v358 = vpop.permute.xlu0 %357
    %363 = vrot.lane.b32.xlu0 %v228, 32
    %v364 = vpop.permute.xlu0 %363
    %365 = vrot.lane.b32.xlu0 %v234, 32
    %v366 = vpop.permute.xlu0 %365
    %367 = vrot.lane.b32.xlu0 %v240, 32
    %v368 = vpop.permute.xlu0 %367
    %369 = vrot.lane.b32.xlu0 %v246, 32
    %v370 = vpop.permute.xlu0 %369
    %v375 = vcombine.low %v228, %v352
    %v376 = vcombine.high %v228, %v352
    %v378 = vunpack.c.l.s4 1983009808
    %v379 = vunpack.c.0.s8 %v378
    %v380 = vlaneseq
    %v381 = vshrl.u32 %v380, 7
    %v382 = vsub.s32 %v379, %v381
    %v383 = vrot.slane %v375, %v382
    %v385 = vunpack.c.l.s4 1983009808
    %v386 = vunpack.c.0.s8 %v385
    %v387 = vlaneseq
    %v388 = vshrl.u32 %v387, 7
    %v389 = vsub.s32 %v386, %v388
    %v390 = vrot.slane %v376, %v389
    %v391 = vcombine.low %v340, %v364
    %v392 = vcombine.high %v340, %v364
    %v394 = vunpack.c.l.s4 1983009808
    %v395 = vunpack.c.0.s8 %v394
    %v396 = vlaneseq
    %v397 = vshrl.u32 %v396, 7
    %v398 = vsub.s32 %v395, %v397
    %v399 = vrot.slane %v391, %v398
    %v401 = vunpack.c.l.s4 1983009808
    %v402 = vunpack.c.0.s8 %v401
    %v403 = vlaneseq
    %v404 = vshrl.u32 %v403, 7
    %v405 = vsub.s32 %v402, %v404
    %v406 = vrot.slane %v392, %v405
    %v407 = vcombine.low %v383, %v399
    %v408 = vcombine.high %v383, %v399
    %v410 = vunpack.c.l.s4 1934713408
    %v411 = vunpack.c.0.s8 %v410
    %v412 = vlaneseq
    %v413 = vshrl.u32 %v412, 7
    %v414 = vsub.s32 %v411, %v413
    %v415 = vrot.slane %v407, %v414
    %v417 = vunpack.c.l.s4 1934713408
    %v418 = vunpack.c.0.s8 %v417
    %v419 = vlaneseq
    %v420 = vshrl.u32 %v419, 7
    %v421 = vsub.s32 %v418, %v420
    %v422 = vrot.slane %v408, %v421
    %v423 = vcombine.low %v390, %v406
    %v424 = vcombine.high %v390, %v406
    %v426 = vunpack.c.l.s4 1934713408
    %v427 = vunpack.c.0.s8 %v426
    %v428 = vlaneseq
    %v429 = vshrl.u32 %v428, 7
    %v430 = vsub.s32 %v427, %v429
    %v431 = vrot.slane %v423, %v430
    %v433 = vunpack.c.l.s4 1934713408
    %v434 = vunpack.c.0.s8 %v433
    %v435 = vlaneseq
    %v436 = vshrl.u32 %v435, 7
    %v437 = vsub.s32 %v434, %v436
    %v438 = vrot.slane %v424, %v437
    %v439 = vcombine.high %v415, 0.0
    %v440 = vcombine.high %v422, 0.0
    %v441 = vcombine.high %v431, 0.0
    %v442 = vcombine.high %v438, 0.0
    %v443 = vcombine.low %v234, %v354
    %v444 = vcombine.high %v234, %v354
    %v446 = vunpack.c.l.s4 1983009808
    %v447 = vunpack.c.0.s8 %v446
    %v448 = vlaneseq
    %v449 = vshrl.u32 %v448, 7
    %v450 = vsub.s32 %v447, %v449
    %v451 = vrot.slane %v443, %v450
    %v453 = vunpack.c.l.s4 1983009808
    %v454 = vunpack.c.0.s8 %v453
    %v455 = vlaneseq
    %v456 = vshrl.u32 %v455, 7
    %v457 = vsub.s32 %v454, %v456
    %v458 = vrot.slane %v444, %v457
    %v459 = vcombine.low %v342, %v366
    %v460 = vcombine.high %v342, %v366
    %v462 = vunpack.c.l.s4 1983009808
    %v463 = vunpack.c.0.s8 %v462
    %v464 = vlaneseq
    %v465 = vshrl.u32 %v464, 7
    %v466 = vsub.s32 %v463, %v465
    %v467 = vrot.slane %v459, %v466
    %v469 = vunpack.c.l.s4 1983009808
    %v470 = vunpack.c.0.s8 %v469
    %v471 = vlaneseq
    %v472 = vshrl.u32 %v471, 7
    %v473 = vsub.s32 %v470, %v472
    %v474 = vrot.slane %v460, %v473
    %v475 = vcombine.low %v451, %v467
    %v476 = vcombine.high %v451, %v467
    %v478 = vunpack.c.l.s4 1934713408
    %v479 = vunpack.c.0.s8 %v478
    %v480 = vlaneseq
    %v481 = vshrl.u32 %v480, 7
    %v482 = vsub.s32 %v479, %v481
    %v483 = vrot.slane %v475, %v482
    %v485 = vunpack.c.l.s4 1934713408
    %v486 = vunpack.c.0.s8 %v485
    %v487 = vlaneseq
    %v488 = vshrl.u32 %v487, 7
    %v489 = vsub.s32 %v486, %v488
    %v490 = vrot.slane %v476, %v489
    %v491 = vcombine.low %v458, %v474
    %v492 = vcombine.high %v458, %v474
    %v494 = vunpack.c.l.s4 1934713408
    %v495 = vunpack.c.0.s8 %v494
    %v496 = vlaneseq
    %v497 = vshrl.u32 %v496, 7
    %v498 = vsub.s32 %v495, %v497
    %v499 = vrot.slane %v491, %v498
    %v501 = vunpack.c.l.s4 1934713408
    %v502 = vunpack.c.0.s8 %v501
    %v503 = vlaneseq
    %v504 = vshrl.u32 %v503, 7
    %v505 = vsub.s32 %v502, %v504
    %v506 = vrot.slane %v492, %v505
    %v507 = vcombine.high %v483, 0.0
    %v508 = vcombine.high %v490, 0.0
    %v509 = vcombine.high %v499, 0.0
    %v510 = vcombine.high %v506, 0.0
    %v511 = vcombine.low %v240, %v356
    %v512 = vcombine.high %v240, %v356
    %v514 = vunpack.c.l.s4 1983009808
    %v515 = vunpack.c.0.s8 %v514
    %v516 = vlaneseq
    %v517 = vshrl.u32 %v516, 7
    %v518 = vsub.s32 %v515, %v517
    %v519 = vrot.slane %v511, %v518
    %v521 = vunpack.c.l.s4 1983009808
    %v522 = vunpack.c.0.s8 %v521
    %v523 = vlaneseq
    %v524 = vshrl.u32 %v523, 7
    %v525 = vsub.s32 %v522, %v524
    %v526 = vrot.slane %v512, %v525
    %v527 = vcombine.low %v344, %v368
    %v528 = vcombine.high %v344, %v368
    %v530 = vunpack.c.l.s4 1983009808
    %v531 = vunpack.c.0.s8 %v530
    %v532 = vlaneseq
    %v533 = vshrl.u32 %v532, 7
    %v534 = vsub.s32 %v531, %v533
    %v535 = vrot.slane %v527, %v534
    %v537 = vunpack.c.l.s4 1983009808
    %v538 = vunpack.c.0.s8 %v537
    %v539 = vlaneseq
    %v540 = vshrl.u32 %v539, 7
    %v541 = vsub.s32 %v538, %v540
    %v542 = vrot.slane %v528, %v541
    %v543 = vcombine.low %v519, %v535
    %v544 = vcombine.high %v519, %v535
    %v546 = vunpack.c.l.s4 1934713408
    %v547 = vunpack.c.0.s8 %v546
    %v548 = vlaneseq
    %v549 = vshrl.u32 %v548, 7
    %v550 = vsub.s32 %v547, %v549
    %v551 = vrot.slane %v543, %v550
    %v553 = vunpack.c.l.s4 1934713408
    %v554 = vunpack.c.0.s8 %v553
    %v555 = vlaneseq
    %v556 = vshrl.u32 %v555, 7
    %v557 = vsub.s32 %v554, %v556
    %v558 = vrot.slane %v544, %v557
    %v559 = vcombine.low %v526, %v542
    %v560 = vcombine.high %v526, %v542
    %v562 = vunpack.c.l.s4 1934713408
    %v563 = vunpack.c.0.s8 %v562
    %v564 = vlaneseq
    %v565 = vshrl.u32 %v564, 7
    %v566 = vsub.s32 %v563, %v565
    %v567 = vrot.slane %v559, %v566
    %v569 = vunpack.c.l.s4 1934713408
    %v570 = vunpack.c.0.s8 %v569
    %v571 = vlaneseq
    %v572 = vshrl.u32 %v571, 7
    %v573 = vsub.s32 %v570, %v572
    %v574 = vrot.slane %v560, %v573
    %v575 = vcombine.high %v551, 0.0
    %v576 = vcombine.high %v558, 0.0
    %v577 = vcombine.high %v567, 0.0
    %v578 = vcombine.high %v574, 0.0
    %v579 = vcombine.low %v246, %v358
    %v580 = vcombine.high %v246, %v358
    %v582 = vunpack.c.l.s4 1983009808
    %v583 = vunpack.c.0.s8 %v582
    %v584 = vlaneseq
    %v585 = vshrl.u32 %v584, 7
    %v586 = vsub.s32 %v583, %v585
    %v587 = vrot.slane %v579, %v586
    %v589 = vunpack.c.l.s4 1983009808
    %v590 = vunpack.c.0.s8 %v589
    %v591 = vlaneseq
    %v592 = vshrl.u32 %v591, 7
    %v593 = vsub.s32 %v590, %v592
    %v594 = vrot.slane %v580, %v593
    %v595 = vcombine.low %v346, %v370
    %v596 = vcombine.high %v346, %v370
    %v598 = vunpack.c.l.s4 1983009808
    %v599 = vunpack.c.0.s8 %v598
    %v600 = vlaneseq
    %v601 = vshrl.u32 %v600, 7
    %v602 = vsub.s32 %v599, %v601
    %v603 = vrot.slane %v595, %v602
    %v605 = vunpack.c.l.s4 1983009808
    %v606 = vunpack.c.0.s8 %v605
    %v607 = vlaneseq
    %v608 = vshrl.u32 %v607, 7
    %v609 = vsub.s32 %v606, %v608
    %v610 = vrot.slane %v596, %v609
    %v611 = vcombine.low %v587, %v603
    %v612 = vcombine.high %v587, %v603
    %v614 = vunpack.c.l.s4 1934713408
    %v615 = vunpack.c.0.s8 %v614
    %v616 = vlaneseq
    %v617 = vshrl.u32 %v616, 7
    %v618 = vsub.s32 %v615, %v617
    %v619 = vrot.slane %v611, %v618
    %v621 = vunpack.c.l.s4 1934713408
    %v622 = vunpack.c.0.s8 %v621
    %v623 = vlaneseq
    %v624 = vshrl.u32 %v623, 7
    %v625 = vsub.s32 %v622, %v624
    %v626 = vrot.slane %v612, %v625
    %v627 = vcombine.low %v594, %v610
    %v628 = vcombine.high %v594, %v610
    %v630 = vunpack.c.l.s4 1934713408
    %v631 = vunpack.c.0.s8 %v630
    %v632 = vlaneseq
    %v633 = vshrl.u32 %v632, 7
    %v634 = vsub.s32 %v631, %v633
    %v635 = vrot.slane %v627, %v634
    %v637 = vunpack.c.l.s4 1934713408
    %v638 = vunpack.c.0.s8 %v637
    %v639 = vlaneseq
    %v640 = vshrl.u32 %v639, 7
    %v641 = vsub.s32 %v638, %v640
    %v642 = vrot.slane %v628, %v641
    %v643 = vcombine.high %v619, 0.0
    %v644 = vcombine.high %v626, 0.0
    %v645 = vcombine.high %v635, 0.0
    %v646 = vcombine.high %v642, 0.0
    %v647 = vcombine.low %v415, %v422
    %v649 = vunpack.c.l.s4 1983009808
    %v650 = vunpack.c.0.s8 %v649
    %v651 = vlaneseq
    %v652 = vshrl.u32 %v651, 7
    %v653 = vsub.s32 %v650, %v652
    %v654 = vrot.slane %v647, %v653
    %v655 = vcombine.low %v439, %v440
    %v657 = vunpack.c.l.s4 1983009808
    %v658 = vunpack.c.0.s8 %v657
    %v659 = vlaneseq
    %v660 = vshrl.u32 %v659, 7
    %v661 = vsub.s32 %v658, %v660
    %v662 = vrot.slane %v655, %v661
    %v663 = vcombine.low %v431, %v438
    %v665 = vunpack.c.l.s4 1983009808
    %v666 = vunpack.c.0.s8 %v665
    %v667 = vlaneseq
    %v668 = vshrl.u32 %v667, 7
    %v669 = vsub.s32 %v666, %v668
    %v670 = vrot.slane %v663, %v669
    %v671 = vcombine.low %v441, %v442
    %v673 = vunpack.c.l.s4 1983009808
    %v674 = vunpack.c.0.s8 %v673
    %v675 = vlaneseq
    %v676 = vshrl.u32 %v675, 7
    %v677 = vsub.s32 %v674, %v676
    %v678 = vrot.slane %v671, %v677
    %v679 = vcombine.low %v654, %v662
    %v680 = vcombine.high %v654, %v662
    %v682 = vunpack.c.l.s4 1934713408
    %v683 = vunpack.c.0.s8 %v682
    %v684 = vlaneseq
    %v685 = vshrl.u32 %v684, 7
    %v686 = vsub.s32 %v683, %v685
    %v687 = vrot.slane %v679, %v686
    %v689 = vunpack.c.l.s4 1934713408
    %v690 = vunpack.c.0.s8 %v689
    %v691 = vlaneseq
    %v692 = vshrl.u32 %v691, 7
    %v693 = vsub.s32 %v690, %v692
    %v694 = vrot.slane %v680, %v693
    %v695 = vcombine.low %v670, %v678
    %v696 = vcombine.high %v670, %v678
    %v698 = vunpack.c.l.s4 1934713408
    %v699 = vunpack.c.0.s8 %v698
    %v700 = vlaneseq
    %v701 = vshrl.u32 %v700, 7
    %v702 = vsub.s32 %v699, %v701
    %v703 = vrot.slane %v695, %v702
    %v705 = vunpack.c.l.s4 1934713408
    %v706 = vunpack.c.0.s8 %v705
    %v707 = vlaneseq
    %v708 = vshrl.u32 %v707, 7
    %v709 = vsub.s32 %v706, %v708
    %v710 = vrot.slane %v696, %v709
    %v711 = vcombine.low %v687, %v703
    %v712 = vcombine.high %v687, %v703
    %v713 = vcombine.low %v694, %v710
    %v714 = vcombine.high %v694, %v710
    %v715 = vcombine.low %v483, %v490
    %v717 = vunpack.c.l.s4 1983009808
    %v718 = vunpack.c.0.s8 %v717
    %v719 = vlaneseq
    %v720 = vshrl.u32 %v719, 7
    %v721 = vsub.s32 %v718, %v720
    %v722 = vrot.slane %v715, %v721
    %v723 = vcombine.low %v507, %v508
    %v725 = vunpack.c.l.s4 1983009808
    %v726 = vunpack.c.0.s8 %v725
    %v727 = vlaneseq
    %v728 = vshrl.u32 %v727, 7
    %v729 = vsub.s32 %v726, %v728
    %v730 = vrot.slane %v723, %v729
    %v731 = vcombine.low %v499, %v506
    %v733 = vunpack.c.l.s4 1983009808
    %v734 = vunpack.c.0.s8 %v733
    %v735 = vlaneseq
    %v736 = vshrl.u32 %v735, 7
    %v737 = vsub.s32 %v734, %v736
    %v738 = vrot.slane %v731, %v737
    %v739 = vcombine.low %v509, %v510
    %v741 = vunpack.c.l.s4 1983009808
    %v742 = vunpack.c.0.s8 %v741
    %v743 = vlaneseq
    %v744 = vshrl.u32 %v743, 7
    %v745 = vsub.s32 %v742, %v744
    %v746 = vrot.slane %v739, %v745
    %v747 = vcombine.low %v722, %v730
    %v748 = vcombine.high %v722, %v730
    %v750 = vunpack.c.l.s4 1934713408
    %v751 = vunpack.c.0.s8 %v750
    %v752 = vlaneseq
    %v753 = vshrl.u32 %v752, 7
    %v754 = vsub.s32 %v751, %v753
    %v755 = vrot.slane %v747, %v754
    %v757 = vunpack.c.l.s4 1934713408
    %v758 = vunpack.c.0.s8 %v757
    %v759 = vlaneseq
    %v760 = vshrl.u32 %v759, 7
    %v761 = vsub.s32 %v758, %v760
    %v762 = vrot.slane %v748, %v761
    %v763 = vcombine.low %v738, %v746
    %v764 = vcombine.high %v738, %v746
    %v766 = vunpack.c.l.s4 1934713408
    %v767 = vunpack.c.0.s8 %v766
    %v768 = vlaneseq
    %v769 = vshrl.u32 %v768, 7
    %v770 = vsub.s32 %v767, %v769
    %v771 = vrot.slane %v763, %v770
    %v773 = vunpack.c.l.s4 1934713408
    %v774 = vunpack.c.0.s8 %v773
    %v775 = vlaneseq
    %v776 = vshrl.u32 %v775, 7
    %v777 = vsub.s32 %v774, %v776
    %v778 = vrot.slane %v764, %v777
    %v779 = vcombine.low %v755, %v771
    %v780 = vcombine.high %v755, %v771
    %v781 = vcombine.low %v762, %v778
    %v782 = vcombine.high %v762, %v778
    %v783 = vcombine.low %v551, %v558
    %v785 = vunpack.c.l.s4 1983009808
    %v786 = vunpack.c.0.s8 %v785
    %v787 = vlaneseq
    %v788 = vshrl.u32 %v787, 7
    %v789 = vsub.s32 %v786, %v788
    %v790 = vrot.slane %v783, %v789
    %v791 = vcombine.low %v575, %v576
    %v793 = vunpack.c.l.s4 1983009808
    %v794 = vunpack.c.0.s8 %v793
    %v795 = vlaneseq
    %v796 = vshrl.u32 %v795, 7
    %v797 = vsub.s32 %v794, %v796
    %v798 = vrot.slane %v791, %v797
    %v799 = vcombine.low %v567, %v574
    %v801 = vunpack.c.l.s4 1983009808
    %v802 = vunpack.c.0.s8 %v801
    %v803 = vlaneseq
    %v804 = vshrl.u32 %v803, 7
    %v805 = vsub.s32 %v802, %v804
    %v806 = vrot.slane %v799, %v805
    %v807 = vcombine.low %v577, %v578
    %v809 = vunpack.c.l.s4 1983009808
    %v810 = vunpack.c.0.s8 %v809
    %v811 = vlaneseq
    %v812 = vshrl.u32 %v811, 7
    %v813 = vsub.s32 %v810, %v812
    %v814 = vrot.slane %v807, %v813
    %v815 = vcombine.low %v790, %v798
    %v816 = vcombine.high %v790, %v798
    %v818 = vunpack.c.l.s4 1934713408
    %v819 = vunpack.c.0.s8 %v818
    %v820 = vlaneseq
    %v821 = vshrl.u32 %v820, 7
    %v822 = vsub.s32 %v819, %v821
    %v823 = vrot.slane %v815, %v822
    %v825 = vunpack.c.l.s4 1934713408
    %v826 = vunpack.c.0.s8 %v825
    %v827 = vlaneseq
    %v828 = vshrl.u32 %v827, 7
    %v829 = vsub.s32 %v826, %v828
    %v830 = vrot.slane %v816, %v829
    %v831 = vcombine.low %v806, %v814
    %v832 = vcombine.high %v806, %v814
    %v834 = vunpack.c.l.s4 1934713408
    %v835 = vunpack.c.0.s8 %v834
    %v836 = vlaneseq
    %v837 = vshrl.u32 %v836, 7
    %v838 = vsub.s32 %v835, %v837
    %v839 = vrot.slane %v831, %v838
    %v841 = vunpack.c.l.s4 1934713408
    %v842 = vunpack.c.0.s8 %v841
    %v843 = vlaneseq
    %v844 = vshrl.u32 %v843, 7
    %v845 = vsub.s32 %v842, %v844
    %v846 = vrot.slane %v832, %v845
    %v847 = vcombine.low %v823, %v839
    %v848 = vcombine.high %v823, %v839
    %v849 = vcombine.low %v830, %v846
    %v850 = vcombine.high %v830, %v846
    %v851 = vcombine.low %v619, %v626
    %v853 = vunpack.c.l.s4 1983009808
    %v854 = vunpack.c.0.s8 %v853
    %v855 = vlaneseq
    %v856 = vshrl.u32 %v855, 7
    %v857 = vsub.s32 %v854, %v856
    %v858 = vrot.slane %v851, %v857
    %v859 = vcombine.low %v643, %v644
    %v861 = vunpack.c.l.s4 1983009808
    %v862 = vunpack.c.0.s8 %v861
    %v863 = vlaneseq
    %v864 = vshrl.u32 %v863, 7
    %v865 = vsub.s32 %v862, %v864
    %v866 = vrot.slane %v859, %v865
    %v867 = vcombine.low %v635, %v642
    %v869 = vunpack.c.l.s4 1983009808
    %v870 = vunpack.c.0.s8 %v869
    %v871 = vlaneseq
    %v872 = vshrl.u32 %v871, 7
    %v873 = vsub.s32 %v870, %v872
    %v874 = vrot.slane %v867, %v873
    %v875 = vcombine.low %v645, %v646
    %v877 = vunpack.c.l.s4 1983009808
    %v878 = vunpack.c.0.s8 %v877
    %v879 = vlaneseq
    %v880 = vshrl.u32 %v879, 7
    %v881 = vsub.s32 %v878, %v880
    %v882 = vrot.slane %v875, %v881
    %v883 = vcombine.low %v858, %v866
    %v884 = vcombine.high %v858, %v866
    %v886 = vunpack.c.l.s4 1934713408
    %v887 = vunpack.c.0.s8 %v886
    %v888 = vlaneseq
    %v889 = vshrl.u32 %v888, 7
    %v890 = vsub.s32 %v887, %v889
    %v891 = vrot.slane %v883, %v890
    %v893 = vunpack.c.l.s4 1934713408
    %v894 = vunpack.c.0.s8 %v893
    %v895 = vlaneseq
    %v896 = vshrl.u32 %v895, 7
    %v897 = vsub.s32 %v894, %v896
    %v898 = vrot.slane %v884, %v897
    %v899 = vcombine.low %v874, %v882
    %v900 = vcombine.high %v874, %v882
    %v902 = vunpack.c.l.s4 1934713408
    %v903 = vunpack.c.0.s8 %v902
    %v904 = vlaneseq
    %v905 = vshrl.u32 %v904, 7
    %v906 = vsub.s32 %v903, %v905
    %v907 = vrot.slane %v899, %v906
    %v909 = vunpack.c.l.s4 1934713408
    %v910 = vunpack.c.0.s8 %v909
    %v911 = vlaneseq
    %v912 = vshrl.u32 %v911, 7
    %v913 = vsub.s32 %v910, %v912
    %v914 = vrot.slane %v900, %v913
    %v915 = vcombine.low %v891, %v907
    %v916 = vcombine.high %v891, %v907
    %v917 = vcombine.low %v898, %v914
    %v918 = vcombine.high %v898, %v914
    %923 = vrot.lane.b32.xlu0 %v230, 96
    %v924 = vpop.permute.xlu0 %923
    %925 = vrot.lane.b32.xlu0 %v236, 96
    %v926 = vpop.permute.xlu0 %925
    %927 = vrot.lane.b32.xlu0 %v242, 96
    %v928 = vpop.permute.xlu0 %927
    %929 = vrot.lane.b32.xlu0 %v248, 96
    %v930 = vpop.permute.xlu0 %929
    %935 = vrot.lane.b32.xlu0 %v230, 64
    %v936 = vpop.permute.xlu0 %935
    %937 = vrot.lane.b32.xlu0 %v236, 64
    %v938 = vpop.permute.xlu0 %937
    %939 = vrot.lane.b32.xlu0 %v242, 64
    %v940 = vpop.permute.xlu0 %939
    %941 = vrot.lane.b32.xlu0 %v248, 64
    %v942 = vpop.permute.xlu0 %941
    %947 = vrot.lane.b32.xlu0 %v230, 32
    %v948 = vpop.permute.xlu0 %947
    %949 = vrot.lane.b32.xlu0 %v236, 32
    %v950 = vpop.permute.xlu0 %949
    %951 = vrot.lane.b32.xlu0 %v242, 32
    %v952 = vpop.permute.xlu0 %951
    %953 = vrot.lane.b32.xlu0 %v248, 32
    %v954 = vpop.permute.xlu0 %953
    %v959 = vcombine.low %v230, %v936
    %v960 = vcombine.high %v230, %v936
    %v962 = vunpack.c.l.s4 1983009808
    %v963 = vunpack.c.0.s8 %v962
    %v964 = vlaneseq
    %v965 = vshrl.u32 %v964, 7
    %v966 = vsub.s32 %v963, %v965
    %v967 = vrot.slane %v959, %v966
    %v969 = vunpack.c.l.s4 1983009808
    %v970 = vunpack.c.0.s8 %v969
    %v971 = vlaneseq
    %v972 = vshrl.u32 %v971, 7
    %v973 = vsub.s32 %v970, %v972
    %v974 = vrot.slane %v960, %v973
    %v975 = vcombine.low %v924, %v948
    %v976 = vcombine.high %v924, %v948
    %v978 = vunpack.c.l.s4 1983009808
    %v979 = vunpack.c.0.s8 %v978
    %v980 = vlaneseq
    %v981 = vshrl.u32 %v980, 7
    %v982 = vsub.s32 %v979, %v981
    %v983 = vrot.slane %v975, %v982
    %v985 = vunpack.c.l.s4 1983009808
    %v986 = vunpack.c.0.s8 %v985
    %v987 = vlaneseq
    %v988 = vshrl.u32 %v987, 7
    %v989 = vsub.s32 %v986, %v988
    %v990 = vrot.slane %v976, %v989
    %v991 = vcombine.low %v967, %v983
    %v992 = vcombine.high %v967, %v983
    %v994 = vunpack.c.l.s4 1934713408
    %v995 = vunpack.c.0.s8 %v994
    %v996 = vlaneseq
    %v997 = vshrl.u32 %v996, 7
    %v998 = vsub.s32 %v995, %v997
    %v999 = vrot.slane %v991, %v998
    %v1001 = vunpack.c.l.s4 1934713408
    %v1002 = vunpack.c.0.s8 %v1001
    %v1003 = vlaneseq
    %v1004 = vshrl.u32 %v1003, 7
    %v1005 = vsub.s32 %v1002, %v1004
    %v1006 = vrot.slane %v992, %v1005
    %v1007 = vcombine.low %v974, %v990
    %v1008 = vcombine.high %v974, %v990
    %v1010 = vunpack.c.l.s4 1934713408
    %v1011 = vunpack.c.0.s8 %v1010
    %v1012 = vlaneseq
    %v1013 = vshrl.u32 %v1012, 7
    %v1014 = vsub.s32 %v1011, %v1013
    %v1015 = vrot.slane %v1007, %v1014
    %v1017 = vunpack.c.l.s4 1934713408
    %v1018 = vunpack.c.0.s8 %v1017
    %v1019 = vlaneseq
    %v1020 = vshrl.u32 %v1019, 7
    %v1021 = vsub.s32 %v1018, %v1020
    %v1022 = vrot.slane %v1008, %v1021
    %v1023 = vcombine.high %v999, 0.0
    %v1024 = vcombine.high %v1006, 0.0
    %v1025 = vcombine.high %v1015, 0.0
    %v1026 = vcombine.high %v1022, 0.0
    %v1027 = vcombine.low %v236, %v938
    %v1028 = vcombine.high %v236, %v938
    %v1030 = vunpack.c.l.s4 1983009808
    %v1031 = vunpack.c.0.s8 %v1030
    %v1032 = vlaneseq
    %v1033 = vshrl.u32 %v1032, 7
    %v1034 = vsub.s32 %v1031, %v1033
    %v1035 = vrot.slane %v1027, %v1034
    %v1037 = vunpack.c.l.s4 1983009808
    %v1038 = vunpack.c.0.s8 %v1037
    %v1039 = vlaneseq
    %v1040 = vshrl.u32 %v1039, 7
    %v1041 = vsub.s32 %v1038, %v1040
    %v1042 = vrot.slane %v1028, %v1041
    %v1043 = vcombine.low %v926, %v950
    %v1044 = vcombine.high %v926, %v950
    %v1046 = vunpack.c.l.s4 1983009808
    %v1047 = vunpack.c.0.s8 %v1046
    %v1048 = vlaneseq
    %v1049 = vshrl.u32 %v1048, 7
    %v1050 = vsub.s32 %v1047, %v1049
    %v1051 = vrot.slane %v1043, %v1050
    %v1053 = vunpack.c.l.s4 1983009808
    %v1054 = vunpack.c.0.s8 %v1053
    %v1055 = vlaneseq
    %v1056 = vshrl.u32 %v1055, 7
    %v1057 = vsub.s32 %v1054, %v1056
    %v1058 = vrot.slane %v1044, %v1057
    %v1059 = vcombine.low %v1035, %v1051
    %v1060 = vcombine.high %v1035, %v1051
    %v1062 = vunpack.c.l.s4 1934713408
    %v1063 = vunpack.c.0.s8 %v1062
    %v1064 = vlaneseq
    %v1065 = vshrl.u32 %v1064, 7
    %v1066 = vsub.s32 %v1063, %v1065
    %v1067 = vrot.slane %v1059, %v1066
    %v1069 = vunpack.c.l.s4 1934713408
    %v1070 = vunpack.c.0.s8 %v1069
    %v1071 = vlaneseq
    %v1072 = vshrl.u32 %v1071, 7
    %v1073 = vsub.s32 %v1070, %v1072
    %v1074 = vrot.slane %v1060, %v1073
    %v1075 = vcombine.low %v1042, %v1058
    %v1076 = vcombine.high %v1042, %v1058
    %v1078 = vunpack.c.l.s4 1934713408
    %v1079 = vunpack.c.0.s8 %v1078
    %v1080 = vlaneseq
    %v1081 = vshrl.u32 %v1080, 7
    %v1082 = vsub.s32 %v1079, %v1081
    %v1083 = vrot.slane %v1075, %v1082
    %v1085 = vunpack.c.l.s4 1934713408
    %v1086 = vunpack.c.0.s8 %v1085
    %v1087 = vlaneseq
    %v1088 = vshrl.u32 %v1087, 7
    %v1089 = vsub.s32 %v1086, %v1088
    %v1090 = vrot.slane %v1076, %v1089
    %v1091 = vcombine.high %v1067, 0.0
    %v1092 = vcombine.high %v1074, 0.0
    %v1093 = vcombine.high %v1083, 0.0
    %v1094 = vcombine.high %v1090, 0.0
    %v1095 = vcombine.low %v242, %v940
    %v1096 = vcombine.high %v242, %v940
    %v1098 = vunpack.c.l.s4 1983009808
    %v1099 = vunpack.c.0.s8 %v1098
    %v1100 = vlaneseq
    %v1101 = vshrl.u32 %v1100, 7
    %v1102 = vsub.s32 %v1099, %v1101
    %v1103 = vrot.slane %v1095, %v1102
    %v1105 = vunpack.c.l.s4 1983009808
    %v1106 = vunpack.c.0.s8 %v1105
    %v1107 = vlaneseq
    %v1108 = vshrl.u32 %v1107, 7
    %v1109 = vsub.s32 %v1106, %v1108
    %v1110 = vrot.slane %v1096, %v1109
    %v1111 = vcombine.low %v928, %v952
    %v1112 = vcombine.high %v928, %v952
    %v1114 = vunpack.c.l.s4 1983009808
    %v1115 = vunpack.c.0.s8 %v1114
    %v1116 = vlaneseq
    %v1117 = vshrl.u32 %v1116, 7
    %v1118 = vsub.s32 %v1115, %v1117
    %v1119 = vrot.slane %v1111, %v1118
    %v1121 = vunpack.c.l.s4 1983009808
    %v1122 = vunpack.c.0.s8 %v1121
    %v1123 = vlaneseq
    %v1124 = vshrl.u32 %v1123, 7
    %v1125 = vsub.s32 %v1122, %v1124
    %v1126 = vrot.slane %v1112, %v1125
    %v1127 = vcombine.low %v1103, %v1119
    %v1128 = vcombine.high %v1103, %v1119
    %v1130 = vunpack.c.l.s4 1934713408
    %v1131 = vunpack.c.0.s8 %v1130
    %v1132 = vlaneseq
    %v1133 = vshrl.u32 %v1132, 7
    %v1134 = vsub.s32 %v1131, %v1133
    %v1135 = vrot.slane %v1127, %v1134
    %v1137 = vunpack.c.l.s4 1934713408
    %v1138 = vunpack.c.0.s8 %v1137
    %v1139 = vlaneseq
    %v1140 = vshrl.u32 %v1139, 7
    %v1141 = vsub.s32 %v1138, %v1140
    %v1142 = vrot.slane %v1128, %v1141
    %v1143 = vcombine.low %v1110, %v1126
    %v1144 = vcombine.high %v1110, %v1126
    %v1146 = vunpack.c.l.s4 1934713408
    %v1147 = vunpack.c.0.s8 %v1146
    %v1148 = vlaneseq
    %v1149 = vshrl.u32 %v1148, 7
    %v1150 = vsub.s32 %v1147, %v1149
    %v1151 = vrot.slane %v1143, %v1150
    %v1153 = vunpack.c.l.s4 1934713408
    %v1154 = vunpack.c.0.s8 %v1153
    %v1155 = vlaneseq
    %v1156 = vshrl.u32 %v1155, 7
    %v1157 = vsub.s32 %v1154, %v1156
    %v1158 = vrot.slane %v1144, %v1157
    %v1159 = vcombine.high %v1135, 0.0
    %v1160 = vcombine.high %v1142, 0.0
    %v1161 = vcombine.high %v1151, 0.0
    %v1162 = vcombine.high %v1158, 0.0
    %v1163 = vcombine.low %v248, %v942
    %v1164 = vcombine.high %v248, %v942
    %v1166 = vunpack.c.l.s4 1983009808
    %v1167 = vunpack.c.0.s8 %v1166
    %v1168 = vlaneseq
    %v1169 = vshrl.u32 %v1168, 7
    %v1170 = vsub.s32 %v1167, %v1169
    %v1171 = vrot.slane %v1163, %v1170
    %v1173 = vunpack.c.l.s4 1983009808
    %v1174 = vunpack.c.0.s8 %v1173
    %v1175 = vlaneseq
    %v1176 = vshrl.u32 %v1175, 7
    %v1177 = vsub.s32 %v1174, %v1176
    %v1178 = vrot.slane %v1164, %v1177
    %v1179 = vcombine.low %v930, %v954
    %v1180 = vcombine.high %v930, %v954
    %v1182 = vunpack.c.l.s4 1983009808
    %v1183 = vunpack.c.0.s8 %v1182
    %v1184 = vlaneseq
    %v1185 = vshrl.u32 %v1184, 7
    %v1186 = vsub.s32 %v1183, %v1185
    %v1187 = vrot.slane %v1179, %v1186
    %v1189 = vunpack.c.l.s4 1983009808
    %v1190 = vunpack.c.0.s8 %v1189
    %v1191 = vlaneseq
    %v1192 = vshrl.u32 %v1191, 7
    %v1193 = vsub.s32 %v1190, %v1192
    %v1194 = vrot.slane %v1180, %v1193
    %v1195 = vcombine.low %v1171, %v1187
    %v1196 = vcombine.high %v1171, %v1187
    %v1198 = vunpack.c.l.s4 1934713408
    %v1199 = vunpack.c.0.s8 %v1198
    %v1200 = vlaneseq
    %v1201 = vshrl.u32 %v1200, 7
    %v1202 = vsub.s32 %v1199, %v1201
    %v1203 = vrot.slane %v1195, %v1202
    %v1205 = vunpack.c.l.s4 1934713408
    %v1206 = vunpack.c.0.s8 %v1205
    %v1207 = vlaneseq
    %v1208 = vshrl.u32 %v1207, 7
    %v1209 = vsub.s32 %v1206, %v1208
    %v1210 = vrot.slane %v1196, %v1209
    %v1211 = vcombine.low %v1178, %v1194
    %v1212 = vcombine.high %v1178, %v1194
    %v1214 = vunpack.c.l.s4 1934713408
    %v1215 = vunpack.c.0.s8 %v1214
    %v1216 = vlaneseq
    %v1217 = vshrl.u32 %v1216, 7
    %v1218 = vsub.s32 %v1215, %v1217
    %v1219 = vrot.slane %v1211, %v1218
    %v1221 = vunpack.c.l.s4 1934713408
    %v1222 = vunpack.c.0.s8 %v1221
    %v1223 = vlaneseq
    %v1224 = vshrl.u32 %v1223, 7
    %v1225 = vsub.s32 %v1222, %v1224
    %v1226 = vrot.slane %v1212, %v1225
    %v1227 = vcombine.high %v1203, 0.0
    %v1228 = vcombine.high %v1210, 0.0
    %v1229 = vcombine.high %v1219, 0.0
    %v1230 = vcombine.high %v1226, 0.0
    %v1231 = vcombine.low %v999, %v1006
    %v1233 = vunpack.c.l.s4 1983009808
    %v1234 = vunpack.c.0.s8 %v1233
    %v1235 = vlaneseq
    %v1236 = vshrl.u32 %v1235, 7
    %v1237 = vsub.s32 %v1234, %v1236
    %v1238 = vrot.slane %v1231, %v1237
    %v1239 = vcombine.low %v1023, %v1024
    %v1241 = vunpack.c.l.s4 1983009808
    %v1242 = vunpack.c.0.s8 %v1241
    %v1243 = vlaneseq
    %v1244 = vshrl.u32 %v1243, 7
    %v1245 = vsub.s32 %v1242, %v1244
    %v1246 = vrot.slane %v1239, %v1245
    %v1247 = vcombine.low %v1015, %v1022
    %v1249 = vunpack.c.l.s4 1983009808
    %v1250 = vunpack.c.0.s8 %v1249
    %v1251 = vlaneseq
    %v1252 = vshrl.u32 %v1251, 7
    %v1253 = vsub.s32 %v1250, %v1252
    %v1254 = vrot.slane %v1247, %v1253
    %v1255 = vcombine.low %v1025, %v1026
    %v1257 = vunpack.c.l.s4 1983009808
    %v1258 = vunpack.c.0.s8 %v1257
    %v1259 = vlaneseq
    %v1260 = vshrl.u32 %v1259, 7
    %v1261 = vsub.s32 %v1258, %v1260
    %v1262 = vrot.slane %v1255, %v1261
    %v1263 = vcombine.low %v1238, %v1246
    %v1264 = vcombine.high %v1238, %v1246
    %v1266 = vunpack.c.l.s4 1934713408
    %v1267 = vunpack.c.0.s8 %v1266
    %v1268 = vlaneseq
    %v1269 = vshrl.u32 %v1268, 7
    %v1270 = vsub.s32 %v1267, %v1269
    %v1271 = vrot.slane %v1263, %v1270
    %v1273 = vunpack.c.l.s4 1934713408
    %v1274 = vunpack.c.0.s8 %v1273
    %v1275 = vlaneseq
    %v1276 = vshrl.u32 %v1275, 7
    %v1277 = vsub.s32 %v1274, %v1276
    %v1278 = vrot.slane %v1264, %v1277
    %v1279 = vcombine.low %v1254, %v1262
    %v1280 = vcombine.high %v1254, %v1262
    %v1282 = vunpack.c.l.s4 1934713408
    %v1283 = vunpack.c.0.s8 %v1282
    %v1284 = vlaneseq
    %v1285 = vshrl.u32 %v1284, 7
    %v1286 = vsub.s32 %v1283, %v1285
    %v1287 = vrot.slane %v1279, %v1286
    %v1289 = vunpack.c.l.s4 1934713408
    %v1290 = vunpack.c.0.s8 %v1289
    %v1291 = vlaneseq
    %v1292 = vshrl.u32 %v1291, 7
    %v1293 = vsub.s32 %v1290, %v1292
    %v1294 = vrot.slane %v1280, %v1293
    %v1295 = vcombine.low %v1271, %v1287
    %v1296 = vcombine.high %v1271, %v1287
    %v1297 = vcombine.low %v1278, %v1294
    %v1298 = vcombine.high %v1278, %v1294
    %v1299 = vcombine.low %v1067, %v1074
    %v1301 = vunpack.c.l.s4 1983009808
    %v1302 = vunpack.c.0.s8 %v1301
    %v1303 = vlaneseq
    %v1304 = vshrl.u32 %v1303, 7
    %v1305 = vsub.s32 %v1302, %v1304
    %v1306 = vrot.slane %v1299, %v1305
    %v1307 = vcombine.low %v1091, %v1092
    %v1309 = vunpack.c.l.s4 1983009808
    %v1310 = vunpack.c.0.s8 %v1309
    %v1311 = vlaneseq
    %v1312 = vshrl.u32 %v1311, 7
    %v1313 = vsub.s32 %v1310, %v1312
    %v1314 = vrot.slane %v1307, %v1313
    %v1315 = vcombine.low %v1083, %v1090
    %v1317 = vunpack.c.l.s4 1983009808
    %v1318 = vunpack.c.0.s8 %v1317
    %v1319 = vlaneseq
    %v1320 = vshrl.u32 %v1319, 7
    %v1321 = vsub.s32 %v1318, %v1320
    %v1322 = vrot.slane %v1315, %v1321
    %v1323 = vcombine.low %v1093, %v1094
    %v1325 = vunpack.c.l.s4 1983009808
    %v1326 = vunpack.c.0.s8 %v1325
    %v1327 = vlaneseq
    %v1328 = vshrl.u32 %v1327, 7
    %v1329 = vsub.s32 %v1326, %v1328
    %v1330 = vrot.slane %v1323, %v1329
    %v1331 = vcombine.low %v1306, %v1314
    %v1332 = vcombine.high %v1306, %v1314
    %v1334 = vunpack.c.l.s4 1934713408
    %v1335 = vunpack.c.0.s8 %v1334
    %v1336 = vlaneseq
    %v1337 = vshrl.u32 %v1336, 7
    %v1338 = vsub.s32 %v1335, %v1337
    %v1339 = vrot.slane %v1331, %v1338
    %v1341 = vunpack.c.l.s4 1934713408
    %v1342 = vunpack.c.0.s8 %v1341
    %v1343 = vlaneseq
    %v1344 = vshrl.u32 %v1343, 7
    %v1345 = vsub.s32 %v1342, %v1344
    %v1346 = vrot.slane %v1332, %v1345
    %v1347 = vcombine.low %v1322, %v1330
    %v1348 = vcombine.high %v1322, %v1330
    %v1350 = vunpack.c.l.s4 1934713408
    %v1351 = vunpack.c.0.s8 %v1350
    %v1352 = vlaneseq
    %v1353 = vshrl.u32 %v1352, 7
    %v1354 = vsub.s32 %v1351, %v1353
    %v1355 = vrot.slane %v1347, %v1354
    %v1357 = vunpack.c.l.s4 1934713408
    %v1358 = vunpack.c.0.s8 %v1357
    %v1359 = vlaneseq
    %v1360 = vshrl.u32 %v1359, 7
    %v1361 = vsub.s32 %v1358, %v1360
    %v1362 = vrot.slane %v1348, %v1361
    %v1363 = vcombine.low %v1339, %v1355
    %v1364 = vcombine.high %v1339, %v1355
    %v1365 = vcombine.low %v1346, %v1362
    %v1366 = vcombine.high %v1346, %v1362
    %v1367 = vcombine.low %v1135, %v1142
    %v1369 = vunpack.c.l.s4 1983009808
    %v1370 = vunpack.c.0.s8 %v1369
    %v1371 = vlaneseq
    %v1372 = vshrl.u32 %v1371, 7
    %v1373 = vsub.s32 %v1370, %v1372
    %v1374 = vrot.slane %v1367, %v1373
    %v1375 = vcombine.low %v1159, %v1160
    %v1377 = vunpack.c.l.s4 1983009808
    %v1378 = vunpack.c.0.s8 %v1377
    %v1379 = vlaneseq
    %v1380 = vshrl.u32 %v1379, 7
    %v1381 = vsub.s32 %v1378, %v1380
    %v1382 = vrot.slane %v1375, %v1381
    %v1383 = vcombine.low %v1151, %v1158
    %v1385 = vunpack.c.l.s4 1983009808
    %v1386 = vunpack.c.0.s8 %v1385
    %v1387 = vlaneseq
    %v1388 = vshrl.u32 %v1387, 7
    %v1389 = vsub.s32 %v1386, %v1388
    %v1390 = vrot.slane %v1383, %v1389
    %v1391 = vcombine.low %v1161, %v1162
    %v1393 = vunpack.c.l.s4 1983009808
    %v1394 = vunpack.c.0.s8 %v1393
    %v1395 = vlaneseq
    %v1396 = vshrl.u32 %v1395, 7
    %v1397 = vsub.s32 %v1394, %v1396
    %v1398 = vrot.slane %v1391, %v1397
    %v1399 = vcombine.low %v1374, %v1382
    %v1400 = vcombine.high %v1374, %v1382
    %v1402 = vunpack.c.l.s4 1934713408
    %v1403 = vunpack.c.0.s8 %v1402
    %v1404 = vlaneseq
    %v1405 = vshrl.u32 %v1404, 7
    %v1406 = vsub.s32 %v1403, %v1405
    %v1407 = vrot.slane %v1399, %v1406
    %v1409 = vunpack.c.l.s4 1934713408
    %v1410 = vunpack.c.0.s8 %v1409
    %v1411 = vlaneseq
    %v1412 = vshrl.u32 %v1411, 7
    %v1413 = vsub.s32 %v1410, %v1412
    %v1414 = vrot.slane %v1400, %v1413
    %v1415 = vcombine.low %v1390, %v1398
    %v1416 = vcombine.high %v1390, %v1398
    %v1418 = vunpack.c.l.s4 1934713408
    %v1419 = vunpack.c.0.s8 %v1418
    %v1420 = vlaneseq
    %v1421 = vshrl.u32 %v1420, 7
    %v1422 = vsub.s32 %v1419, %v1421
    %v1423 = vrot.slane %v1415, %v1422
    %v1425 = vunpack.c.l.s4 1934713408
    %v1426 = vunpack.c.0.s8 %v1425
    %v1427 = vlaneseq
    %v1428 = vshrl.u32 %v1427, 7
    %v1429 = vsub.s32 %v1426, %v1428
    %v1430 = vrot.slane %v1416, %v1429
    %v1431 = vcombine.low %v1407, %v1423
    %v1432 = vcombine.high %v1407, %v1423
    %v1433 = vcombine.low %v1414, %v1430
    %v1434 = vcombine.high %v1414, %v1430
    %v1435 = vcombine.low %v1203, %v1210
    %v1437 = vunpack.c.l.s4 1983009808
    %v1438 = vunpack.c.0.s8 %v1437
    %v1439 = vlaneseq
    %v1440 = vshrl.u32 %v1439, 7
    %v1441 = vsub.s32 %v1438, %v1440
    %v1442 = vrot.slane %v1435, %v1441
    %v1443 = vcombine.low %v1227, %v1228
    %v1445 = vunpack.c.l.s4 1983009808
    %v1446 = vunpack.c.0.s8 %v1445
    %v1447 = vlaneseq
    %v1448 = vshrl.u32 %v1447, 7
    %v1449 = vsub.s32 %v1446, %v1448
    %v1450 = vrot.slane %v1443, %v1449
    %v1451 = vcombine.low %v1219, %v1226
    %v1453 = vunpack.c.l.s4 1983009808
    %v1454 = vunpack.c.0.s8 %v1453
    %v1455 = vlaneseq
    %v1456 = vshrl.u32 %v1455, 7
    %v1457 = vsub.s32 %v1454, %v1456
    %v1458 = vrot.slane %v1451, %v1457
    %v1459 = vcombine.low %v1229, %v1230
    %v1461 = vunpack.c.l.s4 1983009808
    %v1462 = vunpack.c.0.s8 %v1461
    %v1463 = vlaneseq
    %v1464 = vshrl.u32 %v1463, 7
    %v1465 = vsub.s32 %v1462, %v1464
    %v1466 = vrot.slane %v1459, %v1465
    %v1467 = vcombine.low %v1442, %v1450
    %v1468 = vcombine.high %v1442, %v1450
    %v1470 = vunpack.c.l.s4 1934713408
    %v1471 = vunpack.c.0.s8 %v1470
    %v1472 = vlaneseq
    %v1473 = vshrl.u32 %v1472, 7
    %v1474 = vsub.s32 %v1471, %v1473
    %v1475 = vrot.slane %v1467, %v1474
    %v1477 = vunpack.c.l.s4 1934713408
    %v1478 = vunpack.c.0.s8 %v1477
    %v1479 = vlaneseq
    %v1480 = vshrl.u32 %v1479, 7
    %v1481 = vsub.s32 %v1478, %v1480
    %v1482 = vrot.slane %v1468, %v1481
    %v1483 = vcombine.low %v1458, %v1466
    %v1484 = vcombine.high %v1458, %v1466
    %v1486 = vunpack.c.l.s4 1934713408
    %v1487 = vunpack.c.0.s8 %v1486
    %v1488 = vlaneseq
    %v1489 = vshrl.u32 %v1488, 7
    %v1490 = vsub.s32 %v1487, %v1489
    %v1491 = vrot.slane %v1483, %v1490
    %v1493 = vunpack.c.l.s4 1934713408
    %v1494 = vunpack.c.0.s8 %v1493
    %v1495 = vlaneseq
    %v1496 = vshrl.u32 %v1495, 7
    %v1497 = vsub.s32 %v1494, %v1496
    %v1498 = vrot.slane %v1484, %v1497
    %v1499 = vcombine.low %v1475, %v1491
    %v1500 = vcombine.high %v1475, %v1491
    %v1501 = vcombine.low %v1482, %v1498
    %v1502 = vcombine.high %v1482, %v1498
    %1507 = vrot.lane.b32.xlu0 %v317, 96
    %v1508 = vpop.permute.xlu0 %1507
    %1509 = vrot.lane.b32.xlu0 %v322, 96
    %v1510 = vpop.permute.xlu0 %1509
    %1511 = vrot.lane.b32.xlu0 %v327, 96
    %v1512 = vpop.permute.xlu0 %1511
    %1513 = vrot.lane.b32.xlu0 %v332, 96
    %v1514 = vpop.permute.xlu0 %1513
    %1519 = vrot.lane.b32.xlu0 %v317, 64
    %v1520 = vpop.permute.xlu0 %1519
    %1521 = vrot.lane.b32.xlu0 %v322, 64
    %v1522 = vpop.permute.xlu0 %1521
    %1523 = vrot.lane.b32.xlu0 %v327, 64
    %v1524 = vpop.permute.xlu0 %1523
    %1525 = vrot.lane.b32.xlu0 %v332, 64
    %v1526 = vpop.permute.xlu0 %1525
    %1531 = vrot.lane.b32.xlu0 %v317, 32
    %v1532 = vpop.permute.xlu0 %1531
    %1533 = vrot.lane.b32.xlu0 %v322, 32
    %v1534 = vpop.permute.xlu0 %1533
    %1535 = vrot.lane.b32.xlu0 %v327, 32
    %v1536 = vpop.permute.xlu0 %1535
    %1537 = vrot.lane.b32.xlu0 %v332, 32
    %v1538 = vpop.permute.xlu0 %1537
    %v1543 = vcombine.low %v317, %v1520
    %v1544 = vcombine.high %v317, %v1520
    %v1546 = vunpack.c.l.s4 1983009808
    %v1547 = vunpack.c.0.s8 %v1546
    %v1548 = vlaneseq
    %v1549 = vshrl.u32 %v1548, 7
    %v1550 = vsub.s32 %v1547, %v1549
    %v1551 = vrot.slane %v1543, %v1550
    %v1553 = vunpack.c.l.s4 1983009808
    %v1554 = vunpack.c.0.s8 %v1553
    %v1555 = vlaneseq
    %v1556 = vshrl.u32 %v1555, 7
    %v1557 = vsub.s32 %v1554, %v1556
    %v1558 = vrot.slane %v1544, %v1557
    %v1559 = vcombine.low %v1508, %v1532
    %v1560 = vcombine.high %v1508, %v1532
    %v1562 = vunpack.c.l.s4 1983009808
    %v1563 = vunpack.c.0.s8 %v1562
    %v1564 = vlaneseq
    %v1565 = vshrl.u32 %v1564, 7
    %v1566 = vsub.s32 %v1563, %v1565
    %v1567 = vrot.slane %v1559, %v1566
    %v1569 = vunpack.c.l.s4 1983009808
    %v1570 = vunpack.c.0.s8 %v1569
    %v1571 = vlaneseq
    %v1572 = vshrl.u32 %v1571, 7
    %v1573 = vsub.s32 %v1570, %v1572
    %v1574 = vrot.slane %v1560, %v1573
    %v1575 = vcombine.low %v1551, %v1567
    %v1576 = vcombine.high %v1551, %v1567
    %v1578 = vunpack.c.l.s4 1934713408
    %v1579 = vunpack.c.0.s8 %v1578
    %v1580 = vlaneseq
    %v1581 = vshrl.u32 %v1580, 7
    %v1582 = vsub.s32 %v1579, %v1581
    %v1583 = vrot.slane %v1575, %v1582
    %v1585 = vunpack.c.l.s4 1934713408
    %v1586 = vunpack.c.0.s8 %v1585
    %v1587 = vlaneseq
    %v1588 = vshrl.u32 %v1587, 7
    %v1589 = vsub.s32 %v1586, %v1588
    %v1590 = vrot.slane %v1576, %v1589
    %v1591 = vcombine.low %v1558, %v1574
    %v1592 = vcombine.high %v1558, %v1574
    %v1594 = vunpack.c.l.s4 1934713408
    %v1595 = vunpack.c.0.s8 %v1594
    %v1596 = vlaneseq
    %v1597 = vshrl.u32 %v1596, 7
    %v1598 = vsub.s32 %v1595, %v1597
    %v1599 = vrot.slane %v1591, %v1598
    %v1601 = vunpack.c.l.s4 1934713408
    %v1602 = vunpack.c.0.s8 %v1601
    %v1603 = vlaneseq
    %v1604 = vshrl.u32 %v1603, 7
    %v1605 = vsub.s32 %v1602, %v1604
    %v1606 = vrot.slane %v1592, %v1605
    %v1607 = vcombine.high %v1583, 0.0
    %v1608 = vcombine.high %v1590, 0.0
    %v1609 = vcombine.high %v1599, 0.0
    %v1610 = vcombine.high %v1606, 0.0
    %v1611 = vcombine.low %v322, %v1522
    %v1612 = vcombine.high %v322, %v1522
    %v1614 = vunpack.c.l.s4 1983009808
    %v1615 = vunpack.c.0.s8 %v1614
    %v1616 = vlaneseq
    %v1617 = vshrl.u32 %v1616, 7
    %v1618 = vsub.s32 %v1615, %v1617
    %v1619 = vrot.slane %v1611, %v1618
    %v1621 = vunpack.c.l.s4 1983009808
    %v1622 = vunpack.c.0.s8 %v1621
    %v1623 = vlaneseq
    %v1624 = vshrl.u32 %v1623, 7
    %v1625 = vsub.s32 %v1622, %v1624
    %v1626 = vrot.slane %v1612, %v1625
    %v1627 = vcombine.low %v1510, %v1534
    %v1628 = vcombine.high %v1510, %v1534
    %v1630 = vunpack.c.l.s4 1983009808
    %v1631 = vunpack.c.0.s8 %v1630
    %v1632 = vlaneseq
    %v1633 = vshrl.u32 %v1632, 7
    %v1634 = vsub.s32 %v1631, %v1633
    %v1635 = vrot.slane %v1627, %v1634
    %v1637 = vunpack.c.l.s4 1983009808
    %v1638 = vunpack.c.0.s8 %v1637
    %v1639 = vlaneseq
    %v1640 = vshrl.u32 %v1639, 7
    %v1641 = vsub.s32 %v1638, %v1640
    %v1642 = vrot.slane %v1628, %v1641
    %v1643 = vcombine.low %v1619, %v1635
    %v1644 = vcombine.high %v1619, %v1635
    %v1646 = vunpack.c.l.s4 1934713408
    %v1647 = vunpack.c.0.s8 %v1646
    %v1648 = vlaneseq
    %v1649 = vshrl.u32 %v1648, 7
    %v1650 = vsub.s32 %v1647, %v1649
    %v1651 = vrot.slane %v1643, %v1650
    %v1653 = vunpack.c.l.s4 1934713408
    %v1654 = vunpack.c.0.s8 %v1653
    %v1655 = vlaneseq
    %v1656 = vshrl.u32 %v1655, 7
    %v1657 = vsub.s32 %v1654, %v1656
    %v1658 = vrot.slane %v1644, %v1657
    %v1659 = vcombine.low %v1626, %v1642
    %v1660 = vcombine.high %v1626, %v1642
    %v1662 = vunpack.c.l.s4 1934713408
    %v1663 = vunpack.c.0.s8 %v1662
    %v1664 = vlaneseq
    %v1665 = vshrl.u32 %v1664, 7
    %v1666 = vsub.s32 %v1663, %v1665
    %v1667 = vrot.slane %v1659, %v1666
    %v1669 = vunpack.c.l.s4 1934713408
    %v1670 = vunpack.c.0.s8 %v1669
    %v1671 = vlaneseq
    %v1672 = vshrl.u32 %v1671, 7
    %v1673 = vsub.s32 %v1670, %v1672
    %v1674 = vrot.slane %v1660, %v1673
    %v1675 = vcombine.high %v1651, 0.0
    %v1676 = vcombine.high %v1658, 0.0
    %v1677 = vcombine.high %v1667, 0.0
    %v1678 = vcombine.high %v1674, 0.0
    %v1679 = vcombine.low %v327, %v1524
    %v1680 = vcombine.high %v327, %v1524
    %v1682 = vunpack.c.l.s4 1983009808
    %v1683 = vunpack.c.0.s8 %v1682
    %v1684 = vlaneseq
    %v1685 = vshrl.u32 %v1684, 7
    %v1686 = vsub.s32 %v1683, %v1685
    %v1687 = vrot.slane %v1679, %v1686
    %v1689 = vunpack.c.l.s4 1983009808
    %v1690 = vunpack.c.0.s8 %v1689
    %v1691 = vlaneseq
    %v1692 = vshrl.u32 %v1691, 7
    %v1693 = vsub.s32 %v1690, %v1692
    %v1694 = vrot.slane %v1680, %v1693
    %v1695 = vcombine.low %v1512, %v1536
    %v1696 = vcombine.high %v1512, %v1536
    %v1698 = vunpack.c.l.s4 1983009808
    %v1699 = vunpack.c.0.s8 %v1698
    %v1700 = vlaneseq
    %v1701 = vshrl.u32 %v1700, 7
    %v1702 = vsub.s32 %v1699, %v1701
    %v1703 = vrot.slane %v1695, %v1702
    %v1705 = vunpack.c.l.s4 1983009808
    %v1706 = vunpack.c.0.s8 %v1705
    %v1707 = vlaneseq
    %v1708 = vshrl.u32 %v1707, 7
    %v1709 = vsub.s32 %v1706, %v1708
    %v1710 = vrot.slane %v1696, %v1709
    %v1711 = vcombine.low %v1687, %v1703
    %v1712 = vcombine.high %v1687, %v1703
    %v1714 = vunpack.c.l.s4 1934713408
    %v1715 = vunpack.c.0.s8 %v1714
    %v1716 = vlaneseq
    %v1717 = vshrl.u32 %v1716, 7
    %v1718 = vsub.s32 %v1715, %v1717
    %v1719 = vrot.slane %v1711, %v1718
    %v1721 = vunpack.c.l.s4 1934713408
    %v1722 = vunpack.c.0.s8 %v1721
    %v1723 = vlaneseq
    %v1724 = vshrl.u32 %v1723, 7
    %v1725 = vsub.s32 %v1722, %v1724
    %v1726 = vrot.slane %v1712, %v1725
    %v1727 = vcombine.low %v1694, %v1710
    %v1728 = vcombine.high %v1694, %v1710
    %v1730 = vunpack.c.l.s4 1934713408
    %v1731 = vunpack.c.0.s8 %v1730
    %v1732 = vlaneseq
    %v1733 = vshrl.u32 %v1732, 7
    %v1734 = vsub.s32 %v1731, %v1733
    %v1735 = vrot.slane %v1727, %v1734
    %v1737 = vunpack.c.l.s4 1934713408
    %v1738 = vunpack.c.0.s8 %v1737
    %v1739 = vlaneseq
    %v1740 = vshrl.u32 %v1739, 7
    %v1741 = vsub.s32 %v1738, %v1740
    %v1742 = vrot.slane %v1728, %v1741
    %v1743 = vcombine.high %v1719, 0.0
    %v1744 = vcombine.high %v1726, 0.0
    %v1745 = vcombine.high %v1735, 0.0
    %v1746 = vcombine.high %v1742, 0.0
    %v1747 = vcombine.low %v332, %v1526
    %v1748 = vcombine.high %v332, %v1526
    %v1750 = vunpack.c.l.s4 1983009808
    %v1751 = vunpack.c.0.s8 %v1750
    %v1752 = vlaneseq
    %v1753 = vshrl.u32 %v1752, 7
    %v1754 = vsub.s32 %v1751, %v1753
    %v1755 = vrot.slane %v1747, %v1754
    %v1757 = vunpack.c.l.s4 1983009808
    %v1758 = vunpack.c.0.s8 %v1757
    %v1759 = vlaneseq
    %v1760 = vshrl.u32 %v1759, 7
    %v1761 = vsub.s32 %v1758, %v1760
    %v1762 = vrot.slane %v1748, %v1761
    %v1763 = vcombine.low %v1514, %v1538
    %v1764 = vcombine.high %v1514, %v1538
    %v1766 = vunpack.c.l.s4 1983009808
    %v1767 = vunpack.c.0.s8 %v1766
    %v1768 = vlaneseq
    %v1769 = vshrl.u32 %v1768, 7
    %v1770 = vsub.s32 %v1767, %v1769
    %v1771 = vrot.slane %v1763, %v1770
    %v1773 = vunpack.c.l.s4 1983009808
    %v1774 = vunpack.c.0.s8 %v1773
    %v1775 = vlaneseq
    %v1776 = vshrl.u32 %v1775, 7
    %v1777 = vsub.s32 %v1774, %v1776
    %v1778 = vrot.slane %v1764, %v1777
    %v1779 = vcombine.low %v1755, %v1771
    %v1780 = vcombine.high %v1755, %v1771
    %v1782 = vunpack.c.l.s4 1934713408
    %v1783 = vunpack.c.0.s8 %v1782
    %v1784 = vlaneseq
    %v1785 = vshrl.u32 %v1784, 7
    %v1786 = vsub.s32 %v1783, %v1785
    %v1787 = vrot.slane %v1779, %v1786
    %v1789 = vunpack.c.l.s4 1934713408
    %v1790 = vunpack.c.0.s8 %v1789
    %v1791 = vlaneseq
    %v1792 = vshrl.u32 %v1791, 7
    %v1793 = vsub.s32 %v1790, %v1792
    %v1794 = vrot.slane %v1780, %v1793
    %v1795 = vcombine.low %v1762, %v1778
    %v1796 = vcombine.high %v1762, %v1778
    %v1798 = vunpack.c.l.s4 1934713408
    %v1799 = vunpack.c.0.s8 %v1798
    %v1800 = vlaneseq
    %v1801 = vshrl.u32 %v1800, 7
    %v1802 = vsub.s32 %v1799, %v1801
    %v1803 = vrot.slane %v1795, %v1802
    %v1805 = vunpack.c.l.s4 1934713408
    %v1806 = vunpack.c.0.s8 %v1805
    %v1807 = vlaneseq
    %v1808 = vshrl.u32 %v1807, 7
    %v1809 = vsub.s32 %v1806, %v1808
    %v1810 = vrot.slane %v1796, %v1809
    %v1811 = vcombine.high %v1787, 0.0
    %v1812 = vcombine.high %v1794, 0.0
    %v1813 = vcombine.high %v1803, 0.0
    %v1814 = vcombine.high %v1810, 0.0
    %v1815 = vcombine.low %v1583, %v1590
    %v1817 = vunpack.c.l.s4 1983009808
    %v1818 = vunpack.c.0.s8 %v1817
    %v1819 = vlaneseq
    %v1820 = vshrl.u32 %v1819, 7
    %v1821 = vsub.s32 %v1818, %v1820
    %v1822 = vrot.slane %v1815, %v1821
    %v1823 = vcombine.low %v1607, %v1608
    %v1825 = vunpack.c.l.s4 1983009808
    %v1826 = vunpack.c.0.s8 %v1825
    %v1827 = vlaneseq
    %v1828 = vshrl.u32 %v1827, 7
    %v1829 = vsub.s32 %v1826, %v1828
    %v1830 = vrot.slane %v1823, %v1829
    %v1831 = vcombine.low %v1599, %v1606
    %v1833 = vunpack.c.l.s4 1983009808
    %v1834 = vunpack.c.0.s8 %v1833
    %v1835 = vlaneseq
    %v1836 = vshrl.u32 %v1835, 7
    %v1837 = vsub.s32 %v1834, %v1836
    %v1838 = vrot.slane %v1831, %v1837
    %v1839 = vcombine.low %v1609, %v1610
    %v1841 = vunpack.c.l.s4 1983009808
    %v1842 = vunpack.c.0.s8 %v1841
    %v1843 = vlaneseq
    %v1844 = vshrl.u32 %v1843, 7
    %v1845 = vsub.s32 %v1842, %v1844
    %v1846 = vrot.slane %v1839, %v1845
    %v1847 = vcombine.low %v1822, %v1830
    %v1848 = vcombine.high %v1822, %v1830
    %v1850 = vunpack.c.l.s4 1934713408
    %v1851 = vunpack.c.0.s8 %v1850
    %v1852 = vlaneseq
    %v1853 = vshrl.u32 %v1852, 7
    %v1854 = vsub.s32 %v1851, %v1853
    %v1855 = vrot.slane %v1847, %v1854
    %v1857 = vunpack.c.l.s4 1934713408
    %v1858 = vunpack.c.0.s8 %v1857
    %v1859 = vlaneseq
    %v1860 = vshrl.u32 %v1859, 7
    %v1861 = vsub.s32 %v1858, %v1860
    %v1862 = vrot.slane %v1848, %v1861
    %v1863 = vcombine.low %v1838, %v1846
    %v1864 = vcombine.high %v1838, %v1846
    %v1866 = vunpack.c.l.s4 1934713408
    %v1867 = vunpack.c.0.s8 %v1866
    %v1868 = vlaneseq
    %v1869 = vshrl.u32 %v1868, 7
    %v1870 = vsub.s32 %v1867, %v1869
    %v1871 = vrot.slane %v1863, %v1870
    %v1873 = vunpack.c.l.s4 1934713408
    %v1874 = vunpack.c.0.s8 %v1873
    %v1875 = vlaneseq
    %v1876 = vshrl.u32 %v1875, 7
    %v1877 = vsub.s32 %v1874, %v1876
    %v1878 = vrot.slane %v1864, %v1877
    %v1879 = vcombine.low %v1855, %v1871
    %v1880 = vcombine.high %v1855, %v1871
    %v1881 = vcombine.low %v1862, %v1878
    %v1882 = vcombine.high %v1862, %v1878
    %v1883 = vcombine.low %v1651, %v1658
    %v1885 = vunpack.c.l.s4 1983009808
    %v1886 = vunpack.c.0.s8 %v1885
    %v1887 = vlaneseq
    %v1888 = vshrl.u32 %v1887, 7
    %v1889 = vsub.s32 %v1886, %v1888
    %v1890 = vrot.slane %v1883, %v1889
    %v1891 = vcombine.low %v1675, %v1676
    %v1893 = vunpack.c.l.s4 1983009808
    %v1894 = vunpack.c.0.s8 %v1893
    %v1895 = vlaneseq
    %v1896 = vshrl.u32 %v1895, 7
    %v1897 = vsub.s32 %v1894, %v1896
    %v1898 = vrot.slane %v1891, %v1897
    %v1899 = vcombine.low %v1667, %v1674
    %v1901 = vunpack.c.l.s4 1983009808
    %v1902 = vunpack.c.0.s8 %v1901
    %v1903 = vlaneseq
    %v1904 = vshrl.u32 %v1903, 7
    %v1905 = vsub.s32 %v1902, %v1904
    %v1906 = vrot.slane %v1899, %v1905
    %v1907 = vcombine.low %v1677, %v1678
    %v1909 = vunpack.c.l.s4 1983009808
    %v1910 = vunpack.c.0.s8 %v1909
    %v1911 = vlaneseq
    %v1912 = vshrl.u32 %v1911, 7
    %v1913 = vsub.s32 %v1910, %v1912
    %v1914 = vrot.slane %v1907, %v1913
    %v1915 = vcombine.low %v1890, %v1898
    %v1916 = vcombine.high %v1890, %v1898
    %v1918 = vunpack.c.l.s4 1934713408
    %v1919 = vunpack.c.0.s8 %v1918
    %v1920 = vlaneseq
    %v1921 = vshrl.u32 %v1920, 7
    %v1922 = vsub.s32 %v1919, %v1921
    %v1923 = vrot.slane %v1915, %v1922
    %v1925 = vunpack.c.l.s4 1934713408
    %v1926 = vunpack.c.0.s8 %v1925
    %v1927 = vlaneseq
    %v1928 = vshrl.u32 %v1927, 7
    %v1929 = vsub.s32 %v1926, %v1928
    %v1930 = vrot.slane %v1916, %v1929
    %v1931 = vcombine.low %v1906, %v1914
    %v1932 = vcombine.high %v1906, %v1914
    %v1934 = vunpack.c.l.s4 1934713408
    %v1935 = vunpack.c.0.s8 %v1934
    %v1936 = vlaneseq
    %v1937 = vshrl.u32 %v1936, 7
    %v1938 = vsub.s32 %v1935, %v1937
    %v1939 = vrot.slane %v1931, %v1938
    %v1941 = vunpack.c.l.s4 1934713408
    %v1942 = vunpack.c.0.s8 %v1941
    %v1943 = vlaneseq
    %v1944 = vshrl.u32 %v1943, 7
    %v1945 = vsub.s32 %v1942, %v1944
    %v1946 = vrot.slane %v1932, %v1945
    %v1947 = vcombine.low %v1923, %v1939
    %v1948 = vcombine.high %v1923, %v1939
    %v1949 = vcombine.low %v1930, %v1946
    %v1950 = vcombine.high %v1930, %v1946
    %v1951 = vcombine.low %v1719, %v1726
    %v1953 = vunpack.c.l.s4 1983009808
    %v1954 = vunpack.c.0.s8 %v1953
    %v1955 = vlaneseq
    %v1956 = vshrl.u32 %v1955, 7
    %v1957 = vsub.s32 %v1954, %v1956
    %v1958 = vrot.slane %v1951, %v1957
    %v1959 = vcombine.low %v1743, %v1744
    %v1961 = vunpack.c.l.s4 1983009808
    %v1962 = vunpack.c.0.s8 %v1961
    %v1963 = vlaneseq
    %v1964 = vshrl.u32 %v1963, 7
    %v1965 = vsub.s32 %v1962, %v1964
    %v1966 = vrot.slane %v1959, %v1965
    %v1967 = vcombine.low %v1735, %v1742
    %v1969 = vunpack.c.l.s4 1983009808
    %v1970 = vunpack.c.0.s8 %v1969
    %v1971 = vlaneseq
    %v1972 = vshrl.u32 %v1971, 7
    %v1973 = vsub.s32 %v1970, %v1972
    %v1974 = vrot.slane %v1967, %v1973
    %v1975 = vcombine.low %v1745, %v1746
    %v1977 = vunpack.c.l.s4 1983009808
    %v1978 = vunpack.c.0.s8 %v1977
    %v1979 = vlaneseq
    %v1980 = vshrl.u32 %v1979, 7
    %v1981 = vsub.s32 %v1978, %v1980
    %v1982 = vrot.slane %v1975, %v1981
    %v1983 = vcombine.low %v1958, %v1966
    %v1984 = vcombine.high %v1958, %v1966
    %v1986 = vunpack.c.l.s4 1934713408
    %v1987 = vunpack.c.0.s8 %v1986
    %v1988 = vlaneseq
    %v1989 = vshrl.u32 %v1988, 7
    %v1990 = vsub.s32 %v1987, %v1989
    %v1991 = vrot.slane %v1983, %v1990
    %v1993 = vunpack.c.l.s4 1934713408
    %v1994 = vunpack.c.0.s8 %v1993
    %v1995 = vlaneseq
    %v1996 = vshrl.u32 %v1995, 7
    %v1997 = vsub.s32 %v1994, %v1996
    %v1998 = vrot.slane %v1984, %v1997
    %v1999 = vcombine.low %v1974, %v1982
    %v2000 = vcombine.high %v1974, %v1982
    %v2002 = vunpack.c.l.s4 1934713408
    %v2003 = vunpack.c.0.s8 %v2002
    %v2004 = vlaneseq
    %v2005 = vshrl.u32 %v2004, 7
    %v2006 = vsub.s32 %v2003, %v2005
    %v2007 = vrot.slane %v1999, %v2006
    %v2009 = vunpack.c.l.s4 1934713408
    %v2010 = vunpack.c.0.s8 %v2009
    %v2011 = vlaneseq
    %v2012 = vshrl.u32 %v2011, 7
    %v2013 = vsub.s32 %v2010, %v2012
    %v2014 = vrot.slane %v2000, %v2013
    %v2015 = vcombine.low %v1991, %v2007
    %v2016 = vcombine.high %v1991, %v2007
    %v2017 = vcombine.low %v1998, %v2014
    %v2018 = vcombine.high %v1998, %v2014
    %v2019 = vcombine.low %v1787, %v1794
    %v2021 = vunpack.c.l.s4 1983009808
    %v2022 = vunpack.c.0.s8 %v2021
    %v2023 = vlaneseq
    %v2024 = vshrl.u32 %v2023, 7
    %v2025 = vsub.s32 %v2022, %v2024
    %v2026 = vrot.slane %v2019, %v2025
    %v2027 = vcombine.low %v1811, %v1812
    %v2029 = vunpack.c.l.s4 1983009808
    %v2030 = vunpack.c.0.s8 %v2029
    %v2031 = vlaneseq
    %v2032 = vshrl.u32 %v2031, 7
    %v2033 = vsub.s32 %v2030, %v2032
    %v2034 = vrot.slane %v2027, %v2033
    %v2035 = vcombine.low %v1803, %v1810
    %v2037 = vunpack.c.l.s4 1983009808
    %v2038 = vunpack.c.0.s8 %v2037
    %v2039 = vlaneseq
    %v2040 = vshrl.u32 %v2039, 7
    %v2041 = vsub.s32 %v2038, %v2040
    %v2042 = vrot.slane %v2035, %v2041
    %v2043 = vcombine.low %v1813, %v1814
    %v2045 = vunpack.c.l.s4 1983009808
    %v2046 = vunpack.c.0.s8 %v2045
    %v2047 = vlaneseq
    %v2048 = vshrl.u32 %v2047, 7
    %v2049 = vsub.s32 %v2046, %v2048
    %v2050 = vrot.slane %v2043, %v2049
    %v2051 = vcombine.low %v2026, %v2034
    %v2052 = vcombine.high %v2026, %v2034
    %v2054 = vunpack.c.l.s4 1934713408
    %v2055 = vunpack.c.0.s8 %v2054
    %v2056 = vlaneseq
    %v2057 = vshrl.u32 %v2056, 7
    %v2058 = vsub.s32 %v2055, %v2057
    %v2059 = vrot.slane %v2051, %v2058
    %v2061 = vunpack.c.l.s4 1934713408
    %v2062 = vunpack.c.0.s8 %v2061
    %v2063 = vlaneseq
    %v2064 = vshrl.u32 %v2063, 7
    %v2065 = vsub.s32 %v2062, %v2064
    %v2066 = vrot.slane %v2052, %v2065
    %v2067 = vcombine.low %v2042, %v2050
    %v2068 = vcombine.high %v2042, %v2050
    %v2070 = vunpack.c.l.s4 1934713408
    %v2071 = vunpack.c.0.s8 %v2070
    %v2072 = vlaneseq
    %v2073 = vshrl.u32 %v2072, 7
    %v2074 = vsub.s32 %v2071, %v2073
    %v2075 = vrot.slane %v2067, %v2074
    %v2077 = vunpack.c.l.s4 1934713408
    %v2078 = vunpack.c.0.s8 %v2077
    %v2079 = vlaneseq
    %v2080 = vshrl.u32 %v2079, 7
    %v2081 = vsub.s32 %v2078, %v2080
    %v2082 = vrot.slane %v2068, %v2081
    %v2083 = vcombine.low %v2059, %v2075
    %v2084 = vcombine.high %v2059, %v2075
    %v2085 = vcombine.low %v2066, %v2082
    %v2086 = vcombine.high %v2066, %v2082
    %vm2087 = vcmask 261120
    %v2089 = vsel %vm2087, %v711, 0
    %v2092 = vsel %vm2087, %v779, 0
    %v2095 = vsel %vm2087, %v847, 0
    %v2098 = vsel %vm2087, %v915, 0
    %v2101 = vsel %vm2087, %v712, 0
    %v2104 = vsel %vm2087, %v780, 0
    %v2107 = vsel %vm2087, %v848, 0
    %v2110 = vsel %vm2087, %v916, 0
    %v2113 = vsel %vm2087, %v713, 0
    %v2116 = vsel %vm2087, %v781, 0
    %v2119 = vsel %vm2087, %v849, 0
    %v2122 = vsel %vm2087, %v917, 0
    %v2125 = vsel %vm2087, %v714, 0
    %v2128 = vsel %vm2087, %v782, 0
    %v2131 = vsel %vm2087, %v850, 0
    %v2134 = vsel %vm2087, %v918, 0
    %v2137 = vsel %vm2087, %v1295, 0
    %v2140 = vsel %vm2087, %v1363, 0
    %v2143 = vsel %vm2087, %v1431, 0
    %v2146 = vsel %vm2087, %v1499, 0
    %v2149 = vsel %vm2087, %v1296, 0
    %v2152 = vsel %vm2087, %v1364, 0
    %v2155 = vsel %vm2087, %v1432, 0
    %v2158 = vsel %vm2087, %v1500, 0
    %v2161 = vsel %vm2087, %v1297, 0
    %v2164 = vsel %vm2087, %v1365, 0
    %v2167 = vsel %vm2087, %v1433, 0
    %v2170 = vsel %vm2087, %v1501, 0
    %v2173 = vsel %vm2087, %v1298, 0
    %v2176 = vsel %vm2087, %v1366, 0
    %v2179 = vsel %vm2087, %v1434, 0
    %v2182 = vsel %vm2087, %v1502, 0
    %2184 = vmatprep.subr.mxu0 0.0
    %2185 = vmatpush1.xpose.msra.mxu0 %v2137
    %2186 = vmatprep.subr.mxu0 0.0
    %2187 = vmatpush1.xpose.msra.mxu0 %v2140
    %2188 = vmatprep.subr.mxu0 0.0
    %2189 = vmatpush1.xpose.msra.mxu0 %v2143
    %2190 = vmatprep.subr.mxu0 0.0
    %2191 = vmatpush1.xpose.msra.mxu0 %v2146
    %2192 = vmatprep.subr.mxu0 0.0
    %2193 = vmatpush1.xpose.msra.mxu0 %v2149
    %2194 = vmatprep.subr.mxu0 0.0
    %2195 = vmatpush1.xpose.msra.mxu0 %v2152
    %2196 = vmatprep.subr.mxu0 0.0
    %2197 = vmatpush1.xpose.msra.mxu0 %v2155
    %2198 = vmatprep.subr.mxu0 0.0
    %2199 = vmatpush1.xpose.msra.mxu0 %v2158
    %2200 = vmatprep.subr.mxu0 0.0
    %2201 = vmatpush1.xpose.msra.mxu0 %v2161
    %2202 = vmatprep.subr.mxu0 0.0
    %2203 = vmatpush1.xpose.msra.mxu0 %v2164
    %2204 = vmatprep.subr.mxu0 0.0
    %2205 = vmatpush1.xpose.msra.mxu0 %v2167
    %2206 = vmatprep.subr.mxu0 0.0
    %2207 = vmatpush1.xpose.msra.mxu0 %v2170
    %2208 = vmatprep.subr.mxu0 0.0
    %2209 = vmatpush1.xpose.msra.mxu0 %v2173
    %2210 = vmatprep.subr.mxu0 0.0
    %2211 = vmatpush1.xpose.msra.mxu0 %v2176
    %2212 = vmatprep.subr.mxu0 0.0
    %2213 = vmatpush1.xpose.msra.mxu0 %v2179
    %2214 = vmatprep.subr.mxu0 0.0
    %2215 = vmatpush1.xpose.msra.mxu0 %v2182
    %2216 = vmatprep.subr.mxu0 0.0
    %2217 = vmatpush1.xpose.msra.mxu0 0.0
    %2218 = vmatprep.subr.mxu0 0.0
    %2219 = vmatpush1.xpose.msra.mxu0 0.0
    %2220 = vmatprep.subr.mxu0 0.0
    %2221 = vmatpush1.xpose.msra.mxu0 0.0
    %2222 = vmatprep.subr.mxu0 0.0
    %2223 = vmatpush1.xpose.msra.mxu0 0.0
    %2224 = vmatprep.subr.mxu0 0.0
    %2225 = vmatpush1.xpose.msra.mxu0 0.0
    %2226 = vmatprep.subr.mxu0 0.0
    %2227 = vmatpush1.xpose.msra.mxu0 0.0
    %2228 = vmatprep.subr.mxu0 0.0
    %2229 = vmatpush1.xpose.msra.mxu0 0.0
    %2230 = vmatprep.subr.mxu0 0.0
    %2231 = vmatpush1.xpose.msra.mxu0 0.0
    %2232 = vmatprep.subr.mxu0 0.0
    %2233 = vmatpush1.xpose.msra.mxu0 0.0
    %2234 = vmatprep.subr.mxu0 0.0
    %2235 = vmatpush1.xpose.msra.mxu0 0.0
    %2236 = vmatprep.subr.mxu0 0.0
    %2237 = vmatpush1.xpose.msra.mxu0 0.0
    %2238 = vmatprep.subr.mxu0 0.0
    %2239 = vmatpush1.xpose.msra.mxu0 0.0
    %2240 = vmatprep.subr.mxu0 0.0
    %2241 = vmatpush1.xpose.msra.mxu0 0.0
    %2242 = vmatprep.subr.mxu0 0.0
    %2243 = vmatpush1.xpose.msra.mxu0 0.0
    %2244 = vmatprep.subr.mxu0 0.0
    %2245 = vmatpush1.xpose.msra.mxu0 0.0
    %2246 = vmatprep.subr.mxu0 0.0
    %2247 = vmatpush1.xpose.msra.mxu0 0.0
    %2248 = vmatprep.mubr.f32.mxu0 0.0
    %2249 = vmatmul.mubr.f32.gmra.mrb[0].mxu0 %v2089
    %v2250 = vpop.f32.mrb[0].mxu0
    %v2251 = vadd.f32 %v80, %v2250
    %v2252 = vpop.f32.mrb[0].mxu0
    %2253 = vmatprep.mubr.f32.mxu0 0.0
    %2254 = vmatmul.mubr.f32.gmra.mrb[0].mxu0 %v2092
    %v2255 = vpop.f32.mrb[0].mxu0
    %v2256 = vadd.f32 %v81, %v2255
    %v2257 = vpop.f32.mrb[0].mxu0
    %2258 = vmatprep.mubr.f32.mxu0 0.0
    %2259 = vmatmul.mubr.f32.gmra.mrb[0].mxu0 %v2095
    %v2260 = vpop.f32.mrb[0].mxu0
    %v2261 = vadd.f32 %v82, %v2260
    %v2262 = vpop.f32.mrb[0].mxu0
    %2263 = vmatprep.mubr.f32.mxu0 0.0
    %2264 = vmatmul.mubr.f32.gmra.mrb[0].mxu0 %v2098
    %v2265 = vpop.f32.mrb[0].mxu0
    %v2266 = vadd.f32 %v83, %v2265
    %v2267 = vpop.f32.mrb[0].mxu0
    %2268 = vmatprep.mubr.f32.mxu0 0.0
    %2269 = vmatmul.mubr.f32.gmra.mrb[0].mxu0 %v2101
    %v2270 = vpop.f32.mrb[0].mxu0
    %v2271 = vadd.f32 %v84, %v2270
    %v2272 = vpop.f32.mrb[0].mxu0
    %2273 = vmatprep.mubr.f32.mxu0 0.0
    %2274 = vmatmul.mubr.f32.gmra.mrb[0].mxu0 %v2104
    %v2275 = vpop.f32.mrb[0].mxu0
    %v2276 = vadd.f32 %v85, %v2275
    %v2277 = vpop.f32.mrb[0].mxu0
    %2278 = vmatprep.mubr.f32.mxu0 0.0
    %2279 = vmatmul.mubr.f32.gmra.mrb[0].mxu0 %v2107
    %v2280 = vpop.f32.mrb[0].mxu0
    %v2281 = vadd.f32 %v86, %v2280
    %v2282 = vpop.f32.mrb[0].mxu0
    %2283 = vmatprep.mubr.f32.mxu0 0.0
    %2284 = vmatmul.mubr.f32.gmra.mrb[0].mxu0 %v2110
    %v2285 = vpop.f32.mrb[0].mxu0
    %v2286 = vadd.f32 %v87, %v2285
    %v2287 = vpop.f32.mrb[0].mxu0
    %2288 = vmatprep.mubr.f32.mxu0 0.0
    %2289 = vmatmul.mubr.f32.gmra.mrb[0].mxu0 %v2113
    %v2290 = vpop.f32.mrb[0].mxu0
    %v2291 = vadd.f32 %v88, %v2290
    %v2292 = vpop.f32.mrb[0].mxu0
    %2293 = vmatprep.mubr.f32.mxu0 0.0
    %2294 = vmatmul.mubr.f32.gmra.mrb[0].mxu0 %v2116
    %v2295 = vpop.f32.mrb[0].mxu0
    %v2296 = vadd.f32 %v89, %v2295
    %v2297 = vpop.f32.mrb[0].mxu0
    %2298 = vmatprep.mubr.f32.mxu0 0.0
    %2299 = vmatmul.mubr.f32.gmra.mrb[0].mxu0 %v2119
    %v2300 = vpop.f32.mrb[0].mxu0
    %v2301 = vadd.f32 %v90, %v2300
    %v2302 = vpop.f32.mrb[0].mxu0
    %2303 = vmatprep.mubr.f32.mxu0 0.0
    %2304 = vmatmul.mubr.f32.gmra.mrb[0].mxu0 %v2122
    %v2305 = vpop.f32.mrb[0].mxu0
    %v2306 = vadd.f32 %v91, %v2305
    %v2307 = vpop.f32.mrb[0].mxu0
    %2308 = vmatprep.mubr.f32.mxu0 0.0
    %2309 = vmatmul.mubr.f32.gmra.mrb[0].mxu0 %v2125
    %v2310 = vpop.f32.mrb[0].mxu0
    %v2311 = vadd.f32 %v92, %v2310
    %v2312 = vpop.f32.mrb[0].mxu0
    %2313 = vmatprep.mubr.f32.mxu0 0.0
    %2314 = vmatmul.mubr.f32.gmra.mrb[0].mxu0 %v2128
    %v2315 = vpop.f32.mrb[0].mxu0
    %v2316 = vadd.f32 %v93, %v2315
    %v2317 = vpop.f32.mrb[0].mxu0
    %2318 = vmatprep.mubr.f32.mxu0 0.0
    %2319 = vmatmul.mubr.f32.gmra.mrb[0].mxu0 %v2131
    %v2320 = vpop.f32.mrb[0].mxu0
    %v2321 = vadd.f32 %v94, %v2320
    %v2322 = vpop.f32.mrb[0].mxu0
    %2323 = vmatprep.mubr.f32.mxu0 0.0
    %2324 = vmatmul.mubr.f32.gmra.mrb[0].mxu0 %v2134
    %v2325 = vpop.f32.mrb[0].mxu0
    %v2326 = vadd.f32 %v95, %v2325
    %v2327 = vpop.f32.mrb[0].mxu0
    %2328 = vdwg.mxu0
    %2329 = vmax.xlane.f32.xlu0 %v2251
    %v2330 = vpop.xlane.xlu0 %2329
    %2331 = vmax.xlane.f32.xlu0 %v2256
    %v2332 = vpop.xlane.xlu0 %2331
    %2333 = vmax.xlane.f32.xlu0 %v2261
    %v2334 = vpop.xlane.xlu0 %2333
    %2335 = vmax.xlane.f32.xlu0 %v2266
    %v2336 = vpop.xlane.xlu0 %2335
    %2337 = vmax.xlane.f32.xlu0 %v2271
    %v2338 = vpop.xlane.xlu0 %2337
    %2339 = vmax.xlane.f32.xlu0 %v2276
    %v2340 = vpop.xlane.xlu0 %2339
    %2341 = vmax.xlane.f32.xlu0 %v2281
    %v2342 = vpop.xlane.xlu0 %2341
    %2343 = vmax.xlane.f32.xlu0 %v2286
    %v2344 = vpop.xlane.xlu0 %2343
    %2345 = vmax.xlane.f32.xlu0 %v2291
    %v2346 = vpop.xlane.xlu0 %2345
    %2347 = vmax.xlane.f32.xlu0 %v2296
    %v2348 = vpop.xlane.xlu0 %2347
    %2349 = vmax.xlane.f32.xlu0 %v2301
    %v2350 = vpop.xlane.xlu0 %2349
    %2351 = vmax.xlane.f32.xlu0 %v2306
    %v2352 = vpop.xlane.xlu0 %2351
    %2353 = vmax.xlane.f32.xlu0 %v2311
    %v2354 = vpop.xlane.xlu0 %2353
    %2355 = vmax.xlane.f32.xlu0 %v2316
    %v2356 = vpop.xlane.xlu0 %2355
    %2357 = vmax.xlane.f32.xlu0 %v2321
    %v2358 = vpop.xlane.xlu0 %2357
    %2359 = vmax.xlane.f32.xlu0 %v2326
    %v2360 = vpop.xlane.xlu0 %2359
    %v2361 = vsub.f32 %v2251, %v2330
    %v2362 = vsub.f32 %v2256, %v2332
    %v2363 = vsub.f32 %v2261, %v2334
    %v2364 = vsub.f32 %v2266, %v2336
    %v2365 = vsub.f32 %v2271, %v2338
    %v2366 = vsub.f32 %v2276, %v2340
    %v2367 = vsub.f32 %v2281, %v2342
    %v2368 = vsub.f32 %v2286, %v2344
    %v2369 = vsub.f32 %v2291, %v2346
    %v2370 = vsub.f32 %v2296, %v2348
    %v2371 = vsub.f32 %v2301, %v2350
    %v2372 = vsub.f32 %v2306, %v2352
    %v2373 = vsub.f32 %v2311, %v2354
    %v2374 = vsub.f32 %v2316, %v2356
    %v2375 = vsub.f32 %v2321, %v2358
    %v2376 = vsub.f32 %v2326, %v2360
    %v2377 = vmul.f32 %v2361, 1.442695
    %v2378 = vpow.pop %v2377
    %v2379 = vmul.f32 %v2362, 1.442695
    %v2380 = vpow.pop %v2379
    %v2381 = vmul.f32 %v2363, 1.442695
    %v2382 = vpow.pop %v2381
    %v2383 = vmul.f32 %v2364, 1.442695
    %v2384 = vpow.pop %v2383
    %v2385 = vmul.f32 %v2365, 1.442695
    %v2386 = vpow.pop %v2385
    %v2387 = vmul.f32 %v2366, 1.442695
    %v2388 = vpow.pop %v2387
    %v2389 = vmul.f32 %v2367, 1.442695
    %v2390 = vpow.pop %v2389
    %v2391 = vmul.f32 %v2368, 1.442695
    %v2392 = vpow.pop %v2391
    %v2393 = vmul.f32 %v2369, 1.442695
    %v2394 = vpow.pop %v2393
    %v2395 = vmul.f32 %v2370, 1.442695
    %v2396 = vpow.pop %v2395
    %v2397 = vmul.f32 %v2371, 1.442695
    %v2398 = vpow.pop %v2397
    %v2399 = vmul.f32 %v2372, 1.442695
    %v2400 = vpow.pop %v2399
    %v2401 = vmul.f32 %v2373, 1.442695
    %v2402 = vpow.pop %v2401
    %v2403 = vmul.f32 %v2374, 1.442695
    %v2404 = vpow.pop %v2403
    %v2405 = vmul.f32 %v2375, 1.442695
    %v2406 = vpow.pop %v2405
    %v2407 = vmul.f32 %v2376, 1.442695
    %v2408 = vpow.pop %v2407
    %2409 = vadd.xlane.f32.xlu0 %v2378
    %v2410 = vpop.xlane.xlu0 %2409
    %2411 = vadd.xlane.f32.xlu0 %v2380
    %v2412 = vpop.xlane.xlu0 %2411
    %2413 = vadd.xlane.f32.xlu0 %v2382
    %v2414 = vpop.xlane.xlu0 %2413
    %2415 = vadd.xlane.f32.xlu0 %v2384
    %v2416 = vpop.xlane.xlu0 %2415
    %2417 = vadd.xlane.f32.xlu0 %v2386
    %v2418 = vpop.xlane.xlu0 %2417
    %2419 = vadd.xlane.f32.xlu0 %v2388
    %v2420 = vpop.xlane.xlu0 %2419
    %2421 = vadd.xlane.f32.xlu0 %v2390
    %v2422 = vpop.xlane.xlu0 %2421
    %2423 = vadd.xlane.f32.xlu0 %v2392
    %v2424 = vpop.xlane.xlu0 %2423
    %2425 = vadd.xlane.f32.xlu0 %v2394
    %v2426 = vpop.xlane.xlu0 %2425
    %2427 = vadd.xlane.f32.xlu0 %v2396
    %v2428 = vpop.xlane.xlu0 %2427
    %2429 = vadd.xlane.f32.xlu0 %v2398
    %v2430 = vpop.xlane.xlu0 %2429
    %2431 = vadd.xlane.f32.xlu0 %v2400
    %v2432 = vpop.xlane.xlu0 %2431
    %2433 = vadd.xlane.f32.xlu0 %v2402
    %v2434 = vpop.xlane.xlu0 %2433
    %2435 = vadd.xlane.f32.xlu0 %v2404
    %v2436 = vpop.xlane.xlu0 %2435
    %2437 = vadd.xlane.f32.xlu0 %v2406
    %v2438 = vpop.xlane.xlu0 %2437
    %2439 = vadd.xlane.f32.xlu0 %v2408
    %v2440 = vpop.xlane.xlu0 %2439
    %v2441 = vrcp.pop %v2410
    %v2442 = vmul.f32 %v2378, %v2441
    %v2443 = vrcp.pop %v2412
    %v2444 = vmul.f32 %v2380, %v2443
    %v2445 = vrcp.pop %v2414
    %v2446 = vmul.f32 %v2382, %v2445
    %v2447 = vrcp.pop %v2416
    %v2448 = vmul.f32 %v2384, %v2447
    %v2449 = vrcp.pop %v2418
    %v2450 = vmul.f32 %v2386, %v2449
    %v2451 = vrcp.pop %v2420
    %v2452 = vmul.f32 %v2388, %v2451
    %v2453 = vrcp.pop %v2422
    %v2454 = vmul.f32 %v2390, %v2453
    %v2455 = vrcp.pop %v2424
    %v2456 = vmul.f32 %v2392, %v2455
    %v2457 = vrcp.pop %v2426
    %v2458 = vmul.f32 %v2394, %v2457
    %v2459 = vrcp.pop %v2428
    %v2460 = vmul.f32 %v2396, %v2459
    %v2461 = vrcp.pop %v2430
    %v2462 = vmul.f32 %v2398, %v2461
    %v2463 = vrcp.pop %v2432
    %v2464 = vmul.f32 %v2400, %v2463
    %v2465 = vrcp.pop %v2434
    %v2466 = vmul.f32 %v2402, %v2465
    %v2467 = vrcp.pop %v2436
    %v2468 = vmul.f32 %v2404, %v2467
    %v2469 = vrcp.pop %v2438
    %v2470 = vmul.f32 %v2406, %v2469
    %v2471 = vrcp.pop %v2440
    %v2472 = vmul.f32 %v2408, %v2471
    %2473 = vmatprep.subr.mxu0 0.0
    %2474 = vmatpush1.msra.mxu0 %v1879
    %2475 = vmatprep.subr.mxu0 0.0
    %2476 = vmatpush1.msra.mxu0 %v1947
    %2477 = vmatprep.subr.mxu0 0.0
    %2478 = vmatpush1.msra.mxu0 %v2015
    %2479 = vmatprep.subr.mxu0 0.0
    %2480 = vmatpush1.msra.mxu0 %v2083
    %2481 = vmatprep.subr.mxu0 0.0
    %2482 = vmatpush1.msra.mxu0 %v1880
    %2483 = vmatprep.subr.mxu0 0.0
    %2484 = vmatpush1.msra.mxu0 %v1948
    %2485 = vmatprep.subr.mxu0 0.0
    %2486 = vmatpush1.msra.mxu0 %v2016
    %2487 = vmatprep.subr.mxu0 0.0
    %2488 = vmatpush1.msra.mxu0 %v2084
    %2489 = vmatprep.subr.mxu0 0.0
    %2490 = vmatpush1.msra.mxu0 %v1881
    %2491 = vmatprep.subr.mxu0 0.0
    %2492 = vmatpush1.msra.mxu0 %v1949
    %2493 = vmatprep.subr.mxu0 0.0
    %2494 = vmatpush1.msra.mxu0 %v2017
    %2495 = vmatprep.subr.mxu0 0.0
    %2496 = vmatpush1.msra.mxu0 %v2085
    %2497 = vmatprep.subr.mxu0 0.0
    %2498 = vmatpush1.msra.mxu0 %v1882
    %2499 = vmatprep.subr.mxu0 0.0
    %2500 = vmatpush1.msra.mxu0 %v1950
    %2501 = vmatprep.subr.mxu0 0.0
    %2502 = vmatpush1.msra.mxu0 %v2018
    %2503 = vmatprep.subr.mxu0 0.0
    %2504 = vmatpush1.msra.mxu0 %v2086
    %2505 = vmatprep.subr.mxu0 0.0
    %2506 = vmatpush1.msra.mxu0 0.0
    %2507 = vmatprep.subr.mxu0 0.0
    %2508 = vmatpush1.msra.mxu0 0.0
    %2509 = vmatprep.subr.mxu0 0.0
    %2510 = vmatpush1.msra.mxu0 0.0
    %2511 = vmatprep.subr.mxu0 0.0
    %2512 = vmatpush1.msra.mxu0 0.0
    %2513 = vmatprep.subr.mxu0 0.0
    %2514 = vmatpush1.msra.mxu0 0.0
    %2515 = vmatprep.subr.mxu0 0.0
    %2516 = vmatpush1.msra.mxu0 0.0
    %2517 = vmatprep.subr.mxu0 0.0
    %2518 = vmatpush1.msra.mxu0 0.0
    %2519 = vmatprep.subr.mxu0 0.0
    %2520 = vmatpush1.msra.mxu0 0.0
    %2521 = vmatprep.subr.mxu0 0.0
    %2522 = vmatpush1.msra.mxu0 0.0
    %2523 = vmatprep.subr.mxu0 0.0
    %2524 = vmatpush1.msra.mxu0 0.0
    %2525 = vmatprep.subr.mxu0 0.0
    %2526 = vmatpush1.msra.mxu0 0.0
    %2527 = vmatprep.subr.mxu0 0.0
    %2528 = vmatpush1.msra.mxu0 0.0
    %2529 = vmatprep.subr.mxu0 0.0
    %2530 = vmatpush1.msra.mxu0 0.0
    %2531 = vmatprep.subr.mxu0 0.0
    %2532 = vmatpush1.msra.mxu0 0.0
    %2533 = vmatprep.subr.mxu0 0.0
    %2534 = vmatpush1.msra.mxu0 0.0
    %2535 = vmatprep.subr.mxu0 0.0
    %2536 = vmatpush1.msra.mxu0 0.0
    %2537 = vmatprep.mubr.f32.mxu0 0.0
    %2538 = vmatmul.mubr.f32.gmra.mrb[0].mxu0 %v2442
    %v2539 = vpop.f32.mrb[0].mxu0
    %v2540 = vadd.f32 0.0, %v2539
    %v2541 = vpop.f32.mrb[0].mxu0
    %2542 = vmatprep.mubr.f32.mxu0 0.0
    %2543 = vmatmul.mubr.f32.gmra.mrb[0].mxu0 %v2444
    %v2544 = vpop.f32.mrb[0].mxu0
    %v2545 = vadd.f32 0.0, %v2544
    %v2546 = vpop.f32.mrb[0].mxu0
    %2547 = vmatprep.mubr.f32.mxu0 0.0
    %2548 = vmatmul.mubr.f32.gmra.mrb[0].mxu0 %v2446
    %v2549 = vpop.f32.mrb[0].mxu0
    %v2550 = vadd.f32 0.0, %v2549
    %v2551 = vpop.f32.mrb[0].mxu0
    %2552 = vmatprep.mubr.f32.mxu0 0.0
    %2553 = vmatmul.mubr.f32.gmra.mrb[0].mxu0 %v2448
    %v2554 = vpop.f32.mrb[0].mxu0
    %v2555 = vadd.f32 0.0, %v2554
    %v2556 = vpop.f32.mrb[0].mxu0
    %2557 = vmatprep.mubr.f32.mxu0 0.0
    %2558 = vmatmul.mubr.f32.gmra.mrb[0].mxu0 %v2450
    %v2559 = vpop.f32.mrb[0].mxu0
    %v2560 = vadd.f32 0.0, %v2559
    %v2561 = vpop.f32.mrb[0].mxu0
    %2562 = vmatprep.mubr.f32.mxu0 0.0
    %2563 = vmatmul.mubr.f32.gmra.mrb[0].mxu0 %v2452
    %v2564 = vpop.f32.mrb[0].mxu0
    %v2565 = vadd.f32 0.0, %v2564
    %v2566 = vpop.f32.mrb[0].mxu0
    %2567 = vmatprep.mubr.f32.mxu0 0.0
    %2568 = vmatmul.mubr.f32.gmra.mrb[0].mxu0 %v2454
    %v2569 = vpop.f32.mrb[0].mxu0
    %v2570 = vadd.f32 0.0, %v2569
    %v2571 = vpop.f32.mrb[0].mxu0
    %2572 = vmatprep.mubr.f32.mxu0 0.0
    %2573 = vmatmul.mubr.f32.gmra.mrb[0].mxu0 %v2456
    %v2574 = vpop.f32.mrb[0].mxu0
    %v2575 = vadd.f32 0.0, %v2574
    %v2576 = vpop.f32.mrb[0].mxu0
    %2577 = vmatprep.mubr.f32.mxu0 0.0
    %2578 = vmatmul.mubr.f32.gmra.mrb[0].mxu0 %v2458
    %v2579 = vpop.f32.mrb[0].mxu0
    %v2580 = vadd.f32 0.0, %v2579
    %v2581 = vpop.f32.mrb[0].mxu0
    %2582 = vmatprep.mubr.f32.mxu0 0.0
    %2583 = vmatmul.mubr.f32.gmra.mrb[0].mxu0 %v2460
    %v2584 = vpop.f32.mrb[0].mxu0
    %v2585 = vadd.f32 0.0, %v2584
    %v2586 = vpop.f32.mrb[0].mxu0
    %2587 = vmatprep.mubr.f32.mxu0 0.0
    %2588 = vmatmul.mubr.f32.gmra.mrb[0].mxu0 %v2462
    %v2589 = vpop.f32.mrb[0].mxu0
    %v2590 = vadd.f32 0.0, %v2589
    %v2591 = vpop.f32.mrb[0].mxu0
    %2592 = vmatprep.mubr.f32.mxu0 0.0
    %2593 = vmatmul.mubr.f32.gmra.mrb[0].mxu0 %v2464
    %v2594 = vpop.f32.mrb[0].mxu0
    %v2595 = vadd.f32 0.0, %v2594
    %v2596 = vpop.f32.mrb[0].mxu0
    %2597 = vmatprep.mubr.f32.mxu0 0.0
    %2598 = vmatmul.mubr.f32.gmra.mrb[0].mxu0 %v2466
    %v2599 = vpop.f32.mrb[0].mxu0
    %v2600 = vadd.f32 0.0, %v2599
    %v2601 = vpop.f32.mrb[0].mxu0
    %2602 = vmatprep.mubr.f32.mxu0 0.0
    %2603 = vmatmul.mubr.f32.gmra.mrb[0].mxu0 %v2468
    %v2604 = vpop.f32.mrb[0].mxu0
    %v2605 = vadd.f32 0.0, %v2604
    %v2606 = vpop.f32.mrb[0].mxu0
    %2607 = vmatprep.mubr.f32.mxu0 0.0
    %2608 = vmatmul.mubr.f32.gmra.mrb[0].mxu0 %v2470
    %v2609 = vpop.f32.mrb[0].mxu0
    %v2610 = vadd.f32 0.0, %v2609
    %v2611 = vpop.f32.mrb[0].mxu0
    %2612 = vmatprep.mubr.f32.mxu0 0.0
    %2613 = vmatmul.mubr.f32.gmra.mrb[0].mxu0 %v2472
    %v2614 = vpop.f32.mrb[0].mxu0
    %v2615 = vadd.f32 0.0, %v2614
    %v2616 = vpop.f32.mrb[0].mxu0
    %2617 = vdwg.mxu0
    %v2618 = vcombine.low %v2540, %v2580
    %v2619 = vcombine.high %v2540, %v2580
    %v2621 = vunpack.c.l.s4 1983009808
    %v2622 = vunpack.c.0.s8 %v2621
    %v2623 = vlaneseq
    %v2624 = vshrl.u32 %v2623, 7
    %v2625 = vsub.s32 %v2622, %v2624
    %v2626 = vrot.slane %v2618, %v2625
    %v2628 = vunpack.c.l.s4 1983009808
    %v2629 = vunpack.c.0.s8 %v2628
    %v2630 = vlaneseq
    %v2631 = vshrl.u32 %v2630, 7
    %v2632 = vsub.s32 %v2629, %v2631
    %v2633 = vrot.slane %v2619, %v2632
    %v2634 = vcombine.low %v2560, %v2600
    %v2635 = vcombine.high %v2560, %v2600
    %v2637 = vunpack.c.l.s4 1983009808
    %v2638 = vunpack.c.0.s8 %v2637
    %v2639 = vlaneseq
    %v2640 = vshrl.u32 %v2639, 7
    %v2641 = vsub.s32 %v2638, %v2640
    %v2642 = vrot.slane %v2634, %v2641
    %v2644 = vunpack.c.l.s4 1983009808
    %v2645 = vunpack.c.0.s8 %v2644
    %v2646 = vlaneseq
    %v2647 = vshrl.u32 %v2646, 7
    %v2648 = vsub.s32 %v2645, %v2647
    %v2649 = vrot.slane %v2635, %v2648
    %v2650 = vcombine.low %v2626, %v2642
    %v2651 = vcombine.high %v2626, %v2642
    %v2653 = vunpack.c.l.s4 1934713408
    %v2654 = vunpack.c.0.s8 %v2653
    %v2655 = vlaneseq
    %v2656 = vshrl.u32 %v2655, 7
    %v2657 = vsub.s32 %v2654, %v2656
    %v2658 = vrot.slane %v2650, %v2657
    %v2660 = vunpack.c.l.s4 1934713408
    %v2661 = vunpack.c.0.s8 %v2660
    %v2662 = vlaneseq
    %v2663 = vshrl.u32 %v2662, 7
    %v2664 = vsub.s32 %v2661, %v2663
    %v2665 = vrot.slane %v2651, %v2664
    %v2666 = vcombine.low %v2633, %v2649
    %v2667 = vcombine.high %v2633, %v2649
    %v2669 = vunpack.c.l.s4 1934713408
    %v2670 = vunpack.c.0.s8 %v2669
    %v2671 = vlaneseq
    %v2672 = vshrl.u32 %v2671, 7
    %v2673 = vsub.s32 %v2670, %v2672
    %v2674 = vrot.slane %v2666, %v2673
    %v2676 = vunpack.c.l.s4 1934713408
    %v2677 = vunpack.c.0.s8 %v2676
    %v2678 = vlaneseq
    %v2679 = vshrl.u32 %v2678, 7
    %v2680 = vsub.s32 %v2677, %v2679
    %v2681 = vrot.slane %v2667, %v2680
    %v2682 = vcombine.high %v2658, 0.0
    %v2683 = vcombine.high %v2665, 0.0
    %v2684 = vcombine.high %v2674, 0.0
    %v2685 = vcombine.high %v2681, 0.0
    %v2686 = vcombine.low %v2545, %v2585
    %v2687 = vcombine.high %v2545, %v2585
    %v2689 = vunpack.c.l.s4 1983009808
    %v2690 = vunpack.c.0.s8 %v2689
    %v2691 = vlaneseq
    %v2692 = vshrl.u32 %v2691, 7
    %v2693 = vsub.s32 %v2690, %v2692
    %v2694 = vrot.slane %v2686, %v2693
    %v2696 = vunpack.c.l.s4 1983009808
    %v2697 = vunpack.c.0.s8 %v2696
    %v2698 = vlaneseq
    %v2699 = vshrl.u32 %v2698, 7
    %v2700 = vsub.s32 %v2697, %v2699
    %v2701 = vrot.slane %v2687, %v2700
    %v2702 = vcombine.low %v2565, %v2605
    %v2703 = vcombine.high %v2565, %v2605
    %v2705 = vunpack.c.l.s4 1983009808
    %v2706 = vunpack.c.0.s8 %v2705
    %v2707 = vlaneseq
    %v2708 = vshrl.u32 %v2707, 7
    %v2709 = vsub.s32 %v2706, %v2708
    %v2710 = vrot.slane %v2702, %v2709
    %v2712 = vunpack.c.l.s4 1983009808
    %v2713 = vunpack.c.0.s8 %v2712
    %v2714 = vlaneseq
    %v2715 = vshrl.u32 %v2714, 7
    %v2716 = vsub.s32 %v2713, %v2715
    %v2717 = vrot.slane %v2703, %v2716
    %v2718 = vcombine.low %v2694, %v2710
    %v2719 = vcombine.high %v2694, %v2710
    %v2721 = vunpack.c.l.s4 1934713408
    %v2722 = vunpack.c.0.s8 %v2721
    %v2723 = vlaneseq
    %v2724 = vshrl.u32 %v2723, 7
    %v2725 = vsub.s32 %v2722, %v2724
    %v2726 = vrot.slane %v2718, %v2725
    %v2728 = vunpack.c.l.s4 1934713408
    %v2729 = vunpack.c.0.s8 %v2728
    %v2730 = vlaneseq
    %v2731 = vshrl.u32 %v2730, 7
    %v2732 = vsub.s32 %v2729, %v2731
    %v2733 = vrot.slane %v2719, %v2732
    %v2734 = vcombine.low %v2701, %v2717
    %v2735 = vcombine.high %v2701, %v2717
    %v2737 = vunpack.c.l.s4 1934713408
    %v2738 = vunpack.c.0.s8 %v2737
    %v2739 = vlaneseq
    %v2740 = vshrl.u32 %v2739, 7
    %v2741 = vsub.s32 %v2738, %v2740
    %v2742 = vrot.slane %v2734, %v2741
    %v2744 = vunpack.c.l.s4 1934713408
    %v2745 = vunpack.c.0.s8 %v2744
    %v2746 = vlaneseq
    %v2747 = vshrl.u32 %v2746, 7
    %v2748 = vsub.s32 %v2745, %v2747
    %v2749 = vrot.slane %v2735, %v2748
    %v2750 = vcombine.high %v2726, 0.0
    %v2751 = vcombine.high %v2733, 0.0
    %v2752 = vcombine.high %v2742, 0.0
    %v2753 = vcombine.high %v2749, 0.0
    %v2754 = vcombine.low %v2550, %v2590
    %v2755 = vcombine.high %v2550, %v2590
    %v2757 = vunpack.c.l.s4 1983009808
    %v2758 = vunpack.c.0.s8 %v2757
    %v2759 = vlaneseq
    %v2760 = vshrl.u32 %v2759, 7
    %v2761 = vsub.s32 %v2758, %v2760
    %v2762 = vrot.slane %v2754, %v2761
    %v2764 = vunpack.c.l.s4 1983009808
    %v2765 = vunpack.c.0.s8 %v2764
    %v2766 = vlaneseq
    %v2767 = vshrl.u32 %v2766, 7
    %v2768 = vsub.s32 %v2765, %v2767
    %v2769 = vrot.slane %v2755, %v2768
    %v2770 = vcombine.low %v2570, %v2610
    %v2771 = vcombine.high %v2570, %v2610
    %v2773 = vunpack.c.l.s4 1983009808
    %v2774 = vunpack.c.0.s8 %v2773
    %v2775 = vlaneseq
    %v2776 = vshrl.u32 %v2775, 7
    %v2777 = vsub.s32 %v2774, %v2776
    %v2778 = vrot.slane %v2770, %v2777
    %v2780 = vunpack.c.l.s4 1983009808
    %v2781 = vunpack.c.0.s8 %v2780
    %v2782 = vlaneseq
    %v2783 = vshrl.u32 %v2782, 7
    %v2784 = vsub.s32 %v2781, %v2783
    %v2785 = vrot.slane %v2771, %v2784
    %v2786 = vcombine.low %v2762, %v2778
    %v2787 = vcombine.high %v2762, %v2778
    %v2789 = vunpack.c.l.s4 1934713408
    %v2790 = vunpack.c.0.s8 %v2789
    %v2791 = vlaneseq
    %v2792 = vshrl.u32 %v2791, 7
    %v2793 = vsub.s32 %v2790, %v2792
    %v2794 = vrot.slane %v2786, %v2793
    %v2796 = vunpack.c.l.s4 1934713408
    %v2797 = vunpack.c.0.s8 %v2796
    %v2798 = vlaneseq
    %v2799 = vshrl.u32 %v2798, 7
    %v2800 = vsub.s32 %v2797, %v2799
    %v2801 = vrot.slane %v2787, %v2800
    %v2802 = vcombine.low %v2769, %v2785
    %v2803 = vcombine.high %v2769, %v2785
    %v2805 = vunpack.c.l.s4 1934713408
    %v2806 = vunpack.c.0.s8 %v2805
    %v2807 = vlaneseq
    %v2808 = vshrl.u32 %v2807, 7
    %v2809 = vsub.s32 %v2806, %v2808
    %v2810 = vrot.slane %v2802, %v2809
    %v2812 = vunpack.c.l.s4 1934713408
    %v2813 = vunpack.c.0.s8 %v2812
    %v2814 = vlaneseq
    %v2815 = vshrl.u32 %v2814, 7
    %v2816 = vsub.s32 %v2813, %v2815
    %v2817 = vrot.slane %v2803, %v2816
    %v2818 = vcombine.high %v2794, 0.0
    %v2819 = vcombine.high %v2801, 0.0
    %v2820 = vcombine.high %v2810, 0.0
    %v2821 = vcombine.high %v2817, 0.0
    %v2822 = vcombine.low %v2555, %v2595
    %v2823 = vcombine.high %v2555, %v2595
    %v2825 = vunpack.c.l.s4 1983009808
    %v2826 = vunpack.c.0.s8 %v2825
    %v2827 = vlaneseq
    %v2828 = vshrl.u32 %v2827, 7
    %v2829 = vsub.s32 %v2826, %v2828
    %v2830 = vrot.slane %v2822, %v2829
    %v2832 = vunpack.c.l.s4 1983009808
    %v2833 = vunpack.c.0.s8 %v2832
    %v2834 = vlaneseq
    %v2835 = vshrl.u32 %v2834, 7
    %v2836 = vsub.s32 %v2833, %v2835
    %v2837 = vrot.slane %v2823, %v2836
    %v2838 = vcombine.low %v2575, %v2615
    %v2839 = vcombine.high %v2575, %v2615
    %v2841 = vunpack.c.l.s4 1983009808
    %v2842 = vunpack.c.0.s8 %v2841
    %v2843 = vlaneseq
    %v2844 = vshrl.u32 %v2843, 7
    %v2845 = vsub.s32 %v2842, %v2844
    %v2846 = vrot.slane %v2838, %v2845
    %v2848 = vunpack.c.l.s4 1983009808
    %v2849 = vunpack.c.0.s8 %v2848
    %v2850 = vlaneseq
    %v2851 = vshrl.u32 %v2850, 7
    %v2852 = vsub.s32 %v2849, %v2851
    %v2853 = vrot.slane %v2839, %v2852
    %v2854 = vcombine.low %v2830, %v2846
    %v2855 = vcombine.high %v2830, %v2846
    %v2857 = vunpack.c.l.s4 1934713408
    %v2858 = vunpack.c.0.s8 %v2857
    %v2859 = vlaneseq
    %v2860 = vshrl.u32 %v2859, 7
    %v2861 = vsub.s32 %v2858, %v2860
    %v2862 = vrot.slane %v2854, %v2861
    %v2864 = vunpack.c.l.s4 1934713408
    %v2865 = vunpack.c.0.s8 %v2864
    %v2866 = vlaneseq
    %v2867 = vshrl.u32 %v2866, 7
    %v2868 = vsub.s32 %v2865, %v2867
    %v2869 = vrot.slane %v2855, %v2868
    %v2870 = vcombine.low %v2837, %v2853
    %v2871 = vcombine.high %v2837, %v2853
    %v2873 = vunpack.c.l.s4 1934713408
    %v2874 = vunpack.c.0.s8 %v2873
    %v2875 = vlaneseq
    %v2876 = vshrl.u32 %v2875, 7
    %v2877 = vsub.s32 %v2874, %v2876
    %v2878 = vrot.slane %v2870, %v2877
    %v2880 = vunpack.c.l.s4 1934713408
    %v2881 = vunpack.c.0.s8 %v2880
    %v2882 = vlaneseq
    %v2883 = vshrl.u32 %v2882, 7
    %v2884 = vsub.s32 %v2881, %v2883
    %v2885 = vrot.slane %v2871, %v2884
    %v2886 = vcombine.high %v2862, 0.0
    %v2887 = vcombine.high %v2869, 0.0
    %v2888 = vcombine.high %v2878, 0.0
    %v2889 = vcombine.high %v2885, 0.0
    %v2890 = vcombine.low %v2658, %v2665
    %v2892 = vunpack.c.l.s4 1983009808
    %v2893 = vunpack.c.0.s8 %v2892
    %v2894 = vlaneseq
    %v2895 = vshrl.u32 %v2894, 7
    %v2896 = vsub.s32 %v2893, %v2895
    %v2897 = vrot.slane %v2890, %v2896
    %v2898 = vcombine.low %v2682, %v2683
    %v2900 = vunpack.c.l.s4 1983009808
    %v2901 = vunpack.c.0.s8 %v2900
    %v2902 = vlaneseq
    %v2903 = vshrl.u32 %v2902, 7
    %v2904 = vsub.s32 %v2901, %v2903
    %v2905 = vrot.slane %v2898, %v2904
    %v2906 = vcombine.low %v2674, %v2681
    %v2908 = vunpack.c.l.s4 1983009808
    %v2909 = vunpack.c.0.s8 %v2908
    %v2910 = vlaneseq
    %v2911 = vshrl.u32 %v2910, 7
    %v2912 = vsub.s32 %v2909, %v2911
    %v2913 = vrot.slane %v2906, %v2912
    %v2914 = vcombine.low %v2684, %v2685
    %v2916 = vunpack.c.l.s4 1983009808
    %v2917 = vunpack.c.0.s8 %v2916
    %v2918 = vlaneseq
    %v2919 = vshrl.u32 %v2918, 7
    %v2920 = vsub.s32 %v2917, %v2919
    %v2921 = vrot.slane %v2914, %v2920
    %v2922 = vcombine.low %v2897, %v2905
    %v2923 = vcombine.high %v2897, %v2905
    %v2925 = vunpack.c.l.s4 1934713408
    %v2926 = vunpack.c.0.s8 %v2925
    %v2927 = vlaneseq
    %v2928 = vshrl.u32 %v2927, 7
    %v2929 = vsub.s32 %v2926, %v2928
    %v2930 = vrot.slane %v2922, %v2929
    %v2932 = vunpack.c.l.s4 1934713408
    %v2933 = vunpack.c.0.s8 %v2932
    %v2934 = vlaneseq
    %v2935 = vshrl.u32 %v2934, 7
    %v2936 = vsub.s32 %v2933, %v2935
    %v2937 = vrot.slane %v2923, %v2936
    %v2938 = vcombine.low %v2913, %v2921
    %v2939 = vcombine.high %v2913, %v2921
    %v2941 = vunpack.c.l.s4 1934713408
    %v2942 = vunpack.c.0.s8 %v2941
    %v2943 = vlaneseq
    %v2944 = vshrl.u32 %v2943, 7
    %v2945 = vsub.s32 %v2942, %v2944
    %v2946 = vrot.slane %v2938, %v2945
    %v2948 = vunpack.c.l.s4 1934713408
    %v2949 = vunpack.c.0.s8 %v2948
    %v2950 = vlaneseq
    %v2951 = vshrl.u32 %v2950, 7
    %v2952 = vsub.s32 %v2949, %v2951
    %v2953 = vrot.slane %v2939, %v2952
    %v2954 = vcombine.low %v2930, %v2946
    %v2955 = vcombine.high %v2930, %v2946
    %v2956 = vcombine.low %v2937, %v2953
    %v2957 = vcombine.high %v2937, %v2953
    %v2958 = vcombine.low %v2726, %v2733
    %v2960 = vunpack.c.l.s4 1983009808
    %v2961 = vunpack.c.0.s8 %v2960
    %v2962 = vlaneseq
    %v2963 = vshrl.u32 %v2962, 7
    %v2964 = vsub.s32 %v2961, %v2963
    %v2965 = vrot.slane %v2958, %v2964
    %v2966 = vcombine.low %v2750, %v2751
    %v2968 = vunpack.c.l.s4 1983009808
    %v2969 = vunpack.c.0.s8 %v2968
    %v2970 = vlaneseq
    %v2971 = vshrl.u32 %v2970, 7
    %v2972 = vsub.s32 %v2969, %v2971
    %v2973 = vrot.slane %v2966, %v2972
    %v2974 = vcombine.low %v2742, %v2749
    %v2976 = vunpack.c.l.s4 1983009808
    %v2977 = vunpack.c.0.s8 %v2976
    %v2978 = vlaneseq
    %v2979 = vshrl.u32 %v2978, 7
    %v2980 = vsub.s32 %v2977, %v2979
    %v2981 = vrot.slane %v2974, %v2980
    %v2982 = vcombine.low %v2752, %v2753
    %v2984 = vunpack.c.l.s4 1983009808
    %v2985 = vunpack.c.0.s8 %v2984
    %v2986 = vlaneseq
    %v2987 = vshrl.u32 %v2986, 7
    %v2988 = vsub.s32 %v2985, %v2987
    %v2989 = vrot.slane %v2982, %v2988
    %v2990 = vcombine.low %v2965, %v2973
    %v2991 = vcombine.high %v2965, %v2973
    %v2993 = vunpack.c.l.s4 1934713408
    %v2994 = vunpack.c.0.s8 %v2993
    %v2995 = vlaneseq
    %v2996 = vshrl.u32 %v2995, 7
    %v2997 = vsub.s32 %v2994, %v2996
    %v2998 = vrot.slane %v2990, %v2997
    %v3000 = vunpack.c.l.s4 1934713408
    %v3001 = vunpack.c.0.s8 %v3000
    %v3002 = vlaneseq
    %v3003 = vshrl.u32 %v3002, 7
    %v3004 = vsub.s32 %v3001, %v3003
    %v3005 = vrot.slane %v2991, %v3004
    %v3006 = vcombine.low %v2981, %v2989
    %v3007 = vcombine.high %v2981, %v2989
    %v3009 = vunpack.c.l.s4 1934713408
    %v3010 = vunpack.c.0.s8 %v3009
    %v3011 = vlaneseq
    %v3012 = vshrl.u32 %v3011, 7
    %v3013 = vsub.s32 %v3010, %v3012
    %v3014 = vrot.slane %v3006, %v3013
    %v3016 = vunpack.c.l.s4 1934713408
    %v3017 = vunpack.c.0.s8 %v3016
    %v3018 = vlaneseq
    %v3019 = vshrl.u32 %v3018, 7
    %v3020 = vsub.s32 %v3017, %v3019
    %v3021 = vrot.slane %v3007, %v3020
    %v3022 = vcombine.low %v2998, %v3014
    %v3023 = vcombine.high %v2998, %v3014
    %v3024 = vcombine.low %v3005, %v3021
    %v3025 = vcombine.high %v3005, %v3021
    %v3026 = vcombine.low %v2794, %v2801
    %v3028 = vunpack.c.l.s4 1983009808
    %v3029 = vunpack.c.0.s8 %v3028
    %v3030 = vlaneseq
    %v3031 = vshrl.u32 %v3030, 7
    %v3032 = vsub.s32 %v3029, %v3031
    %v3033 = vrot.slane %v3026, %v3032
    %v3034 = vcombine.low %v2818, %v2819
    %v3036 = vunpack.c.l.s4 1983009808
    %v3037 = vunpack.c.0.s8 %v3036
    %v3038 = vlaneseq
    %v3039 = vshrl.u32 %v3038, 7
    %v3040 = vsub.s32 %v3037, %v3039
    %v3041 = vrot.slane %v3034, %v3040
    %v3042 = vcombine.low %v2810, %v2817
    %v3044 = vunpack.c.l.s4 1983009808
    %v3045 = vunpack.c.0.s8 %v3044
    %v3046 = vlaneseq
    %v3047 = vshrl.u32 %v3046, 7
    %v3048 = vsub.s32 %v3045, %v3047
    %v3049 = vrot.slane %v3042, %v3048
    %v3050 = vcombine.low %v2820, %v2821
    %v3052 = vunpack.c.l.s4 1983009808
    %v3053 = vunpack.c.0.s8 %v3052
    %v3054 = vlaneseq
    %v3055 = vshrl.u32 %v3054, 7
    %v3056 = vsub.s32 %v3053, %v3055
    %v3057 = vrot.slane %v3050, %v3056
    %v3058 = vcombine.low %v3033, %v3041
    %v3059 = vcombine.high %v3033, %v3041
    %v3061 = vunpack.c.l.s4 1934713408
    %v3062 = vunpack.c.0.s8 %v3061
    %v3063 = vlaneseq
    %v3064 = vshrl.u32 %v3063, 7
    %v3065 = vsub.s32 %v3062, %v3064
    %v3066 = vrot.slane %v3058, %v3065
    %v3068 = vunpack.c.l.s4 1934713408
    %v3069 = vunpack.c.0.s8 %v3068
    %v3070 = vlaneseq
    %v3071 = vshrl.u32 %v3070, 7
    %v3072 = vsub.s32 %v3069, %v3071
    %v3073 = vrot.slane %v3059, %v3072
    %v3074 = vcombine.low %v3049, %v3057
    %v3075 = vcombine.high %v3049, %v3057
    %v3077 = vunpack.c.l.s4 1934713408
    %v3078 = vunpack.c.0.s8 %v3077
    %v3079 = vlaneseq
    %v3080 = vshrl.u32 %v3079, 7
    %v3081 = vsub.s32 %v3078, %v3080
    %v3082 = vrot.slane %v3074, %v3081
    %v3084 = vunpack.c.l.s4 1934713408
    %v3085 = vunpack.c.0.s8 %v3084
    %v3086 = vlaneseq
    %v3087 = vshrl.u32 %v3086, 7
    %v3088 = vsub.s32 %v3085, %v3087
    %v3089 = vrot.slane %v3075, %v3088
    %v3090 = vcombine.low %v3066, %v3082
    %v3091 = vcombine.high %v3066, %v3082
    %v3092 = vcombine.low %v3073, %v3089
    %v3093 = vcombine.high %v3073, %v3089
    %v3094 = vcombine.low %v2862, %v2869
    %v3096 = vunpack.c.l.s4 1983009808
    %v3097 = vunpack.c.0.s8 %v3096
    %v3098 = vlaneseq
    %v3099 = vshrl.u32 %v3098, 7
    %v3100 = vsub.s32 %v3097, %v3099
    %v3101 = vrot.slane %v3094, %v3100
    %v3102 = vcombine.low %v2886, %v2887
    %v3104 = vunpack.c.l.s4 1983009808
    %v3105 = vunpack.c.0.s8 %v3104
    %v3106 = vlaneseq
    %v3107 = vshrl.u32 %v3106, 7
    %v3108 = vsub.s32 %v3105, %v3107
    %v3109 = vrot.slane %v3102, %v3108
    %v3110 = vcombine.low %v2878, %v2885
    %v3112 = vunpack.c.l.s4 1983009808
    %v3113 = vunpack.c.0.s8 %v3112
    %v3114 = vlaneseq
    %v3115 = vshrl.u32 %v3114, 7
    %v3116 = vsub.s32 %v3113, %v3115
    %v3117 = vrot.slane %v3110, %v3116
    %v3118 = vcombine.low %v2888, %v2889
    %v3120 = vunpack.c.l.s4 1983009808
    %v3121 = vunpack.c.0.s8 %v3120
    %v3122 = vlaneseq
    %v3123 = vshrl.u32 %v3122, 7
    %v3124 = vsub.s32 %v3121, %v3123
    %v3125 = vrot.slane %v3118, %v3124
    %v3126 = vcombine.low %v3101, %v3109
    %v3127 = vcombine.high %v3101, %v3109
    %v3129 = vunpack.c.l.s4 1934713408
    %v3130 = vunpack.c.0.s8 %v3129
    %v3131 = vlaneseq
    %v3132 = vshrl.u32 %v3131, 7
    %v3133 = vsub.s32 %v3130, %v3132
    %v3134 = vrot.slane %v3126, %v3133
    %v3136 = vunpack.c.l.s4 1934713408
    %v3137 = vunpack.c.0.s8 %v3136
    %v3138 = vlaneseq
    %v3139 = vshrl.u32 %v3138, 7
    %v3140 = vsub.s32 %v3137, %v3139
    %v3141 = vrot.slane %v3127, %v3140
    %v3142 = vcombine.low %v3117, %v3125
    %v3143 = vcombine.high %v3117, %v3125
    %v3145 = vunpack.c.l.s4 1934713408
    %v3146 = vunpack.c.0.s8 %v3145
    %v3147 = vlaneseq
    %v3148 = vshrl.u32 %v3147, 7
    %v3149 = vsub.s32 %v3146, %v3148
    %v3150 = vrot.slane %v3142, %v3149
    %v3152 = vunpack.c.l.s4 1934713408
    %v3153 = vunpack.c.0.s8 %v3152
    %v3154 = vlaneseq
    %v3155 = vshrl.u32 %v3154, 7
    %v3156 = vsub.s32 %v3153, %v3155
    %v3157 = vrot.slane %v3143, %v3156
    %v3158 = vcombine.low %v3134, %v3150
    %v3159 = vcombine.high %v3134, %v3150
    %v3160 = vcombine.low %v3141, %v3157
    %v3161 = vcombine.high %v3141, %v3157
    %3166 = vrot.lane.b32.xlu0 %v2955, 32
    %v3167 = vpop.permute.xlu0 %3166
    %3168 = vrot.lane.b32.xlu0 %v3023, 32
    %v3169 = vpop.permute.xlu0 %3168
    %3170 = vrot.lane.b32.xlu0 %v3091, 32
    %v3171 = vpop.permute.xlu0 %3170
    %3172 = vrot.lane.b32.xlu0 %v3159, 32
    %v3173 = vpop.permute.xlu0 %3172
    %3182 = vrot.lane.b32.xlu0 %v2956, 64
    %v3183 = vpop.permute.xlu0 %3182
    %3184 = vrot.lane.b32.xlu0 %v3024, 64
    %v3185 = vpop.permute.xlu0 %3184
    %3186 = vrot.lane.b32.xlu0 %v3092, 64
    %v3187 = vpop.permute.xlu0 %3186
    %3188 = vrot.lane.b32.xlu0 %v3160, 64
    %v3189 = vpop.permute.xlu0 %3188
    %3198 = vrot.lane.b32.xlu0 %v2957, 96
    %v3199 = vpop.permute.xlu0 %3198
    %3200 = vrot.lane.b32.xlu0 %v3025, 96
    %v3201 = vpop.permute.xlu0 %3200
    %3202 = vrot.lane.b32.xlu0 %v3093, 96
    %v3203 = vpop.permute.xlu0 %3202
    %3204 = vrot.lane.b32.xlu0 %v3161, 96
    %v3205 = vpop.permute.xlu0 %3204
    %v3210 = vsel %vm2087, %v2954, %v3167
    %v3211 = vsel %vm2087, %v3022, %v3169
    %v3212 = vsel %vm2087, %v3090, %v3171
    %v3213 = vsel %vm2087, %v3158, %v3173
    %vm3214 = vcmask 523264
    %v3215 = vsel %vm3214, %v3210, %v3183
    %v3216 = vsel %vm3214, %v3211, %v3185
    %v3217 = vsel %vm3214, %v3212, %v3187
    %v3218 = vsel %vm3214, %v3213, %v3189
    %vm3219 = vcmask 785408
    %v3220 = vsel %vm3219, %v3215, %v3199
    %v3221 = vsel %vm3219, %v3216, %v3201
    %v3222 = vsel %vm3219, %v3217, %v3203
    %v3223 = vsel %vm3219, %v3218, %v3205
    %v3224 = vld [vmem:[#allocation2] sm:$0xff]
    %v3225 = vld [vmem:[#allocation2 + $0x8] sm:$0xff]
    %v3226 = vld [vmem:[#allocation2 + $0x10] sm:$0xff]
    %v3227 = vld [vmem:[#allocation2 + $0x18] sm:$0xff]
    %v3228 = vld [vmem:[#allocation2 + $0x20] sm:$0xff]
    %v3229 = vld [vmem:[#allocation2 + $0x28] sm:$0xff]
    %v3230 = vld [vmem:[#allocation2 + $0x30] sm:$0xff]
    %v3231 = vld [vmem:[#allocation2 + $0x38] sm:$0xff]
    %v3232 = vld [vmem:[#allocation2 + $0x40] sm:$0xff]
    %v3233 = vld [vmem:[#allocation2 + $0x48] sm:$0xff]
    %v3234 = vld [vmem:[#allocation2 + $0x50] sm:$0xff]
    %v3235 = vld [vmem:[#allocation2 + $0x58] sm:$0xff]
    %v3236 = vld [vmem:[#allocation2 + $0x60] sm:$0xff]
    %v3237 = vld [vmem:[#allocation2 + $0x68] sm:$0xff]
    %v3238 = vld [vmem:[#allocation2 + $0x70] sm:$0xff]
    %v3239 = vld [vmem:[#allocation2 + $0x78] sm:$0xff]
    %v3240 = vld [vmem:[%s5] sm:$0x1]
    %v3242 = vlaneseq
    %v3243 = vshrl.u32 %v3242, 7
    %v3244 = vsub.s32 0, %v3243
    %v3245 = vrot.slane %v3240, %v3244
    %3247 = vmatprep.subr.mxu0 0.0
    %3248 = vmatpush1.msra.mxu0 %v3224
    %3249 = vmatprep.subr.mxu0 0.0
    %3250 = vmatpush1.msra.mxu0 %v3225
    %3251 = vmatprep.subr.mxu0 0.0
    %3252 = vmatpush1.msra.mxu0 %v3226
    %3253 = vmatprep.subr.mxu0 0.0
    %3254 = vmatpush1.msra.mxu0 %v3227
    %3255 = vmatprep.subr.mxu0 0.0
    %3256 = vmatpush1.msra.mxu0 %v3228
    %3257 = vmatprep.subr.mxu0 0.0
    %3258 = vmatpush1.msra.mxu0 %v3229
    %3259 = vmatprep.subr.mxu0 0.0
    %3260 = vmatpush1.msra.mxu0 %v3230
    %3261 = vmatprep.subr.mxu0 0.0
    %3262 = vmatpush1.msra.mxu0 %v3231
    %3263 = vmatprep.subr.mxu0 0.0
    %3264 = vmatpush1.msra.mxu0 %v3232
    %3265 = vmatprep.subr.mxu0 0.0
    %3266 = vmatpush1.msra.mxu0 %v3233
    %3267 = vmatprep.subr.mxu0 0.0
    %3268 = vmatpush1.msra.mxu0 %v3234
    %3269 = vmatprep.subr.mxu0 0.0
    %3270 = vmatpush1.msra.mxu0 %v3235
    %3271 = vmatprep.subr.mxu0 0.0
    %3272 = vmatpush1.msra.mxu0 %v3236
    %3273 = vmatprep.subr.mxu0 0.0
    %3274 = vmatpush1.msra.mxu0 %v3237
    %3275 = vmatprep.subr.mxu0 0.0
    %3276 = vmatpush1.msra.mxu0 %v3238
    %3277 = vmatprep.subr.mxu0 0.0
    %3278 = vmatpush1.msra.mxu0 %v3239
    %3279 = vmatprep.subr.mxu0 0.0
    %3280 = vmatpush1.msra.mxu0 0.0
    %3281 = vmatprep.subr.mxu0 0.0
    %3282 = vmatpush1.msra.mxu0 0.0
    %3283 = vmatprep.subr.mxu0 0.0
    %3284 = vmatpush1.msra.mxu0 0.0
    %3285 = vmatprep.subr.mxu0 0.0
    %3286 = vmatpush1.msra.mxu0 0.0
    %3287 = vmatprep.subr.mxu0 0.0
    %3288 = vmatpush1.msra.mxu0 0.0
    %3289 = vmatprep.subr.mxu0 0.0
    %3290 = vmatpush1.msra.mxu0 0.0
    %3291 = vmatprep.subr.mxu0 0.0
    %3292 = vmatpush1.msra.mxu0 0.0
    %3293 = vmatprep.subr.mxu0 0.0
    %3294 = vmatpush1.msra.mxu0 0.0
    %3295 = vmatprep.subr.mxu0 0.0
    %3296 = vmatpush1.msra.mxu0 0.0
    %3297 = vmatprep.subr.mxu0 0.0
    %3298 = vmatpush1.msra.mxu0 0.0
    %3299 = vmatprep.subr.mxu0 0.0
    %3300 = vmatpush1.msra.mxu0 0.0
    %3301 = vmatprep.subr.mxu0 0.0
    %3302 = vmatpush1.msra.mxu0 0.0
    %3303 = vmatprep.subr.mxu0 0.0
    %3304 = vmatpush1.msra.mxu0 0.0
    %3305 = vmatprep.subr.mxu0 0.0
    %3306 = vmatpush1.msra.mxu0 0.0
    %3307 = vmatprep.subr.mxu0 0.0
    %3308 = vmatpush1.msra.mxu0 0.0
    %3309 = vmatprep.subr.mxu0 0.0
    %3310 = vmatpush1.msra.mxu0 0.0
    %3311 = vmatprep.mubr.f32.mxu0 0.0
    %3312 = vmatmul.mubr.f32.gmra.mrb[0].mxu0 %v3220
    %v3313 = vpop.f32.mrb[0].mxu0
    %v3314 = vadd.f32 %v3245, %v3313
    %v3315 = vpop.f32.mrb[0].mxu0
    %3316 = vmatprep.mubr.f32.mxu0 0.0
    %3317 = vmatmul.mubr.f32.gmra.mrb[0].mxu0 %v3221
    %v3318 = vpop.f32.mrb[0].mxu0
    %v3319 = vadd.f32 %v3245, %v3318
    %v3320 = vpop.f32.mrb[0].mxu0
    %3321 = vmatprep.mubr.f32.mxu0 0.0
    %3322 = vmatmul.mubr.f32.gmra.mrb[0].mxu0 %v3222
    %v3323 = vpop.f32.mrb[0].mxu0
    %v3324 = vadd.f32 %v3245, %v3323
    %v3325 = vpop.f32.mrb[0].mxu0
    %3326 = vmatprep.mubr.f32.mxu0 0.0
    %3327 = vmatmul.mubr.f32.gmra.mrb[0].mxu0 %v3223
    %v3328 = vpop.f32.mrb[0].mxu0
    %v3329 = vadd.f32 %v3245, %v3328
    %v3330 = vpop.f32.mrb[0].mxu0
    %3331 = vdwg.mxu0
    %v3332 = vadd.f32 %v3314, %v76
    %v3333 = vadd.f32 %v3319, %v77
    %v3334 = vadd.f32 %v3324, %v78
    %v3335 = vadd.f32 %v3329, %v79
    %v3336 = vld [vmem:[%s10] sm:$0x1]
    %v3337 = vld [vmem:[%s11] sm:$0x1]
    %3338 = vadd.xlane.f32.xlu0 %v3332
    %v3339 = vpop.xlane.xlu0 %3338
    %3340 = vadd.xlane.f32.xlu0 %v3333
    %v3341 = vpop.xlane.xlu0 %3340
    %3342 = vadd.xlane.f32.xlu0 %v3334
    %v3343 = vpop.xlane.xlu0 %3342
    %3344 = vadd.xlane.f32.xlu0 %v3335
    %v3345 = vpop.xlane.xlu0 %3344
    %v3346 = vrcp.pop 128.0
    %v3347 = vmul.f32 %v3339, %v3346
    %v3348 = vmul.f32 %v3341, %v3346
    %v3349 = vmul.f32 %v3343, %v3346
    %v3350 = vmul.f32 %v3345, %v3346
    %v3351 = vsub.f32 %v3332, %v3347
    %v3352 = vsub.f32 %v3333, %v3348
    %v3353 = vsub.f32 %v3334, %v3349
    %v3354 = vsub.f32 %v3335, %v3350
    %v3355 = vmul.f32 %v3351, %v3351
    %v3356 = vmul.f32 %v3352, %v3352
    %v3357 = vmul.f32 %v3353, %v3353
    %v3358 = vmul.f32 %v3354, %v3354
    %3359 = vadd.xlane.f32.xlu0 %v3355
    %v3360 = vpop.xlane.xlu0 %3359
    %3361 = vadd.xlane.f32.xlu0 %v3356
    %v3362 = vpop.xlane.xlu0 %3361
    %3363 = vadd.xlane.f32.xlu0 %v3357
    %v3364 = vpop.xlane.xlu0 %3363
    %3365 = vadd.xlane.f32.xlu0 %v3358
    %v3366 = vpop.xlane.xlu0 %3365
    %v3367 = vmul.f32 %v3360, %v3346
    %v3368 = vmul.f32 %v3362, %v3346
    %v3369 = vmul.f32 %v3364, %v3346
    %v3370 = vmul.f32 %v3366, %v3346
    %v3371 = vadd.f32 %v3367, 1e-05
    %v3372 = vadd.f32 %v3368, 1e-05
    %v3373 = vadd.f32 %v3369, 1e-05
    %v3374 = vadd.f32 %v3370, 1e-05
    %v3375 = vrsqrt.pop %v3371
    %v3376 = vrsqrt.pop %v3372
    %v3377 = vrsqrt.pop %v3373
    %v3378 = vrsqrt.pop %v3374
    %v3379 = vmul.f32 %v3351, %v3375
    %v3380 = vmul.f32 %v3352, %v3376
    %v3381 = vmul.f32 %v3353, %v3377
    %v3382 = vmul.f32 %v3354, %v3378
    %v3384 = vlaneseq
    %v3385 = vshrl.u32 %v3384, 7
    %v3386 = vsub.s32 0, %v3385
    %v3387 = vrot.slane %v3336, %v3386
    %v3389 = vmul.f32 %v3379, %v3387
    %v3390 = vmul.f32 %v3380, %v3387
    %v3391 = vmul.f32 %v3381, %v3387
    %v3392 = vmul.f32 %v3382, %v3387
    %v3394 = vlaneseq
    %v3395 = vshrl.u32 %v3394, 7
    %v3396 = vsub.s32 0, %v3395
    %v3397 = vrot.slane %v3337, %v3396
    %v3399 = vadd.f32 %v3389, %v3397
    %v3400 = vadd.f32 %v3390, %v3397
    %v3401 = vadd.f32 %v3391, %v3397
    %v3402 = vadd.f32 %v3392, %v3397
    %v3403 = vld [vmem:[%s6] sm:$0xff]
    %v3404 = vld [vmem:[%s6 + $0x8] sm:$0xff]
    %v3405 = vld [vmem:[%s6 + $0x10] sm:$0xff]
    %v3406 = vld [vmem:[%s6 + $0x18] sm:$0xff]
    %v3407 = vld [vmem:[%s6 + $0x20] sm:$0xff]
    %v3408 = vld [vmem:[%s6 + $0x28] sm:$0xff]
    %v3409 = vld [vmem:[%s6 + $0x30] sm:$0xff]
    %v3410 = vld [vmem:[%s6 + $0x38] sm:$0xff]
    %v3411 = vld [vmem:[%s6 + $0x40] sm:$0xff]
    %v3412 = vld [vmem:[%s6 + $0x48] sm:$0xff]
    %v3413 = vld [vmem:[%s6 + $0x50] sm:$0xff]
    %v3414 = vld [vmem:[%s6 + $0x58] sm:$0xff]
    %v3415 = vld [vmem:[%s6 + $0x60] sm:$0xff]
    %v3416 = vld [vmem:[%s6 + $0x68] sm:$0xff]
    %v3417 = vld [vmem:[%s6 + $0x70] sm:$0xff]
    %v3418 = vld [vmem:[%s6 + $0x78] sm:$0xff]
    %v3419 = vld [vmem:[%s6 + $0x80] sm:$0xff]
    %v3420 = vld [vmem:[%s6 + $0x88] sm:$0xff]
    %v3421 = vld [vmem:[%s6 + $0x90] sm:$0xff]
    %v3422 = vld [vmem:[%s6 + $0x98] sm:$0xff]
    %v3423 = vld [vmem:[%s6 + $0xa0] sm:$0xff]
    %v3424 = vld [vmem:[%s6 + $0xa8] sm:$0xff]
    %v3425 = vld [vmem:[%s6 + $0xb0] sm:$0xff]
    %v3426 = vld [vmem:[%s6 + $0xb8] sm:$0xff]
    %v3427 = vld [vmem:[%s6 + $0xc0] sm:$0xff]
    %v3428 = vld [vmem:[%s6 + $0xc8] sm:$0xff]
    %v3429 = vld [vmem:[%s6 + $0xd0] sm:$0xff]
    %v3430 = vld [vmem:[%s6 + $0xd8] sm:$0xff]
    %v3431 = vld [vmem:[%s6 + $0xe0] sm:$0xff]
    %v3432 = vld [vmem:[%s6 + $0xe8] sm:$0xff]
    %v3433 = vld [vmem:[%s6 + $0xf0] sm:$0xff]
    %v3434 = vld [vmem:[%s6 + $0xf8] sm:$0xff]
    %v3435 = vld [vmem:[%s7] sm:$0x3]
    %v3437 = vlaneseq
    %v3438 = vshrl.u32 %v3437, 7
    %v3439 = vsub.s32 0, %v3438
    %v3440 = vrot.slane %v3435, %v3439
    %v3441 = vlaneseq
    %v3442 = vshrl.u32 %v3441, 7
    %v3443 = vsub.s32 1, %v3442
    %v3444 = vrot.slane %v3435, %v3443
    %3447 = vmatprep.subr.mxu0 %v3404
    %3448 = vmatpush1.msra.mxu0 %v3403
    %3449 = vmatprep.subr.mxu0 %v3406
    %3450 = vmatpush1.msra.mxu0 %v3405
    %3451 = vmatprep.subr.mxu0 %v3408
    %3452 = vmatpush1.msra.mxu0 %v3407
    %3453 = vmatprep.subr.mxu0 %v3410
    %3454 = vmatpush1.msra.mxu0 %v3409
    %3455 = vmatprep.subr.mxu0 %v3412
    %3456 = vmatpush1.msra.mxu0 %v3411
    %3457 = vmatprep.subr.mxu0 %v3414
    %3458 = vmatpush1.msra.mxu0 %v3413
    %3459 = vmatprep.subr.mxu0 %v3416
    %3460 = vmatpush1.msra.mxu0 %v3415
    %3461 = vmatprep.subr.mxu0 %v3418
    %3462 = vmatpush1.msra.mxu0 %v3417
    %3463 = vmatprep.subr.mxu0 %v3420
    %3464 = vmatpush1.msra.mxu0 %v3419
    %3465 = vmatprep.subr.mxu0 %v3422
    %3466 = vmatpush1.msra.mxu0 %v3421
    %3467 = vmatprep.subr.mxu0 %v3424
    %3468 = vmatpush1.msra.mxu0 %v3423
    %3469 = vmatprep.subr.mxu0 %v3426
    %3470 = vmatpush1.msra.mxu0 %v3425
    %3471 = vmatprep.subr.mxu0 %v3428
    %3472 = vmatpush1.msra.mxu0 %v3427
    %3473 = vmatprep.subr.mxu0 %v3430
    %3474 = vmatpush1.msra.mxu0 %v3429
    %3475 = vmatprep.subr.mxu0 %v3432
    %3476 = vmatpush1.msra.mxu0 %v3431
    %3477 = vmatprep.subr.mxu0 %v3434
    %3478 = vmatpush1.msra.mxu0 %v3433
    %3479 = vmatprep.subr.mxu0 0.0
    %3480 = vmatpush1.msra.mxu0 0.0
    %3481 = vmatprep.subr.mxu0 0.0
    %3482 = vmatpush1.msra.mxu0 0.0
    %3483 = vmatprep.subr.mxu0 0.0
    %3484 = vmatpush1.msra.mxu0 0.0
    %3485 = vmatprep.subr.mxu0 0.0
    %3486 = vmatpush1.msra.mxu0 0.0
    %3487 = vmatprep.subr.mxu0 0.0
    %3488 = vmatpush1.msra.mxu0 0.0
    %3489 = vmatprep.subr.mxu0 0.0
    %3490 = vmatpush1.msra.mxu0 0.0
    %3491 = vmatprep.subr.mxu0 0.0
    %3492 = vmatpush1.msra.mxu0 0.0
    %3493 = vmatprep.subr.mxu0 0.0
    %3494 = vmatpush1.msra.mxu0 0.0
    %3495 = vmatprep.subr.mxu0 0.0
    %3496 = vmatpush1.msra.mxu0 0.0
    %3497 = vmatprep.subr.mxu0 0.0
    %3498 = vmatpush1.msra.mxu0 0.0
    %3499 = vmatprep.subr.mxu0 0.0
    %3500 = vmatpush1.msra.mxu0 0.0
    %3501 = vmatprep.subr.mxu0 0.0
    %3502 = vmatpush1.msra.mxu0 0.0
    %3503 = vmatprep.subr.mxu0 0.0
    %3504 = vmatpush1.msra.mxu0 0.0
    %3505 = vmatprep.subr.mxu0 0.0
    %3506 = vmatpush1.msra.mxu0 0.0
    %3507 = vmatprep.subr.mxu0 0.0
    %3508 = vmatpush1.msra.mxu0 0.0
    %3509 = vmatprep.subr.mxu0 0.0
    %3510 = vmatpush1.msra.mxu0 0.0
    %3511 = vmatprep.mubr.f32.mxu0 0.0
    %3512 = vmatmul.mubr.f32.gmra.mrb[0].mxu0 %v3399
    %v3513 = vpop.f32.mrb[0].mxu0
    %v3514 = vadd.f32 %v3440, %v3513
    %v3515 = vpop.f32.mrb[0].mxu0
    %v3516 = vadd.f32 %v3444, %v3515
    %3517 = vmatprep.mubr.f32.mxu0 0.0
    %3518 = vmatmul.mubr.f32.gmra.mrb[0].mxu0 %v3400
    %v3519 = vpop.f32.mrb[0].mxu0
    %v3520 = vadd.f32 %v3440, %v3519
    %v3521 = vpop.f32.mrb[0].mxu0
    %v3522 = vadd.f32 %v3444, %v3521
    %3523 = vmatprep.mubr.f32.mxu0 0.0
    %3524 = vmatmul.mubr.f32.gmra.mrb[0].mxu0 %v3401
    %v3525 = vpop.f32.mrb[0].mxu0
    %v3526 = vadd.f32 %v3440, %v3525
    %v3527 = vpop.f32.mrb[0].mxu0
    %v3528 = vadd.f32 %v3444, %v3527
    %3529 = vmatprep.mubr.f32.mxu0 0.0
    %3530 = vmatmul.mubr.f32.gmra.mrb[0].mxu0 %v3402
    %v3531 = vpop.f32.mrb[0].mxu0
    %v3532 = vadd.f32 %v3440, %v3531
    %v3533 = vpop.f32.mrb[0].mxu0
    %v3534 = vadd.f32 %v3444, %v3533
    %3535 = vdwg.mxu0
    %v3536 = vmax.f32 %v3514, 0.0
    %v3537 = vmax.f32 %v3516, 0.0
    %v3538 = vmax.f32 %v3520, 0.0
    %v3539 = vmax.f32 %v3522, 0.0
    %v3540 = vmax.f32 %v3526, 0.0
    %v3541 = vmax.f32 %v3528, 0.0
    %v3542 = vmax.f32 %v3532, 0.0
    %v3543 = vmax.f32 %v3534, 0.0
    %v3544 = vld [vmem:[#allocation5] sm:$0xff]
    %v3545 = vld [vmem:[#allocation5 + $0x8] sm:$0xff]
    %v3546 = vld [vmem:[#allocation5 + $0x10] sm:$0xff]
    %v3547 = vld [vmem:[#allocation5 + $0x18] sm:$0xff]
    %v3548 = vld [vmem:[#allocation5 + $0x20] sm:$0xff]
    %v3549 = vld [vmem:[#allocation5 + $0x28] sm:$0xff]
    %v3550 = vld [vmem:[#allocation5 + $0x30] sm:$0xff]
    %v3551 = vld [vmem:[#allocation5 + $0x38] sm:$0xff]
    %v3552 = vld [vmem:[#allocation5 + $0x40] sm:$0xff]
    %v3553 = vld [vmem:[#allocation5 + $0x48] sm:$0xff]
    %v3554 = vld [vmem:[#allocation5 + $0x50] sm:$0xff]
    %v3555 = vld [vmem:[#allocation5 + $0x58] sm:$0xff]
    %v3556 = vld [vmem:[#allocation5 + $0x60] sm:$0xff]
    %v3557 = vld [vmem:[#allocation5 + $0x68] sm:$0xff]
    %v3558 = vld [vmem:[#allocation5 + $0x70] sm:$0xff]
    %v3559 = vld [vmem:[#allocation5 + $0x78] sm:$0xff]
    %v3560 = vld [vmem:[#allocation5 + $0x80] sm:$0xff]
    %v3561 = vld [vmem:[#allocation5 + $0x88] sm:$0xff]
    %v3562 = vld [vmem:[#allocation5 + $0x90] sm:$0xff]
    %v3563 = vld [vmem:[#allocation5 + $0x98] sm:$0xff]
    %v3564 = vld [vmem:[#allocation5 + $0xa0] sm:$0xff]
    %v3565 = vld [vmem:[#allocation5 + $0xa8] sm:$0xff]
    %v3566 = vld [vmem:[#allocation5 + $0xb0] sm:$0xff]
    %v3567 = vld [vmem:[#allocation5 + $0xb8] sm:$0xff]
    %v3568 = vld [vmem:[#allocation5 + $0xc0] sm:$0xff]
    %v3569 = vld [vmem:[#allocation5 + $0xc8] sm:$0xff]
    %v3570 = vld [vmem:[#allocation5 + $0xd0] sm:$0xff]
    %v3571 = vld [vmem:[#allocation5 + $0xd8] sm:$0xff]
    %v3572 = vld [vmem:[#allocation5 + $0xe0] sm:$0xff]
    %v3573 = vld [vmem:[#allocation5 + $0xe8] sm:$0xff]
    %v3574 = vld [vmem:[#allocation5 + $0xf0] sm:$0xff]
    %v3575 = vld [vmem:[#allocation5 + $0xf8] sm:$0xff]
    %v3576 = vld [vmem:[%s9] sm:$0x1]
    %v3578 = vlaneseq
    %v3579 = vshrl.u32 %v3578, 7
    %v3580 = vsub.s32 0, %v3579
    %v3581 = vrot.slane %v3576, %v3580
    %3583 = vmatprep.subr.mxu0 0.0
    %3584 = vmatpush1.msra.mxu0 %v3544
    %3585 = vmatprep.subr.mxu0 0.0
    %3586 = vmatpush1.msra.mxu0 %v3545
    %3587 = vmatprep.subr.mxu0 0.0
    %3588 = vmatpush1.msra.mxu0 %v3546
    %3589 = vmatprep.subr.mxu0 0.0
    %3590 = vmatpush1.msra.mxu0 %v3547
    %3591 = vmatprep.subr.mxu0 0.0
    %3592 = vmatpush1.msra.mxu0 %v3548
    %3593 = vmatprep.subr.mxu0 0.0
    %3594 = vmatpush1.msra.mxu0 %v3549
    %3595 = vmatprep.subr.mxu0 0.0
    %3596 = vmatpush1.msra.mxu0 %v3550
    %3597 = vmatprep.subr.mxu0 0.0
    %3598 = vmatpush1.msra.mxu0 %v3551
    %3599 = vmatprep.subr.mxu0 0.0
    %3600 = vmatpush1.msra.mxu0 %v3552
    %3601 = vmatprep.subr.mxu0 0.0
    %3602 = vmatpush1.msra.mxu0 %v3553
    %3603 = vmatprep.subr.mxu0 0.0
    %3604 = vmatpush1.msra.mxu0 %v3554
    %3605 = vmatprep.subr.mxu0 0.0
    %3606 = vmatpush1.msra.mxu0 %v3555
    %3607 = vmatprep.subr.mxu0 0.0
    %3608 = vmatpush1.msra.mxu0 %v3556
    %3609 = vmatprep.subr.mxu0 0.0
    %3610 = vmatpush1.msra.mxu0 %v3557
    %3611 = vmatprep.subr.mxu0 0.0
    %3612 = vmatpush1.msra.mxu0 %v3558
    %3613 = vmatprep.subr.mxu0 0.0
    %3614 = vmatpush1.msra.mxu0 %v3559
    %3615 = vmatprep.subr.mxu0 0.0
    %3616 = vmatpush1.msra.mxu0 %v3560
    %3617 = vmatprep.subr.mxu0 0.0
    %3618 = vmatpush1.msra.mxu0 %v3561
    %3619 = vmatprep.subr.mxu0 0.0
    %3620 = vmatpush1.msra.mxu0 %v3562
    %3621 = vmatprep.subr.mxu0 0.0
    %3622 = vmatpush1.msra.mxu0 %v3563
    %3623 = vmatprep.subr.mxu0 0.0
    %3624 = vmatpush1.msra.mxu0 %v3564
    %3625 = vmatprep.subr.mxu0 0.0
    %3626 = vmatpush1.msra.mxu0 %v3565
    %3627 = vmatprep.subr.mxu0 0.0
    %3628 = vmatpush1.msra.mxu0 %v3566
    %3629 = vmatprep.subr.mxu0 0.0
    %3630 = vmatpush1.msra.mxu0 %v3567
    %3631 = vmatprep.subr.mxu0 0.0
    %3632 = vmatpush1.msra.mxu0 %v3568
    %3633 = vmatprep.subr.mxu0 0.0
    %3634 = vmatpush1.msra.mxu0 %v3569
    %3635 = vmatprep.subr.mxu0 0.0
    %3636 = vmatpush1.msra.mxu0 %v3570
    %3637 = vmatprep.subr.mxu0 0.0
    %3638 = vmatpush1.msra.mxu0 %v3571
    %3639 = vmatprep.subr.mxu0 0.0
    %3640 = vmatpush1.msra.mxu0 %v3572
    %3641 = vmatprep.subr.mxu0 0.0
    %3642 = vmatpush1.msra.mxu0 %v3573
    %3643 = vmatprep.subr.mxu0 0.0
    %3644 = vmatpush1.msra.mxu0 %v3574
    %3645 = vmatprep.subr.mxu0 0.0
    %3646 = vmatpush1.msra.mxu0 %v3575
    %3647 = vmatprep.mubr.f32.mxu0 %v3537
    %3648 = vmatmul.mubr.f32.gmra.mrb[0].mxu0 %v3536
    %v3649 = vpop.f32.mrb[0].mxu0
    %v3650 = vadd.f32 %v3581, %v3649
    %v3651 = vpop.f32.mrb[0].mxu0
    %3652 = vmatprep.mubr.f32.mxu0 %v3539
    %3653 = vmatmul.mubr.f32.gmra.mrb[0].mxu0 %v3538
    %v3654 = vpop.f32.mrb[0].mxu0
    %v3655 = vadd.f32 %v3581, %v3654
    %v3656 = vpop.f32.mrb[0].mxu0
    %3657 = vmatprep.mubr.f32.mxu0 %v3541
    %3658 = vmatmul.mubr.f32.gmra.mrb[0].mxu0 %v3540
    %v3659 = vpop.f32.mrb[0].mxu0
    %v3660 = vadd.f32 %v3581, %v3659
    %v3661 = vpop.f32.mrb[0].mxu0
    %3662 = vmatprep.mubr.f32.mxu0 %v3543
    %3663 = vmatmul.mubr.f32.gmra.mrb[0].mxu0 %v3542
    %v3664 = vpop.f32.mrb[0].mxu0
    %v3665 = vadd.f32 %v3581, %v3664
    %v3666 = vpop.f32.mrb[0].mxu0
    %3667 = vdwg.mxu0
    %v3668 = vadd.f32 %v3650, %v3399
    %v3669 = vadd.f32 %v3655, %v3400
    %v3670 = vadd.f32 %v3660, %v3401
    %v3671 = vadd.f32 %v3665, %v3402
    %v3672 = vld [vmem:[%s12] sm:$0x1]
    %v3673 = vld [vmem:[%s13] sm:$0x1]
    %3674 = vadd.xlane.f32.xlu0 %v3668
    %v3675 = vpop.xlane.xlu0 %3674
    %3676 = vadd.xlane.f32.xlu0 %v3669
    %v3677 = vpop.xlane.xlu0 %3676
    %3678 = vadd.xlane.f32.xlu0 %v3670
    %v3679 = vpop.xlane.xlu0 %3678
    %3680 = vadd.xlane.f32.xlu0 %v3671
    %v3681 = vpop.xlane.xlu0 %3680
    %v3682 = vmul.f32 %v3675, %v3346
    %v3683 = vmul.f32 %v3677, %v3346
    %v3684 = vmul.f32 %v3679, %v3346
    %v3685 = vmul.f32 %v3681, %v3346
    %v3686 = vsub.f32 %v3668, %v3682
    %v3687 = vsub.f32 %v3669, %v3683
    %v3688 = vsub.f32 %v3670, %v3684
    %v3689 = vsub.f32 %v3671, %v3685
    %v3690 = vmul.f32 %v3686, %v3686
    %v3691 = vmul.f32 %v3687, %v3687
    %v3692 = vmul.f32 %v3688, %v3688
    %v3693 = vmul.f32 %v3689, %v3689
    %3694 = vadd.xlane.f32.xlu0 %v3690
    %v3695 = vpop.xlane.xlu0 %3694
    %3696 = vadd.xlane.f32.xlu0 %v3691
    %v3697 = vpop.xlane.xlu0 %3696
    %3698 = vadd.xlane.f32.xlu0 %v3692
    %v3699 = vpop.xlane.xlu0 %3698
    %3700 = vadd.xlane.f32.xlu0 %v3693
    %v3701 = vpop.xlane.xlu0 %3700
    %v3702 = vmul.f32 %v3695, %v3346
    %v3703 = vmul.f32 %v3697, %v3346
    %v3704 = vmul.f32 %v3699, %v3346
    %v3705 = vmul.f32 %v3701, %v3346
    %v3706 = vadd.f32 %v3702, 1e-05
    %v3707 = vadd.f32 %v3703, 1e-05
    %v3708 = vadd.f32 %v3704, 1e-05
    %v3709 = vadd.f32 %v3705, 1e-05
    %v3710 = vrsqrt.pop %v3706
    %v3711 = vrsqrt.pop %v3707
    %v3712 = vrsqrt.pop %v3708
    %v3713 = vrsqrt.pop %v3709
    %v3714 = vmul.f32 %v3686, %v3710
    %v3715 = vmul.f32 %v3687, %v3711
    %v3716 = vmul.f32 %v3688, %v3712
    %v3717 = vmul.f32 %v3689, %v3713
    %v3719 = vlaneseq
    %v3720 = vshrl.u32 %v3719, 7
    %v3721 = vsub.s32 0, %v3720
    %v3722 = vrot.slane %v3672, %v3721
    %v3724 = vmul.f32 %v3714, %v3722
    %v3725 = vmul.f32 %v3715, %v3722
    %v3726 = vmul.f32 %v3716, %v3722
    %v3727 = vmul.f32 %v3717, %v3722
    %v3729 = vlaneseq
    %v3730 = vshrl.u32 %v3729, 7
    %v3731 = vsub.s32 0, %v3730
    %v3732 = vrot.slane %v3673, %v3731
    %v3734 = vadd.f32 %v3724, %v3732
    %v3735 = vadd.f32 %v3725, %v3732
    %v3736 = vadd.f32 %v3726, %v3732
    %v3737 = vadd.f32 %v3727, %v3732
    %s3738 = scalar_lea.vmem %s2, 384
    %v3739 = vld [vmem:[%s3738] sm:$0xff]
    %v3740 = vld [vmem:[%s3738 + $0x8] sm:$0xff]
    %v3741 = vld [vmem:[%s3738 + $0x10] sm:$0xff]
    %v3742 = vld [vmem:[%s3738 + $0x18] sm:$0xff]
    %v3743 = vld [vmem:[%s3738 + $0x20] sm:$0xff]
    %v3744 = vld [vmem:[%s3738 + $0x28] sm:$0xff]
    %v3745 = vld [vmem:[%s3738 + $0x30] sm:$0xff]
    %v3746 = vld [vmem:[%s3738 + $0x38] sm:$0xff]
    %v3747 = vld [vmem:[%s3738 + $0x40] sm:$0xff]
    %v3748 = vld [vmem:[%s3738 + $0x48] sm:$0xff]
    %v3749 = vld [vmem:[%s3738 + $0x50] sm:$0xff]
    %v3750 = vld [vmem:[%s3738 + $0x58] sm:$0xff]
    %v3751 = vld [vmem:[%s3738 + $0x60] sm:$0xff]
    %v3752 = vld [vmem:[%s3738 + $0x68] sm:$0xff]
    %v3753 = vld [vmem:[%s3738 + $0x70] sm:$0xff]
    %v3754 = vld [vmem:[%s3738 + $0x78] sm:$0xff]
    %v3755 = vld [vmem:[%s3738 + $0x80] sm:$0xff]
    %v3756 = vld [vmem:[%s3738 + $0x88] sm:$0xff]
    %v3757 = vld [vmem:[%s3738 + $0x90] sm:$0xff]
    %v3758 = vld [vmem:[%s3738 + $0x98] sm:$0xff]
    %v3759 = vld [vmem:[%s3738 + $0xa0] sm:$0xff]
    %v3760 = vld [vmem:[%s3738 + $0xa8] sm:$0xff]
    %v3761 = vld [vmem:[%s3738 + $0xb0] sm:$0xff]
    %v3762 = vld [vmem:[%s3738 + $0xb8] sm:$0xff]
    %v3763 = vld [vmem:[%s3738 + $0xc0] sm:$0xff]
    %v3764 = vld [vmem:[%s3738 + $0xc8] sm:$0xff]
    %v3765 = vld [vmem:[%s3738 + $0xd0] sm:$0xff]
    %v3766 = vld [vmem:[%s3738 + $0xd8] sm:$0xff]
    %v3767 = vld [vmem:[%s3738 + $0xe0] sm:$0xff]
    %v3768 = vld [vmem:[%s3738 + $0xe8] sm:$0xff]
    %v3769 = vld [vmem:[%s3738 + $0xf0] sm:$0xff]
    %v3770 = vld [vmem:[%s3738 + $0xf8] sm:$0xff]
    %v3771 = vld [vmem:[%s3738 + $0x100] sm:$0xff]
    %v3772 = vld [vmem:[%s3738 + $0x108] sm:$0xff]
    %v3773 = vld [vmem:[%s3738 + $0x110] sm:$0xff]
    %v3774 = vld [vmem:[%s3738 + $0x118] sm:$0xff]
    %v3775 = vld [vmem:[%s3738 + $0x120] sm:$0xff]
    %v3776 = vld [vmem:[%s3738 + $0x128] sm:$0xff]
    %v3777 = vld [vmem:[%s3738 + $0x130] sm:$0xff]
    %v3778 = vld [vmem:[%s3738 + $0x138] sm:$0xff]
    %v3779 = vld [vmem:[%s3738 + $0x140] sm:$0xff]
    %v3780 = vld [vmem:[%s3738 + $0x148] sm:$0xff]
    %v3781 = vld [vmem:[%s3738 + $0x150] sm:$0xff]
    %v3782 = vld [vmem:[%s3738 + $0x158] sm:$0xff]
    %v3783 = vld [vmem:[%s3738 + $0x160] sm:$0xff]
    %v3784 = vld [vmem:[%s3738 + $0x168] sm:$0xff]
    %v3785 = vld [vmem:[%s3738 + $0x170] sm:$0xff]
    %v3786 = vld [vmem:[%s3738 + $0x178] sm:$0xff]
    %s3787 = scalar_lea.vmem %s3, 3
    %v3788 = vld [vmem:[%s3787] sm:$0x7]
    %v3790 = vlaneseq
    %v3791 = vshrl.u32 %v3790, 7
    %v3792 = vsub.s32 0, %v3791
    %v3793 = vrot.slane %v3788, %v3792
    %v3794 = vlaneseq
    %v3795 = vshrl.u32 %v3794, 7
    %v3796 = vsub.s32 1, %v3795
    %v3797 = vrot.slane %v3788, %v3796
    %v3798 = vlaneseq
    %v3799 = vshrl.u32 %v3798, 7
    %v3800 = vsub.s32 2, %v3799
    %v3801 = vrot.slane %v3788, %v3800
    %3805 = vmatprep.subr.mxu0 %v3740
    %3806 = vmatpush1.msra.mxu0 %v3739
    %3807 = vmatprep.subr.mxu0 %v3743
    %3808 = vmatpush1.msra.mxu0 %v3742
    %3809 = vmatprep.subr.mxu0 %v3746
    %3810 = vmatpush1.msra.mxu0 %v3745
    %3811 = vmatprep.subr.mxu0 %v3749
    %3812 = vmatpush1.msra.mxu0 %v3748
    %3813 = vmatprep.subr.mxu0 %v3752
    %3814 = vmatpush1.msra.mxu0 %v3751
    %3815 = vmatprep.subr.mxu0 %v3755
    %3816 = vmatpush1.msra.mxu0 %v3754
    %3817 = vmatprep.subr.mxu0 %v3758
    %3818 = vmatpush1.msra.mxu0 %v3757
    %3819 = vmatprep.subr.mxu0 %v3761
    %3820 = vmatpush1.msra.mxu0 %v3760
    %3821 = vmatprep.subr.mxu0 %v3764
    %3822 = vmatpush1.msra.mxu0 %v3763
    %3823 = vmatprep.subr.mxu0 %v3767
    %3824 = vmatpush1.msra.mxu0 %v3766
    %3825 = vmatprep.subr.mxu0 %v3770
    %3826 = vmatpush1.msra.mxu0 %v3769
    %3827 = vmatprep.subr.mxu0 %v3773
    %3828 = vmatpush1.msra.mxu0 %v3772
    %3829 = vmatprep.subr.mxu0 %v3776
    %3830 = vmatpush1.msra.mxu0 %v3775
    %3831 = vmatprep.subr.mxu0 %v3779
    %3832 = vmatpush1.msra.mxu0 %v3778
    %3833 = vmatprep.subr.mxu0 %v3782
    %3834 = vmatpush1.msra.mxu0 %v3781
    %3835 = vmatprep.subr.mxu0 %v3785
    %3836 = vmatpush1.msra.mxu0 %v3784
    %3837 = vmatprep.subr.mxu0 0.0
    %3838 = vmatpush1.msra.mxu0 0.0
    %3839 = vmatprep.subr.mxu0 0.0
    %3840 = vmatpush1.msra.mxu0 0.0
    %3841 = vmatprep.subr.mxu0 0.0
    %3842 = vmatpush1.msra.mxu0 0.0
    %3843 = vmatprep.subr.mxu0 0.0
    %3844 = vmatpush1.msra.mxu0 0.0
    %3845 = vmatprep.subr.mxu0 0.0
    %3846 = vmatpush1.msra.mxu0 0.0
    %3847 = vmatprep.subr.mxu0 0.0
    %3848 = vmatpush1.msra.mxu0 0.0
    %3849 = vmatprep.subr.mxu0 0.0
    %3850 = vmatpush1.msra.mxu0 0.0
    %3851 = vmatprep.subr.mxu0 0.0
    %3852 = vmatpush1.msra.mxu0 0.0
    %3853 = vmatprep.subr.mxu0 0.0
    %3854 = vmatpush1.msra.mxu0 0.0
    %3855 = vmatprep.subr.mxu0 0.0
    %3856 = vmatpush1.msra.mxu0 0.0
    %3857 = vmatprep.subr.mxu0 0.0
    %3858 = vmatpush1.msra.mxu0 0.0
    %3859 = vmatprep.subr.mxu0 0.0
    %3860 = vmatpush1.msra.mxu0 0.0
    %3861 = vmatprep.subr.mxu0 0.0
    %3862 = vmatpush1.msra.mxu0 0.0
    %3863 = vmatprep.subr.mxu0 0.0
    %3864 = vmatpush1.msra.mxu0 0.0
    %3865 = vmatprep.subr.mxu0 0.0
    %3866 = vmatpush1.msra.mxu0 0.0
    %3867 = vmatprep.subr.mxu0 0.0
    %3868 = vmatpush1.msra.mxu0 0.0
    %3869 = vmatprep.mubr.f32.mxu0 0.0
    %3870 = vmatmul.mubr.f32.gmra.mrb[0].mxu0 %v3734
    %v3871 = vpop.f32.mrb[0].mxu0
    %v3872 = vadd.f32 %v3793, %v3871
    %v3873 = vpop.f32.mrb[0].mxu0
    %v3874 = vadd.f32 %v3797, %v3873
    %3875 = vmatprep.mubr.f32.mxu0 0.0
    %3876 = vmatmul.mubr.f32.gmra.mrb[0].mxu0 %v3735
    %v3877 = vpop.f32.mrb[0].mxu0
    %v3878 = vadd.f32 %v3793, %v3877
    %v3879 = vpop.f32.mrb[0].mxu0
    %v3880 = vadd.f32 %v3797, %v3879
    %3881 = vmatprep.mubr.f32.mxu0 0.0
    %3882 = vmatmul.mubr.f32.gmra.mrb[0].mxu0 %v3736
    %v3883 = vpop.f32.mrb[0].mxu0
    %v3884 = vadd.f32 %v3793, %v3883
    %v3885 = vpop.f32.mrb[0].mxu0
    %v3886 = vadd.f32 %v3797, %v3885
    %3887 = vmatprep.mubr.f32.mxu0 0.0
    %3888 = vmatmul.mubr.f32.gmra.mrb[0].mxu0 %v3737
    %v3889 = vpop.f32.mrb[0].mxu0
    %v3890 = vadd.f32 %v3793, %v3889
    %v3891 = vpop.f32.mrb[0].mxu0
    %v3892 = vadd.f32 %v3797, %v3891
    %3893 = vdwg.mxu0
    %3894 = vmatprep.subr.mxu0 0.0
    %3895 = vmatpush1.msra.mxu0 %v3741
    %3896 = vmatprep.subr.mxu0 0.0
    %3897 = vmatpush1.msra.mxu0 %v3744
    %3898 = vmatprep.subr.mxu0 0.0
    %3899 = vmatpush1.msra.mxu0 %v3747
    %3900 = vmatprep.subr.mxu0 0.0
    %3901 = vmatpush1.msra.mxu0 %v3750
    %3902 = vmatprep.subr.mxu0 0.0
    %3903 = vmatpush1.msra.mxu0 %v3753
    %3904 = vmatprep.subr.mxu0 0.0
    %3905 = vmatpush1.msra.mxu0 %v3756
    %3906 = vmatprep.subr.mxu0 0.0
    %3907 = vmatpush1.msra.mxu0 %v3759
    %3908 = vmatprep.subr.mxu0 0.0
    %3909 = vmatpush1.msra.mxu0 %v3762
    %3910 = vmatprep.subr.mxu0 0.0
    %3911 = vmatpush1.msra.mxu0 %v3765
    %3912 = vmatprep.subr.mxu0 0.0
    %3913 = vmatpush1.msra.mxu0 %v3768
    %3914 = vmatprep.subr.mxu0 0.0
    %3915 = vmatpush1.msra.mxu0 %v3771
    %3916 = vmatprep.subr.mxu0 0.0
    %3917 = vmatpush1.msra.mxu0 %v3774
    %3918 = vmatprep.subr.mxu0 0.0
    %3919 = vmatpush1.msra.mxu0 %v3777
    %3920 = vmatprep.subr.mxu0 0.0
    %3921 = vmatpush1.msra.mxu0 %v3780
    %3922 = vmatprep.subr.mxu0 0.0
    %3923 = vmatpush1.msra.mxu0 %v3783
    %3924 = vmatprep.subr.mxu0 0.0
    %3925 = vmatpush1.msra.mxu0 %v3786
    %3926 = vmatprep.subr.mxu0 0.0
    %3927 = vmatpush1.msra.mxu0 0.0
    %3928 = vmatprep.subr.mxu0 0.0
    %3929 = vmatpush1.msra.mxu0 0.0
    %3930 = vmatprep.subr.mxu0 0.0
    %3931 = vmatpush1.msra.mxu0 0.0
    %3932 = vmatprep.subr.mxu0 0.0
    %3933 = vmatpush1.msra.mxu0 0.0
    %3934 = vmatprep.subr.mxu0 0.0
    %3935 = vmatpush1.msra.mxu0 0.0
    %3936 = vmatprep.subr.mxu0 0.0
    %3937 = vmatpush1.msra.mxu0 0.0
    %3938 = vmatprep.subr.mxu0 0.0
    %3939 = vmatpush1.msra.mxu0 0.0
    %3940 = vmatprep.subr.mxu0 0.0
    %3941 = vmatpush1.msra.mxu0 0.0
    %3942 = vmatprep.subr.mxu0 0.0
    %3943 = vmatpush1.msra.mxu0 0.0
    %3944 = vmatprep.subr.mxu0 0.0
    %3945 = vmatpush1.msra.mxu0 0.0
    %3946 = vmatprep.subr.mxu0 0.0
    %3947 = vmatpush1.msra.mxu0 0.0
    %3948 = vmatprep.subr.mxu0 0.0
    %3949 = vmatpush1.msra.mxu0 0.0
    %3950 = vmatprep.subr.mxu0 0.0
    %3951 = vmatpush1.msra.mxu0 0.0
    %3952 = vmatprep.subr.mxu0 0.0
    %3953 = vmatpush1.msra.mxu0 0.0
    %3954 = vmatprep.subr.mxu0 0.0
    %3955 = vmatpush1.msra.mxu0 0.0
    %3956 = vmatprep.subr.mxu0 0.0
    %3957 = vmatpush1.msra.mxu0 0.0
    %3958 = vmatprep.mubr.f32.mxu0 0.0
    %3959 = vmatmul.mubr.f32.gmra.mrb[0].mxu0 %v3734
    %v3960 = vpop.f32.mrb[0].mxu0
    %v3961 = vadd.f32 %v3801, %v3960
    %v3962 = vpop.f32.mrb[0].mxu0
    %3963 = vmatprep.mubr.f32.mxu0 0.0
    %3964 = vmatmul.mubr.f32.gmra.mrb[0].mxu0 %v3735
    %v3965 = vpop.f32.mrb[0].mxu0
    %v3966 = vadd.f32 %v3801, %v3965
    %v3967 = vpop.f32.mrb[0].mxu0
    %3968 = vmatprep.mubr.f32.mxu0 0.0
    %3969 = vmatmul.mubr.f32.gmra.mrb[0].mxu0 %v3736
    %v3970 = vpop.f32.mrb[0].mxu0
    %v3971 = vadd.f32 %v3801, %v3970
    %v3972 = vpop.f32.mrb[0].mxu0
    %3973 = vmatprep.mubr.f32.mxu0 0.0
    %3974 = vmatmul.mubr.f32.gmra.mrb[0].mxu0 %v3737
    %v3975 = vpop.f32.mrb[0].mxu0
    %v3976 = vadd.f32 %v3801, %v3975
    %v3977 = vpop.f32.mrb[0].mxu0
    %3978 = vdwg.mxu0
    %3983 = vrot.lane.b32.xlu0 %v3872, 96
    %v3984 = vpop.permute.xlu0 %3983
    %3985 = vrot.lane.b32.xlu0 %v3878, 96
    %v3986 = vpop.permute.xlu0 %3985
    %3987 = vrot.lane.b32.xlu0 %v3884, 96
    %v3988 = vpop.permute.xlu0 %3987
    %3989 = vrot.lane.b32.xlu0 %v3890, 96
    %v3990 = vpop.permute.xlu0 %3989
    %3995 = vrot.lane.b32.xlu0 %v3872, 64
    %v3996 = vpop.permute.xlu0 %3995
    %3997 = vrot.lane.b32.xlu0 %v3878, 64
    %v3998 = vpop.permute.xlu0 %3997
    %3999 = vrot.lane.b32.xlu0 %v3884, 64
    %v4000 = vpop.permute.xlu0 %3999
    %4001 = vrot.lane.b32.xlu0 %v3890, 64
    %v4002 = vpop.permute.xlu0 %4001
    %4007 = vrot.lane.b32.xlu0 %v3872, 32
    %v4008 = vpop.permute.xlu0 %4007
    %4009 = vrot.lane.b32.xlu0 %v3878, 32
    %v4010 = vpop.permute.xlu0 %4009
    %4011 = vrot.lane.b32.xlu0 %v3884, 32
    %v4012 = vpop.permute.xlu0 %4011
    %4013 = vrot.lane.b32.xlu0 %v3890, 32
    %v4014 = vpop.permute.xlu0 %4013
    %v4019 = vcombine.low %v3872, %v3996
    %v4020 = vcombine.high %v3872, %v3996
    %v4022 = vunpack.c.l.s4 1983009808
    %v4023 = vunpack.c.0.s8 %v4022
    %v4024 = vlaneseq
    %v4025 = vshrl.u32 %v4024, 7
    %v4026 = vsub.s32 %v4023, %v4025
    %v4027 = vrot.slane %v4019, %v4026
    %v4029 = vunpack.c.l.s4 1983009808
    %v4030 = vunpack.c.0.s8 %v4029
    %v4031 = vlaneseq
    %v4032 = vshrl.u32 %v4031, 7
    %v4033 = vsub.s32 %v4030, %v4032
    %v4034 = vrot.slane %v4020, %v4033
    %v4035 = vcombine.low %v3984, %v4008
    %v4036 = vcombine.high %v3984, %v4008
    %v4038 = vunpack.c.l.s4 1983009808
    %v4039 = vunpack.c.0.s8 %v4038
    %v4040 = vlaneseq
    %v4041 = vshrl.u32 %v4040, 7
    %v4042 = vsub.s32 %v4039, %v4041
    %v4043 = vrot.slane %v4035, %v4042
    %v4045 = vunpack.c.l.s4 1983009808
    %v4046 = vunpack.c.0.s8 %v4045
    %v4047 = vlaneseq
    %v4048 = vshrl.u32 %v4047, 7
    %v4049 = vsub.s32 %v4046, %v4048
    %v4050 = vrot.slane %v4036, %v4049
    %v4051 = vcombine.low %v4027, %v4043
    %v4052 = vcombine.high %v4027, %v4043
    %v4054 = vunpack.c.l.s4 1934713408
    %v4055 = vunpack.c.0.s8 %v4054
    %v4056 = vlaneseq
    %v4057 = vshrl.u32 %v4056, 7
    %v4058 = vsub.s32 %v4055, %v4057
    %v4059 = vrot.slane %v4051, %v4058
    %v4061 = vunpack.c.l.s4 1934713408
    %v4062 = vunpack.c.0.s8 %v4061
    %v4063 = vlaneseq
    %v4064 = vshrl.u32 %v4063, 7
    %v4065 = vsub.s32 %v4062, %v4064
    %v4066 = vrot.slane %v4052, %v4065
    %v4067 = vcombine.low %v4034, %v4050
    %v4068 = vcombine.high %v4034, %v4050
    %v4070 = vunpack.c.l.s4 1934713408
    %v4071 = vunpack.c.0.s8 %v4070
    %v4072 = vlaneseq
    %v4073 = vshrl.u32 %v4072, 7
    %v4074 = vsub.s32 %v4071, %v4073
    %v4075 = vrot.slane %v4067, %v4074
    %v4077 = vunpack.c.l.s4 1934713408
    %v4078 = vunpack.c.0.s8 %v4077
    %v4079 = vlaneseq
    %v4080 = vshrl.u32 %v4079, 7
    %v4081 = vsub.s32 %v4078, %v4080
    %v4082 = vrot.slane %v4068, %v4081
    %v4083 = vcombine.high %v4059, 0.0
    %v4084 = vcombine.high %v4066, 0.0
    %v4085 = vcombine.high %v4075, 0.0
    %v4086 = vcombine.high %v4082, 0.0
    %v4087 = vcombine.low %v3878, %v3998
    %v4088 = vcombine.high %v3878, %v3998
    %v4090 = vunpack.c.l.s4 1983009808
    %v4091 = vunpack.c.0.s8 %v4090
    %v4092 = vlaneseq
    %v4093 = vshrl.u32 %v4092, 7
    %v4094 = vsub.s32 %v4091, %v4093
    %v4095 = vrot.slane %v4087, %v4094
    %v4097 = vunpack.c.l.s4 1983009808
    %v4098 = vunpack.c.0.s8 %v4097
    %v4099 = vlaneseq
    %v4100 = vshrl.u32 %v4099, 7
    %v4101 = vsub.s32 %v4098, %v4100
    %v4102 = vrot.slane %v4088, %v4101
    %v4103 = vcombine.low %v3986, %v4010
    %v4104 = vcombine.high %v3986, %v4010
    %v4106 = vunpack.c.l.s4 1983009808
    %v4107 = vunpack.c.0.s8 %v4106
    %v4108 = vlaneseq
    %v4109 = vshrl.u32 %v4108, 7
    %v4110 = vsub.s32 %v4107, %v4109
    %v4111 = vrot.slane %v4103, %v4110
    %v4113 = vunpack.c.l.s4 1983009808
    %v4114 = vunpack.c.0.s8 %v4113
    %v4115 = vlaneseq
    %v4116 = vshrl.u32 %v4115, 7
    %v4117 = vsub.s32 %v4114, %v4116
    %v4118 = vrot.slane %v4104, %v4117
    %v4119 = vcombine.low %v4095, %v4111
    %v4120 = vcombine.high %v4095, %v4111
    %v4122 = vunpack.c.l.s4 1934713408
    %v4123 = vunpack.c.0.s8 %v4122
    %v4124 = vlaneseq
    %v4125 = vshrl.u32 %v4124, 7
    %v4126 = vsub.s32 %v4123, %v4125
    %v4127 = vrot.slane %v4119, %v4126
    %v4129 = vunpack.c.l.s4 1934713408
    %v4130 = vunpack.c.0.s8 %v4129
    %v4131 = vlaneseq
    %v4132 = vshrl.u32 %v4131, 7
    %v4133 = vsub.s32 %v4130, %v4132
    %v4134 = vrot.slane %v4120, %v4133
    %v4135 = vcombine.low %v4102, %v4118
    %v4136 = vcombine.high %v4102, %v4118
    %v4138 = vunpack.c.l.s4 1934713408
    %v4139 = vunpack.c.0.s8 %v4138
    %v4140 = vlaneseq
    %v4141 = vshrl.u32 %v4140, 7
    %v4142 = vsub.s32 %v4139, %v4141
    %v4143 = vrot.slane %v4135, %v4142
    %v4145 = vunpack.c.l.s4 1934713408
    %v4146 = vunpack.c.0.s8 %v4145
    %v4147 = vlaneseq
    %v4148 = vshrl.u32 %v4147, 7
    %v4149 = vsub.s32 %v4146, %v4148
    %v4150 = vrot.slane %v4136, %v4149
    %v4151 = vcombine.high %v4127, 0.0
    %v4152 = vcombine.high %v4134, 0.0
    %v4153 = vcombine.high %v4143, 0.0
    %v4154 = vcombine.high %v4150, 0.0
    %v4155 = vcombine.low %v3884, %v4000
    %v4156 = vcombine.high %v3884, %v4000
    %v4158 = vunpack.c.l.s4 1983009808
    %v4159 = vunpack.c.0.s8 %v4158
    %v4160 = vlaneseq
    %v4161 = vshrl.u32 %v4160, 7
    %v4162 = vsub.s32 %v4159, %v4161
    %v4163 = vrot.slane %v4155, %v4162
    %v4165 = vunpack.c.l.s4 1983009808
    %v4166 = vunpack.c.0.s8 %v4165
    %v4167 = vlaneseq
    %v4168 = vshrl.u32 %v4167, 7
    %v4169 = vsub.s32 %v4166, %v4168
    %v4170 = vrot.slane %v4156, %v4169
    %v4171 = vcombine.low %v3988, %v4012
    %v4172 = vcombine.high %v3988, %v4012
    %v4174 = vunpack.c.l.s4 1983009808
    %v4175 = vunpack.c.0.s8 %v4174
    %v4176 = vlaneseq
    %v4177 = vshrl.u32 %v4176, 7
    %v4178 = vsub.s32 %v4175, %v4177
    %v4179 = vrot.slane %v4171, %v4178
    %v4181 = vunpack.c.l.s4 1983009808
    %v4182 = vunpack.c.0.s8 %v4181
    %v4183 = vlaneseq
    %v4184 = vshrl.u32 %v4183, 7
    %v4185 = vsub.s32 %v4182, %v4184
    %v4186 = vrot.slane %v4172, %v4185
    %v4187 = vcombine.low %v4163, %v4179
    %v4188 = vcombine.high %v4163, %v4179
    %v4190 = vunpack.c.l.s4 1934713408
    %v4191 = vunpack.c.0.s8 %v4190
    %v4192 = vlaneseq
    %v4193 = vshrl.u32 %v4192, 7
    %v4194 = vsub.s32 %v4191, %v4193
    %v4195 = vrot.slane %v4187, %v4194
    %v4197 = vunpack.c.l.s4 1934713408
    %v4198 = vunpack.c.0.s8 %v4197
    %v4199 = vlaneseq
    %v4200 = vshrl.u32 %v4199, 7
    %v4201 = vsub.s32 %v4198, %v4200
    %v4202 = vrot.slane %v4188, %v4201
    %v4203 = vcombine.low %v4170, %v4186
    %v4204 = vcombine.high %v4170, %v4186
    %v4206 = vunpack.c.l.s4 1934713408
    %v4207 = vunpack.c.0.s8 %v4206
    %v4208 = vlaneseq
    %v4209 = vshrl.u32 %v4208, 7
    %v4210 = vsub.s32 %v4207, %v4209
    %v4211 = vrot.slane %v4203, %v4210
    %v4213 = vunpack.c.l.s4 1934713408
    %v4214 = vunpack.c.0.s8 %v4213
    %v4215 = vlaneseq
    %v4216 = vshrl.u32 %v4215, 7
    %v4217 = vsub.s32 %v4214, %v4216
    %v4218 = vrot.slane %v4204, %v4217
    %v4219 = vcombine.high %v4195, 0.0
    %v4220 = vcombine.high %v4202, 0.0
    %v4221 = vcombine.high %v4211, 0.0
    %v4222 = vcombine.high %v4218, 0.0
    %v4223 = vcombine.low %v3890, %v4002
    %v4224 = vcombine.high %v3890, %v4002
    %v4226 = vunpack.c.l.s4 1983009808
    %v4227 = vunpack.c.0.s8 %v4226
    %v4228 = vlaneseq
    %v4229 = vshrl.u32 %v4228, 7
    %v4230 = vsub.s32 %v4227, %v4229
    %v4231 = vrot.slane %v4223, %v4230
    %v4233 = vunpack.c.l.s4 1983009808
    %v4234 = vunpack.c.0.s8 %v4233
    %v4235 = vlaneseq
    %v4236 = vshrl.u32 %v4235, 7
    %v4237 = vsub.s32 %v4234, %v4236
    %v4238 = vrot.slane %v4224, %v4237
    %v4239 = vcombine.low %v3990, %v4014
    %v4240 = vcombine.high %v3990, %v4014
    %v4242 = vunpack.c.l.s4 1983009808
    %v4243 = vunpack.c.0.s8 %v4242
    %v4244 = vlaneseq
    %v4245 = vshrl.u32 %v4244, 7
    %v4246 = vsub.s32 %v4243, %v4245
    %v4247 = vrot.slane %v4239, %v4246
    %v4249 = vunpack.c.l.s4 1983009808
    %v4250 = vunpack.c.0.s8 %v4249
    %v4251 = vlaneseq
    %v4252 = vshrl.u32 %v4251, 7
    %v4253 = vsub.s32 %v4250, %v4252
    %v4254 = vrot.slane %v4240, %v4253
    %v4255 = vcombine.low %v4231, %v4247
    %v4256 = vcombine.high %v4231, %v4247
    %v4258 = vunpack.c.l.s4 1934713408
    %v4259 = vunpack.c.0.s8 %v4258
    %v4260 = vlaneseq
    %v4261 = vshrl.u32 %v4260, 7
    %v4262 = vsub.s32 %v4259, %v4261
    %v4263 = vrot.slane %v4255, %v4262
    %v4265 = vunpack.c.l.s4 1934713408
    %v4266 = vunpack.c.0.s8 %v4265
    %v4267 = vlaneseq
    %v4268 = vshrl.u32 %v4267, 7
    %v4269 = vsub.s32 %v4266, %v4268
    %v4270 = vrot.slane %v4256, %v4269
    %v4271 = vcombine.low %v4238, %v4254
    %v4272 = vcombine.high %v4238, %v4254
    %v4274 = vunpack.c.l.s4 1934713408
    %v4275 = vunpack.c.0.s8 %v4274
    %v4276 = vlaneseq
    %v4277 = vshrl.u32 %v4276, 7
    %v4278 = vsub.s32 %v4275, %v4277
    %v4279 = vrot.slane %v4271, %v4278
    %v4281 = vunpack.c.l.s4 1934713408
    %v4282 = vunpack.c.0.s8 %v4281
    %v4283 = vlaneseq
    %v4284 = vshrl.u32 %v4283, 7
    %v4285 = vsub.s32 %v4282, %v4284
    %v4286 = vrot.slane %v4272, %v4285
    %v4287 = vcombine.high %v4263, 0.0
    %v4288 = vcombine.high %v4270, 0.0
    %v4289 = vcombine.high %v4279, 0.0
    %v4290 = vcombine.high %v4286, 0.0
    %v4291 = vcombine.low %v4059, %v4066
    %v4293 = vunpack.c.l.s4 1983009808
    %v4294 = vunpack.c.0.s8 %v4293
    %v4295 = vlaneseq
    %v4296 = vshrl.u32 %v4295, 7
    %v4297 = vsub.s32 %v4294, %v4296
    %v4298 = vrot.slane %v4291, %v4297
    %v4299 = vcombine.low %v4083, %v4084
    %v4301 = vunpack.c.l.s4 1983009808
    %v4302 = vunpack.c.0.s8 %v4301
    %v4303 = vlaneseq
    %v4304 = vshrl.u32 %v4303, 7
    %v4305 = vsub.s32 %v4302, %v4304
    %v4306 = vrot.slane %v4299, %v4305
    %v4307 = vcombine.low %v4075, %v4082
    %v4309 = vunpack.c.l.s4 1983009808
    %v4310 = vunpack.c.0.s8 %v4309
    %v4311 = vlaneseq
    %v4312 = vshrl.u32 %v4311, 7
    %v4313 = vsub.s32 %v4310, %v4312
    %v4314 = vrot.slane %v4307, %v4313
    %v4315 = vcombine.low %v4085, %v4086
    %v4317 = vunpack.c.l.s4 1983009808
    %v4318 = vunpack.c.0.s8 %v4317
    %v4319 = vlaneseq
    %v4320 = vshrl.u32 %v4319, 7
    %v4321 = vsub.s32 %v4318, %v4320
    %v4322 = vrot.slane %v4315, %v4321
    %v4323 = vcombine.low %v4298, %v4306
    %v4324 = vcombine.high %v4298, %v4306
    %v4326 = vunpack.c.l.s4 1934713408
    %v4327 = vunpack.c.0.s8 %v4326
    %v4328 = vlaneseq
    %v4329 = vshrl.u32 %v4328, 7
    %v4330 = vsub.s32 %v4327, %v4329
    %v4331 = vrot.slane %v4323, %v4330
    %v4333 = vunpack.c.l.s4 1934713408
    %v4334 = vunpack.c.0.s8 %v4333
    %v4335 = vlaneseq
    %v4336 = vshrl.u32 %v4335, 7
    %v4337 = vsub.s32 %v4334, %v4336
    %v4338 = vrot.slane %v4324, %v4337
    %v4339 = vcombine.low %v4314, %v4322
    %v4340 = vcombine.high %v4314, %v4322
    %v4342 = vunpack.c.l.s4 1934713408
    %v4343 = vunpack.c.0.s8 %v4342
    %v4344 = vlaneseq
    %v4345 = vshrl.u32 %v4344, 7
    %v4346 = vsub.s32 %v4343, %v4345
    %v4347 = vrot.slane %v4339, %v4346
    %v4349 = vunpack.c.l.s4 1934713408
    %v4350 = vunpack.c.0.s8 %v4349
    %v4351 = vlaneseq
    %v4352 = vshrl.u32 %v4351, 7
    %v4353 = vsub.s32 %v4350, %v4352
    %v4354 = vrot.slane %v4340, %v4353
    %v4355 = vcombine.low %v4331, %v4347
    %v4356 = vcombine.high %v4331, %v4347
    %v4357 = vcombine.low %v4338, %v4354
    %v4358 = vcombine.high %v4338, %v4354
    %v4359 = vcombine.low %v4127, %v4134
    %v4361 = vunpack.c.l.s4 1983009808
    %v4362 = vunpack.c.0.s8 %v4361
    %v4363 = vlaneseq
    %v4364 = vshrl.u32 %v4363, 7
    %v4365 = vsub.s32 %v4362, %v4364
    %v4366 = vrot.slane %v4359, %v4365
    %v4367 = vcombine.low %v4151, %v4152
    %v4369 = vunpack.c.l.s4 1983009808
    %v4370 = vunpack.c.0.s8 %v4369
    %v4371 = vlaneseq
    %v4372 = vshrl.u32 %v4371, 7
    %v4373 = vsub.s32 %v4370, %v4372
    %v4374 = vrot.slane %v4367, %v4373
    %v4375 = vcombine.low %v4143, %v4150
    %v4377 = vunpack.c.l.s4 1983009808
    %v4378 = vunpack.c.0.s8 %v4377
    %v4379 = vlaneseq
    %v4380 = vshrl.u32 %v4379, 7
    %v4381 = vsub.s32 %v4378, %v4380
    %v4382 = vrot.slane %v4375, %v4381
    %v4383 = vcombine.low %v4153, %v4154
    %v4385 = vunpack.c.l.s4 1983009808
    %v4386 = vunpack.c.0.s8 %v4385
    %v4387 = vlaneseq
    %v4388 = vshrl.u32 %v4387, 7
    %v4389 = vsub.s32 %v4386, %v4388
    %v4390 = vrot.slane %v4383, %v4389
    %v4391 = vcombine.low %v4366, %v4374
    %v4392 = vcombine.high %v4366, %v4374
    %v4394 = vunpack.c.l.s4 1934713408
    %v4395 = vunpack.c.0.s8 %v4394
    %v4396 = vlaneseq
    %v4397 = vshrl.u32 %v4396, 7
    %v4398 = vsub.s32 %v4395, %v4397
    %v4399 = vrot.slane %v4391, %v4398
    %v4401 = vunpack.c.l.s4 1934713408
    %v4402 = vunpack.c.0.s8 %v4401
    %v4403 = vlaneseq
    %v4404 = vshrl.u32 %v4403, 7
    %v4405 = vsub.s32 %v4402, %v4404
    %v4406 = vrot.slane %v4392, %v4405
    %v4407 = vcombine.low %v4382, %v4390
    %v4408 = vcombine.high %v4382, %v4390
    %v4410 = vunpack.c.l.s4 1934713408
    %v4411 = vunpack.c.0.s8 %v4410
    %v4412 = vlaneseq
    %v4413 = vshrl.u32 %v4412, 7
    %v4414 = vsub.s32 %v4411, %v4413
    %v4415 = vrot.slane %v4407, %v4414
    %v4417 = vunpack.c.l.s4 1934713408
    %v4418 = vunpack.c.0.s8 %v4417
    %v4419 = vlaneseq
    %v4420 = vshrl.u32 %v4419, 7
    %v4421 = vsub.s32 %v4418, %v4420
    %v4422 = vrot.slane %v4408, %v4421
    %v4423 = vcombine.low %v4399, %v4415
    %v4424 = vcombine.high %v4399, %v4415
    %v4425 = vcombine.low %v4406, %v4422
    %v4426 = vcombine.high %v4406, %v4422
    %v4427 = vcombine.low %v4195, %v4202
    %v4429 = vunpack.c.l.s4 1983009808
    %v4430 = vunpack.c.0.s8 %v4429
    %v4431 = vlaneseq
    %v4432 = vshrl.u32 %v4431, 7
    %v4433 = vsub.s32 %v4430, %v4432
    %v4434 = vrot.slane %v4427, %v4433
    %v4435 = vcombine.low %v4219, %v4220
    %v4437 = vunpack.c.l.s4 1983009808
    %v4438 = vunpack.c.0.s8 %v4437
    %v4439 = vlaneseq
    %v4440 = vshrl.u32 %v4439, 7
    %v4441 = vsub.s32 %v4438, %v4440
    %v4442 = vrot.slane %v4435, %v4441
    %v4443 = vcombine.low %v4211, %v4218
    %v4445 = vunpack.c.l.s4 1983009808
    %v4446 = vunpack.c.0.s8 %v4445
    %v4447 = vlaneseq
    %v4448 = vshrl.u32 %v4447, 7
    %v4449 = vsub.s32 %v4446, %v4448
    %v4450 = vrot.slane %v4443, %v4449
    %v4451 = vcombine.low %v4221, %v4222
    %v4453 = vunpack.c.l.s4 1983009808
    %v4454 = vunpack.c.0.s8 %v4453
    %v4455 = vlaneseq
    %v4456 = vshrl.u32 %v4455, 7
    %v4457 = vsub.s32 %v4454, %v4456
    %v4458 = vrot.slane %v4451, %v4457
    %v4459 = vcombine.low %v4434, %v4442
    %v4460 = vcombine.high %v4434, %v4442
    %v4462 = vunpack.c.l.s4 1934713408
    %v4463 = vunpack.c.0.s8 %v4462
    %v4464 = vlaneseq
    %v4465 = vshrl.u32 %v4464, 7
    %v4466 = vsub.s32 %v4463, %v4465
    %v4467 = vrot.slane %v4459, %v4466
    %v4469 = vunpack.c.l.s4 1934713408
    %v4470 = vunpack.c.0.s8 %v4469
    %v4471 = vlaneseq
    %v4472 = vshrl.u32 %v4471, 7
    %v4473 = vsub.s32 %v4470, %v4472
    %v4474 = vrot.slane %v4460, %v4473
    %v4475 = vcombine.low %v4450, %v4458
    %v4476 = vcombine.high %v4450, %v4458
    %v4478 = vunpack.c.l.s4 1934713408
    %v4479 = vunpack.c.0.s8 %v4478
    %v4480 = vlaneseq
    %v4481 = vshrl.u32 %v4480, 7
    %v4482 = vsub.s32 %v4479, %v4481
    %v4483 = vrot.slane %v4475, %v4482
    %v4485 = vunpack.c.l.s4 1934713408
    %v4486 = vunpack.c.0.s8 %v4485
    %v4487 = vlaneseq
    %v4488 = vshrl.u32 %v4487, 7
    %v4489 = vsub.s32 %v4486, %v4488
    %v4490 = vrot.slane %v4476, %v4489
    %v4491 = vcombine.low %v4467, %v4483
    %v4492 = vcombine.high %v4467, %v4483
    %v4493 = vcombine.low %v4474, %v4490
    %v4494 = vcombine.high %v4474, %v4490
    %v4495 = vcombine.low %v4263, %v4270
    %v4497 = vunpack.c.l.s4 1983009808
    %v4498 = vunpack.c.0.s8 %v4497
    %v4499 = vlaneseq
    %v4500 = vshrl.u32 %v4499, 7
    %v4501 = vsub.s32 %v4498, %v4500
    %v4502 = vrot.slane %v4495, %v4501
    %v4503 = vcombine.low %v4287, %v4288
    %v4505 = vunpack.c.l.s4 1983009808
    %v4506 = vunpack.c.0.s8 %v4505
    %v4507 = vlaneseq
    %v4508 = vshrl.u32 %v4507, 7
    %v4509 = vsub.s32 %v4506, %v4508
    %v4510 = vrot.slane %v4503, %v4509
    %v4511 = vcombine.low %v4279, %v4286
    %v4513 = vunpack.c.l.s4 1983009808
    %v4514 = vunpack.c.0.s8 %v4513
    %v4515 = vlaneseq
    %v4516 = vshrl.u32 %v4515, 7
    %v4517 = vsub.s32 %v4514, %v4516
    %v4518 = vrot.slane %v4511, %v4517
    %v4519 = vcombine.low %v4289, %v4290
    %v4521 = vunpack.c.l.s4 1983009808
    %v4522 = vunpack.c.0.s8 %v4521
    %v4523 = vlaneseq
    %v4524 = vshrl.u32 %v4523, 7
    %v4525 = vsub.s32 %v4522, %v4524
    %v4526 = vrot.slane %v4519, %v4525
    %v4527 = vcombine.low %v4502, %v4510
    %v4528 = vcombine.high %v4502, %v4510
    %v4530 = vunpack.c.l.s4 1934713408
    %v4531 = vunpack.c.0.s8 %v4530
    %v4532 = vlaneseq
    %v4533 = vshrl.u32 %v4532, 7
    %v4534 = vsub.s32 %v4531, %v4533
    %v4535 = vrot.slane %v4527, %v4534
    %v4537 = vunpack.c.l.s4 1934713408
    %v4538 = vunpack.c.0.s8 %v4537
    %v4539 = vlaneseq
    %v4540 = vshrl.u32 %v4539, 7
    %v4541 = vsub.s32 %v4538, %v4540
    %v4542 = vrot.slane %v4528, %v4541
    %v4543 = vcombine.low %v4518, %v4526
    %v4544 = vcombine.high %v4518, %v4526
    %v4546 = vunpack.c.l.s4 1934713408
    %v4547 = vunpack.c.0.s8 %v4546
    %v4548 = vlaneseq
    %v4549 = vshrl.u32 %v4548, 7
    %v4550 = vsub.s32 %v4547, %v4549
    %v4551 = vrot.slane %v4543, %v4550
    %v4553 = vunpack.c.l.s4 1934713408
    %v4554 = vunpack.c.0.s8 %v4553
    %v4555 = vlaneseq
    %v4556 = vshrl.u32 %v4555, 7
    %v4557 = vsub.s32 %v4554, %v4556
    %v4558 = vrot.slane %v4544, %v4557
    %v4559 = vcombine.low %v4535, %v4551
    %v4560 = vcombine.high %v4535, %v4551
    %v4561 = vcombine.low %v4542, %v4558
    %v4562 = vcombine.high %v4542, %v4558
    %4567 = vrot.lane.b32.xlu0 %v3874, 96
    %v4568 = vpop.permute.xlu0 %4567
    %4569 = vrot.lane.b32.xlu0 %v3880, 96
    %v4570 = vpop.permute.xlu0 %4569
    %4571 = vrot.lane.b32.xlu0 %v3886, 96
    %v4572 = vpop.permute.xlu0 %4571
    %4573 = vrot.lane.b32.xlu0 %v3892, 96
    %v4574 = vpop.permute.xlu0 %4573
    %4579 = vrot.lane.b32.xlu0 %v3874, 64
    %v4580 = vpop.permute.xlu0 %4579
    %4581 = vrot.lane.b32.xlu0 %v3880, 64
    %v4582 = vpop.permute.xlu0 %4581
    %4583 = vrot.lane.b32.xlu0 %v3886, 64
    %v4584 = vpop.permute.xlu0 %4583
    %4585 = vrot.lane.b32.xlu0 %v3892, 64
    %v4586 = vpop.permute.xlu0 %4585
    %4591 = vrot.lane.b32.xlu0 %v3874, 32
    %v4592 = vpop.permute.xlu0 %4591
    %4593 = vrot.lane.b32.xlu0 %v3880, 32
    %v4594 = vpop.permute.xlu0 %4593
    %4595 = vrot.lane.b32.xlu0 %v3886, 32
    %v4596 = vpop.permute.xlu0 %4595
    %4597 = vrot.lane.b32.xlu0 %v3892, 32
    %v4598 = vpop.permute.xlu0 %4597
    %v4603 = vcombine.low %v3874, %v4580
    %v4604 = vcombine.high %v3874, %v4580
    %v4606 = vunpack.c.l.s4 1983009808
    %v4607 = vunpack.c.0.s8 %v4606
    %v4608 = vlaneseq
    %v4609 = vshrl.u32 %v4608, 7
    %v4610 = vsub.s32 %v4607, %v4609
    %v4611 = vrot.slane %v4603, %v4610
    %v4613 = vunpack.c.l.s4 1983009808
    %v4614 = vunpack.c.0.s8 %v4613
    %v4615 = vlaneseq
    %v4616 = vshrl.u32 %v4615, 7
    %v4617 = vsub.s32 %v4614, %v4616
    %v4618 = vrot.slane %v4604, %v4617
    %v4619 = vcombine.low %v4568, %v4592
    %v4620 = vcombine.high %v4568, %v4592
    %v4622 = vunpack.c.l.s4 1983009808
    %v4623 = vunpack.c.0.s8 %v4622
    %v4624 = vlaneseq
    %v4625 = vshrl.u32 %v4624, 7
    %v4626 = vsub.s32 %v4623, %v4625
    %v4627 = vrot.slane %v4619, %v4626
    %v4629 = vunpack.c.l.s4 1983009808
    %v4630 = vunpack.c.0.s8 %v4629
    %v4631 = vlaneseq
    %v4632 = vshrl.u32 %v4631, 7
    %v4633 = vsub.s32 %v4630, %v4632
    %v4634 = vrot.slane %v4620, %v4633
    %v4635 = vcombine.low %v4611, %v4627
    %v4636 = vcombine.high %v4611, %v4627
    %v4638 = vunpack.c.l.s4 1934713408
    %v4639 = vunpack.c.0.s8 %v4638
    %v4640 = vlaneseq
    %v4641 = vshrl.u32 %v4640, 7
    %v4642 = vsub.s32 %v4639, %v4641
    %v4643 = vrot.slane %v4635, %v4642
    %v4645 = vunpack.c.l.s4 1934713408
    %v4646 = vunpack.c.0.s8 %v4645
    %v4647 = vlaneseq
    %v4648 = vshrl.u32 %v4647, 7
    %v4649 = vsub.s32 %v4646, %v4648
    %v4650 = vrot.slane %v4636, %v4649
    %v4651 = vcombine.low %v4618, %v4634
    %v4652 = vcombine.high %v4618, %v4634
    %v4654 = vunpack.c.l.s4 1934713408
    %v4655 = vunpack.c.0.s8 %v4654
    %v4656 = vlaneseq
    %v4657 = vshrl.u32 %v4656, 7
    %v4658 = vsub.s32 %v4655, %v4657
    %v4659 = vrot.slane %v4651, %v4658
    %v4661 = vunpack.c.l.s4 1934713408
    %v4662 = vunpack.c.0.s8 %v4661
    %v4663 = vlaneseq
    %v4664 = vshrl.u32 %v4663, 7
    %v4665 = vsub.s32 %v4662, %v4664
    %v4666 = vrot.slane %v4652, %v4665
    %v4667 = vcombine.high %v4643, 0.0
    %v4668 = vcombine.high %v4650, 0.0
    %v4669 = vcombine.high %v4659, 0.0
    %v4670 = vcombine.high %v4666, 0.0
    %v4671 = vcombine.low %v3880, %v4582
    %v4672 = vcombine.high %v3880, %v4582
    %v4674 = vunpack.c.l.s4 1983009808
    %v4675 = vunpack.c.0.s8 %v4674
    %v4676 = vlaneseq
    %v4677 = vshrl.u32 %v4676, 7
    %v4678 = vsub.s32 %v4675, %v4677
    %v4679 = vrot.slane %v4671, %v4678
    %v4681 = vunpack.c.l.s4 1983009808
    %v4682 = vunpack.c.0.s8 %v4681
    %v4683 = vlaneseq
    %v4684 = vshrl.u32 %v4683, 7
    %v4685 = vsub.s32 %v4682, %v4684
    %v4686 = vrot.slane %v4672, %v4685
    %v4687 = vcombine.low %v4570, %v4594
    %v4688 = vcombine.high %v4570, %v4594
    %v4690 = vunpack.c.l.s4 1983009808
    %v4691 = vunpack.c.0.s8 %v4690
    %v4692 = vlaneseq
    %v4693 = vshrl.u32 %v4692, 7
    %v4694 = vsub.s32 %v4691, %v4693
    %v4695 = vrot.slane %v4687, %v4694
    %v4697 = vunpack.c.l.s4 1983009808
    %v4698 = vunpack.c.0.s8 %v4697
    %v4699 = vlaneseq
    %v4700 = vshrl.u32 %v4699, 7
    %v4701 = vsub.s32 %v4698, %v4700
    %v4702 = vrot.slane %v4688, %v4701
    %v4703 = vcombine.low %v4679, %v4695
    %v4704 = vcombine.high %v4679, %v4695
    %v4706 = vunpack.c.l.s4 1934713408
    %v4707 = vunpack.c.0.s8 %v4706
    %v4708 = vlaneseq
    %v4709 = vshrl.u32 %v4708, 7
    %v4710 = vsub.s32 %v4707, %v4709
    %v4711 = vrot.slane %v4703, %v4710
    %v4713 = vunpack.c.l.s4 1934713408
    %v4714 = vunpack.c.0.s8 %v4713
    %v4715 = vlaneseq
    %v4716 = vshrl.u32 %v4715, 7
    %v4717 = vsub.s32 %v4714, %v4716
    %v4718 = vrot.slane %v4704, %v4717
    %v4719 = vcombine.low %v4686, %v4702
    %v4720 = vcombine.high %v4686, %v4702
    %v4722 = vunpack.c.l.s4 1934713408
    %v4723 = vunpack.c.0.s8 %v4722
    %v4724 = vlaneseq
    %v4725 = vshrl.u32 %v4724, 7
    %v4726 = vsub.s32 %v4723, %v4725
    %v4727 = vrot.slane %v4719, %v4726
    %v4729 = vunpack.c.l.s4 1934713408
    %v4730 = vunpack.c.0.s8 %v4729
    %v4731 = vlaneseq
    %v4732 = vshrl.u32 %v4731, 7
    %v4733 = vsub.s32 %v4730, %v4732
    %v4734 = vrot.slane %v4720, %v4733
    %v4735 = vcombine.high %v4711, 0.0
    %v4736 = vcombine.high %v4718, 0.0
    %v4737 = vcombine.high %v4727, 0.0
    %v4738 = vcombine.high %v4734, 0.0
    %v4739 = vcombine.low %v3886, %v4584
    %v4740 = vcombine.high %v3886, %v4584
    %v4742 = vunpack.c.l.s4 1983009808
    %v4743 = vunpack.c.0.s8 %v4742
    %v4744 = vlaneseq
    %v4745 = vshrl.u32 %v4744, 7
    %v4746 = vsub.s32 %v4743, %v4745
    %v4747 = vrot.slane %v4739, %v4746
    %v4749 = vunpack.c.l.s4 1983009808
    %v4750 = vunpack.c.0.s8 %v4749
    %v4751 = vlaneseq
    %v4752 = vshrl.u32 %v4751, 7
    %v4753 = vsub.s32 %v4750, %v4752
    %v4754 = vrot.slane %v4740, %v4753
    %v4755 = vcombine.low %v4572, %v4596
    %v4756 = vcombine.high %v4572, %v4596
    %v4758 = vunpack.c.l.s4 1983009808
    %v4759 = vunpack.c.0.s8 %v4758
    %v4760 = vlaneseq
    %v4761 = vshrl.u32 %v4760, 7
    %v4762 = vsub.s32 %v4759, %v4761
    %v4763 = vrot.slane %v4755, %v4762
    %v4765 = vunpack.c.l.s4 1983009808
    %v4766 = vunpack.c.0.s8 %v4765
    %v4767 = vlaneseq
    %v4768 = vshrl.u32 %v4767, 7
    %v4769 = vsub.s32 %v4766, %v4768
    %v4770 = vrot.slane %v4756, %v4769
    %v4771 = vcombine.low %v4747, %v4763
    %v4772 = vcombine.high %v4747, %v4763
    %v4774 = vunpack.c.l.s4 1934713408
    %v4775 = vunpack.c.0.s8 %v4774
    %v4776 = vlaneseq
    %v4777 = vshrl.u32 %v4776, 7
    %v4778 = vsub.s32 %v4775, %v4777
    %v4779 = vrot.slane %v4771, %v4778
    %v4781 = vunpack.c.l.s4 1934713408
    %v4782 = vunpack.c.0.s8 %v4781
    %v4783 = vlaneseq
    %v4784 = vshrl.u32 %v4783, 7
    %v4785 = vsub.s32 %v4782, %v4784
    %v4786 = vrot.slane %v4772, %v4785
    %v4787 = vcombine.low %v4754, %v4770
    %v4788 = vcombine.high %v4754, %v4770
    %v4790 = vunpack.c.l.s4 1934713408
    %v4791 = vunpack.c.0.s8 %v4790
    %v4792 = vlaneseq
    %v4793 = vshrl.u32 %v4792, 7
    %v4794 = vsub.s32 %v4791, %v4793
    %v4795 = vrot.slane %v4787, %v4794
    %v4797 = vunpack.c.l.s4 1934713408
    %v4798 = vunpack.c.0.s8 %v4797
    %v4799 = vlaneseq
    %v4800 = vshrl.u32 %v4799, 7
    %v4801 = vsub.s32 %v4798, %v4800
    %v4802 = vrot.slane %v4788, %v4801
    %v4803 = vcombine.high %v4779, 0.0
    %v4804 = vcombine.high %v4786, 0.0
    %v4805 = vcombine.high %v4795, 0.0
    %v4806 = vcombine.high %v4802, 0.0
    %v4807 = vcombine.low %v3892, %v4586
    %v4808 = vcombine.high %v3892, %v4586
    %v4810 = vunpack.c.l.s4 1983009808
    %v4811 = vunpack.c.0.s8 %v4810
    %v4812 = vlaneseq
    %v4813 = vshrl.u32 %v4812, 7
    %v4814 = vsub.s32 %v4811, %v4813
    %v4815 = vrot.slane %v4807, %v4814
    %v4817 = vunpack.c.l.s4 1983009808
    %v4818 = vunpack.c.0.s8 %v4817
    %v4819 = vlaneseq
    %v4820 = vshrl.u32 %v4819, 7
    %v4821 = vsub.s32 %v4818, %v4820
    %v4822 = vrot.slane %v4808, %v4821
    %v4823 = vcombine.low %v4574, %v4598
    %v4824 = vcombine.high %v4574, %v4598
    %v4826 = vunpack.c.l.s4 1983009808
    %v4827 = vunpack.c.0.s8 %v4826
    %v4828 = vlaneseq
    %v4829 = vshrl.u32 %v4828, 7
    %v4830 = vsub.s32 %v4827, %v4829
    %v4831 = vrot.slane %v4823, %v4830
    %v4833 = vunpack.c.l.s4 1983009808
    %v4834 = vunpack.c.0.s8 %v4833
    %v4835 = vlaneseq
    %v4836 = vshrl.u32 %v4835, 7
    %v4837 = vsub.s32 %v4834, %v4836
    %v4838 = vrot.slane %v4824, %v4837
    %v4839 = vcombine.low %v4815, %v4831
    %v4840 = vcombine.high %v4815, %v4831
    %v4842 = vunpack.c.l.s4 1934713408
    %v4843 = vunpack.c.0.s8 %v4842
    %v4844 = vlaneseq
    %v4845 = vshrl.u32 %v4844, 7
    %v4846 = vsub.s32 %v4843, %v4845
    %v4847 = vrot.slane %v4839, %v4846
    %v4849 = vunpack.c.l.s4 1934713408
    %v4850 = vunpack.c.0.s8 %v4849
    %v4851 = vlaneseq
    %v4852 = vshrl.u32 %v4851, 7
    %v4853 = vsub.s32 %v4850, %v4852
    %v4854 = vrot.slane %v4840, %v4853
    %v4855 = vcombine.low %v4822, %v4838
    %v4856 = vcombine.high %v4822, %v4838
    %v4858 = vunpack.c.l.s4 1934713408
    %v4859 = vunpack.c.0.s8 %v4858
    %v4860 = vlaneseq
    %v4861 = vshrl.u32 %v4860, 7
    %v4862 = vsub.s32 %v4859, %v4861
    %v4863 = vrot.slane %v4855, %v4862
    %v4865 = vunpack.c.l.s4 1934713408
    %v4866 = vunpack.c.0.s8 %v4865
    %v4867 = vlaneseq
    %v4868 = vshrl.u32 %v4867, 7
    %v4869 = vsub.s32 %v4866, %v4868
    %v4870 = vrot.slane %v4856, %v4869
    %v4871 = vcombine.high %v4847, 0.0
    %v4872 = vcombine.high %v4854, 0.0
    %v4873 = vcombine.high %v4863, 0.0
    %v4874 = vcombine.high %v4870, 0.0
    %v4875 = vcombine.low %v4643, %v4650
    %v4877 = vunpack.c.l.s4 1983009808
    %v4878 = vunpack.c.0.s8 %v4877
    %v4879 = vlaneseq
    %v4880 = vshrl.u32 %v4879, 7
    %v4881 = vsub.s32 %v4878, %v4880
    %v4882 = vrot.slane %v4875, %v4881
    %v4883 = vcombine.low %v4667, %v4668
    %v4885 = vunpack.c.l.s4 1983009808
    %v4886 = vunpack.c.0.s8 %v4885
    %v4887 = vlaneseq
    %v4888 = vshrl.u32 %v4887, 7
    %v4889 = vsub.s32 %v4886, %v4888
    %v4890 = vrot.slane %v4883, %v4889
    %v4891 = vcombine.low %v4659, %v4666
    %v4893 = vunpack.c.l.s4 1983009808
    %v4894 = vunpack.c.0.s8 %v4893
    %v4895 = vlaneseq
    %v4896 = vshrl.u32 %v4895, 7
    %v4897 = vsub.s32 %v4894, %v4896
    %v4898 = vrot.slane %v4891, %v4897
    %v4899 = vcombine.low %v4669, %v4670
    %v4901 = vunpack.c.l.s4 1983009808
    %v4902 = vunpack.c.0.s8 %v4901
    %v4903 = vlaneseq
    %v4904 = vshrl.u32 %v4903, 7
    %v4905 = vsub.s32 %v4902, %v4904
    %v4906 = vrot.slane %v4899, %v4905
    %v4907 = vcombine.low %v4882, %v4890
    %v4908 = vcombine.high %v4882, %v4890
    %v4910 = vunpack.c.l.s4 1934713408
    %v4911 = vunpack.c.0.s8 %v4910
    %v4912 = vlaneseq
    %v4913 = vshrl.u32 %v4912, 7
    %v4914 = vsub.s32 %v4911, %v4913
    %v4915 = vrot.slane %v4907, %v4914
    %v4917 = vunpack.c.l.s4 1934713408
    %v4918 = vunpack.c.0.s8 %v4917
    %v4919 = vlaneseq
    %v4920 = vshrl.u32 %v4919, 7
    %v4921 = vsub.s32 %v4918, %v4920
    %v4922 = vrot.slane %v4908, %v4921
    %v4923 = vcombine.low %v4898, %v4906
    %v4924 = vcombine.high %v4898, %v4906
    %v4926 = vunpack.c.l.s4 1934713408
    %v4927 = vunpack.c.0.s8 %v4926
    %v4928 = vlaneseq
    %v4929 = vshrl.u32 %v4928, 7
    %v4930 = vsub.s32 %v4927, %v4929
    %v4931 = vrot.slane %v4923, %v4930
    %v4933 = vunpack.c.l.s4 1934713408
    %v4934 = vunpack.c.0.s8 %v4933
    %v4935 = vlaneseq
    %v4936 = vshrl.u32 %v4935, 7
    %v4937 = vsub.s32 %v4934, %v4936
    %v4938 = vrot.slane %v4924, %v4937
    %v4939 = vcombine.low %v4915, %v4931
    %v4940 = vcombine.high %v4915, %v4931
    %v4941 = vcombine.low %v4922, %v4938
    %v4942 = vcombine.high %v4922, %v4938
    %v4943 = vcombine.low %v4711, %v4718
    %v4945 = vunpack.c.l.s4 1983009808
    %v4946 = vunpack.c.0.s8 %v4945
    %v4947 = vlaneseq
    %v4948 = vshrl.u32 %v4947, 7
    %v4949 = vsub.s32 %v4946, %v4948
    %v4950 = vrot.slane %v4943, %v4949
    %v4951 = vcombine.low %v4735, %v4736
    %v4953 = vunpack.c.l.s4 1983009808
    %v4954 = vunpack.c.0.s8 %v4953
    %v4955 = vlaneseq
    %v4956 = vshrl.u32 %v4955, 7
    %v4957 = vsub.s32 %v4954, %v4956
    %v4958 = vrot.slane %v4951, %v4957
    %v4959 = vcombine.low %v4727, %v4734
    %v4961 = vunpack.c.l.s4 1983009808
    %v4962 = vunpack.c.0.s8 %v4961
    %v4963 = vlaneseq
    %v4964 = vshrl.u32 %v4963, 7
    %v4965 = vsub.s32 %v4962, %v4964
    %v4966 = vrot.slane %v4959, %v4965
    %v4967 = vcombine.low %v4737, %v4738
    %v4969 = vunpack.c.l.s4 1983009808
    %v4970 = vunpack.c.0.s8 %v4969
    %v4971 = vlaneseq
    %v4972 = vshrl.u32 %v4971, 7
    %v4973 = vsub.s32 %v4970, %v4972
    %v4974 = vrot.slane %v4967, %v4973
    %v4975 = vcombine.low %v4950, %v4958
    %v4976 = vcombine.high %v4950, %v4958
    %v4978 = vunpack.c.l.s4 1934713408
    %v4979 = vunpack.c.0.s8 %v4978
    %v4980 = vlaneseq
    %v4981 = vshrl.u32 %v4980, 7
    %v4982 = vsub.s32 %v4979, %v4981
    %v4983 = vrot.slane %v4975, %v4982
    %v4985 = vunpack.c.l.s4 1934713408
    %v4986 = vunpack.c.0.s8 %v4985
    %v4987 = vlaneseq
    %v4988 = vshrl.u32 %v4987, 7
    %v4989 = vsub.s32 %v4986, %v4988
    %v4990 = vrot.slane %v4976, %v4989
    %v4991 = vcombine.low %v4966, %v4974
    %v4992 = vcombine.high %v4966, %v4974
    %v4994 = vunpack.c.l.s4 1934713408
    %v4995 = vunpack.c.0.s8 %v4994
    %v4996 = vlaneseq
    %v4997 = vshrl.u32 %v4996, 7
    %v4998 = vsub.s32 %v4995, %v4997
    %v4999 = vrot.slane %v4991, %v4998
    %v5001 = vunpack.c.l.s4 1934713408
    %v5002 = vunpack.c.0.s8 %v5001
    %v5003 = vlaneseq
    %v5004 = vshrl.u32 %v5003, 7
    %v5005 = vsub.s32 %v5002, %v5004
    %v5006 = vrot.slane %v4992, %v5005
    %v5007 = vcombine.low %v4983, %v4999
    %v5008 = vcombine.high %v4983, %v4999
    %v5009 = vcombine.low %v4990, %v5006
    %v5010 = vcombine.high %v4990, %v5006
    %v5011 = vcombine.low %v4779, %v4786
    %v5013 = vunpack.c.l.s4 1983009808
    %v5014 = vunpack.c.0.s8 %v5013
    %v5015 = vlaneseq
    %v5016 = vshrl.u32 %v5015, 7
    %v5017 = vsub.s32 %v5014, %v5016
    %v5018 = vrot.slane %v5011, %v5017
    %v5019 = vcombine.low %v4803, %v4804
    %v5021 = vunpack.c.l.s4 1983009808
    %v5022 = vunpack.c.0.s8 %v5021
    %v5023 = vlaneseq
    %v5024 = vshrl.u32 %v5023, 7
    %v5025 = vsub.s32 %v5022, %v5024
    %v5026 = vrot.slane %v5019, %v5025
    %v5027 = vcombine.low %v4795, %v4802
    %v5029 = vunpack.c.l.s4 1983009808
    %v5030 = vunpack.c.0.s8 %v5029
    %v5031 = vlaneseq
    %v5032 = vshrl.u32 %v5031, 7
    %v5033 = vsub.s32 %v5030, %v5032
    %v5034 = vrot.slane %v5027, %v5033
    %v5035 = vcombine.low %v4805, %v4806
    %v5037 = vunpack.c.l.s4 1983009808
    %v5038 = vunpack.c.0.s8 %v5037
    %v5039 = vlaneseq
    %v5040 = vshrl.u32 %v5039, 7
    %v5041 = vsub.s32 %v5038, %v5040
    %v5042 = vrot.slane %v5035, %v5041
    %v5043 = vcombine.low %v5018, %v5026
    %v5044 = vcombine.high %v5018, %v5026
    %v5046 = vunpack.c.l.s4 1934713408
    %v5047 = vunpack.c.0.s8 %v5046
    %v5048 = vlaneseq
    %v5049 = vshrl.u32 %v5048, 7
    %v5050 = vsub.s32 %v5047, %v5049
    %v5051 = vrot.slane %v5043, %v5050
    %v5053 = vunpack.c.l.s4 1934713408
    %v5054 = vunpack.c.0.s8 %v5053
    %v5055 = vlaneseq
    %v5056 = vshrl.u32 %v5055, 7
    %v5057 = vsub.s32 %v5054, %v5056
    %v5058 = vrot.slane %v5044, %v5057
    %v5059 = vcombine.low %v5034, %v5042
    %v5060 = vcombine.high %v5034, %v5042
    %v5062 = vunpack.c.l.s4 1934713408
    %v5063 = vunpack.c.0.s8 %v5062
    %v5064 = vlaneseq
    %v5065 = vshrl.u32 %v5064, 7
    %v5066 = vsub.s32 %v5063, %v5065
    %v5067 = vrot.slane %v5059, %v5066
    %v5069 = vunpack.c.l.s4 1934713408
    %v5070 = vunpack.c.0.s8 %v5069
    %v5071 = vlaneseq
    %v5072 = vshrl.u32 %v5071, 7
    %v5073 = vsub.s32 %v5070, %v5072
    %v5074 = vrot.slane %v5060, %v5073
    %v5075 = vcombine.low %v5051, %v5067
    %v5076 = vcombine.high %v5051, %v5067
    %v5077 = vcombine.low %v5058, %v5074
    %v5078 = vcombine.high %v5058, %v5074
    %v5079 = vcombine.low %v4847, %v4854
    %v5081 = vunpack.c.l.s4 1983009808
    %v5082 = vunpack.c.0.s8 %v5081
    %v5083 = vlaneseq
    %v5084 = vshrl.u32 %v5083, 7
    %v5085 = vsub.s32 %v5082, %v5084
    %v5086 = vrot.slane %v5079, %v5085
    %v5087 = vcombine.low %v4871, %v4872
    %v5089 = vunpack.c.l.s4 1983009808
    %v5090 = vunpack.c.0.s8 %v5089
    %v5091 = vlaneseq
    %v5092 = vshrl.u32 %v5091, 7
    %v5093 = vsub.s32 %v5090, %v5092
    %v5094 = vrot.slane %v5087, %v5093
    %v5095 = vcombine.low %v4863, %v4870
    %v5097 = vunpack.c.l.s4 1983009808
    %v5098 = vunpack.c.0.s8 %v5097
    %v5099 = vlaneseq
    %v5100 = vshrl.u32 %v5099, 7
    %v5101 = vsub.s32 %v5098, %v5100
    %v5102 = vrot.slane %v5095, %v5101
    %v5103 = vcombine.low %v4873, %v4874
    %v5105 = vunpack.c.l.s4 1983009808
    %v5106 = vunpack.c.0.s8 %v5105
    %v5107 = vlaneseq
    %v5108 = vshrl.u32 %v5107, 7
    %v5109 = vsub.s32 %v5106, %v5108
    %v5110 = vrot.slane %v5103, %v5109
    %v5111 = vcombine.low %v5086, %v5094
    %v5112 = vcombine.high %v5086, %v5094
    %v5114 = vunpack.c.l.s4 1934713408
    %v5115 = vunpack.c.0.s8 %v5114
    %v5116 = vlaneseq
    %v5117 = vshrl.u32 %v5116, 7
    %v5118 = vsub.s32 %v5115, %v5117
    %v5119 = vrot.slane %v5111, %v5118
    %v5121 = vunpack.c.l.s4 1934713408
    %v5122 = vunpack.c.0.s8 %v5121
    %v5123 = vlaneseq
    %v5124 = vshrl.u32 %v5123, 7
    %v5125 = vsub.s32 %v5122, %v5124
    %v5126 = vrot.slane %v5112, %v5125
    %v5127 = vcombine.low %v5102, %v5110
    %v5128 = vcombine.high %v5102, %v5110
    %v5130 = vunpack.c.l.s4 1934713408
    %v5131 = vunpack.c.0.s8 %v5130
    %v5132 = vlaneseq
    %v5133 = vshrl.u32 %v5132, 7
    %v5134 = vsub.s32 %v5131, %v5133
    %v5135 = vrot.slane %v5127, %v5134
    %v5137 = vunpack.c.l.s4 1934713408
    %v5138 = vunpack.c.0.s8 %v5137
    %v5139 = vlaneseq
    %v5140 = vshrl.u32 %v5139, 7
    %v5141 = vsub.s32 %v5138, %v5140
    %v5142 = vrot.slane %v5128, %v5141
    %v5143 = vcombine.low %v5119, %v5135
    %v5144 = vcombine.high %v5119, %v5135
    %v5145 = vcombine.low %v5126, %v5142
    %v5146 = vcombine.high %v5126, %v5142
    %5151 = vrot.lane.b32.xlu0 %v3961, 96
    %v5152 = vpop.permute.xlu0 %5151
    %5153 = vrot.lane.b32.xlu0 %v3966, 96
    %v5154 = vpop.permute.xlu0 %5153
    %5155 = vrot.lane.b32.xlu0 %v3971, 96
    %v5156 = vpop.permute.xlu0 %5155
    %5157 = vrot.lane.b32.xlu0 %v3976, 96
    %v5158 = vpop.permute.xlu0 %5157
    %5163 = vrot.lane.b32.xlu0 %v3961, 64
    %v5164 = vpop.permute.xlu0 %5163
    %5165 = vrot.lane.b32.xlu0 %v3966, 64
    %v5166 = vpop.permute.xlu0 %5165
    %5167 = vrot.lane.b32.xlu0 %v3971, 64
    %v5168 = vpop.permute.xlu0 %5167
    %5169 = vrot.lane.b32.xlu0 %v3976, 64
    %v5170 = vpop.permute.xlu0 %5169
    %5175 = vrot.lane.b32.xlu0 %v3961, 32
    %v5176 = vpop.permute.xlu0 %5175
    %5177 = vrot.lane.b32.xlu0 %v3966, 32
    %v5178 = vpop.permute.xlu0 %5177
    %5179 = vrot.lane.b32.xlu0 %v3971, 32
    %v5180 = vpop.permute.xlu0 %5179
    %5181 = vrot.lane.b32.xlu0 %v3976, 32
    %v5182 = vpop.permute.xlu0 %5181
    %v5187 = vcombine.low %v3961, %v5164
    %v5188 = vcombine.high %v3961, %v5164
    %v5190 = vunpack.c.l.s4 1983009808
    %v5191 = vunpack.c.0.s8 %v5190
    %v5192 = vlaneseq
    %v5193 = vshrl.u32 %v5192, 7
    %v5194 = vsub.s32 %v5191, %v5193
    %v5195 = vrot.slane %v5187, %v5194
    %v5197 = vunpack.c.l.s4 1983009808
    %v5198 = vunpack.c.0.s8 %v5197
    %v5199 = vlaneseq
    %v5200 = vshrl.u32 %v5199, 7
    %v5201 = vsub.s32 %v5198, %v5200
    %v5202 = vrot.slane %v5188, %v5201
    %v5203 = vcombine.low %v5152, %v5176
    %v5204 = vcombine.high %v5152, %v5176
    %v5206 = vunpack.c.l.s4 1983009808
    %v5207 = vunpack.c.0.s8 %v5206
    %v5208 = vlaneseq
    %v5209 = vshrl.u32 %v5208, 7
    %v5210 = vsub.s32 %v5207, %v5209
    %v5211 = vrot.slane %v5203, %v5210
    %v5213 = vunpack.c.l.s4 1983009808
    %v5214 = vunpack.c.0.s8 %v5213
    %v5215 = vlaneseq
    %v5216 = vshrl.u32 %v5215, 7
    %v5217 = vsub.s32 %v5214, %v5216
    %v5218 = vrot.slane %v5204, %v5217
    %v5219 = vcombine.low %v5195, %v5211
    %v5220 = vcombine.high %v5195, %v5211
    %v5222 = vunpack.c.l.s4 1934713408
    %v5223 = vunpack.c.0.s8 %v5222
    %v5224 = vlaneseq
    %v5225 = vshrl.u32 %v5224, 7
    %v5226 = vsub.s32 %v5223, %v5225
    %v5227 = vrot.slane %v5219, %v5226
    %v5229 = vunpack.c.l.s4 1934713408
    %v5230 = vunpack.c.0.s8 %v5229
    %v5231 = vlaneseq
    %v5232 = vshrl.u32 %v5231, 7
    %v5233 = vsub.s32 %v5230, %v5232
    %v5234 = vrot.slane %v5220, %v5233
    %v5235 = vcombine.low %v5202, %v5218
    %v5236 = vcombine.high %v5202, %v5218
    %v5238 = vunpack.c.l.s4 1934713408
    %v5239 = vunpack.c.0.s8 %v5238
    %v5240 = vlaneseq
    %v5241 = vshrl.u32 %v5240, 7
    %v5242 = vsub.s32 %v5239, %v5241
    %v5243 = vrot.slane %v5235, %v5242
    %v5245 = vunpack.c.l.s4 1934713408
    %v5246 = vunpack.c.0.s8 %v5245
    %v5247 = vlaneseq
    %v5248 = vshrl.u32 %v5247, 7
    %v5249 = vsub.s32 %v5246, %v5248
    %v5250 = vrot.slane %v5236, %v5249
    %v5251 = vcombine.high %v5227, 0.0
    %v5252 = vcombine.high %v5234, 0.0
    %v5253 = vcombine.high %v5243, 0.0
    %v5254 = vcombine.high %v5250, 0.0
    %v5255 = vcombine.low %v3966, %v5166
    %v5256 = vcombine.high %v3966, %v5166
    %v5258 = vunpack.c.l.s4 1983009808
    %v5259 = vunpack.c.0.s8 %v5258
    %v5260 = vlaneseq
    %v5261 = vshrl.u32 %v5260, 7
    %v5262 = vsub.s32 %v5259, %v5261
    %v5263 = vrot.slane %v5255, %v5262
    %v5265 = vunpack.c.l.s4 1983009808
    %v5266 = vunpack.c.0.s8 %v5265
    %v5267 = vlaneseq
    %v5268 = vshrl.u32 %v5267, 7
    %v5269 = vsub.s32 %v5266, %v5268
    %v5270 = vrot.slane %v5256, %v5269
    %v5271 = vcombine.low %v5154, %v5178
    %v5272 = vcombine.high %v5154, %v5178
    %v5274 = vunpack.c.l.s4 1983009808
    %v5275 = vunpack.c.0.s8 %v5274
    %v5276 = vlaneseq
    %v5277 = vshrl.u32 %v5276, 7
    %v5278 = vsub.s32 %v5275, %v5277
    %v5279 = vrot.slane %v5271, %v5278
    %v5281 = vunpack.c.l.s4 1983009808
    %v5282 = vunpack.c.0.s8 %v5281
    %v5283 = vlaneseq
    %v5284 = vshrl.u32 %v5283, 7
    %v5285 = vsub.s32 %v5282, %v5284
    %v5286 = vrot.slane %v5272, %v5285
    %v5287 = vcombine.low %v5263, %v5279
    %v5288 = vcombine.high %v5263, %v5279
    %v5290 = vunpack.c.l.s4 1934713408
    %v5291 = vunpack.c.0.s8 %v5290
    %v5292 = vlaneseq
    %v5293 = vshrl.u32 %v5292, 7
    %v5294 = vsub.s32 %v5291, %v5293
    %v5295 = vrot.slane %v5287, %v5294
    %v5297 = vunpack.c.l.s4 1934713408
    %v5298 = vunpack.c.0.s8 %v5297
    %v5299 = vlaneseq
    %v5300 = vshrl.u32 %v5299, 7
    %v5301 = vsub.s32 %v5298, %v5300
    %v5302 = vrot.slane %v5288, %v5301
    %v5303 = vcombine.low %v5270, %v5286
    %v5304 = vcombine.high %v5270, %v5286
    %v5306 = vunpack.c.l.s4 1934713408
    %v5307 = vunpack.c.0.s8 %v5306
    %v5308 = vlaneseq
    %v5309 = vshrl.u32 %v5308, 7
    %v5310 = vsub.s32 %v5307, %v5309
    %v5311 = vrot.slane %v5303, %v5310
    %v5313 = vunpack.c.l.s4 1934713408
    %v5314 = vunpack.c.0.s8 %v5313
    %v5315 = vlaneseq
    %v5316 = vshrl.u32 %v5315, 7
    %v5317 = vsub.s32 %v5314, %v5316
    %v5318 = vrot.slane %v5304, %v5317
    %v5319 = vcombine.high %v5295, 0.0
    %v5320 = vcombine.high %v5302, 0.0
    %v5321 = vcombine.high %v5311, 0.0
    %v5322 = vcombine.high %v5318, 0.0
    %v5323 = vcombine.low %v3971, %v5168
    %v5324 = vcombine.high %v3971, %v5168
    %v5326 = vunpack.c.l.s4 1983009808
    %v5327 = vunpack.c.0.s8 %v5326
    %v5328 = vlaneseq
    %v5329 = vshrl.u32 %v5328, 7
    %v5330 = vsub.s32 %v5327, %v5329
    %v5331 = vrot.slane %v5323, %v5330
    %v5333 = vunpack.c.l.s4 1983009808
    %v5334 = vunpack.c.0.s8 %v5333
    %v5335 = vlaneseq
    %v5336 = vshrl.u32 %v5335, 7
    %v5337 = vsub.s32 %v5334, %v5336
    %v5338 = vrot.slane %v5324, %v5337
    %v5339 = vcombine.low %v5156, %v5180
    %v5340 = vcombine.high %v5156, %v5180
    %v5342 = vunpack.c.l.s4 1983009808
    %v5343 = vunpack.c.0.s8 %v5342
    %v5344 = vlaneseq
    %v5345 = vshrl.u32 %v5344, 7
    %v5346 = vsub.s32 %v5343, %v5345
    %v5347 = vrot.slane %v5339, %v5346
    %v5349 = vunpack.c.l.s4 1983009808
    %v5350 = vunpack.c.0.s8 %v5349
    %v5351 = vlaneseq
    %v5352 = vshrl.u32 %v5351, 7
    %v5353 = vsub.s32 %v5350, %v5352
    %v5354 = vrot.slane %v5340, %v5353
    %v5355 = vcombine.low %v5331, %v5347
    %v5356 = vcombine.high %v5331, %v5347
    %v5358 = vunpack.c.l.s4 1934713408
    %v5359 = vunpack.c.0.s8 %v5358
    %v5360 = vlaneseq
    %v5361 = vshrl.u32 %v5360, 7
    %v5362 = vsub.s32 %v5359, %v5361
    %v5363 = vrot.slane %v5355, %v5362
    %v5365 = vunpack.c.l.s4 1934713408
    %v5366 = vunpack.c.0.s8 %v5365
    %v5367 = vlaneseq
    %v5368 = vshrl.u32 %v5367, 7
    %v5369 = vsub.s32 %v5366, %v5368
    %v5370 = vrot.slane %v5356, %v5369
    %v5371 = vcombine.low %v5338, %v5354
    %v5372 = vcombine.high %v5338, %v5354
    %v5374 = vunpack.c.l.s4 1934713408
    %v5375 = vunpack.c.0.s8 %v5374
    %v5376 = vlaneseq
    %v5377 = vshrl.u32 %v5376, 7
    %v5378 = vsub.s32 %v5375, %v5377
    %v5379 = vrot.slane %v5371, %v5378
    %v5381 = vunpack.c.l.s4 1934713408
    %v5382 = vunpack.c.0.s8 %v5381
    %v5383 = vlaneseq
    %v5384 = vshrl.u32 %v5383, 7
    %v5385 = vsub.s32 %v5382, %v5384
    %v5386 = vrot.slane %v5372, %v5385
    %v5387 = vcombine.high %v5363, 0.0
    %v5388 = vcombine.high %v5370, 0.0
    %v5389 = vcombine.high %v5379, 0.0
    %v5390 = vcombine.high %v5386, 0.0
    %v5391 = vcombine.low %v3976, %v5170
    %v5392 = vcombine.high %v3976, %v5170
    %v5394 = vunpack.c.l.s4 1983009808
    %v5395 = vunpack.c.0.s8 %v5394
    %v5396 = vlaneseq
    %v5397 = vshrl.u32 %v5396, 7
    %v5398 = vsub.s32 %v5395, %v5397
    %v5399 = vrot.slane %v5391, %v5398
    %v5401 = vunpack.c.l.s4 1983009808
    %v5402 = vunpack.c.0.s8 %v5401
    %v5403 = vlaneseq
    %v5404 = vshrl.u32 %v5403, 7
    %v5405 = vsub.s32 %v5402, %v5404
    %v5406 = vrot.slane %v5392, %v5405
    %v5407 = vcombine.low %v5158, %v5182
    %v5408 = vcombine.high %v5158, %v5182
    %v5410 = vunpack.c.l.s4 1983009808
    %v5411 = vunpack.c.0.s8 %v5410
    %v5412 = vlaneseq
    %v5413 = vshrl.u32 %v5412, 7
    %v5414 = vsub.s32 %v5411, %v5413
    %v5415 = vrot.slane %v5407, %v5414
    %v5417 = vunpack.c.l.s4 1983009808
    %v5418 = vunpack.c.0.s8 %v5417
    %v5419 = vlaneseq
    %v5420 = vshrl.u32 %v5419, 7
    %v5421 = vsub.s32 %v5418, %v5420
    %v5422 = vrot.slane %v5408, %v5421
    %v5423 = vcombine.low %v5399, %v5415
    %v5424 = vcombine.high %v5399, %v5415
    %v5426 = vunpack.c.l.s4 1934713408
    %v5427 = vunpack.c.0.s8 %v5426
    %v5428 = vlaneseq
    %v5429 = vshrl.u32 %v5428, 7
    %v5430 = vsub.s32 %v5427, %v5429
    %v5431 = vrot.slane %v5423, %v5430
    %v5433 = vunpack.c.l.s4 1934713408
    %v5434 = vunpack.c.0.s8 %v5433
    %v5435 = vlaneseq
    %v5436 = vshrl.u32 %v5435, 7
    %v5437 = vsub.s32 %v5434, %v5436
    %v5438 = vrot.slane %v5424, %v5437
    %v5439 = vcombine.low %v5406, %v5422
    %v5440 = vcombine.high %v5406, %v5422
    %v5442 = vunpack.c.l.s4 1934713408
    %v5443 = vunpack.c.0.s8 %v5442
    %v5444 = vlaneseq
    %v5445 = vshrl.u32 %v5444, 7
    %v5446 = vsub.s32 %v5443, %v5445
    %v5447 = vrot.slane %v5439, %v5446
    %v5449 = vunpack.c.l.s4 1934713408
    %v5450 = vunpack.c.0.s8 %v5449
    %v5451 = vlaneseq
    %v5452 = vshrl.u32 %v5451, 7
    %v5453 = vsub.s32 %v5450, %v5452
    %v5454 = vrot.slane %v5440, %v5453
    %v5455 = vcombine.high %v5431, 0.0
    %v5456 = vcombine.high %v5438, 0.0
    %v5457 = vcombine.high %v5447, 0.0
    %v5458 = vcombine.high %v5454, 0.0
    %v5459 = vcombine.low %v5227, %v5234
    %v5461 = vunpack.c.l.s4 1983009808
    %v5462 = vunpack.c.0.s8 %v5461
    %v5463 = vlaneseq
    %v5464 = vshrl.u32 %v5463, 7
    %v5465 = vsub.s32 %v5462, %v5464
    %v5466 = vrot.slane %v5459, %v5465
    %v5467 = vcombine.low %v5251, %v5252
    %v5469 = vunpack.c.l.s4 1983009808
    %v5470 = vunpack.c.0.s8 %v5469
    %v5471 = vlaneseq
    %v5472 = vshrl.u32 %v5471, 7
    %v5473 = vsub.s32 %v5470, %v5472
    %v5474 = vrot.slane %v5467, %v5473
    %v5475 = vcombine.low %v5243, %v5250
    %v5477 = vunpack.c.l.s4 1983009808
    %v5478 = vunpack.c.0.s8 %v5477
    %v5479 = vlaneseq
    %v5480 = vshrl.u32 %v5479, 7
    %v5481 = vsub.s32 %v5478, %v5480
    %v5482 = vrot.slane %v5475, %v5481
    %v5483 = vcombine.low %v5253, %v5254
    %v5485 = vunpack.c.l.s4 1983009808
    %v5486 = vunpack.c.0.s8 %v5485
    %v5487 = vlaneseq
    %v5488 = vshrl.u32 %v5487, 7
    %v5489 = vsub.s32 %v5486, %v5488
    %v5490 = vrot.slane %v5483, %v5489
    %v5491 = vcombine.low %v5466, %v5474
    %v5492 = vcombine.high %v5466, %v5474
    %v5494 = vunpack.c.l.s4 1934713408
    %v5495 = vunpack.c.0.s8 %v5494
    %v5496 = vlaneseq
    %v5497 = vshrl.u32 %v5496, 7
    %v5498 = vsub.s32 %v5495, %v5497
    %v5499 = vrot.slane %v5491, %v5498
    %v5501 = vunpack.c.l.s4 1934713408
    %v5502 = vunpack.c.0.s8 %v5501
    %v5503 = vlaneseq
    %v5504 = vshrl.u32 %v5503, 7
    %v5505 = vsub.s32 %v5502, %v5504
    %v5506 = vrot.slane %v5492, %v5505
    %v5507 = vcombine.low %v5482, %v5490
    %v5508 = vcombine.high %v5482, %v5490
    %v5510 = vunpack.c.l.s4 1934713408
    %v5511 = vunpack.c.0.s8 %v5510
    %v5512 = vlaneseq
    %v5513 = vshrl.u32 %v5512, 7
    %v5514 = vsub.s32 %v5511, %v5513
    %v5515 = vrot.slane %v5507, %v5514
    %v5517 = vunpack.c.l.s4 1934713408
    %v5518 = vunpack.c.0.s8 %v5517
    %v5519 = vlaneseq
    %v5520 = vshrl.u32 %v5519, 7
    %v5521 = vsub.s32 %v5518, %v5520
    %v5522 = vrot.slane %v5508, %v5521
    %v5523 = vcombine.low %v5499, %v5515
    %v5524 = vcombine.high %v5499, %v5515
    %v5525 = vcombine.low %v5506, %v5522
    %v5526 = vcombine.high %v5506, %v5522
    %v5527 = vcombine.low %v5295, %v5302
    %v5529 = vunpack.c.l.s4 1983009808
    %v5530 = vunpack.c.0.s8 %v5529
    %v5531 = vlaneseq
    %v5532 = vshrl.u32 %v5531, 7
    %v5533 = vsub.s32 %v5530, %v5532
    %v5534 = vrot.slane %v5527, %v5533
    %v5535 = vcombine.low %v5319, %v5320
    %v5537 = vunpack.c.l.s4 1983009808
    %v5538 = vunpack.c.0.s8 %v5537
    %v5539 = vlaneseq
    %v5540 = vshrl.u32 %v5539, 7
    %v5541 = vsub.s32 %v5538, %v5540
    %v5542 = vrot.slane %v5535, %v5541
    %v5543 = vcombine.low %v5311, %v5318
    %v5545 = vunpack.c.l.s4 1983009808
    %v5546 = vunpack.c.0.s8 %v5545
    %v5547 = vlaneseq
    %v5548 = vshrl.u32 %v5547, 7
    %v5549 = vsub.s32 %v5546, %v5548
    %v5550 = vrot.slane %v5543, %v5549
    %v5551 = vcombine.low %v5321, %v5322
    %v5553 = vunpack.c.l.s4 1983009808
    %v5554 = vunpack.c.0.s8 %v5553
    %v5555 = vlaneseq
    %v5556 = vshrl.u32 %v5555, 7
    %v5557 = vsub.s32 %v5554, %v5556
    %v5558 = vrot.slane %v5551, %v5557
    %v5559 = vcombine.low %v5534, %v5542
    %v5560 = vcombine.high %v5534, %v5542
    %v5562 = vunpack.c.l.s4 1934713408
    %v5563 = vunpack.c.0.s8 %v5562
    %v5564 = vlaneseq
    %v5565 = vshrl.u32 %v5564, 7
    %v5566 = vsub.s32 %v5563, %v5565
    %v5567 = vrot.slane %v5559, %v5566
    %v5569 = vunpack.c.l.s4 1934713408
    %v5570 = vunpack.c.0.s8 %v5569
    %v5571 = vlaneseq
    %v5572 = vshrl.u32 %v5571, 7
    %v5573 = vsub.s32 %v5570, %v5572
    %v5574 = vrot.slane %v5560, %v5573
    %v5575 = vcombine.low %v5550, %v5558
    %v5576 = vcombine.high %v5550, %v5558
    %v5578 = vunpack.c.l.s4 1934713408
    %v5579 = vunpack.c.0.s8 %v5578
    %v5580 = vlaneseq
    %v5581 = vshrl.u32 %v5580, 7
    %v5582 = vsub.s32 %v5579, %v5581
    %v5583 = vrot.slane %v5575, %v5582
    %v5585 = vunpack.c.l.s4 1934713408
    %v5586 = vunpack.c.0.s8 %v5585
    %v5587 = vlaneseq
    %v5588 = vshrl.u32 %v5587, 7
    %v5589 = vsub.s32 %v5586, %v5588
    %v5590 = vrot.slane %v5576, %v5589
    %v5591 = vcombine.low %v5567, %v5583
    %v5592 = vcombine.high %v5567, %v5583
    %v5593 = vcombine.low %v5574, %v5590
    %v5594 = vcombine.high %v5574, %v5590
    %v5595 = vcombine.low %v5363, %v5370
    %v5597 = vunpack.c.l.s4 1983009808
    %v5598 = vunpack.c.0.s8 %v5597
    %v5599 = vlaneseq
    %v5600 = vshrl.u32 %v5599, 7
    %v5601 = vsub.s32 %v5598, %v5600
    %v5602 = vrot.slane %v5595, %v5601
    %v5603 = vcombine.low %v5387, %v5388
    %v5605 = vunpack.c.l.s4 1983009808
    %v5606 = vunpack.c.0.s8 %v5605
    %v5607 = vlaneseq
    %v5608 = vshrl.u32 %v5607, 7
    %v5609 = vsub.s32 %v5606, %v5608
    %v5610 = vrot.slane %v5603, %v5609
    %v5611 = vcombine.low %v5379, %v5386
    %v5613 = vunpack.c.l.s4 1983009808
    %v5614 = vunpack.c.0.s8 %v5613
    %v5615 = vlaneseq
    %v5616 = vshrl.u32 %v5615, 7
    %v5617 = vsub.s32 %v5614, %v5616
    %v5618 = vrot.slane %v5611, %v5617
    %v5619 = vcombine.low %v5389, %v5390
    %v5621 = vunpack.c.l.s4 1983009808
    %v5622 = vunpack.c.0.s8 %v5621
    %v5623 = vlaneseq
    %v5624 = vshrl.u32 %v5623, 7
    %v5625 = vsub.s32 %v5622, %v5624
    %v5626 = vrot.slane %v5619, %v5625
    %v5627 = vcombine.low %v5602, %v5610
    %v5628 = vcombine.high %v5602, %v5610
    %v5630 = vunpack.c.l.s4 1934713408
    %v5631 = vunpack.c.0.s8 %v5630
    %v5632 = vlaneseq
    %v5633 = vshrl.u32 %v5632, 7
    %v5634 = vsub.s32 %v5631, %v5633
    %v5635 = vrot.slane %v5627, %v5634
    %v5637 = vunpack.c.l.s4 1934713408
    %v5638 = vunpack.c.0.s8 %v5637
    %v5639 = vlaneseq
    %v5640 = vshrl.u32 %v5639, 7
    %v5641 = vsub.s32 %v5638, %v5640
    %v5642 = vrot.slane %v5628, %v5641
    %v5643 = vcombine.low %v5618, %v5626
    %v5644 = vcombine.high %v5618, %v5626
    %v5646 = vunpack.c.l.s4 1934713408
    %v5647 = vunpack.c.0.s8 %v5646
    %v5648 = vlaneseq
    %v5649 = vshrl.u32 %v5648, 7
    %v5650 = vsub.s32 %v5647, %v5649
    %v5651 = vrot.slane %v5643, %v5650
    %v5653 = vunpack.c.l.s4 1934713408
    %v5654 = vunpack.c.0.s8 %v5653
    %v5655 = vlaneseq
    %v5656 = vshrl.u32 %v5655, 7
    %v5657 = vsub.s32 %v5654, %v5656
    %v5658 = vrot.slane %v5644, %v5657
    %v5659 = vcombine.low %v5635, %v5651
    %v5660 = vcombine.high %v5635, %v5651
    %v5661 = vcombine.low %v5642, %v5658
    %v5662 = vcombine.high %v5642, %v5658
    %v5663 = vcombine.low %v5431, %v5438
    %v5665 = vunpack.c.l.s4 1983009808
    %v5666 = vunpack.c.0.s8 %v5665
    %v5667 = vlaneseq
    %v5668 = vshrl.u32 %v5667, 7
    %v5669 = vsub.s32 %v5666, %v5668
    %v5670 = vrot.slane %v5663, %v5669
    %v5671 = vcombine.low %v5455, %v5456
    %v5673 = vunpack.c.l.s4 1983009808
    %v5674 = vunpack.c.0.s8 %v5673
    %v5675 = vlaneseq
    %v5676 = vshrl.u32 %v5675, 7
    %v5677 = vsub.s32 %v5674, %v5676
    %v5678 = vrot.slane %v5671, %v5677
    %v5679 = vcombine.low %v5447, %v5454
    %v5681 = vunpack.c.l.s4 1983009808
    %v5682 = vunpack.c.0.s8 %v5681
    %v5683 = vlaneseq
    %v5684 = vshrl.u32 %v5683, 7
    %v5685 = vsub.s32 %v5682, %v5684
    %v5686 = vrot.slane %v5679, %v5685
    %v5687 = vcombine.low %v5457, %v5458
    %v5689 = vunpack.c.l.s4 1983009808
    %v5690 = vunpack.c.0.s8 %v5689
    %v5691 = vlaneseq
    %v5692 = vshrl.u32 %v5691, 7
    %v5693 = vsub.s32 %v5690, %v5692
    %v5694 = vrot.slane %v5687, %v5693
    %v5695 = vcombine.low %v5670, %v5678
    %v5696 = vcombine.high %v5670, %v5678
    %v5698 = vunpack.c.l.s4 1934713408
    %v5699 = vunpack.c.0.s8 %v5698
    %v5700 = vlaneseq
    %v5701 = vshrl.u32 %v5700, 7
    %v5702 = vsub.s32 %v5699, %v5701
    %v5703 = vrot.slane %v5695, %v5702
    %v5705 = vunpack.c.l.s4 1934713408
    %v5706 = vunpack.c.0.s8 %v5705
    %v5707 = vlaneseq
    %v5708 = vshrl.u32 %v5707, 7
    %v5709 = vsub.s32 %v5706, %v5708
    %v5710 = vrot.slane %v5696, %v5709
    %v5711 = vcombine.low %v5686, %v5694
    %v5712 = vcombine.high %v5686, %v5694
    %v5714 = vunpack.c.l.s4 1934713408
    %v5715 = vunpack.c.0.s8 %v5714
    %v5716 = vlaneseq
    %v5717 = vshrl.u32 %v5716, 7
    %v5718 = vsub.s32 %v5715, %v5717
    %v5719 = vrot.slane %v5711, %v5718
    %v5721 = vunpack.c.l.s4 1934713408
    %v5722 = vunpack.c.0.s8 %v5721
    %v5723 = vlaneseq
    %v5724 = vshrl.u32 %v5723, 7
    %v5725 = vsub.s32 %v5722, %v5724
    %v5726 = vrot.slane %v5712, %v5725
    %v5727 = vcombine.low %v5703, %v5719
    %v5728 = vcombine.high %v5703, %v5719
    %v5729 = vcombine.low %v5710, %v5726
    %v5730 = vcombine.high %v5710, %v5726
    %v5732 = vsel %vm2087, %v4355, 0
    %v5735 = vsel %vm2087, %v4423, 0
    %v5738 = vsel %vm2087, %v4491, 0
    %v5741 = vsel %vm2087, %v4559, 0
    %v5744 = vsel %vm2087, %v4356, 0
    %v5747 = vsel %vm2087, %v4424, 0
    %v5750 = vsel %vm2087, %v4492, 0
    %v5753 = vsel %vm2087, %v4560, 0
    %v5756 = vsel %vm2087, %v4357, 0
    %v5759 = vsel %vm2087, %v4425, 0
    %v5762 = vsel %vm2087, %v4493, 0
    %v5765 = vsel %vm2087, %v4561, 0
    %v5768 = vsel %vm2087, %v4358, 0
    %v5771 = vsel %vm2087, %v4426, 0
    %v5774 = vsel %vm2087, %v4494, 0
    %v5777 = vsel %vm2087, %v4562, 0
    %v5780 = vsel %vm2087, %v4939, 0
    %v5783 = vsel %vm2087, %v5007, 0
    %v5786 = vsel %vm2087, %v5075, 0
    %v5789 = vsel %vm2087, %v5143, 0
    %v5792 = vsel %vm2087, %v4940, 0
    %v5795 = vsel %vm2087, %v5008, 0
    %v5798 = vsel %vm2087, %v5076, 0
    %v5801 = vsel %vm2087, %v5144, 0
    %v5804 = vsel %vm2087, %v4941, 0
    %v5807 = vsel %vm2087, %v5009, 0
    %v5810 = vsel %vm2087, %v5077, 0
    %v5813 = vsel %vm2087, %v5145, 0
    %v5816 = vsel %vm2087, %v4942, 0
    %v5819 = vsel %vm2087, %v5010, 0
    %v5822 = vsel %vm2087, %v5078, 0
    %v5825 = vsel %vm2087, %v5146, 0
    %5827 = vmatprep.subr.mxu0 0.0
    %5828 = vmatpush1.xpose.msra.mxu0 %v5780
    %5829 = vmatprep.subr.mxu0 0.0
    %5830 = vmatpush1.xpose.msra.mxu0 %v5783
    %5831 = vmatprep.subr.mxu0 0.0
    %5832 = vmatpush1.xpose.msra.mxu0 %v5786
    %5833 = vmatprep.subr.mxu0 0.0
    %5834 = vmatpush1.xpose.msra.mxu0 %v5789
    %5835 = vmatprep.subr.mxu0 0.0
    %5836 = vmatpush1.xpose.msra.mxu0 %v5792
    %5837 = vmatprep.subr.mxu0 0.0
    %5838 = vmatpush1.xpose.msra.mxu0 %v5795
    %5839 = vmatprep.subr.mxu0 0.0
    %5840 = vmatpush1.xpose.msra.mxu0 %v5798
    %5841 = vmatprep.subr.mxu0 0.0
    %5842 = vmatpush1.xpose.msra.mxu0 %v5801
    %5843 = vmatprep.subr.mxu0 0.0
    %5844 = vmatpush1.xpose.msra.mxu0 %v5804
    %5845 = vmatprep.subr.mxu0 0.0
    %5846 = vmatpush1.xpose.msra.mxu0 %v5807
    %5847 = vmatprep.subr.mxu0 0.0
    %5848 = vmatpush1.xpose.msra.mxu0 %v5810
    %5849 = vmatprep.subr.mxu0 0.0
    %5850 = vmatpush1.xpose.msra.mxu0 %v5813
    %5851 = vmatprep.subr.mxu0 0.0
    %5852 = vmatpush1.xpose.msra.mxu0 %v5816
    %5853 = vmatprep.subr.mxu0 0.0
    %5854 = vmatpush1.xpose.msra.mxu0 %v5819
    %5855 = vmatprep.subr.mxu0 0.0
    %5856 = vmatpush1.xpose.msra.mxu0 %v5822
    %5857 = vmatprep.subr.mxu0 0.0
    %5858 = vmatpush1.xpose.msra.mxu0 %v5825
    %5859 = vmatprep.subr.mxu0 0.0
    %5860 = vmatpush1.xpose.msra.mxu0 0.0
    %5861 = vmatprep.subr.mxu0 0.0
    %5862 = vmatpush1.xpose.msra.mxu0 0.0
    %5863 = vmatprep.subr.mxu0 0.0
    %5864 = vmatpush1.xpose.msra.mxu0 0.0
    %5865 = vmatprep.subr.mxu0 0.0
    %5866 = vmatpush1.xpose.msra.mxu0 0.0
    %5867 = vmatprep.subr.mxu0 0.0
    %5868 = vmatpush1.xpose.msra.mxu0 0.0
    %5869 = vmatprep.subr.mxu0 0.0
    %5870 = vmatpush1.xpose.msra.mxu0 0.0
    %5871 = vmatprep.subr.mxu0 0.0
    %5872 = vmatpush1.xpose.msra.mxu0 0.0
    %5873 = vmatprep.subr.mxu0 0.0
    %5874 = vmatpush1.xpose.msra.mxu0 0.0
    %5875 = vmatprep.subr.mxu0 0.0
    %5876 = vmatpush1.xpose.msra.mxu0 0.0
    %5877 = vmatprep.subr.mxu0 0.0
    %5878 = vmatpush1.xpose.msra.mxu0 0.0
    %5879 = vmatprep.subr.mxu0 0.0
    %5880 = vmatpush1.xpose.msra.mxu0 0.0
    %5881 = vmatprep.subr.mxu0 0.0
    %5882 = vmatpush1.xpose.msra.mxu0 0.0
    %5883 = vmatprep.subr.mxu0 0.0
    %5884 = vmatpush1.xpose.msra.mxu0 0.0
    %5885 = vmatprep.subr.mxu0 0.0
    %5886 = vmatpush1.xpose.msra.mxu0 0.0
    %5887 = vmatprep.subr.mxu0 0.0
    %5888 = vmatpush1.xpose.msra.mxu0 0.0
    %5889 = vmatprep.subr.mxu0 0.0
    %5890 = vmatpush1.xpose.msra.mxu0 0.0
    %5891 = vmatprep.mubr.f32.mxu0 0.0
    %5892 = vmatmul.mubr.f32.gmra.mrb[0].mxu0 %v5732
    %v5893 = vpop.f32.mrb[0].mxu0
    %v5894 = vadd.f32 %v80, %v5893
    %v5895 = vpop.f32.mrb[0].mxu0
    %5896 = vmatprep.mubr.f32.mxu0 0.0
    %5897 = vmatmul.mubr.f32.gmra.mrb[0].mxu0 %v5735
    %v5898 = vpop.f32.mrb[0].mxu0
    %v5899 = vadd.f32 %v81, %v5898
    %v5900 = vpop.f32.mrb[0].mxu0
    %5901 = vmatprep.mubr.f32.mxu0 0.0
    %5902 = vmatmul.mubr.f32.gmra.mrb[0].mxu0 %v5738
    %v5903 = vpop.f32.mrb[0].mxu0
    %v5904 = vadd.f32 %v82, %v5903
    %v5905 = vpop.f32.mrb[0].mxu0
    %5906 = vmatprep.mubr.f32.mxu0 0.0
    %5907 = vmatmul.mubr.f32.gmra.mrb[0].mxu0 %v5741
    %v5908 = vpop.f32.mrb[0].mxu0
    %v5909 = vadd.f32 %v83, %v5908
    %v5910 = vpop.f32.mrb[0].mxu0
    %5911 = vmatprep.mubr.f32.mxu0 0.0
    %5912 = vmatmul.mubr.f32.gmra.mrb[0].mxu0 %v5744
    %v5913 = vpop.f32.mrb[0].mxu0
    %v5914 = vadd.f32 %v84, %v5913
    %v5915 = vpop.f32.mrb[0].mxu0
    %5916 = vmatprep.mubr.f32.mxu0 0.0
    %5917 = vmatmul.mubr.f32.gmra.mrb[0].mxu0 %v5747
    %v5918 = vpop.f32.mrb[0].mxu0
    %v5919 = vadd.f32 %v85, %v5918
    %v5920 = vpop.f32.mrb[0].mxu0
    %5921 = vmatprep.mubr.f32.mxu0 0.0
    %5922 = vmatmul.mubr.f32.gmra.mrb[0].mxu0 %v5750
    %v5923 = vpop.f32.mrb[0].mxu0
    %v5924 = vadd.f32 %v86, %v5923
    %v5925 = vpop.f32.mrb[0].mxu0
    %5926 = vmatprep.mubr.f32.mxu0 0.0
    %5927 = vmatmul.mubr.f32.gmra.mrb[0].mxu0 %v5753
    %v5928 = vpop.f32.mrb[0].mxu0
    %v5929 = vadd.f32 %v87, %v5928
    %v5930 = vpop.f32.mrb[0].mxu0
    %5931 = vmatprep.mubr.f32.mxu0 0.0
    %5932 = vmatmul.mubr.f32.gmra.mrb[0].mxu0 %v5756
    %v5933 = vpop.f32.mrb[0].mxu0
    %v5934 = vadd.f32 %v88, %v5933
    %v5935 = vpop.f32.mrb[0].mxu0
    %5936 = vmatprep.mubr.f32.mxu0 0.0
    %5937 = vmatmul.mubr.f32.gmra.mrb[0].mxu0 %v5759
    %v5938 = vpop.f32.mrb[0].mxu0
    %v5939 = vadd.f32 %v89, %v5938
    %v5940 = vpop.f32.mrb[0].mxu0
    %5941 = vmatprep.mubr.f32.mxu0 0.0
    %5942 = vmatmul.mubr.f32.gmra.mrb[0].mxu0 %v5762
    %v5943 = vpop.f32.mrb[0].mxu0
    %v5944 = vadd.f32 %v90, %v5943
    %v5945 = vpop.f32.mrb[0].mxu0
    %5946 = vmatprep.mubr.f32.mxu0 0.0
    %5947 = vmatmul.mubr.f32.gmra.mrb[0].mxu0 %v5765
    %v5948 = vpop.f32.mrb[0].mxu0
    %v5949 = vadd.f32 %v91, %v5948
    %v5950 = vpop.f32.mrb[0].mxu0
    %5951 = vmatprep.mubr.f32.mxu0 0.0
    %5952 = vmatmul.mubr.f32.gmra.mrb[0].mxu0 %v5768
    %v5953 = vpop.f32.mrb[0].mxu0
    %v5954 = vadd.f32 %v92, %v5953
    %v5955 = vpop.f32.mrb[0].mxu0
    %5956 = vmatprep.mubr.f32.mxu0 0.0
    %5957 = vmatmul.mubr.f32.gmra.mrb[0].mxu0 %v5771
    %v5958 = vpop.f32.mrb[0].mxu0
    %v5959 = vadd.f32 %v93, %v5958
    %v5960 = vpop.f32.mrb[0].mxu0
    %5961 = vmatprep.mubr.f32.mxu0 0.0
    %5962 = vmatmul.mubr.f32.gmra.mrb[0].mxu0 %v5774
    %v5963 = vpop.f32.mrb[0].mxu0
    %v5964 = vadd.f32 %v94, %v5963
    %v5965 = vpop.f32.mrb[0].mxu0
    %5966 = vmatprep.mubr.f32.mxu0 0.0
    %5967 = vmatmul.mubr.f32.gmra.mrb[0].mxu0 %v5777
    %v5968 = vpop.f32.mrb[0].mxu0
    %v5969 = vadd.f32 %v95, %v5968
    %v5970 = vpop.f32.mrb[0].mxu0
    %5971 = vdwg.mxu0
    %5972 = vmax.xlane.f32.xlu0 %v5894
    %v5973 = vpop.xlane.xlu0 %5972
    %5974 = vmax.xlane.f32.xlu0 %v5899
    %v5975 = vpop.xlane.xlu0 %5974
    %5976 = vmax.xlane.f32.xlu0 %v5904
    %v5977 = vpop.xlane.xlu0 %5976
    %5978 = vmax.xlane.f32.xlu0 %v5909
    %v5979 = vpop.xlane.xlu0 %5978
    %5980 = vmax.xlane.f32.xlu0 %v5914
    %v5981 = vpop.xlane.xlu0 %5980
    %5982 = vmax.xlane.f32.xlu0 %v5919
    %v5983 = vpop.xlane.xlu0 %5982
    %5984 = vmax.xlane.f32.xlu0 %v5924
    %v5985 = vpop.xlane.xlu0 %5984
    %5986 = vmax.xlane.f32.xlu0 %v5929
    %v5987 = vpop.xlane.xlu0 %5986
    %5988 = vmax.xlane.f32.xlu0 %v5934
    %v5989 = vpop.xlane.xlu0 %5988
    %5990 = vmax.xlane.f32.xlu0 %v5939
    %v5991 = vpop.xlane.xlu0 %5990
    %5992 = vmax.xlane.f32.xlu0 %v5944
    %v5993 = vpop.xlane.xlu0 %5992
    %5994 = vmax.xlane.f32.xlu0 %v5949
    %v5995 = vpop.xlane.xlu0 %5994
    %5996 = vmax.xlane.f32.xlu0 %v5954
    %v5997 = vpop.xlane.xlu0 %5996
    %5998 = vmax.xlane.f32.xlu0 %v5959
    %v5999 = vpop.xlane.xlu0 %5998
    %6000 = vmax.xlane.f32.xlu0 %v5964
    %v6001 = vpop.xlane.xlu0 %6000
    %6002 = vmax.xlane.f32.xlu0 %v5969
    %v6003 = vpop.xlane.xlu0 %6002
    %v6004 = vsub.f32 %v5894, %v5973
    %v6005 = vsub.f32 %v5899, %v5975
    %v6006 = vsub.f32 %v5904, %v5977
    %v6007 = vsub.f32 %v5909, %v5979
    %v6008 = vsub.f32 %v5914, %v5981
    %v6009 = vsub.f32 %v5919, %v5983
    %v6010 = vsub.f32 %v5924, %v5985
    %v6011 = vsub.f32 %v5929, %v5987
    %v6012 = vsub.f32 %v5934, %v5989
    %v6013 = vsub.f32 %v5939, %v5991
    %v6014 = vsub.f32 %v5944, %v5993
    %v6015 = vsub.f32 %v5949, %v5995
    %v6016 = vsub.f32 %v5954, %v5997
    %v6017 = vsub.f32 %v5959, %v5999
    %v6018 = vsub.f32 %v5964, %v6001
    %v6019 = vsub.f32 %v5969, %v6003
    %v6020 = vmul.f32 %v6004, 1.442695
    %v6021 = vpow.pop %v6020
    %v6022 = vmul.f32 %v6005, 1.442695
    %v6023 = vpow.pop %v6022
    %v6024 = vmul.f32 %v6006, 1.442695
    %v6025 = vpow.pop %v6024
    %v6026 = vmul.f32 %v6007, 1.442695
    %v6027 = vpow.pop %v6026
    %v6028 = vmul.f32 %v6008, 1.442695
    %v6029 = vpow.pop %v6028
    %v6030 = vmul.f32 %v6009, 1.442695
    %v6031 = vpow.pop %v6030
    %v6032 = vmul.f32 %v6010, 1.442695
    %v6033 = vpow.pop %v6032
    %v6034 = vmul.f32 %v6011, 1.442695
    %v6035 = vpow.pop %v6034
    %v6036 = vmul.f32 %v6012, 1.442695
    %v6037 = vpow.pop %v6036
    %v6038 = vmul.f32 %v6013, 1.442695
    %v6039 = vpow.pop %v6038
    %v6040 = vmul.f32 %v6014, 1.442695
    %v6041 = vpow.pop %v6040
    %v6042 = vmul.f32 %v6015, 1.442695
    %v6043 = vpow.pop %v6042
    %v6044 = vmul.f32 %v6016, 1.442695
    %v6045 = vpow.pop %v6044
    %v6046 = vmul.f32 %v6017, 1.442695
    %v6047 = vpow.pop %v6046
    %v6048 = vmul.f32 %v6018, 1.442695
    %v6049 = vpow.pop %v6048
    %v6050 = vmul.f32 %v6019, 1.442695
    %v6051 = vpow.pop %v6050
    %6052 = vadd.xlane.f32.xlu0 %v6021
    %v6053 = vpop.xlane.xlu0 %6052
    %6054 = vadd.xlane.f32.xlu0 %v6023
    %v6055 = vpop.xlane.xlu0 %6054
    %6056 = vadd.xlane.f32.xlu0 %v6025
    %v6057 = vpop.xlane.xlu0 %6056
    %6058 = vadd.xlane.f32.xlu0 %v6027
    %v6059 = vpop.xlane.xlu0 %6058
    %6060 = vadd.xlane.f32.xlu0 %v6029
    %v6061 = vpop.xlane.xlu0 %6060
    %6062 = vadd.xlane.f32.xlu0 %v6031
    %v6063 = vpop.xlane.xlu0 %6062
    %6064 = vadd.xlane.f32.xlu0 %v6033
    %v6065 = vpop.xlane.xlu0 %6064
    %6066 = vadd.xlane.f32.xlu0 %v6035
    %v6067 = vpop.xlane.xlu0 %6066
    %6068 = vadd.xlane.f32.xlu0 %v6037
    %v6069 = vpop.xlane.xlu0 %6068
    %6070 = vadd.xlane.f32.xlu0 %v6039
    %v6071 = vpop.xlane.xlu0 %6070
    %6072 = vadd.xlane.f32.xlu0 %v6041
    %v6073 = vpop.xlane.xlu0 %6072
    %6074 = vadd.xlane.f32.xlu0 %v6043
    %v6075 = vpop.xlane.xlu0 %6074
    %6076 = vadd.xlane.f32.xlu0 %v6045
    %v6077 = vpop.xlane.xlu0 %6076
    %6078 = vadd.xlane.f32.xlu0 %v6047
    %v6079 = vpop.xlane.xlu0 %6078
    %6080 = vadd.xlane.f32.xlu0 %v6049
    %v6081 = vpop.xlane.xlu0 %6080
    %6082 = vadd.xlane.f32.xlu0 %v6051
    %v6083 = vpop.xlane.xlu0 %6082
    %v6084 = vrcp.pop %v6053
    %v6085 = vmul.f32 %v6021, %v6084
    %v6086 = vrcp.pop %v6055
    %v6087 = vmul.f32 %v6023, %v6086
    %v6088 = vrcp.pop %v6057
    %v6089 = vmul.f32 %v6025, %v6088
    %v6090 = vrcp.pop %v6059
    %v6091 = vmul.f32 %v6027, %v6090
    %v6092 = vrcp.pop %v6061
    %v6093 = vmul.f32 %v6029, %v6092
    %v6094 = vrcp.pop %v6063
    %v6095 = vmul.f32 %v6031, %v6094
    %v6096 = vrcp.pop %v6065
    %v6097 = vmul.f32 %v6033, %v6096
    %v6098 = vrcp.pop %v6067
    %v6099 = vmul.f32 %v6035, %v6098
    %v6100 = vrcp.pop %v6069
    %v6101 = vmul.f32 %v6037, %v6100
    %v6102 = vrcp.pop %v6071
    %v6103 = vmul.f32 %v6039, %v6102
    %v6104 = vrcp.pop %v6073
    %v6105 = vmul.f32 %v6041, %v6104
    %v6106 = vrcp.pop %v6075
    %v6107 = vmul.f32 %v6043, %v6106
    %v6108 = vrcp.pop %v6077
    %v6109 = vmul.f32 %v6045, %v6108
    %v6110 = vrcp.pop %v6079
    %v6111 = vmul.f32 %v6047, %v6110
    %v6112 = vrcp.pop %v6081
    %v6113 = vmul.f32 %v6049, %v6112
    %v6114 = vrcp.pop %v6083
    %v6115 = vmul.f32 %v6051, %v6114
    %6116 = vmatprep.subr.mxu0 0.0
    %6117 = vmatpush1.msra.mxu0 %v5523
    %6118 = vmatprep.subr.mxu0 0.0
    %6119 = vmatpush1.msra.mxu0 %v5591
    %6120 = vmatprep.subr.mxu0 0.0
    %6121 = vmatpush1.msra.mxu0 %v5659
    %6122 = vmatprep.subr.mxu0 0.0
    %6123 = vmatpush1.msra.mxu0 %v5727
    %6124 = vmatprep.subr.mxu0 0.0
    %6125 = vmatpush1.msra.mxu0 %v5524
    %6126 = vmatprep.subr.mxu0 0.0
    %6127 = vmatpush1.msra.mxu0 %v5592
    %6128 = vmatprep.subr.mxu0 0.0
    %6129 = vmatpush1.msra.mxu0 %v5660
    %6130 = vmatprep.subr.mxu0 0.0
    %6131 = vmatpush1.msra.mxu0 %v5728
    %6132 = vmatprep.subr.mxu0 0.0
    %6133 = vmatpush1.msra.mxu0 %v5525
    %6134 = vmatprep.subr.mxu0 0.0
    %6135 = vmatpush1.msra.mxu0 %v5593
    %6136 = vmatprep.subr.mxu0 0.0
    %6137 = vmatpush1.msra.mxu0 %v5661
    %6138 = vmatprep.subr.mxu0 0.0
    %6139 = vmatpush1.msra.mxu0 %v5729
    %6140 = vmatprep.subr.mxu0 0.0
    %6141 = vmatpush1.msra.mxu0 %v5526
    %6142 = vmatprep.subr.mxu0 0.0
    %6143 = vmatpush1.msra.mxu0 %v5594
    %6144 = vmatprep.subr.mxu0 0.0
    %6145 = vmatpush1.msra.mxu0 %v5662
    %6146 = vmatprep.subr.mxu0 0.0
    %6147 = vmatpush1.msra.mxu0 %v5730
    %6148 = vmatprep.subr.mxu0 0.0
    %6149 = vmatpush1.msra.mxu0 0.0
    %6150 = vmatprep.subr.mxu0 0.0
    %6151 = vmatpush1.msra.mxu0 0.0
    %6152 = vmatprep.subr.mxu0 0.0
    %6153 = vmatpush1.msra.mxu0 0.0
    %6154 = vmatprep.subr.mxu0 0.0
    %6155 = vmatpush1.msra.mxu0 0.0
    %6156 = vmatprep.subr.mxu0 0.0
    %6157 = vmatpush1.msra.mxu0 0.0
    %6158 = vmatprep.subr.mxu0 0.0
    %6159 = vmatpush1.msra.mxu0 0.0
    %6160 = vmatprep.subr.mxu0 0.0
    %6161 = vmatpush1.msra.mxu0 0.0
    %6162 = vmatprep.subr.mxu0 0.0
    %6163 = vmatpush1.msra.mxu0 0.0
    %6164 = vmatprep.subr.mxu0 0.0
    %6165 = vmatpush1.msra.mxu0 0.0
    %6166 = vmatprep.subr.mxu0 0.0
    %6167 = vmatpush1.msra.mxu0 0.0
    %6168 = vmatprep.subr.mxu0 0.0
    %6169 = vmatpush1.msra.mxu0 0.0
    %6170 = vmatprep.subr.mxu0 0.0
    %6171 = vmatpush1.msra.mxu0 0.0
    %6172 = vmatprep.subr.mxu0 0.0
    %6173 = vmatpush1.msra.mxu0 0.0
    %6174 = vmatprep.subr.mxu0 0.0
    %6175 = vmatpush1.msra.mxu0 0.0
    %6176 = vmatprep.subr.mxu0 0.0
    %6177 = vmatpush1.msra.mxu0 0.0
    %6178 = vmatprep.subr.mxu0 0.0
    %6179 = vmatpush1.msra.mxu0 0.0
    %6180 = vmatprep.mubr.f32.mxu0 0.0
    %6181 = vmatmul.mubr.f32.gmra.mrb[0].mxu0 %v6085
    %v6182 = vpop.f32.mrb[0].mxu0
    %v6183 = vadd.f32 0.0, %v6182
    %v6184 = vpop.f32.mrb[0].mxu0
    %6185 = vmatprep.mubr.f32.mxu0 0.0
    %6186 = vmatmul.mubr.f32.gmra.mrb[0].mxu0 %v6087
    %v6187 = vpop.f32.mrb[0].mxu0
    %v6188 = vadd.f32 0.0, %v6187
    %v6189 = vpop.f32.mrb[0].mxu0
    %6190 = vmatprep.mubr.f32.mxu0 0.0
    %6191 = vmatmul.mubr.f32.gmra.mrb[0].mxu0 %v6089
    %v6192 = vpop.f32.mrb[0].mxu0
    %v6193 = vadd.f32 0.0, %v6192
    %v6194 = vpop.f32.mrb[0].mxu0
    %6195 = vmatprep.mubr.f32.mxu0 0.0
    %6196 = vmatmul.mubr.f32.gmra.mrb[0].mxu0 %v6091
    %v6197 = vpop.f32.mrb[0].mxu0
    %v6198 = vadd.f32 0.0, %v6197
    %v6199 = vpop.f32.mrb[0].mxu0
    %6200 = vmatprep.mubr.f32.mxu0 0.0
    %6201 = vmatmul.mubr.f32.gmra.mrb[0].mxu0 %v6093
    %v6202 = vpop.f32.mrb[0].mxu0
    %v6203 = vadd.f32 0.0, %v6202
    %v6204 = vpop.f32.mrb[0].mxu0
    %6205 = vmatprep.mubr.f32.mxu0 0.0
    %6206 = vmatmul.mubr.f32.gmra.mrb[0].mxu0 %v6095
    %v6207 = vpop.f32.mrb[0].mxu0
    %v6208 = vadd.f32 0.0, %v6207
    %v6209 = vpop.f32.mrb[0].mxu0
    %6210 = vmatprep.mubr.f32.mxu0 0.0
    %6211 = vmatmul.mubr.f32.gmra.mrb[0].mxu0 %v6097
    %v6212 = vpop.f32.mrb[0].mxu0
    %v6213 = vadd.f32 0.0, %v6212
    %v6214 = vpop.f32.mrb[0].mxu0
    %6215 = vmatprep.mubr.f32.mxu0 0.0
    %6216 = vmatmul.mubr.f32.gmra.mrb[0].mxu0 %v6099
    %v6217 = vpop.f32.mrb[0].mxu0
    %v6218 = vadd.f32 0.0, %v6217
    %v6219 = vpop.f32.mrb[0].mxu0
    %6220 = vmatprep.mubr.f32.mxu0 0.0
    %6221 = vmatmul.mubr.f32.gmra.mrb[0].mxu0 %v6101
    %v6222 = vpop.f32.mrb[0].mxu0
    %v6223 = vadd.f32 0.0, %v6222
    %v6224 = vpop.f32.mrb[0].mxu0
    %6225 = vmatprep.mubr.f32.mxu0 0.0
    %6226 = vmatmul.mubr.f32.gmra.mrb[0].mxu0 %v6103
    %v6227 = vpop.f32.mrb[0].mxu0
    %v6228 = vadd.f32 0.0, %v6227
    %v6229 = vpop.f32.mrb[0].mxu0
    %6230 = vmatprep.mubr.f32.mxu0 0.0
    %6231 = vmatmul.mubr.f32.gmra.mrb[0].mxu0 %v6105
    %v6232 = vpop.f32.mrb[0].mxu0
    %v6233 = vadd.f32 0.0, %v6232
    %v6234 = vpop.f32.mrb[0].mxu0
    %6235 = vmatprep.mubr.f32.mxu0 0.0
    %6236 = vmatmul.mubr.f32.gmra.mrb[0].mxu0 %v6107
    %v6237 = vpop.f32.mrb[0].mxu0
    %v6238 = vadd.f32 0.0, %v6237
    %v6239 = vpop.f32.mrb[0].mxu0
    %6240 = vmatprep.mubr.f32.mxu0 0.0
    %6241 = vmatmul.mubr.f32.gmra.mrb[0].mxu0 %v6109
    %v6242 = vpop.f32.mrb[0].mxu0
    %v6243 = vadd.f32 0.0, %v6242
    %v6244 = vpop.f32.mrb[0].mxu0
    %6245 = vmatprep.mubr.f32.mxu0 0.0
    %6246 = vmatmul.mubr.f32.gmra.mrb[0].mxu0 %v6111
    %v6247 = vpop.f32.mrb[0].mxu0
    %v6248 = vadd.f32 0.0, %v6247
    %v6249 = vpop.f32.mrb[0].mxu0
    %6250 = vmatprep.mubr.f32.mxu0 0.0
    %6251 = vmatmul.mubr.f32.gmra.mrb[0].mxu0 %v6113
    %v6252 = vpop.f32.mrb[0].mxu0
    %v6253 = vadd.f32 0.0, %v6252
    %v6254 = vpop.f32.mrb[0].mxu0
    %6255 = vmatprep.mubr.f32.mxu0 0.0
    %6256 = vmatmul.mubr.f32.gmra.mrb[0].mxu0 %v6115
    %v6257 = vpop.f32.mrb[0].mxu0
    %v6258 = vadd.f32 0.0, %v6257
    %v6259 = vpop.f32.mrb[0].mxu0
    %6260 = vdwg.mxu0
    %v6261 = vcombine.low %v6183, %v6223
    %v6262 = vcombine.high %v6183, %v6223
    %v6264 = vunpack.c.l.s4 1983009808
    %v6265 = vunpack.c.0.s8 %v6264
    %v6266 = vlaneseq
    %v6267 = vshrl.u32 %v6266, 7
    %v6268 = vsub.s32 %v6265, %v6267
    %v6269 = vrot.slane %v6261, %v6268
    %v6271 = vunpack.c.l.s4 1983009808
    %v6272 = vunpack.c.0.s8 %v6271
    %v6273 = vlaneseq
    %v6274 = vshrl.u32 %v6273, 7
    %v6275 = vsub.s32 %v6272, %v6274
    %v6276 = vrot.slane %v6262, %v6275
    %v6277 = vcombine.low %v6203, %v6243
    %v6278 = vcombine.high %v6203, %v6243
    %v6280 = vunpack.c.l.s4 1983009808
    %v6281 = vunpack.c.0.s8 %v6280
    %v6282 = vlaneseq
    %v6283 = vshrl.u32 %v6282, 7
    %v6284 = vsub.s32 %v6281, %v6283
    %v6285 = vrot.slane %v6277, %v6284
    %v6287 = vunpack.c.l.s4 1983009808
    %v6288 = vunpack.c.0.s8 %v6287
    %v6289 = vlaneseq
    %v6290 = vshrl.u32 %v6289, 7
    %v6291 = vsub.s32 %v6288, %v6290
    %v6292 = vrot.slane %v6278, %v6291
    %v6293 = vcombine.low %v6269, %v6285
    %v6294 = vcombine.high %v6269, %v6285
    %v6296 = vunpack.c.l.s4 1934713408
    %v6297 = vunpack.c.0.s8 %v6296
    %v6298 = vlaneseq
    %v6299 = vshrl.u32 %v6298, 7
    %v6300 = vsub.s32 %v6297, %v6299
    %v6301 = vrot.slane %v6293, %v6300
    %v6303 = vunpack.c.l.s4 1934713408
    %v6304 = vunpack.c.0.s8 %v6303
    %v6305 = vlaneseq
    %v6306 = vshrl.u32 %v6305, 7
    %v6307 = vsub.s32 %v6304, %v6306
    %v6308 = vrot.slane %v6294, %v6307
    %v6309 = vcombine.low %v6276, %v6292
    %v6310 = vcombine.high %v6276, %v6292
    %v6312 = vunpack.c.l.s4 1934713408
    %v6313 = vunpack.c.0.s8 %v6312
    %v6314 = vlaneseq
    %v6315 = vshrl.u32 %v6314, 7
    %v6316 = vsub.s32 %v6313, %v6315
    %v6317 = vrot.slane %v6309, %v6316
    %v6319 = vunpack.c.l.s4 1934713408
    %v6320 = vunpack.c.0.s8 %v6319
    %v6321 = vlaneseq
    %v6322 = vshrl.u32 %v6321, 7
    %v6323 = vsub.s32 %v6320, %v6322
    %v6324 = vrot.slane %v6310, %v6323
    %v6325 = vcombine.high %v6301, 0.0
    %v6326 = vcombine.high %v6308, 0.0
    %v6327 = vcombine.high %v6317, 0.0
    %v6328 = vcombine.high %v6324, 0.0
    %v6329 = vcombine.low %v6188, %v6228
    %v6330 = vcombine.high %v6188, %v6228
    %v6332 = vunpack.c.l.s4 1983009808
    %v6333 = vunpack.c.0.s8 %v6332
    %v6334 = vlaneseq
    %v6335 = vshrl.u32 %v6334, 7
    %v6336 = vsub.s32 %v6333, %v6335
    %v6337 = vrot.slane %v6329, %v6336
    %v6339 = vunpack.c.l.s4 1983009808
    %v6340 = vunpack.c.0.s8 %v6339
    %v6341 = vlaneseq
    %v6342 = vshrl.u32 %v6341, 7
    %v6343 = vsub.s32 %v6340, %v6342
    %v6344 = vrot.slane %v6330, %v6343
    %v6345 = vcombine.low %v6208, %v6248
    %v6346 = vcombine.high %v6208, %v6248
    %v6348 = vunpack.c.l.s4 1983009808
    %v6349 = vunpack.c.0.s8 %v6348
    %v6350 = vlaneseq
    %v6351 = vshrl.u32 %v6350, 7
    %v6352 = vsub.s32 %v6349, %v6351
    %v6353 = vrot.slane %v6345, %v6352
    %v6355 = vunpack.c.l.s4 1983009808
    %v6356 = vunpack.c.0.s8 %v6355
    %v6357 = vlaneseq
    %v6358 = vshrl.u32 %v6357, 7
    %v6359 = vsub.s32 %v6356, %v6358
    %v6360 = vrot.slane %v6346, %v6359
    %v6361 = vcombine.low %v6337, %v6353
    %v6362 = vcombine.high %v6337, %v6353
    %v6364 = vunpack.c.l.s4 1934713408
    %v6365 = vunpack.c.0.s8 %v6364
    %v6366 = vlaneseq
    %v6367 = vshrl.u32 %v6366, 7
    %v6368 = vsub.s32 %v6365, %v6367
    %v6369 = vrot.slane %v6361, %v6368
    %v6371 = vunpack.c.l.s4 1934713408
    %v6372 = vunpack.c.0.s8 %v6371
    %v6373 = vlaneseq
    %v6374 = vshrl.u32 %v6373, 7
    %v6375 = vsub.s32 %v6372, %v6374
    %v6376 = vrot.slane %v6362, %v6375
    %v6377 = vcombine.low %v6344, %v6360
    %v6378 = vcombine.high %v6344, %v6360
    %v6380 = vunpack.c.l.s4 1934713408
    %v6381 = vunpack.c.0.s8 %v6380
    %v6382 = vlaneseq
    %v6383 = vshrl.u32 %v6382, 7
    %v6384 = vsub.s32 %v6381, %v6383
    %v6385 = vrot.slane %v6377, %v6384
    %v6387 = vunpack.c.l.s4 1934713408
    %v6388 = vunpack.c.0.s8 %v6387
    %v6389 = vlaneseq
    %v6390 = vshrl.u32 %v6389, 7
    %v6391 = vsub.s32 %v6388, %v6390
    %v6392 = vrot.slane %v6378, %v6391
    %v6393 = vcombine.high %v6369, 0.0
    %v6394 = vcombine.high %v6376, 0.0
    %v6395 = vcombine.high %v6385, 0.0
    %v6396 = vcombine.high %v6392, 0.0
    %v6397 = vcombine.low %v6193, %v6233
    %v6398 = vcombine.high %v6193, %v6233
    %v6400 = vunpack.c.l.s4 1983009808
    %v6401 = vunpack.c.0.s8 %v6400
    %v6402 = vlaneseq
    %v6403 = vshrl.u32 %v6402, 7
    %v6404 = vsub.s32 %v6401, %v6403
    %v6405 = vrot.slane %v6397, %v6404
    %v6407 = vunpack.c.l.s4 1983009808
    %v6408 = vunpack.c.0.s8 %v6407
    %v6409 = vlaneseq
    %v6410 = vshrl.u32 %v6409, 7
    %v6411 = vsub.s32 %v6408, %v6410
    %v6412 = vrot.slane %v6398, %v6411
    %v6413 = vcombine.low %v6213, %v6253
    %v6414 = vcombine.high %v6213, %v6253
    %v6416 = vunpack.c.l.s4 1983009808
    %v6417 = vunpack.c.0.s8 %v6416
    %v6418 = vlaneseq
    %v6419 = vshrl.u32 %v6418, 7
    %v6420 = vsub.s32 %v6417, %v6419
    %v6421 = vrot.slane %v6413, %v6420
    %v6423 = vunpack.c.l.s4 1983009808
    %v6424 = vunpack.c.0.s8 %v6423
    %v6425 = vlaneseq
    %v6426 = vshrl.u32 %v6425, 7
    %v6427 = vsub.s32 %v6424, %v6426
    %v6428 = vrot.slane %v6414, %v6427
    %v6429 = vcombine.low %v6405, %v6421
    %v6430 = vcombine.high %v6405, %v6421
    %v6432 = vunpack.c.l.s4 1934713408
    %v6433 = vunpack.c.0.s8 %v6432
    %v6434 = vlaneseq
    %v6435 = vshrl.u32 %v6434, 7
    %v6436 = vsub.s32 %v6433, %v6435
    %v6437 = vrot.slane %v6429, %v6436
    %v6439 = vunpack.c.l.s4 1934713408
    %v6440 = vunpack.c.0.s8 %v6439
    %v6441 = vlaneseq
    %v6442 = vshrl.u32 %v6441, 7
    %v6443 = vsub.s32 %v6440, %v6442
    %v6444 = vrot.slane %v6430, %v6443
    %v6445 = vcombine.low %v6412, %v6428
    %v6446 = vcombine.high %v6412, %v6428
    %v6448 = vunpack.c.l.s4 1934713408
    %v6449 = vunpack.c.0.s8 %v6448
    %v6450 = vlaneseq
    %v6451 = vshrl.u32 %v6450, 7
    %v6452 = vsub.s32 %v6449, %v6451
    %v6453 = vrot.slane %v6445, %v6452
    %v6455 = vunpack.c.l.s4 1934713408
    %v6456 = vunpack.c.0.s8 %v6455
    %v6457 = vlaneseq
    %v6458 = vshrl.u32 %v6457, 7
    %v6459 = vsub.s32 %v6456, %v6458
    %v6460 = vrot.slane %v6446, %v6459
    %v6461 = vcombine.high %v6437, 0.0
    %v6462 = vcombine.high %v6444, 0.0
    %v6463 = vcombine.high %v6453, 0.0
    %v6464 = vcombine.high %v6460, 0.0
    %v6465 = vcombine.low %v6198, %v6238
    %v6466 = vcombine.high %v6198, %v6238
    %v6468 = vunpack.c.l.s4 1983009808
    %v6469 = vunpack.c.0.s8 %v6468
    %v6470 = vlaneseq
    %v6471 = vshrl.u32 %v6470, 7
    %v6472 = vsub.s32 %v6469, %v6471
    %v6473 = vrot.slane %v6465, %v6472
    %v6475 = vunpack.c.l.s4 1983009808
    %v6476 = vunpack.c.0.s8 %v6475
    %v6477 = vlaneseq
    %v6478 = vshrl.u32 %v6477, 7
    %v6479 = vsub.s32 %v6476, %v6478
    %v6480 = vrot.slane %v6466, %v6479
    %v6481 = vcombine.low %v6218, %v6258
    %v6482 = vcombine.high %v6218, %v6258
    %v6484 = vunpack.c.l.s4 1983009808
    %v6485 = vunpack.c.0.s8 %v6484
    %v6486 = vlaneseq
    %v6487 = vshrl.u32 %v6486, 7
    %v6488 = vsub.s32 %v6485, %v6487
    %v6489 = vrot.slane %v6481, %v6488
    %v6491 = vunpack.c.l.s4 1983009808
    %v6492 = vunpack.c.0.s8 %v6491
    %v6493 = vlaneseq
    %v6494 = vshrl.u32 %v6493, 7
    %v6495 = vsub.s32 %v6492, %v6494
    %v6496 = vrot.slane %v6482, %v6495
    %v6497 = vcombine.low %v6473, %v6489
    %v6498 = vcombine.high %v6473, %v6489
    %v6500 = vunpack.c.l.s4 1934713408
    %v6501 = vunpack.c.0.s8 %v6500
    %v6502 = vlaneseq
    %v6503 = vshrl.u32 %v6502, 7
    %v6504 = vsub.s32 %v6501, %v6503
    %v6505 = vrot.slane %v6497, %v6504
    %v6507 = vunpack.c.l.s4 1934713408
    %v6508 = vunpack.c.0.s8 %v6507
    %v6509 = vlaneseq
    %v6510 = vshrl.u32 %v6509, 7
    %v6511 = vsub.s32 %v6508, %v6510
    %v6512 = vrot.slane %v6498, %v6511
    %v6513 = vcombine.low %v6480, %v6496
    %v6514 = vcombine.high %v6480, %v6496
    %v6516 = vunpack.c.l.s4 1934713408
    %v6517 = vunpack.c.0.s8 %v6516
    %v6518 = vlaneseq
    %v6519 = vshrl.u32 %v6518, 7
    %v6520 = vsub.s32 %v6517, %v6519
    %v6521 = vrot.slane %v6513, %v6520
    %v6523 = vunpack.c.l.s4 1934713408
    %v6524 = vunpack.c.0.s8 %v6523
    %v6525 = vlaneseq
    %v6526 = vshrl.u32 %v6525, 7
    %v6527 = vsub.s32 %v6524, %v6526
    %v6528 = vrot.slane %v6514, %v6527
    %v6529 = vcombine.high %v6505, 0.0
    %v6530 = vcombine.high %v6512, 0.0
    %v6531 = vcombine.high %v6521, 0.0
    %v6532 = vcombine.high %v6528, 0.0
    %v6533 = vcombine.low %v6301, %v6308
    %v6535 = vunpack.c.l.s4 1983009808
    %v6536 = vunpack.c.0.s8 %v6535
    %v6537 = vlaneseq
    %v6538 = vshrl.u32 %v6537, 7
    %v6539 = vsub.s32 %v6536, %v6538
    %v6540 = vrot.slane %v6533, %v6539
    %v6541 = vcombine.low %v6325, %v6326
    %v6543 = vunpack.c.l.s4 1983009808
    %v6544 = vunpack.c.0.s8 %v6543
    %v6545 = vlaneseq
    %v6546 = vshrl.u32 %v6545, 7
    %v6547 = vsub.s32 %v6544, %v6546
    %v6548 = vrot.slane %v6541, %v6547
    %v6549 = vcombine.low %v6317, %v6324
    %v6551 = vunpack.c.l.s4 1983009808
    %v6552 = vunpack.c.0.s8 %v6551
    %v6553 = vlaneseq
    %v6554 = vshrl.u32 %v6553, 7
    %v6555 = vsub.s32 %v6552, %v6554
    %v6556 = vrot.slane %v6549, %v6555
    %v6557 = vcombine.low %v6327, %v6328
    %v6559 = vunpack.c.l.s4 1983009808
    %v6560 = vunpack.c.0.s8 %v6559
    %v6561 = vlaneseq
    %v6562 = vshrl.u32 %v6561, 7
    %v6563 = vsub.s32 %v6560, %v6562
    %v6564 = vrot.slane %v6557, %v6563
    %v6565 = vcombine.low %v6540, %v6548
    %v6566 = vcombine.high %v6540, %v6548
    %v6568 = vunpack.c.l.s4 1934713408
    %v6569 = vunpack.c.0.s8 %v6568
    %v6570 = vlaneseq
    %v6571 = vshrl.u32 %v6570, 7
    %v6572 = vsub.s32 %v6569, %v6571
    %v6573 = vrot.slane %v6565, %v6572
    %v6575 = vunpack.c.l.s4 1934713408
    %v6576 = vunpack.c.0.s8 %v6575
    %v6577 = vlaneseq
    %v6578 = vshrl.u32 %v6577, 7
    %v6579 = vsub.s32 %v6576, %v6578
    %v6580 = vrot.slane %v6566, %v6579
    %v6581 = vcombine.low %v6556, %v6564
    %v6582 = vcombine.high %v6556, %v6564
    %v6584 = vunpack.c.l.s4 1934713408
    %v6585 = vunpack.c.0.s8 %v6584
    %v6586 = vlaneseq
    %v6587 = vshrl.u32 %v6586, 7
    %v6588 = vsub.s32 %v6585, %v6587
    %v6589 = vrot.slane %v6581, %v6588
    %v6591 = vunpack.c.l.s4 1934713408
    %v6592 = vunpack.c.0.s8 %v6591
    %v6593 = vlaneseq
    %v6594 = vshrl.u32 %v6593, 7
    %v6595 = vsub.s32 %v6592, %v6594
    %v6596 = vrot.slane %v6582, %v6595
    %v6597 = vcombine.low %v6573, %v6589
    %v6598 = vcombine.high %v6573, %v6589
    %v6599 = vcombine.low %v6580, %v6596
    %v6600 = vcombine.high %v6580, %v6596
    %v6601 = vcombine.low %v6369, %v6376
    %v6603 = vunpack.c.l.s4 1983009808
    %v6604 = vunpack.c.0.s8 %v6603
    %v6605 = vlaneseq
    %v6606 = vshrl.u32 %v6605, 7
    %v6607 = vsub.s32 %v6604, %v6606
    %v6608 = vrot.slane %v6601, %v6607
    %v6609 = vcombine.low %v6393, %v6394
    %v6611 = vunpack.c.l.s4 1983009808
    %v6612 = vunpack.c.0.s8 %v6611
    %v6613 = vlaneseq
    %v6614 = vshrl.u32 %v6613, 7
    %v6615 = vsub.s32 %v6612, %v6614
    %v6616 = vrot.slane %v6609, %v6615
    %v6617 = vcombine.low %v6385, %v6392
    %v6619 = vunpack.c.l.s4 1983009808
    %v6620 = vunpack.c.0.s8 %v6619
    %v6621 = vlaneseq
    %v6622 = vshrl.u32 %v6621, 7
    %v6623 = vsub.s32 %v6620, %v6622
    %v6624 = vrot.slane %v6617, %v6623
    %v6625 = vcombine.low %v6395, %v6396
    %v6627 = vunpack.c.l.s4 1983009808
    %v6628 = vunpack.c.0.s8 %v6627
    %v6629 = vlaneseq
    %v6630 = vshrl.u32 %v6629, 7
    %v6631 = vsub.s32 %v6628, %v6630
    %v6632 = vrot.slane %v6625, %v6631
    %v6633 = vcombine.low %v6608, %v6616
    %v6634 = vcombine.high %v6608, %v6616
    %v6636 = vunpack.c.l.s4 1934713408
    %v6637 = vunpack.c.0.s8 %v6636
    %v6638 = vlaneseq
    %v6639 = vshrl.u32 %v6638, 7
    %v6640 = vsub.s32 %v6637, %v6639
    %v6641 = vrot.slane %v6633, %v6640
    %v6643 = vunpack.c.l.s4 1934713408
    %v6644 = vunpack.c.0.s8 %v6643
    %v6645 = vlaneseq
    %v6646 = vshrl.u32 %v6645, 7
    %v6647 = vsub.s32 %v6644, %v6646
    %v6648 = vrot.slane %v6634, %v6647
    %v6649 = vcombine.low %v6624, %v6632
    %v6650 = vcombine.high %v6624, %v6632
    %v6652 = vunpack.c.l.s4 1934713408
    %v6653 = vunpack.c.0.s8 %v6652
    %v6654 = vlaneseq
    %v6655 = vshrl.u32 %v6654, 7
    %v6656 = vsub.s32 %v6653, %v6655
    %v6657 = vrot.slane %v6649, %v6656
    %v6659 = vunpack.c.l.s4 1934713408
    %v6660 = vunpack.c.0.s8 %v6659
    %v6661 = vlaneseq
    %v6662 = vshrl.u32 %v6661, 7
    %v6663 = vsub.s32 %v6660, %v6662
    %v6664 = vrot.slane %v6650, %v6663
    %v6665 = vcombine.low %v6641, %v6657
    %v6666 = vcombine.high %v6641, %v6657
    %v6667 = vcombine.low %v6648, %v6664
    %v6668 = vcombine.high %v6648, %v6664
    %v6669 = vcombine.low %v6437, %v6444
    %v6671 = vunpack.c.l.s4 1983009808
    %v6672 = vunpack.c.0.s8 %v6671
    %v6673 = vlaneseq
    %v6674 = vshrl.u32 %v6673, 7
    %v6675 = vsub.s32 %v6672, %v6674
    %v6676 = vrot.slane %v6669, %v6675
    %v6677 = vcombine.low %v6461, %v6462
    %v6679 = vunpack.c.l.s4 1983009808
    %v6680 = vunpack.c.0.s8 %v6679
    %v6681 = vlaneseq
    %v6682 = vshrl.u32 %v6681, 7
    %v6683 = vsub.s32 %v6680, %v6682
    %v6684 = vrot.slane %v6677, %v6683
    %v6685 = vcombine.low %v6453, %v6460
    %v6687 = vunpack.c.l.s4 1983009808
    %v6688 = vunpack.c.0.s8 %v6687
    %v6689 = vlaneseq
    %v6690 = vshrl.u32 %v6689, 7
    %v6691 = vsub.s32 %v6688, %v6690
    %v6692 = vrot.slane %v6685, %v6691
    %v6693 = vcombine.low %v6463, %v6464
    %v6695 = vunpack.c.l.s4 1983009808
    %v6696 = vunpack.c.0.s8 %v6695
    %v6697 = vlaneseq
    %v6698 = vshrl.u32 %v6697, 7
    %v6699 = vsub.s32 %v6696, %v6698
    %v6700 = vrot.slane %v6693, %v6699
    %v6701 = vcombine.low %v6676, %v6684
    %v6702 = vcombine.high %v6676, %v6684
    %v6704 = vunpack.c.l.s4 1934713408
    %v6705 = vunpack.c.0.s8 %v6704
    %v6706 = vlaneseq
    %v6707 = vshrl.u32 %v6706, 7
    %v6708 = vsub.s32 %v6705, %v6707
    %v6709 = vrot.slane %v6701, %v6708
    %v6711 = vunpack.c.l.s4 1934713408
    %v6712 = vunpack.c.0.s8 %v6711
    %v6713 = vlaneseq
    %v6714 = vshrl.u32 %v6713, 7
    %v6715 = vsub.s32 %v6712, %v6714
    %v6716 = vrot.slane %v6702, %v6715
    %v6717 = vcombine.low %v6692, %v6700
    %v6718 = vcombine.high %v6692, %v6700
    %v6720 = vunpack.c.l.s4 1934713408
    %v6721 = vunpack.c.0.s8 %v6720
    %v6722 = vlaneseq
    %v6723 = vshrl.u32 %v6722, 7
    %v6724 = vsub.s32 %v6721, %v6723
    %v6725 = vrot.slane %v6717, %v6724
    %v6727 = vunpack.c.l.s4 1934713408
    %v6728 = vunpack.c.0.s8 %v6727
    %v6729 = vlaneseq
    %v6730 = vshrl.u32 %v6729, 7
    %v6731 = vsub.s32 %v6728, %v6730
    %v6732 = vrot.slane %v6718, %v6731
    %v6733 = vcombine.low %v6709, %v6725
    %v6734 = vcombine.high %v6709, %v6725
    %v6735 = vcombine.low %v6716, %v6732
    %v6736 = vcombine.high %v6716, %v6732
    %v6737 = vcombine.low %v6505, %v6512
    %v6739 = vunpack.c.l.s4 1983009808
    %v6740 = vunpack.c.0.s8 %v6739
    %v6741 = vlaneseq
    %v6742 = vshrl.u32 %v6741, 7
    %v6743 = vsub.s32 %v6740, %v6742
    %v6744 = vrot.slane %v6737, %v6743
    %v6745 = vcombine.low %v6529, %v6530
    %v6747 = vunpack.c.l.s4 1983009808
    %v6748 = vunpack.c.0.s8 %v6747
    %v6749 = vlaneseq
    %v6750 = vshrl.u32 %v6749, 7
    %v6751 = vsub.s32 %v6748, %v6750
    %v6752 = vrot.slane %v6745, %v6751
    %v6753 = vcombine.low %v6521, %v6528
    %v6755 = vunpack.c.l.s4 1983009808
    %v6756 = vunpack.c.0.s8 %v6755
    %v6757 = vlaneseq
    %v6758 = vshrl.u32 %v6757, 7
    %v6759 = vsub.s32 %v6756, %v6758
    %v6760 = vrot.slane %v6753, %v6759
    %v6761 = vcombine.low %v6531, %v6532
    %v6763 = vunpack.c.l.s4 1983009808
    %v6764 = vunpack.c.0.s8 %v6763
    %v6765 = vlaneseq
    %v6766 = vshrl.u32 %v6765, 7
    %v6767 = vsub.s32 %v6764, %v6766
    %v6768 = vrot.slane %v6761, %v6767
    %v6769 = vcombine.low %v6744, %v6752
    %v6770 = vcombine.high %v6744, %v6752
    %v6772 = vunpack.c.l.s4 1934713408
    %v6773 = vunpack.c.0.s8 %v6772
    %v6774 = vlaneseq
    %v6775 = vshrl.u32 %v6774, 7
    %v6776 = vsub.s32 %v6773, %v6775
    %v6777 = vrot.slane %v6769, %v6776
    %v6779 = vunpack.c.l.s4 1934713408
    %v6780 = vunpack.c.0.s8 %v6779
    %v6781 = vlaneseq
    %v6782 = vshrl.u32 %v6781, 7
    %v6783 = vsub.s32 %v6780, %v6782
    %v6784 = vrot.slane %v6770, %v6783
    %v6785 = vcombine.low %v6760, %v6768
    %v6786 = vcombine.high %v6760, %v6768
    %v6788 = vunpack.c.l.s4 1934713408
    %v6789 = vunpack.c.0.s8 %v6788
    %v6790 = vlaneseq
    %v6791 = vshrl.u32 %v6790, 7
    %v6792 = vsub.s32 %v6789, %v6791
    %v6793 = vrot.slane %v6785, %v6792
    %v6795 = vunpack.c.l.s4 1934713408
    %v6796 = vunpack.c.0.s8 %v6795
    %v6797 = vlaneseq
    %v6798 = vshrl.u32 %v6797, 7
    %v6799 = vsub.s32 %v6796, %v6798
    %v6800 = vrot.slane %v6786, %v6799
    %v6801 = vcombine.low %v6777, %v6793
    %v6802 = vcombine.high %v6777, %v6793
    %v6803 = vcombine.low %v6784, %v6800
    %v6804 = vcombine.high %v6784, %v6800
    %6809 = vrot.lane.b32.xlu0 %v6598, 32
    %v6810 = vpop.permute.xlu0 %6809
    %6811 = vrot.lane.b32.xlu0 %v6666, 32
    %v6812 = vpop.permute.xlu0 %6811
    %6813 = vrot.lane.b32.xlu0 %v6734, 32
    %v6814 = vpop.permute.xlu0 %6813
    %6815 = vrot.lane.b32.xlu0 %v6802, 32
    %v6816 = vpop.permute.xlu0 %6815
    %6825 = vrot.lane.b32.xlu0 %v6599, 64
    %v6826 = vpop.permute.xlu0 %6825
    %6827 = vrot.lane.b32.xlu0 %v6667, 64
    %v6828 = vpop.permute.xlu0 %6827
    %6829 = vrot.lane.b32.xlu0 %v6735, 64
    %v6830 = vpop.permute.xlu0 %6829
    %6831 = vrot.lane.b32.xlu0 %v6803, 64
    %v6832 = vpop.permute.xlu0 %6831
    %6841 = vrot.lane.b32.xlu0 %v6600, 96
    %v6842 = vpop.permute.xlu0 %6841
    %6843 = vrot.lane.b32.xlu0 %v6668, 96
    %v6844 = vpop.permute.xlu0 %6843
    %6845 = vrot.lane.b32.xlu0 %v6736, 96
    %v6846 = vpop.permute.xlu0 %6845
    %6847 = vrot.lane.b32.xlu0 %v6804, 96
    %v6848 = vpop.permute.xlu0 %6847
    %v6853 = vsel %vm2087, %v6597, %v6810
    %v6854 = vsel %vm2087, %v6665, %v6812
    %v6855 = vsel %vm2087, %v6733, %v6814
    %v6856 = vsel %vm2087, %v6801, %v6816
    %v6857 = vsel %vm3214, %v6853, %v6826
    %v6858 = vsel %vm3214, %v6854, %v6828
    %v6859 = vsel %vm3214, %v6855, %v6830
    %v6860 = vsel %vm3214, %v6856, %v6832
    %v6861 = vsel %vm3219, %v6857, %v6842
    %v6862 = vsel %vm3219, %v6858, %v6844
    %v6863 = vsel %vm3219, %v6859, %v6846
    %v6864 = vsel %vm3219, %v6860, %v6848
    %s6865 = scalar_lea.vmem [#allocation2], 128
    %v6866 = vld [vmem:[%s6865] sm:$0xff]
    %v6867 = vld [vmem:[%s6865 + $0x8] sm:$0xff]
    %v6868 = vld [vmem:[%s6865 + $0x10] sm:$0xff]
    %v6869 = vld [vmem:[%s6865 + $0x18] sm:$0xff]
    %v6870 = vld [vmem:[%s6865 + $0x20] sm:$0xff]
    %v6871 = vld [vmem:[%s6865 + $0x28] sm:$0xff]
    %v6872 = vld [vmem:[%s6865 + $0x30] sm:$0xff]
    %v6873 = vld [vmem:[%s6865 + $0x38] sm:$0xff]
    %v6874 = vld [vmem:[%s6865 + $0x40] sm:$0xff]
    %v6875 = vld [vmem:[%s6865 + $0x48] sm:$0xff]
    %v6876 = vld [vmem:[%s6865 + $0x50] sm:$0xff]
    %v6877 = vld [vmem:[%s6865 + $0x58] sm:$0xff]
    %v6878 = vld [vmem:[%s6865 + $0x60] sm:$0xff]
    %v6879 = vld [vmem:[%s6865 + $0x68] sm:$0xff]
    %v6880 = vld [vmem:[%s6865 + $0x70] sm:$0xff]
    %v6881 = vld [vmem:[%s6865 + $0x78] sm:$0xff]
    %s6882 = scalar_lea.vmem %s5, 1
    %v6883 = vld [vmem:[%s6882] sm:$0x1]
    %v6885 = vlaneseq
    %v6886 = vshrl.u32 %v6885, 7
    %v6887 = vsub.s32 0, %v6886
    %v6888 = vrot.slane %v6883, %v6887
    %6890 = vmatprep.subr.mxu0 0.0
    %6891 = vmatpush1.msra.mxu0 %v6866
    %6892 = vmatprep.subr.mxu0 0.0
    %6893 = vmatpush1.msra.mxu0 %v6867
    %6894 = vmatprep.subr.mxu0 0.0
    %6895 = vmatpush1.msra.mxu0 %v6868
    %6896 = vmatprep.subr.mxu0 0.0
    %6897 = vmatpush1.msra.mxu0 %v6869
    %6898 = vmatprep.subr.mxu0 0.0
    %6899 = vmatpush1.msra.mxu0 %v6870
    %6900 = vmatprep.subr.mxu0 0.0
    %6901 = vmatpush1.msra.mxu0 %v6871
    %6902 = vmatprep.subr.mxu0 0.0
    %6903 = vmatpush1.msra.mxu0 %v6872
    %6904 = vmatprep.subr.mxu0 0.0
    %6905 = vmatpush1.msra.mxu0 %v6873
    %6906 = vmatprep.subr.mxu0 0.0
    %6907 = vmatpush1.msra.mxu0 %v6874
    %6908 = vmatprep.subr.mxu0 0.0
    %6909 = vmatpush1.msra.mxu0 %v6875
    %6910 = vmatprep.subr.mxu0 0.0
    %6911 = vmatpush1.msra.mxu0 %v6876
    %6912 = vmatprep.subr.mxu0 0.0
    %6913 = vmatpush1.msra.mxu0 %v6877
    %6914 = vmatprep.subr.mxu0 0.0
    %6915 = vmatpush1.msra.mxu0 %v6878
    %6916 = vmatprep.subr.mxu0 0.0
    %6917 = vmatpush1.msra.mxu0 %v6879
    %6918 = vmatprep.subr.mxu0 0.0
    %6919 = vmatpush1.msra.mxu0 %v6880
    %6920 = vmatprep.subr.mxu0 0.0
    %6921 = vmatpush1.msra.mxu0 %v6881
    %6922 = vmatprep.subr.mxu0 0.0
    %6923 = vmatpush1.msra.mxu0 0.0
    %6924 = vmatprep.subr.mxu0 0.0
    %6925 = vmatpush1.msra.mxu0 0.0
    %6926 = vmatprep.subr.mxu0 0.0
    %6927 = vmatpush1.msra.mxu0 0.0
    %6928 = vmatprep.subr.mxu0 0.0
    %6929 = vmatpush1.msra.mxu0 0.0
    %6930 = vmatprep.subr.mxu0 0.0
    %6931 = vmatpush1.msra.mxu0 0.0
    %6932 = vmatprep.subr.mxu0 0.0
    %6933 = vmatpush1.msra.mxu0 0.0
    %6934 = vmatprep.subr.mxu0 0.0
    %6935 = vmatpush1.msra.mxu0 0.0
    %6936 = vmatprep.subr.mxu0 0.0
    %6937 = vmatpush1.msra.mxu0 0.0
    %6938 = vmatprep.subr.mxu0 0.0
    %6939 = vmatpush1.msra.mxu0 0.0
    %6940 = vmatprep.subr.mxu0 0.0
    %6941 = vmatpush1.msra.mxu0 0.0
    %6942 = vmatprep.subr.mxu0 0.0
    %6943 = vmatpush1.msra.mxu0 0.0
    %6944 = vmatprep.subr.mxu0 0.0
    %6945 = vmatpush1.msra.mxu0 0.0
    %6946 = vmatprep.subr.mxu0 0.0
    %6947 = vmatpush1.msra.mxu0 0.0
    %6948 = vmatprep.subr.mxu0 0.0
    %6949 = vmatpush1.msra.mxu0 0.0
    %6950 = vmatprep.subr.mxu0 0.0
    %6951 = vmatpush1.msra.mxu0 0.0
    %6952 = vmatprep.subr.mxu0 0.0
    %6953 = vmatpush1.msra.mxu0 0.0
    %6954 = vmatprep.mubr.f32.mxu0 0.0
    %6955 = vmatmul.mubr.f32.gmra.mrb[0].mxu0 %v6861
    %v6956 = vpop.f32.mrb[0].mxu0
    %v6957 = vadd.f32 %v6888, %v6956
    %v6958 = vpop.f32.mrb[0].mxu0
    %6959 = vmatprep.mubr.f32.mxu0 0.0
    %6960 = vmatmul.mubr.f32.gmra.mrb[0].mxu0 %v6862
    %v6961 = vpop.f32.mrb[0].mxu0
    %v6962 = vadd.f32 %v6888, %v6961
    %v6963 = vpop.f32.mrb[0].mxu0
    %6964 = vmatprep.mubr.f32.mxu0 0.0
    %6965 = vmatmul.mubr.f32.gmra.mrb[0].mxu0 %v6863
    %v6966 = vpop.f32.mrb[0].mxu0
    %v6967 = vadd.f32 %v6888, %v6966
    %v6968 = vpop.f32.mrb[0].mxu0
    %6969 = vmatprep.mubr.f32.mxu0 0.0
    %6970 = vmatmul.mubr.f32.gmra.mrb[0].mxu0 %v6864
    %v6971 = vpop.f32.mrb[0].mxu0
    %v6972 = vadd.f32 %v6888, %v6971
    %v6973 = vpop.f32.mrb[0].mxu0
    %6974 = vdwg.mxu0
    %v6975 = vadd.f32 %v6957, %v3734
    %v6976 = vadd.f32 %v6962, %v3735
    %v6977 = vadd.f32 %v6967, %v3736
    %v6978 = vadd.f32 %v6972, %v3737
    %s6979 = scalar_lea.vmem %s10, 1
    %v6980 = vld [vmem:[%s6979] sm:$0x1]
    %s6981 = scalar_lea.vmem %s11, 1
    %v6982 = vld [vmem:[%s6981] sm:$0x1]
    %6983 = vadd.xlane.f32.xlu0 %v6975
    %v6984 = vpop.xlane.xlu0 %6983
    %6985 = vadd.xlane.f32.xlu0 %v6976
    %v6986 = vpop.xlane.xlu0 %6985
    %6987 = vadd.xlane.f32.xlu0 %v6977
    %v6988 = vpop.xlane.xlu0 %6987
    %6989 = vadd.xlane.f32.xlu0 %v6978
    %v6990 = vpop.xlane.xlu0 %6989
    %v6991 = vmul.f32 %v6984, %v3346
    %v6992 = vmul.f32 %v6986, %v3346
    %v6993 = vmul.f32 %v6988, %v3346
    %v6994 = vmul.f32 %v6990, %v3346
    %v6995 = vsub.f32 %v6975, %v6991
    %v6996 = vsub.f32 %v6976, %v6992
    %v6997 = vsub.f32 %v6977, %v6993
    %v6998 = vsub.f32 %v6978, %v6994
    %v6999 = vmul.f32 %v6995, %v6995
    %v7000 = vmul.f32 %v6996, %v6996
    %v7001 = vmul.f32 %v6997, %v6997
    %v7002 = vmul.f32 %v6998, %v6998
    %7003 = vadd.xlane.f32.xlu0 %v6999
    %v7004 = vpop.xlane.xlu0 %7003
    %7005 = vadd.xlane.f32.xlu0 %v7000
    %v7006 = vpop.xlane.xlu0 %7005
    %7007 = vadd.xlane.f32.xlu0 %v7001
    %v7008 = vpop.xlane.xlu0 %7007
    %7009 = vadd.xlane.f32.xlu0 %v7002
    %v7010 = vpop.xlane.xlu0 %7009
    %v7011 = vmul.f32 %v7004, %v3346
    %v7012 = vmul.f32 %v7006, %v3346
    %v7013 = vmul.f32 %v7008, %v3346
    %v7014 = vmul.f32 %v7010, %v3346
    %v7015 = vadd.f32 %v7011, 1e-05
    %v7016 = vadd.f32 %v7012, 1e-05
    %v7017 = vadd.f32 %v7013, 1e-05
    %v7018 = vadd.f32 %v7014, 1e-05
    %v7019 = vrsqrt.pop %v7015
    %v7020 = vrsqrt.pop %v7016
    %v7021 = vrsqrt.pop %v7017
    %v7022 = vrsqrt.pop %v7018
    %v7023 = vmul.f32 %v6995, %v7019
    %v7024 = vmul.f32 %v6996, %v7020
    %v7025 = vmul.f32 %v6997, %v7021
    %v7026 = vmul.f32 %v6998, %v7022
    %v7028 = vlaneseq
    %v7029 = vshrl.u32 %v7028, 7
    %v7030 = vsub.s32 0, %v7029
    %v7031 = vrot.slane %v6980, %v7030
    %v7033 = vmul.f32 %v7023, %v7031
    %v7034 = vmul.f32 %v7024, %v7031
    %v7035 = vmul.f32 %v7025, %v7031
    %v7036 = vmul.f32 %v7026, %v7031
    %v7038 = vlaneseq
    %v7039 = vshrl.u32 %v7038, 7
    %v7040 = vsub.s32 0, %v7039
    %v7041 = vrot.slane %v6982, %v7040
    %v7043 = vadd.f32 %v7033, %v7041
    %v7044 = vadd.f32 %v7034, %v7041
    %v7045 = vadd.f32 %v7035, %v7041
    %v7046 = vadd.f32 %v7036, %v7041
    %s7047 = scalar_lea.vmem %s6, 256
    %v7048 = vld [vmem:[%s7047] sm:$0xff]
    %v7049 = vld [vmem:[%s7047 + $0x8] sm:$0xff]
    %v7050 = vld [vmem:[%s7047 + $0x10] sm:$0xff]
    %v7051 = vld [vmem:[%s7047 + $0x18] sm:$0xff]
    %v7052 = vld [vmem:[%s7047 + $0x20] sm:$0xff]
    %v7053 = vld [vmem:[%s7047 + $0x28] sm:$0xff]
    %v7054 = vld [vmem:[%s7047 + $0x30] sm:$0xff]
    %v7055 = vld [vmem:[%s7047 + $0x38] sm:$0xff]
    %v7056 = vld [vmem:[%s7047 + $0x40] sm:$0xff]
    %v7057 = vld [vmem:[%s7047 + $0x48] sm:$0xff]
    %v7058 = vld [vmem:[%s7047 + $0x50] sm:$0xff]
    %v7059 = vld [vmem:[%s7047 + $0x58] sm:$0xff]
    %v7060 = vld [vmem:[%s7047 + $0x60] sm:$0xff]
    %v7061 = vld [vmem:[%s7047 + $0x68] sm:$0xff]
    %v7062 = vld [vmem:[%s7047 + $0x70] sm:$0xff]
    %v7063 = vld [vmem:[%s7047 + $0x78] sm:$0xff]
    %v7064 = vld [vmem:[%s7047 + $0x80] sm:$0xff]
    %v7065 = vld [vmem:[%s7047 + $0x88] sm:$0xff]
    %v7066 = vld [vmem:[%s7047 + $0x90] sm:$0xff]
    %v7067 = vld [vmem:[%s7047 + $0x98] sm:$0xff]
    %v7068 = vld [vmem:[%s7047 + $0xa0] sm:$0xff]
    %v7069 = vld [vmem:[%s7047 + $0xa8] sm:$0xff]
    %v7070 = vld [vmem:[%s7047 + $0xb0] sm:$0xff]
    %v7071 = vld [vmem:[%s7047 + $0xb8] sm:$0xff]
    %v7072 = vld [vmem:[%s7047 + $0xc0] sm:$0xff]
    %v7073 = vld [vmem:[%s7047 + $0xc8] sm:$0xff]
    %v7074 = vld [vmem:[%s7047 + $0xd0] sm:$0xff]
    %v7075 = vld [vmem:[%s7047 + $0xd8] sm:$0xff]
    %v7076 = vld [vmem:[%s7047 + $0xe0] sm:$0xff]
    %v7077 = vld [vmem:[%s7047 + $0xe8] sm:$0xff]
    %v7078 = vld [vmem:[%s7047 + $0xf0] sm:$0xff]
    %v7079 = vld [vmem:[%s7047 + $0xf8] sm:$0xff]
    %s7080 = scalar_lea.vmem %s7, 2
    %v7081 = vld [vmem:[%s7080] sm:$0x3]
    %v7083 = vlaneseq
    %v7084 = vshrl.u32 %v7083, 7
    %v7085 = vsub.s32 0, %v7084
    %v7086 = vrot.slane %v7081, %v7085
    %v7087 = vlaneseq
    %v7088 = vshrl.u32 %v7087, 7
    %v7089 = vsub.s32 1, %v7088
    %v7090 = vrot.slane %v7081, %v7089
    %7093 = vmatprep.subr.mxu0 %v7049
    %7094 = vmatpush1.msra.mxu0 %v7048
    %7095 = vmatprep.subr.mxu0 %v7051
    %7096 = vmatpush1.msra.mxu0 %v7050
    %7097 = vmatprep.subr.mxu0 %v7053
    %7098 = vmatpush1.msra.mxu0 %v7052
    %7099 = vmatprep.subr.mxu0 %v7055
    %7100 = vmatpush1.msra.mxu0 %v7054
    %7101 = vmatprep.subr.mxu0 %v7057
    %7102 = vmatpush1.msra.mxu0 %v7056
    %7103 = vmatprep.subr.mxu0 %v7059
    %7104 = vmatpush1.msra.mxu0 %v7058
    %7105 = vmatprep.subr.mxu0 %v7061
    %7106 = vmatpush1.msra.mxu0 %v7060
    %7107 = vmatprep.subr.mxu0 %v7063
    %7108 = vmatpush1.msra.mxu0 %v7062
    %7109 = vmatprep.subr.mxu0 %v7065
    %7110 = vmatpush1.msra.mxu0 %v7064
    %7111 = vmatprep.subr.mxu0 %v7067
    %7112 = vmatpush1.msra.mxu0 %v7066
    %7113 = vmatprep.subr.mxu0 %v7069
    %7114 = vmatpush1.msra.mxu0 %v7068
    %7115 = vmatprep.subr.mxu0 %v7071
    %7116 = vmatpush1.msra.mxu0 %v7070
    %7117 = vmatprep.subr.mxu0 %v7073
    %7118 = vmatpush1.msra.mxu0 %v7072
    %7119 = vmatprep.subr.mxu0 %v7075
    %7120 = vmatpush1.msra.mxu0 %v7074
    %7121 = vmatprep.subr.mxu0 %v7077
    %7122 = vmatpush1.msra.mxu0 %v7076
    %7123 = vmatprep.subr.mxu0 %v7079
    %7124 = vmatpush1.msra.mxu0 %v7078
    %7125 = vmatprep.subr.mxu0 0.0
    %7126 = vmatpush1.msra.mxu0 0.0
    %7127 = vmatprep.subr.mxu0 0.0
    %7128 = vmatpush1.msra.mxu0 0.0
    %7129 = vmatprep.subr.mxu0 0.0
    %7130 = vmatpush1.msra.mxu0 0.0
    %7131 = vmatprep.subr.mxu0 0.0
    %7132 = vmatpush1.msra.mxu0 0.0
    %7133 = vmatprep.subr.mxu0 0.0
    %7134 = vmatpush1.msra.mxu0 0.0
    %7135 = vmatprep.subr.mxu0 0.0
    %7136 = vmatpush1.msra.mxu0 0.0
    %7137 = vmatprep.subr.mxu0 0.0
    %7138 = vmatpush1.msra.mxu0 0.0
    %7139 = vmatprep.subr.mxu0 0.0
    %7140 = vmatpush1.msra.mxu0 0.0
    %7141 = vmatprep.subr.mxu0 0.0
    %7142 = vmatpush1.msra.mxu0 0.0
    %7143 = vmatprep.subr.mxu0 0.0
    %7144 = vmatpush1.msra.mxu0 0.0
    %7145 = vmatprep.subr.mxu0 0.0
    %7146 = vmatpush1.msra.mxu0 0.0
    %7147 = vmatprep.subr.mxu0 0.0
    %7148 = vmatpush1.msra.mxu0 0.0
    %7149 = vmatprep.subr.mxu0 0.0
    %7150 = vmatpush1.msra.mxu0 0.0
    %7151 = vmatprep.subr.mxu0 0.0
    %7152 = vmatpush1.msra.mxu0 0.0
    %7153 = vmatprep.subr.mxu0 0.0
    %7154 = vmatpush1.msra.mxu0 0.0
    %7155 = vmatprep.subr.mxu0 0.0
    %7156 = vmatpush1.msra.mxu0 0.0
    %7157 = vmatprep.mubr.f32.mxu0 0.0
    %7158 = vmatmul.mubr.f32.gmra.mrb[0].mxu0 %v7043
    %v7159 = vpop.f32.mrb[0].mxu0
    %v7160 = vadd.f32 %v7086, %v7159
    %v7161 = vpop.f32.mrb[0].mxu0
    %v7162 = vadd.f32 %v7090, %v7161
    %7163 = vmatprep.mubr.f32.mxu0 0.0
    %7164 = vmatmul.mubr.f32.gmra.mrb[0].mxu0 %v7044
    %v7165 = vpop.f32.mrb[0].mxu0
    %v7166 = vadd.f32 %v7086, %v7165
    %v7167 = vpop.f32.mrb[0].mxu0
    %v7168 = vadd.f32 %v7090, %v7167
    %7169 = vmatprep.mubr.f32.mxu0 0.0
    %7170 = vmatmul.mubr.f32.gmra.mrb[0].mxu0 %v7045
    %v7171 = vpop.f32.mrb[0].mxu0
    %v7172 = vadd.f32 %v7086, %v7171
    %v7173 = vpop.f32.mrb[0].mxu0
    %v7174 = vadd.f32 %v7090, %v7173
    %7175 = vmatprep.mubr.f32.mxu0 0.0
    %7176 = vmatmul.mubr.f32.gmra.mrb[0].mxu0 %v7046
    %v7177 = vpop.f32.mrb[0].mxu0
    %v7178 = vadd.f32 %v7086, %v7177
    %v7179 = vpop.f32.mrb[0].mxu0
    %v7180 = vadd.f32 %v7090, %v7179
    %7181 = vdwg.mxu0
    %v7182 = vmax.f32 %v7160, 0.0
    %v7183 = vmax.f32 %v7162, 0.0
    %v7184 = vmax.f32 %v7166, 0.0
    %v7185 = vmax.f32 %v7168, 0.0
    %v7186 = vmax.f32 %v7172, 0.0
    %v7187 = vmax.f32 %v7174, 0.0
    %v7188 = vmax.f32 %v7178, 0.0
    %v7189 = vmax.f32 %v7180, 0.0
    %s7190 = scalar_lea.vmem [#allocation5], 256
    %v7191 = vld [vmem:[%s7190] sm:$0xff]
    %v7192 = vld [vmem:[%s7190 + $0x8] sm:$0xff]
    %v7193 = vld [vmem:[%s7190 + $0x10] sm:$0xff]
    %v7194 = vld [vmem:[%s7190 + $0x18] sm:$0xff]
    %v7195 = vld [vmem:[%s7190 + $0x20] sm:$0xff]
    %v7196 = vld [vmem:[%s7190 + $0x28] sm:$0xff]
    %v7197 = vld [vmem:[%s7190 + $0x30] sm:$0xff]
    %v7198 = vld [vmem:[%s7190 + $0x38] sm:$0xff]
    %v7199 = vld [vmem:[%s7190 + $0x40] sm:$0xff]
    %v7200 = vld [vmem:[%s7190 + $0x48] sm:$0xff]
    %v7201 = vld [vmem:[%s7190 + $0x50] sm:$0xff]
    %v7202 = vld [vmem:[%s7190 + $0x58] sm:$0xff]
    %v7203 = vld [vmem:[%s7190 + $0x60] sm:$0xff]
    %v7204 = vld [vmem:[%s7190 + $0x68] sm:$0xff]
    %v7205 = vld [vmem:[%s7190 + $0x70] sm:$0xff]
    %v7206 = vld [vmem:[%s7190 + $0x78] sm:$0xff]
    %v7207 = vld [vmem:[%s7190 + $0x80] sm:$0xff]
    %v7208 = vld [vmem:[%s7190 + $0x88] sm:$0xff]
    %v7209 = vld [vmem:[%s7190 + $0x90] sm:$0xff]
    %v7210 = vld [vmem:[%s7190 + $0x98] sm:$0xff]
    %v7211 = vld [vmem:[%s7190 + $0xa0] sm:$0xff]
    %v7212 = vld [vmem:[%s7190 + $0xa8] sm:$0xff]
    %v7213 = vld [vmem:[%s7190 + $0xb0] sm:$0xff]
    %v7214 = vld [vmem:[%s7190 + $0xb8] sm:$0xff]
    %v7215 = vld [vmem:[%s7190 + $0xc0] sm:$0xff]
    %v7216 = vld [vmem:[%s7190 + $0xc8] sm:$0xff]
    %v7217 = vld [vmem:[%s7190 + $0xd0] sm:$0xff]
    %v7218 = vld [vmem:[%s7190 + $0xd8] sm:$0xff]
    %v7219 = vld [vmem:[%s7190 + $0xe0] sm:$0xff]
    %v7220 = vld [vmem:[%s7190 + $0xe8] sm:$0xff]
    %v7221 = vld [vmem:[%s7190 + $0xf0] sm:$0xff]
    %v7222 = vld [vmem:[%s7190 + $0xf8] sm:$0xff]
    %s7223 = scalar_lea.vmem %s9, 1
    %v7224 = vld [vmem:[%s7223] sm:$0x1]
    %v7226 = vlaneseq
    %v7227 = vshrl.u32 %v7226, 7
    %v7228 = vsub.s32 0, %v7227
    %v7229 = vrot.slane %v7224, %v7228
    %7231 = vmatprep.subr.mxu0 0.0
    %7232 = vmatpush1.msra.mxu0 %v7191
    %7233 = vmatprep.subr.mxu0 0.0
    %7234 = vmatpush1.msra.mxu0 %v7192
    %7235 = vmatprep.subr.mxu0 0.0
    %7236 = vmatpush1.msra.mxu0 %v7193
    %7237 = vmatprep.subr.mxu0 0.0
    %7238 = vmatpush1.msra.mxu0 %v7194
    %7239 = vmatprep.subr.mxu0 0.0
    %7240 = vmatpush1.msra.mxu0 %v7195
    %7241 = vmatprep.subr.mxu0 0.0
    %7242 = vmatpush1.msra.mxu0 %v7196
    %7243 = vmatprep.subr.mxu0 0.0
    %7244 = vmatpush1.msra.mxu0 %v7197
    %7245 = vmatprep.subr.mxu0 0.0
    %7246 = vmatpush1.msra.mxu0 %v7198
    %7247 = vmatprep.subr.mxu0 0.0
    %7248 = vmatpush1.msra.mxu0 %v7199
    %7249 = vmatprep.subr.mxu0 0.0
    %7250 = vmatpush1.msra.mxu0 %v7200
    %7251 = vmatprep.subr.mxu0 0.0
    %7252 = vmatpush1.msra.mxu0 %v7201
    %7253 = vmatprep.subr.mxu0 0.0
    %7254 = vmatpush1.msra.mxu0 %v7202
    %7255 = vmatprep.subr.mxu0 0.0
    %7256 = vmatpush1.msra.mxu0 %v7203
    %7257 = vmatprep.subr.mxu0 0.0
    %7258 = vmatpush1.msra.mxu0 %v7204
    %7259 = vmatprep.subr.mxu0 0.0
    %7260 = vmatpush1.msra.mxu0 %v7205
    %7261 = vmatprep.subr.mxu0 0.0
    %7262 = vmatpush1.msra.mxu0 %v7206
    %7263 = vmatprep.subr.mxu0 0.0
    %7264 = vmatpush1.msra.mxu0 %v7207
    %7265 = vmatprep.subr.mxu0 0.0
    %7266 = vmatpush1.msra.mxu0 %v7208
    %7267 = vmatprep.subr.mxu0 0.0
    %7268 = vmatpush1.msra.mxu0 %v7209
    %7269 = vmatprep.subr.mxu0 0.0
    %7270 = vmatpush1.msra.mxu0 %v7210
    %7271 = vmatprep.subr.mxu0 0.0
    %7272 = vmatpush1.msra.mxu0 %v7211
    %7273 = vmatprep.subr.mxu0 0.0
    %7274 = vmatpush1.msra.mxu0 %v7212
    %7275 = vmatprep.subr.mxu0 0.0
    %7276 = vmatpush1.msra.mxu0 %v7213
    %7277 = vmatprep.subr.mxu0 0.0
    %7278 = vmatpush1.msra.mxu0 %v7214
    %7279 = vmatprep.subr.mxu0 0.0
    %7280 = vmatpush1.msra.mxu0 %v7215
    %7281 = vmatprep.subr.mxu0 0.0
    %7282 = vmatpush1.msra.mxu0 %v7216
    %7283 = vmatprep.subr.mxu0 0.0
    %7284 = vmatpush1.msra.mxu0 %v7217
    %7285 = vmatprep.subr.mxu0 0.0
    %7286 = vmatpush1.msra.mxu0 %v7218
    %7287 = vmatprep.subr.mxu0 0.0
    %7288 = vmatpush1.msra.mxu0 %v7219
    %7289 = vmatprep.subr.mxu0 0.0
    %7290 = vmatpush1.msra.mxu0 %v7220
    %7291 = vmatprep.subr.mxu0 0.0
    %7292 = vmatpush1.msra.mxu0 %v7221
    %7293 = vmatprep.subr.mxu0 0.0
    %7294 = vmatpush1.msra.mxu0 %v7222
    %7295 = vmatprep.mubr.f32.mxu0 %v7183
    %7296 = vmatmul.mubr.f32.gmra.mrb[0].mxu0 %v7182
    %v7297 = vpop.f32.mrb[0].mxu0
    %v7298 = vadd.f32 %v7229, %v7297
    %v7299 = vpop.f32.mrb[0].mxu0
    %7300 = vmatprep.mubr.f32.mxu0 %v7185
    %7301 = vmatmul.mubr.f32.gmra.mrb[0].mxu0 %v7184
    %v7302 = vpop.f32.mrb[0].mxu0
    %v7303 = vadd.f32 %v7229, %v7302
    %v7304 = vpop.f32.mrb[0].mxu0
    %7305 = vmatprep.mubr.f32.mxu0 %v7187
    %7306 = vmatmul.mubr.f32.gmra.mrb[0].mxu0 %v7186
    %v7307 = vpop.f32.mrb[0].mxu0
    %v7308 = vadd.f32 %v7229, %v7307
    %v7309 = vpop.f32.mrb[0].mxu0
    %7310 = vmatprep.mubr.f32.mxu0 %v7189
    %7311 = vmatmul.mubr.f32.gmra.mrb[0].mxu0 %v7188
    %v7312 = vpop.f32.mrb[0].mxu0
    %v7313 = vadd.f32 %v7229, %v7312
    %v7314 = vpop.f32.mrb[0].mxu0
    %7315 = vdwg.mxu0
    %v7316 = vadd.f32 %v7298, %v7043
    %v7317 = vadd.f32 %v7303, %v7044
    %v7318 = vadd.f32 %v7308, %v7045
    %v7319 = vadd.f32 %v7313, %v7046
    %s7320 = scalar_lea.vmem %s12, 1
    %v7321 = vld [vmem:[%s7320] sm:$0x1]
    %s7322 = scalar_lea.vmem %s13, 1
    %v7323 = vld [vmem:[%s7322] sm:$0x1]
    %7324 = vadd.xlane.f32.xlu0 %v7316
    %v7325 = vpop.xlane.xlu0 %7324
    %7326 = vadd.xlane.f32.xlu0 %v7317
    %v7327 = vpop.xlane.xlu0 %7326
    %7328 = vadd.xlane.f32.xlu0 %v7318
    %v7329 = vpop.xlane.xlu0 %7328
    %7330 = vadd.xlane.f32.xlu0 %v7319
    %v7331 = vpop.xlane.xlu0 %7330
    %v7332 = vmul.f32 %v7325, %v3346
    %v7333 = vmul.f32 %v7327, %v3346
    %v7334 = vmul.f32 %v7329, %v3346
    %v7335 = vmul.f32 %v7331, %v3346
    %v7336 = vsub.f32 %v7316, %v7332
    %v7337 = vsub.f32 %v7317, %v7333
    %v7338 = vsub.f32 %v7318, %v7334
    %v7339 = vsub.f32 %v7319, %v7335
    %v7340 = vmul.f32 %v7336, %v7336
    %v7341 = vmul.f32 %v7337, %v7337
    %v7342 = vmul.f32 %v7338, %v7338
    %v7343 = vmul.f32 %v7339, %v7339
    %7344 = vadd.xlane.f32.xlu0 %v7340
    %v7345 = vpop.xlane.xlu0 %7344
    %7346 = vadd.xlane.f32.xlu0 %v7341
    %v7347 = vpop.xlane.xlu0 %7346
    %7348 = vadd.xlane.f32.xlu0 %v7342
    %v7349 = vpop.xlane.xlu0 %7348
    %7350 = vadd.xlane.f32.xlu0 %v7343
    %v7351 = vpop.xlane.xlu0 %7350
    %v7352 = vmul.f32 %v7345, %v3346
    %v7353 = vmul.f32 %v7347, %v3346
    %v7354 = vmul.f32 %v7349, %v3346
    %v7355 = vmul.f32 %v7351, %v3346
    %v7356 = vadd.f32 %v7352, 1e-05
    %v7357 = vadd.f32 %v7353, 1e-05
    %v7358 = vadd.f32 %v7354, 1e-05
    %v7359 = vadd.f32 %v7355, 1e-05
    %v7360 = vrsqrt.pop %v7356
    %v7361 = vrsqrt.pop %v7357
    %v7362 = vrsqrt.pop %v7358
    %v7363 = vrsqrt.pop %v7359
    %v7364 = vmul.f32 %v7336, %v7360
    %v7365 = vmul.f32 %v7337, %v7361
    %v7366 = vmul.f32 %v7338, %v7362
    %v7367 = vmul.f32 %v7339, %v7363
    %v7369 = vlaneseq
    %v7370 = vshrl.u32 %v7369, 7
    %v7371 = vsub.s32 0, %v7370
    %v7372 = vrot.slane %v7321, %v7371
    %v7374 = vmul.f32 %v7364, %v7372
    %v7375 = vmul.f32 %v7365, %v7372
    %v7376 = vmul.f32 %v7366, %v7372
    %v7377 = vmul.f32 %v7367, %v7372
    %v7379 = vlaneseq
    %v7380 = vshrl.u32 %v7379, 7
    %v7381 = vsub.s32 0, %v7380
    %v7382 = vrot.slane %v7323, %v7381
    %v7384 = vadd.f32 %v7374, %v7382
    %v7385 = vadd.f32 %v7375, %v7382
    %v7386 = vadd.f32 %v7376, %v7382
    %v7387 = vadd.f32 %v7377, %v7382
    %7388 = vst [vmem:[#allocation7] sm:$0xff] %v7384
    %7389 = vst [vmem:[#allocation7 + $0x8] sm:$0xff] %v7385
    %7390 = vst [vmem:[#allocation7 + $0x10] sm:$0xff] %v7386
    %7391 = vst [vmem:[#allocation7 + $0x18] sm:$0xff] %v7387
    // Predicated region
    $region66: #{encoder_forward.1} parent=1 // pred_check
      _
    $region67: #{encoder_forward.1} parent=1 // pred_check_branch
      %7393 = sbr.rel (0) target = $region69
    $region68: #{encoder_forward.1} parent=1 // pred_region
      %s7395 = ssub.s32 512, 512
      %7396 = vsyncadd [#allocation4], %s7395
      %s7397 = sshll.u32 [#allocation7], 4
      %s7398 = int_to_ptr.vmem [resolvable:$true] %s7397
      %7403 = dma.vmem_to_hbm [thread:$0]  %s7398, 512, %s14, [#allocation4], 128, 128, 8
    $region69: #{encoder_forward.1} parent=1 // pred_fallthru
      _
    // Predicated region
    $region70: #{encoder_forward.1} parent=1 // pred_check
      _
    $region71: #{encoder_forward.1} parent=1 // pred_check_branch
      %7405 = sbr.rel (0) target = $region73
    $region72: #{encoder_forward.1} parent=1 // pred_region
      %7406 = dma.done [#allocation4], 512
    $region73: #{encoder_forward.1} parent=1 // pred_fallthru
      _
    %7407 = vsyncpa [#allocation3], 1
    %7408 = vsyncpa [#allocation6], 1
    %7409 = vsyncpa [#allocation4], 1

</llo_original>
